<compile_context>
chip_gen: v7x
topology: tpu7x:2x2x1
jax: 0.10.0
libtpu: 0.0.40
codegen_flags: <defaults>
</compile_context>

<pallas_src>
import math
import numpy as np

import jax
import jax.numpy as jnp
from jax.experimental import pallas as pl
from jax.experimental.pallas import tpu as pltpu

# ----------------------------- problem sizes ------------------------------
B, H, W = 2, 16, 16            # batch, spatial
CIN, C, COUT = 1, 25, 2        # conv0 input chans, hidden chans, readout chans
K0, PAD0 = 7, 3                # conv0 kernel / padding (fixed by the module)
K, PADK = 5, 2                 # filt_size (constructor arg; small for demo)
T = 8                          # timesteps
EPS = 1e-3                     # BatchNorm eps (module uses eps=0.001)
R = B * H * W                  # flattened spatial size (lane axis) = 512
INV_R = 1.0 / R

KK = K * K                     # 25 recurrent-conv taps
CB = 32                        # per-tap channel block (25 padded, 8/16-aligned)
K0K0 = K0 * K0                 # 49 stem taps
K0P = 56                       # 49 padded up to a multiple of 8

# loop-invariant per-channel params, broadcast once to (C, R) in VMEM scratch
(P_ALPHA, P_MU, P_KAPPA, P_GAMMA, P_W, P_U1B, P_U2B) = range(7)
N_LOOP = 7
# per-channel params kept as (C, 1) and folded into per-channel scalars
(S_BN1G, S_BN3G, S_FBNG, S_FBNB, S_B0) = range(5)
N_SMALL = 5

# static lane-roll amount per recurrent-conv tap t = dy*K + dx:
#   rolled[p] = v[(p + (dy-PADK)*W + (dx-PADK)) mod R]   (np.roll semantics)
SHIFTS = [((PADK - dy) * W + (PADK - dx)) % R
          for dy in range(K) for dx in range(K)]


def _tap_masks_np():
    """(KK, R) 0/1 masks: 1 where tap (dy, dx) reads an in-bounds pixel."""
    p = np.arange(R)
    y = (p % (H * W)) // W
    x = p % W
    m = np.zeros((KK, R), np.float32)
    for t in range(KK):
        dy, dx = t // K, t % K
        ok = ((y + dy - PADK >= 0) & (y + dy - PADK < H) &
              (x + dx - PADK >= 0) & (x + dx - PADK < W))
        m[t] = ok.astype(np.float32)
    return m


_MASKS_NP = _tap_masks_np()
# taps whose mask is all-ones (the interior/center tap): skip the mask multiply
FULL_TAP = [bool(_MASKS_NP[t].all()) for t in range(KK)]


def _softplus(v):
    # stable softplus, matches F.softplus numerically.  (log1p gives no extra
    # accuracy here: the log argument is in (1, 2].)  EUP exp + EUP log.
    return jnp.maximum(v, 0.0) + jnp.log(1.0 + jnp.exp(-jnp.abs(v)))


# ------------------------------ the kernel --------------------------------
def hgru_kernel(x0col_ref, w0_ref, u1w_ref, u2w_ref, winh_ref, wexc_ref,
                maskk_ref, ploop_ref, psmall_ref, c6w_ref, c6b_ref,
                out_ref, xcol_ref, xfeat_ref, pbig_ref, h_ref):

    def sigmoid(v):
        # EUP exp + EUP approximate reciprocal: keeps the divide off the VALU.
        return pl.reciprocal(1.0 + jnp.exp(-v), approx=True)

    def bn(v, gamma, beta=None):
        # BatchNorm2d (track_running_stats=False): biased batch stats over
        # the lane axis (B*H*W).  One-pass variance so the two XLU reductions
        # are independent; 1/R, rsqrt and gamma fold into one (C, 1) scale.
        s1 = jnp.sum(v, axis=1, keepdims=True)
        s2 = jnp.sum(v * v, axis=1, keepdims=True)
        mean = s1 * INV_R
        var = s2 * INV_R - mean * mean
        scale = jax.lax.rsqrt(var + EPS) * gamma
        shift = -mean * scale if beta is None else beta - mean * scale
        return v * scale + shift

    def conv_hh(v, w_ref):
        # KxK (C->C) conv as ONE bf16 MXU matmul over an im2col scratch: each
        # tap is a static lane-roll of v (XLU), boundary-masked in f32 (VPU),
        # cast to bf16 on the store into an 8/16-aligned 32-row block.
        for t in range(KK):
            rolled = v if SHIFTS[t] == 0 else pltpu.roll(v, shift=SHIFTS[t],
                                                         axis=1)
            tap = rolled if FULL_TAP[t] else rolled * maskk_ref[t:t + 1, :]
            xcol_ref[t * CB:t * CB + C, :] = tap.astype(jnp.bfloat16)
        return jnp.dot(w_ref[...], xcol_ref[...],
                       preferred_element_type=jnp.float32)

    # ---------------- one-time prologue (off the recurrent path) ----------
    # (a) broadcast the 7 loop-invariant per-channel params to (C, R) ONCE
    for i in range(N_LOOP):
        pbig_ref[i] = jnp.broadcast_to(ploop_ref[i], (C, R))
    # (b) zero ONLY the channel-padding rows of the im2col scratch; the data
    #     rows are rewritten by every conv (padding rows must be initialised
    #     exactly once: 0-weight x NaN garbage would still poison the MXU sum).
    zpad = jnp.zeros((CB - C, R), jnp.bfloat16)
    for t in range(KK):
        xcol_ref[t * CB + C:(t + 1) * CB, :] = zpad
    # (c) stem: conv0 (7x7, 1->25, f32) + bias, then square (torch.pow(x, 2))
    x0 = jnp.dot(w0_ref[...], x0col_ref[...],
                 preferred_element_type=jnp.float32) + psmall_ref[S_B0]
    xfeat_ref[...] = x0 * x0
    # (d) h0 = 0
    h_ref[...] = jnp.zeros((C, R), jnp.float32)

    # ---------------- hConvGRUCell recurrence (T serial steps) ------------
    @pl.loop(0, T)
    def _(step):
        h = h_ref[...]
        g1 = sigmoid(jnp.dot(u1w_ref[...], h,
                             preferred_element_type=jnp.float32)
                     + pbig_ref[P_U1B])
        c1 = bn(conv_hh(h * g1, winh_ref), psmall_ref[S_BN1G])
        ns1 = _softplus(xfeat_ref[...]
                        - _softplus(c1 * (pbig_ref[P_ALPHA] * h
                                          + pbig_ref[P_MU])))
        g2 = sigmoid(jnp.dot(u2w_ref[...], ns1,
                             preferred_element_type=jnp.float32)
                     + pbig_ref[P_U2B])
        c2 = bn(conv_hh(ns1, wexc_ref), psmall_ref[S_BN3G])
        h2 = _softplus(pbig_ref[P_KAPPA] * ns1 + pbig_ref[P_GAMMA] * c2
                       + pbig_ref[P_W] * ns1 * c2)
        h_ref[...] = _softplus((1.0 - g2) * h + g2 * h2)

    # ---------------- readout: final BN + 1x1 conv (25 -> 2) --------------
    o = bn(h_ref[...], psmall_ref[S_FBNG], psmall_ref[S_FBNB])
    out_ref[...] = jnp.dot(c6w_ref[...], o,
                           preferred_element_type=jnp.float32) + c6b_ref[...]


# ------------------------------ JAX wrapper --------------------------------
def _kernel_inputs(x_nchw, P):
    # stem im2col (a pure layout transform of the input, done once in XLA)
    x = x_nchw[:, 0].astype(jnp.float32)                          # (B, H, W)
    xp = jnp.pad(x, ((0, 0), (PAD0, PAD0), (PAD0, PAD0)))
    cols = [xp[:, dy:dy + H, dx:dx + W].reshape(R)
            for dy in range(K0) for dx in range(K0)]
    x0col = jnp.pad(jnp.stack(cols, 0), ((0, K0P - K0K0), (0, 0)))  # (56, R)
    w0f = jnp.pad(P['w0'].reshape(C, K0K0), ((0, 0), (0, K0P - K0K0)))

    def flat_hh(w):     # (Co, Ci, K, K) -> (Co, KK*CB) bf16, contraction minor
        wt = jnp.transpose(w, (0, 2, 3, 1)).reshape(C, KK, C)
        wt = jnp.pad(wt, ((0, 0), (0, 0), (0, CB - C))).reshape(C, KK * CB)
        return wt.astype(jnp.bfloat16)

    def col(v):         # (C,) -> (C, 1); lane broadcast happens in-kernel
        return v.reshape(C, 1)

    ploop = jnp.stack([col(P['alpha']), col(P['mu']), col(P['kappa']),
                       col(P['gam']), col(P['wv']),
                       col(P['u1b']), col(P['u2b'])], 0)            # (7, C, 1)
    psmall = jnp.stack([col(P['bn1_g']), col(P['bn3_g']),
                        col(P['fbn_g']), col(P['fbn_b']),
                        col(P['b0'])], 0)                           # (5, C, 1)
    maskk = jnp.asarray(_MASKS_NP)                                  # (KK, R)
    c6w = P['c6w'].reshape(COUT, C)
    c6b = P['c6b'].reshape(COUT, 1)
    return (x0col, w0f, P['u1w'], P['u2w'], flat_hh(P['w_inh']),
            flat_hh(P['w_exc']), maskk, ploop, psmall, c6w, c6b)


def run_pallas(x_nchw, P):
    args = _kernel_inputs(x_nchw, P)
    vspec = pl.BlockSpec(memory_space=pltpu.MemorySpace.VMEM)
    # Gridless single program: the whole problem (~2.5 MiB) is VMEM-resident.
    # TODO(synk): on v7x (2 TCs/chip) a leading "parallel" grid axis over
    # independent samples would occupy the second core; this single instance
    # is not split because the BatchNorm stats span the full B*H*W.
    out_flat = pl.pallas_call(
        hgru_kernel,
        out_shape=jax.ShapeDtypeStruct((COUT, R), jnp.float32),
        in_specs=[vspec] * len(args),
        out_specs=vspec,
        scratch_shapes=[
            pltpu.VMEM((KK * CB, R), jnp.bfloat16),   # im2col scratch (800,512)
            pltpu.VMEM((C, R), jnp.float32),          # xfeat = (conv0(x)+b)^2
            pltpu.VMEM((N_LOOP, C, R), jnp.float32),  # loop params, pre-bcast
            pltpu.VMEM((C, R), jnp.float32),          # hidden state h
        ],
    )(*args)
    return jnp.transpose(out_flat.reshape(COUT, B, H, W), (1, 0, 2, 3))  # NCHW


# --------------------------- pure-JAX reference ----------------------------
def run_reference(x_nchw, P):
    x = jnp.transpose(x_nchw, (0, 2, 3, 1)).astype(jnp.float32)   # NHWC
    w0_hwio = jnp.transpose(P['w0'], (2, 3, 1, 0))
    winh_hwio = jnp.transpose(P['w_inh'], (2, 3, 1, 0))
    wexc_hwio = jnp.transpose(P['w_exc'], (2, 3, 1, 0))

    def conv(inp, w, pad):
        return jax.lax.conv_general_dilated(
            inp, w, (1, 1), [(pad, pad), (pad, pad)],
            dimension_numbers=('NHWC', 'HWIO', 'NHWC'))

    def bn(v, g, b):
        m = jnp.mean(v, axis=(0, 1, 2), keepdims=True)
        var = jnp.mean((v - m) ** 2, axis=(0, 1, 2), keepdims=True)
        return (v - m) * jax.lax.rsqrt(var + EPS) * g + b

    sigmoid = jax.nn.sigmoid
    xf = conv(x, w0_hwio, PAD0) + P['b0']
    xf = xf * xf
    h = jnp.zeros_like(xf)
    for _ in range(T):
        g1 = sigmoid(h @ P['u1w'].T + P['u1b'])
        c1 = bn(conv(h * g1, winh_hwio, PADK), P['bn1_g'], 0.0)
        ns1 = _softplus(xf - _softplus(c1 * (P['alpha'] * h + P['mu'])))
        g2 = sigmoid(ns1 @ P['u2w'].T + P['u2b'])
        c2 = bn(conv(ns1, wexc_hwio, PADK), P['bn3_g'], 0.0)
        h2 = _softplus(P['kappa'] * ns1 + P['gam'] * c2 + P['wv'] * ns1 * c2)
        h = _softplus((1.0 - g2) * h + g2 * h2)
    o = bn(h, P['fbn_g'], P['fbn_b'])
    out = o @ P['c6w'].reshape(COUT, C).T + P['c6b']
    return jnp.transpose(out, (0, 3, 1, 2))


# --------------------------------- main ------------------------------------
if __name__ == "__main__":
    key = jax.random.PRNGKey(0)
    k = jax.random.split(key, 10)

    params = dict(
        # TODO(synk): conv0 weights come from utils/gabor_serre.npy in the
        # original; replaced with a deterministic random init here.
        w0=jax.random.normal(k[0], (C, CIN, K0, K0), jnp.float32) * 0.1,
        b0=jax.random.normal(k[1], (C,), jnp.float32) * 0.05,
        # stand-ins for init.orthogonal_ (deterministic random)
        u1w=jax.random.normal(k[2], (C, C), jnp.float32) / math.sqrt(C),
        u2w=jax.random.normal(k[3], (C, C), jnp.float32) / math.sqrt(C),
        # in the original, `.bias.data.log()` is a no-op (not in-place), so
        # the u1 bias stays U(1, 7) and the u2 bias is its negation.
        u1b=jax.random.uniform(k[4], (C,), jnp.float32, minval=1.0, maxval=7.0),
        w_inh=jax.random.normal(k[5], (C, C, K, K), jnp.float32) * 0.05,
        w_exc=jax.random.normal(k[6], (C, C, K, K), jnp.float32) * 0.05,
        alpha=jnp.full((C,), 0.1, jnp.float32),
        mu=jnp.full((C,), 1.0, jnp.float32),
        kappa=jnp.full((C,), 0.5, jnp.float32),
        gam=jnp.full((C,), 1.0, jnp.float32),
        wv=jnp.full((C,), 0.5, jnp.float32),
        bn1_g=jnp.full((C,), 0.1, jnp.float32),   # bn[1]: weight=0.1, bias=0
        bn3_g=jnp.full((C,), 0.1, jnp.float32),   # bn[3]: weight=0.1, bias=0
        fbn_g=jnp.ones((C,), jnp.float32),        # final BN weight
        fbn_b=jnp.zeros((C,), jnp.float32),       # final BN bias
        c6w=jax.random.normal(k[7], (COUT, C, 1, 1), jnp.float32)
            * math.sqrt(2.0 / (C + COUT)),
        c6b=jnp.full((COUT,), math.log((1.0 - 0.01) / 0.01), jnp.float32),
    )
    params['u2b'] = -params['u1b']

    x = jax.random.normal(k[8], (B, CIN, H, W), jnp.float32)
    target = jax.random.normal(k[9], (B, COUT, H, W), jnp.float32)

    out = jax.block_until_ready(jax.jit(lambda xx: run_pallas(xx, params))(x))
    ref = jax.block_until_ready(jax.jit(lambda xx: run_reference(xx, params))(x))

    diff = jnp.abs(out - ref)
    max_abs = float(jnp.max(diff))
    rel_rms = float(jnp.sqrt(jnp.mean(diff * diff) /
                             (jnp.mean(ref * ref) + 1e-12)))
    # Tolerances account for the bf16 im2col / hh-weights and approx-reciprocal
    # sigmoid in the kernel vs the f32 (default-precision) XLA reference; the
    # relative-RMS bound is the tight structural-regression check.
    assert rel_rms < 2e-2 and max_abs < 1.5e-1, (
        f"Pallas kernel mismatch vs JAX reference: "
        f"rel_rms={rel_rms:.3e} max|diff|={max_abs:.3e}")

    # glue matching the module's return signature (criterion is user-supplied;
    # a simple MSE stand-in is used here; no jacobian penalty at eval time)
    criterion = lambda o, t: jnp.mean((o - t) ** 2)
    loss = criterion(out, target)
    jv_penalty = jnp.array([1.0], jnp.float32)
    jax.block_until_ready(loss)

    print("KERNEL_OK")
</pallas_src>

<mosaic_0001>
module attributes {stable_mosaic.version = 11 : i64} {
  func.func @hgru_kernel(%arg0: memref<56x512xf32, #tpu.memory_space<vmem>>, %arg1: memref<25x56xf32, #tpu.memory_space<vmem>>, %arg2: memref<25x25xf32, #tpu.memory_space<vmem>>, %arg3: memref<25x25xf32, #tpu.memory_space<vmem>>, %arg4: memref<25x800xbf16, #tpu.memory_space<vmem>>, %arg5: memref<25x800xbf16, #tpu.memory_space<vmem>>, %arg6: memref<25x512xf32, #tpu.memory_space<vmem>>, %arg7: memref<7x25x1xf32, #tpu.memory_space<vmem>>, %arg8: memref<5x25x1xf32, #tpu.memory_space<vmem>>, %arg9: memref<2x25xf32, #tpu.memory_space<vmem>>, %arg10: memref<2x1xf32, #tpu.memory_space<vmem>>, %arg11: memref<2x512xf32, #tpu.memory_space<vmem>>, %arg12: memref<800x512xbf16, #tpu.memory_space<vmem>>, %arg13: memref<25x512xf32, #tpu.memory_space<vmem>>, %arg14: memref<7x25x512xf32, #tpu.memory_space<vmem>>, %arg15: memref<25x512xf32, #tpu.memory_space<vmem>>) attributes {dimension_semantics = [], scalar_prefetch = 0 : i64, scratch_operands = 4 : i64, tpu.core_type = #tpu.core_type<tc>} {
    %c0 = arith.constant 0 : index
    %c0_0 = arith.constant 0 : index
    %c0_1 = arith.constant 0 : index
    %0 = vector.load %arg7[%c0, %c0_0, %c0_1] : memref<7x25x1xf32, #tpu.memory_space<vmem>>, vector<1x25x1xf32>
    %1 = vector.shape_cast %0 : vector<1x25x1xf32> to vector<25x1xf32>
    %2 = vector.shape_cast %1 : vector<25x1xf32> to vector<25x1xf32>
    %3 = vector.broadcast %2 : vector<25x1xf32> to vector<25x512xf32>
    %c0_2 = arith.constant 0 : index
    %c0_3 = arith.constant 0 : index
    %c0_4 = arith.constant 0 : index
    %4 = vector.load %arg14[%c0_2, %c0_3, %c0_4] : memref<7x25x512xf32, #tpu.memory_space<vmem>>, vector<1x25x512xf32>
    %5 = vector.shape_cast %4 : vector<1x25x512xf32> to vector<25x512xf32>
    %6 = vector.shape_cast %3 : vector<25x512xf32> to vector<1x25x512xf32>
    tpu.vector_store %arg14[%c0_2, %c0_3, %c0_4], %6 {strides = array<i32>} : memref<7x25x512xf32, #tpu.memory_space<vmem>>, vector<1x25x512xf32>,
    %c1 = arith.constant 1 : index
    %c0_5 = arith.constant 0 : index
    %c0_6 = arith.constant 0 : index
    %7 = vector.load %arg7[%c1, %c0_5, %c0_6] : memref<7x25x1xf32, #tpu.memory_space<vmem>>, vector<1x25x1xf32>
    %8 = vector.shape_cast %7 : vector<1x25x1xf32> to vector<25x1xf32>
    %9 = vector.shape_cast %8 : vector<25x1xf32> to vector<25x1xf32>
    %10 = vector.broadcast %9 : vector<25x1xf32> to vector<25x512xf32>
    %c1_7 = arith.constant 1 : index
    %c0_8 = arith.constant 0 : index
    %c0_9 = arith.constant 0 : index
    %11 = vector.load %arg14[%c1_7, %c0_8, %c0_9] : memref<7x25x512xf32, #tpu.memory_space<vmem>>, vector<1x25x512xf32>
    %12 = vector.shape_cast %11 : vector<1x25x512xf32> to vector<25x512xf32>
    %13 = vector.shape_cast %10 : vector<25x512xf32> to vector<1x25x512xf32>
    tpu.vector_store %arg14[%c1_7, %c0_8, %c0_9], %13 {strides = array<i32>} : memref<7x25x512xf32, #tpu.memory_space<vmem>>, vector<1x25x512xf32>,
    %c2 = arith.constant 2 : index
    %c0_10 = arith.constant 0 : index
    %c0_11 = arith.constant 0 : index
    %14 = vector.load %arg7[%c2, %c0_10, %c0_11] : memref<7x25x1xf32, #tpu.memory_space<vmem>>, vector<1x25x1xf32>
    %15 = vector.shape_cast %14 : vector<1x25x1xf32> to vector<25x1xf32>
    %16 = vector.shape_cast %15 : vector<25x1xf32> to vector<25x1xf32>
    %17 = vector.broadcast %16 : vector<25x1xf32> to vector<25x512xf32>
    %c2_12 = arith.constant 2 : index
    %c0_13 = arith.constant 0 : index
    %c0_14 = arith.constant 0 : index
    %18 = vector.load %arg14[%c2_12, %c0_13, %c0_14] : memref<7x25x512xf32, #tpu.memory_space<vmem>>, vector<1x25x512xf32>
    %19 = vector.shape_cast %18 : vector<1x25x512xf32> to vector<25x512xf32>
    %20 = vector.shape_cast %17 : vector<25x512xf32> to vector<1x25x512xf32>
    tpu.vector_store %arg14[%c2_12, %c0_13, %c0_14], %20 {strides = array<i32>} : memref<7x25x512xf32, #tpu.memory_space<vmem>>, vector<1x25x512xf32>,
    %c3 = arith.constant 3 : index
    %c0_15 = arith.constant 0 : index
    %c0_16 = arith.constant 0 : index
    %21 = vector.load %arg7[%c3, %c0_15, %c0_16] : memref<7x25x1xf32, #tpu.memory_space<vmem>>, vector<1x25x1xf32>
    %22 = vector.shape_cast %21 : vector<1x25x1xf32> to vector<25x1xf32>
    %23 = vector.shape_cast %22 : vector<25x1xf32> to vector<25x1xf32>
    %24 = vector.broadcast %23 : vector<25x1xf32> to vector<25x512xf32>
    %c3_17 = arith.constant 3 : index
    %c0_18 = arith.constant 0 : index
    %c0_19 = arith.constant 0 : index
    %25 = vector.load %arg14[%c3_17, %c0_18, %c0_19] : memref<7x25x512xf32, #tpu.memory_space<vmem>>, vector<1x25x512xf32>
    %26 = vector.shape_cast %25 : vector<1x25x512xf32> to vector<25x512xf32>
    %27 = vector.shape_cast %24 : vector<25x512xf32> to vector<1x25x512xf32>
    tpu.vector_store %arg14[%c3_17, %c0_18, %c0_19], %27 {strides = array<i32>} : memref<7x25x512xf32, #tpu.memory_space<vmem>>, vector<1x25x512xf32>,
    %c4 = arith.constant 4 : index
    %c0_20 = arith.constant 0 : index
    %c0_21 = arith.constant 0 : index
    %28 = vector.load %arg7[%c4, %c0_20, %c0_21] : memref<7x25x1xf32, #tpu.memory_space<vmem>>, vector<1x25x1xf32>
    %29 = vector.shape_cast %28 : vector<1x25x1xf32> to vector<25x1xf32>
    %30 = vector.shape_cast %29 : vector<25x1xf32> to vector<25x1xf32>
    %31 = vector.broadcast %30 : vector<25x1xf32> to vector<25x512xf32>
    %c4_22 = arith.constant 4 : index
    %c0_23 = arith.constant 0 : index
    %c0_24 = arith.constant 0 : index
    %32 = vector.load %arg14[%c4_22, %c0_23, %c0_24] : memref<7x25x512xf32, #tpu.memory_space<vmem>>, vector<1x25x512xf32>
    %33 = vector.shape_cast %32 : vector<1x25x512xf32> to vector<25x512xf32>
    %34 = vector.shape_cast %31 : vector<25x512xf32> to vector<1x25x512xf32>
    tpu.vector_store %arg14[%c4_22, %c0_23, %c0_24], %34 {strides = array<i32>} : memref<7x25x512xf32, #tpu.memory_space<vmem>>, vector<1x25x512xf32>,
    %c5 = arith.constant 5 : index
    %c0_25 = arith.constant 0 : index
    %c0_26 = arith.constant 0 : index
    %35 = vector.load %arg7[%c5, %c0_25, %c0_26] : memref<7x25x1xf32, #tpu.memory_space<vmem>>, vector<1x25x1xf32>
    %36 = vector.shape_cast %35 : vector<1x25x1xf32> to vector<25x1xf32>
    %37 = vector.shape_cast %36 : vector<25x1xf32> to vector<25x1xf32>
    %38 = vector.broadcast %37 : vector<25x1xf32> to vector<25x512xf32>
    %c5_27 = arith.constant 5 : index
    %c0_28 = arith.constant 0 : index
    %c0_29 = arith.constant 0 : index
    %39 = vector.load %arg14[%c5_27, %c0_28, %c0_29] : memref<7x25x512xf32, #tpu.memory_space<vmem>>, vector<1x25x512xf32>
    %40 = vector.shape_cast %39 : vector<1x25x512xf32> to vector<25x512xf32>
    %41 = vector.shape_cast %38 : vector<25x512xf32> to vector<1x25x512xf32>
    tpu.vector_store %arg14[%c5_27, %c0_28, %c0_29], %41 {strides = array<i32>} : memref<7x25x512xf32, #tpu.memory_space<vmem>>, vector<1x25x512xf32>,
    %c6 = arith.constant 6 : index
    %c0_30 = arith.constant 0 : index
    %c0_31 = arith.constant 0 : index
    %42 = vector.load %arg7[%c6, %c0_30, %c0_31] : memref<7x25x1xf32, #tpu.memory_space<vmem>>, vector<1x25x1xf32>
    %43 = vector.shape_cast %42 : vector<1x25x1xf32> to vector<25x1xf32>
    %44 = vector.shape_cast %43 : vector<25x1xf32> to vector<25x1xf32>
    %45 = vector.broadcast %44 : vector<25x1xf32> to vector<25x512xf32>
    %c6_32 = arith.constant 6 : index
    %c0_33 = arith.constant 0 : index
    %c0_34 = arith.constant 0 : index
    %46 = vector.load %arg14[%c6_32, %c0_33, %c0_34] : memref<7x25x512xf32, #tpu.memory_space<vmem>>, vector<1x25x512xf32>
    %47 = vector.shape_cast %46 : vector<1x25x512xf32> to vector<25x512xf32>
    %48 = vector.shape_cast %45 : vector<25x512xf32> to vector<1x25x512xf32>
    tpu.vector_store %arg14[%c6_32, %c0_33, %c0_34], %48 {strides = array<i32>} : memref<7x25x512xf32, #tpu.memory_space<vmem>>, vector<1x25x512xf32>,
    %cst = arith.constant 0.000000e+00 : bf16
    %49 = vector.broadcast %cst : bf16 to vector<7x512xbf16>
    %c25 = arith.constant 25 : index
    %c0_35 = arith.constant 0 : index
    %50 = vector.load %arg12[%c25, %c0_35] : memref<800x512xbf16, #tpu.memory_space<vmem>>, vector<7x512xbf16>
    tpu.vector_store %arg12[%c25, %c0_35], %49 {strides = array<i32>} : memref<800x512xbf16, #tpu.memory_space<vmem>>, vector<7x512xbf16>,
    %c57 = arith.constant 57 : index
    %c0_36 = arith.constant 0 : index
    %51 = vector.load %arg12[%c57, %c0_36] : memref<800x512xbf16, #tpu.memory_space<vmem>>, vector<7x512xbf16>
    tpu.vector_store %arg12[%c57, %c0_36], %49 {strides = array<i32>} : memref<800x512xbf16, #tpu.memory_space<vmem>>, vector<7x512xbf16>,
    %c89 = arith.constant 89 : index
    %c0_37 = arith.constant 0 : index
    %52 = vector.load %arg12[%c89, %c0_37] : memref<800x512xbf16, #tpu.memory_space<vmem>>, vector<7x512xbf16>
    tpu.vector_store %arg12[%c89, %c0_37], %49 {strides = array<i32>} : memref<800x512xbf16, #tpu.memory_space<vmem>>, vector<7x512xbf16>,
    %c121 = arith.constant 121 : index
    %c0_38 = arith.constant 0 : index
    %53 = vector.load %arg12[%c121, %c0_38] : memref<800x512xbf16, #tpu.memory_space<vmem>>, vector<7x512xbf16>
    tpu.vector_store %arg12[%c121, %c0_38], %49 {strides = array<i32>} : memref<800x512xbf16, #tpu.memory_space<vmem>>, vector<7x512xbf16>,
    %c153 = arith.constant 153 : index
    %c0_39 = arith.constant 0 : index
    %54 = vector.load %arg12[%c153, %c0_39] : memref<800x512xbf16, #tpu.memory_space<vmem>>, vector<7x512xbf16>
    tpu.vector_store %arg12[%c153, %c0_39], %49 {strides = array<i32>} : memref<800x512xbf16, #tpu.memory_space<vmem>>, vector<7x512xbf16>,
    %c185 = arith.constant 185 : index
    %c0_40 = arith.constant 0 : index
    %55 = vector.load %arg12[%c185, %c0_40] : memref<800x512xbf16, #tpu.memory_space<vmem>>, vector<7x512xbf16>
    tpu.vector_store %arg12[%c185, %c0_40], %49 {strides = array<i32>} : memref<800x512xbf16, #tpu.memory_space<vmem>>, vector<7x512xbf16>,
    %c217 = arith.constant 217 : index
    %c0_41 = arith.constant 0 : index
    %56 = vector.load %arg12[%c217, %c0_41] : memref<800x512xbf16, #tpu.memory_space<vmem>>, vector<7x512xbf16>
    tpu.vector_store %arg12[%c217, %c0_41], %49 {strides = array<i32>} : memref<800x512xbf16, #tpu.memory_space<vmem>>, vector<7x512xbf16>,
    %c249 = arith.constant 249 : index
    %c0_42 = arith.constant 0 : index
    %57 = vector.load %arg12[%c249, %c0_42] : memref<800x512xbf16, #tpu.memory_space<vmem>>, vector<7x512xbf16>
    tpu.vector_store %arg12[%c249, %c0_42], %49 {strides = array<i32>} : memref<800x512xbf16, #tpu.memory_space<vmem>>, vector<7x512xbf16>,
    %c281 = arith.constant 281 : index
    %c0_43 = arith.constant 0 : index
    %58 = vector.load %arg12[%c281, %c0_43] : memref<800x512xbf16, #tpu.memory_space<vmem>>, vector<7x512xbf16>
    tpu.vector_store %arg12[%c281, %c0_43], %49 {strides = array<i32>} : memref<800x512xbf16, #tpu.memory_space<vmem>>, vector<7x512xbf16>,
    %c313 = arith.constant 313 : index
    %c0_44 = arith.constant 0 : index
    %59 = vector.load %arg12[%c313, %c0_44] : memref<800x512xbf16, #tpu.memory_space<vmem>>, vector<7x512xbf16>
    tpu.vector_store %arg12[%c313, %c0_44], %49 {strides = array<i32>} : memref<800x512xbf16, #tpu.memory_space<vmem>>, vector<7x512xbf16>,
    %c345 = arith.constant 345 : index
    %c0_45 = arith.constant 0 : index
    %60 = vector.load %arg12[%c345, %c0_45] : memref<800x512xbf16, #tpu.memory_space<vmem>>, vector<7x512xbf16>
    tpu.vector_store %arg12[%c345, %c0_45], %49 {strides = array<i32>} : memref<800x512xbf16, #tpu.memory_space<vmem>>, vector<7x512xbf16>,
    %c377 = arith.constant 377 : index
    %c0_46 = arith.constant 0 : index
    %61 = vector.load %arg12[%c377, %c0_46] : memref<800x512xbf16, #tpu.memory_space<vmem>>, vector<7x512xbf16>
    tpu.vector_store %arg12[%c377, %c0_46], %49 {strides = array<i32>} : memref<800x512xbf16, #tpu.memory_space<vmem>>, vector<7x512xbf16>,
    %c409 = arith.constant 409 : index
    %c0_47 = arith.constant 0 : index
    %62 = vector.load %arg12[%c409, %c0_47] : memref<800x512xbf16, #tpu.memory_space<vmem>>, vector<7x512xbf16>
    tpu.vector_store %arg12[%c409, %c0_47], %49 {strides = array<i32>} : memref<800x512xbf16, #tpu.memory_space<vmem>>, vector<7x512xbf16>,
    %c441 = arith.constant 441 : index
    %c0_48 = arith.constant 0 : index
    %63 = vector.load %arg12[%c441, %c0_48] : memref<800x512xbf16, #tpu.memory_space<vmem>>, vector<7x512xbf16>
    tpu.vector_store %arg12[%c441, %c0_48], %49 {strides = array<i32>} : memref<800x512xbf16, #tpu.memory_space<vmem>>, vector<7x512xbf16>,
    %c473 = arith.constant 473 : index
    %c0_49 = arith.constant 0 : index
    %64 = vector.load %arg12[%c473, %c0_49] : memref<800x512xbf16, #tpu.memory_space<vmem>>, vector<7x512xbf16>
    tpu.vector_store %arg12[%c473, %c0_49], %49 {strides = array<i32>} : memref<800x512xbf16, #tpu.memory_space<vmem>>, vector<7x512xbf16>,
    %c505 = arith.constant 505 : index
    %c0_50 = arith.constant 0 : index
    %65 = vector.load %arg12[%c505, %c0_50] : memref<800x512xbf16, #tpu.memory_space<vmem>>, vector<7x512xbf16>
    tpu.vector_store %arg12[%c505, %c0_50], %49 {strides = array<i32>} : memref<800x512xbf16, #tpu.memory_space<vmem>>, vector<7x512xbf16>,
    %c537 = arith.constant 537 : index
    %c0_51 = arith.constant 0 : index
    %66 = vector.load %arg12[%c537, %c0_51] : memref<800x512xbf16, #tpu.memory_space<vmem>>, vector<7x512xbf16>
    tpu.vector_store %arg12[%c537, %c0_51], %49 {strides = array<i32>} : memref<800x512xbf16, #tpu.memory_space<vmem>>, vector<7x512xbf16>,
    %c569 = arith.constant 569 : index
    %c0_52 = arith.constant 0 : index
    %67 = vector.load %arg12[%c569, %c0_52] : memref<800x512xbf16, #tpu.memory_space<vmem>>, vector<7x512xbf16>
    tpu.vector_store %arg12[%c569, %c0_52], %49 {strides = array<i32>} : memref<800x512xbf16, #tpu.memory_space<vmem>>, vector<7x512xbf16>,
    %c601 = arith.constant 601 : index
    %c0_53 = arith.constant 0 : index
    %68 = vector.load %arg12[%c601, %c0_53] : memref<800x512xbf16, #tpu.memory_space<vmem>>, vector<7x512xbf16>
    tpu.vector_store %arg12[%c601, %c0_53], %49 {strides = array<i32>} : memref<800x512xbf16, #tpu.memory_space<vmem>>, vector<7x512xbf16>,
    %c633 = arith.constant 633 : index
    %c0_54 = arith.constant 0 : index
    %69 = vector.load %arg12[%c633, %c0_54] : memref<800x512xbf16, #tpu.memory_space<vmem>>, vector<7x512xbf16>
    tpu.vector_store %arg12[%c633, %c0_54], %49 {strides = array<i32>} : memref<800x512xbf16, #tpu.memory_space<vmem>>, vector<7x512xbf16>,
    %c665 = arith.constant 665 : index
    %c0_55 = arith.constant 0 : index
    %70 = vector.load %arg12[%c665, %c0_55] : memref<800x512xbf16, #tpu.memory_space<vmem>>, vector<7x512xbf16>
    tpu.vector_store %arg12[%c665, %c0_55], %49 {strides = array<i32>} : memref<800x512xbf16, #tpu.memory_space<vmem>>, vector<7x512xbf16>,
    %c697 = arith.constant 697 : index
    %c0_56 = arith.constant 0 : index
    %71 = vector.load %arg12[%c697, %c0_56] : memref<800x512xbf16, #tpu.memory_space<vmem>>, vector<7x512xbf16>
    tpu.vector_store %arg12[%c697, %c0_56], %49 {strides = array<i32>} : memref<800x512xbf16, #tpu.memory_space<vmem>>, vector<7x512xbf16>,
    %c729 = arith.constant 729 : index
    %c0_57 = arith.constant 0 : index
    %72 = vector.load %arg12[%c729, %c0_57] : memref<800x512xbf16, #tpu.memory_space<vmem>>, vector<7x512xbf16>
    tpu.vector_store %arg12[%c729, %c0_57], %49 {strides = array<i32>} : memref<800x512xbf16, #tpu.memory_space<vmem>>, vector<7x512xbf16>,
    %c761 = arith.constant 761 : index
    %c0_58 = arith.constant 0 : index
    %73 = vector.load %arg12[%c761, %c0_58] : memref<800x512xbf16, #tpu.memory_space<vmem>>, vector<7x512xbf16>
    tpu.vector_store %arg12[%c761, %c0_58], %49 {strides = array<i32>} : memref<800x512xbf16, #tpu.memory_space<vmem>>, vector<7x512xbf16>,
    %c793 = arith.constant 793 : index
    %c0_59 = arith.constant 0 : index
    %74 = vector.load %arg12[%c793, %c0_59] : memref<800x512xbf16, #tpu.memory_space<vmem>>, vector<7x512xbf16>
    tpu.vector_store %arg12[%c793, %c0_59], %49 {strides = array<i32>} : memref<800x512xbf16, #tpu.memory_space<vmem>>, vector<7x512xbf16>,
    %c0_60 = arith.constant 0 : index
    %c0_61 = arith.constant 0 : index
    %75 = vector.load %arg1[%c0_60, %c0_61] : memref<25x56xf32, #tpu.memory_space<vmem>>, vector<25x56xf32>
    %c0_62 = arith.constant 0 : index
    %c0_63 = arith.constant 0 : index
    %76 = vector.load %arg0[%c0_62, %c0_63] : memref<56x512xf32, #tpu.memory_space<vmem>>, vector<56x512xf32>
    %cst_64 = arith.constant dense<0.000000e+00> : vector<25x512xf32>
    %77 = tpu.matmul %75, %76, %cst_64 {dimension_numbers = #tpu.dot_dimension_numbers<[1], [0], [0], [1], [0, 0, 1, 1], [], []>} : vector<25x56xf32>, vector<56x512xf32>, vector<25x512xf32> -> vector<25x512xf32>
    %c4_65 = arith.constant 4 : index
    %c0_66 = arith.constant 0 : index
    %c0_67 = arith.constant 0 : index
    %78 = vector.load %arg8[%c4_65, %c0_66, %c0_67] : memref<5x25x1xf32, #tpu.memory_space<vmem>>, vector<1x25x1xf32>
    %79 = vector.shape_cast %78 : vector<1x25x1xf32> to vector<25x1xf32>
    %80 = vector.broadcast %79 : vector<25x1xf32> to vector<25x512xf32>
    %81 = arith.addf %77, %80 : vector<25x512xf32>
    %82 = arith.mulf %81, %81 : vector<25x512xf32>
    %c0_68 = arith.constant 0 : index
    %c0_69 = arith.constant 0 : index
    %83 = vector.load %arg13[%c0_68, %c0_69] : memref<25x512xf32, #tpu.memory_space<vmem>>, vector<25x512xf32>
    tpu.vector_store %arg13[%c0_68, %c0_69], %82 {strides = array<i32>} : memref<25x512xf32, #tpu.memory_space<vmem>>, vector<25x512xf32>,
    %cst_70 = arith.constant 0.000000e+00 : f32
    %84 = vector.broadcast %cst_70 : f32 to vector<25x512xf32>
    %c0_71 = arith.constant 0 : index
    %c0_72 = arith.constant 0 : index
    %85 = vector.load %arg15[%c0_71, %c0_72] : memref<25x512xf32, #tpu.memory_space<vmem>>, vector<25x512xf32>
    tpu.vector_store %arg15[%c0_71, %c0_72], %84 {strides = array<i32>} : memref<25x512xf32, #tpu.memory_space<vmem>>, vector<25x512xf32>,
    %c0_i32 = arith.constant 0 : i32
    %c8_i32 = arith.constant 8 : i32
    %86 = arith.addi %c0_i32, %c8_i32 : i32
    %c1_i32 = arith.constant 1 : i32
    scf.for %arg16 = %c0_i32 to %86 step %c1_i32  : i32 {
      %c0_93 = arith.constant 0 : index
      %c0_94 = arith.constant 0 : index
      %119 = vector.load %arg15[%c0_93, %c0_94] : memref<25x512xf32, #tpu.memory_space<vmem>>, vector<25x512xf32>
      %c0_95 = arith.constant 0 : index
      %c0_96 = arith.constant 0 : index
      %120 = vector.load %arg2[%c0_95, %c0_96] : memref<25x25xf32, #tpu.memory_space<vmem>>, vector<25x25xf32>
      %cst_97 = arith.constant dense<0.000000e+00> : vector<25x512xf32>
      %121 = tpu.matmul %120, %119, %cst_97 {dimension_numbers = #tpu.dot_dimension_numbers<[1], [0], [0], [1], [0, 0, 1, 1], [], []>} : vector<25x25xf32>, vector<25x512xf32>, vector<25x512xf32> -> vector<25x512xf32>
      %c5_98 = arith.constant 5 : index
      %c0_99 = arith.constant 0 : index
      %c0_100 = arith.constant 0 : index
      %122 = vector.load %arg14[%c5_98, %c0_99, %c0_100] : memref<7x25x512xf32, #tpu.memory_space<vmem>>, vector<1x25x512xf32>
      %123 = vector.shape_cast %122 : vector<1x25x512xf32> to vector<25x512xf32>
      %124 = arith.addf %121, %123 : vector<25x512xf32>
      %cst_101 = arith.constant 0.000000e+00 : f32
      %125 = vector.broadcast %cst_101 : f32 to vector<25x512xf32>
      %126 = arith.subf %125, %124 : vector<25x512xf32>
      %127 = math.exp %126 : vector<25x512xf32>
      %cst_102 = arith.constant 1.000000e+00 : f32
      %128 = vector.broadcast %cst_102 : f32 to vector<25x512xf32>
      %129 = arith.addf %128, %127 : vector<25x512xf32>
      %130 = tpu.reciprocal %129 {approx = true} : vector<25x512xf32> -> vector<25x512xf32>
      %131 = arith.mulf %119, %130 : vector<25x512xf32>
      %c34_i32 = arith.constant 34 : i32
      %132 = tpu.dynamic_rotate %131 by %c34_i32 dim 1 : vector<25x512xf32>, i32 -> vector<25x512xf32>
      %c0_103 = arith.constant 0 : index
      %c0_104 = arith.constant 0 : index
      %133 = vector.load %arg6[%c0_103, %c0_104] : memref<25x512xf32, #tpu.memory_space<vmem>>, vector<1x512xf32>
      %134 = vector.broadcast %133 : vector<1x512xf32> to vector<25x512xf32>
      %135 = arith.mulf %132, %134 : vector<25x512xf32>
      %136 = arith.truncf %135 : vector<25x512xf32> to vector<25x512xbf16>
      %c0_105 = arith.constant 0 : index
      %c0_106 = arith.constant 0 : index
      %137 = vector.load %arg12[%c0_105, %c0_106] : memref<800x512xbf16, #tpu.memory_space<vmem>>, vector<25x512xbf16>
      tpu.vector_store %arg12[%c0_105, %c0_106], %136 {strides = array<i32>} : memref<800x512xbf16, #tpu.memory_space<vmem>>, vector<25x512xbf16>,
      %c33_i32 = arith.constant 33 : i32
      %138 = tpu.dynamic_rotate %131 by %c33_i32 dim 1 : vector<25x512xf32>, i32 -> vector<25x512xf32>
      %c1_107 = arith.constant 1 : index
      %c0_108 = arith.constant 0 : index
      %139 = vector.load %arg6[%c1_107, %c0_108] : memref<25x512xf32, #tpu.memory_space<vmem>>, vector<1x512xf32>
      %140 = vector.broadcast %139 : vector<1x512xf32> to vector<25x512xf32>
      %141 = arith.mulf %138, %140 : vector<25x512xf32>
      %142 = arith.truncf %141 : vector<25x512xf32> to vector<25x512xbf16>
      %c32 = arith.constant 32 : index
      %c0_109 = arith.constant 0 : index
      %143 = vector.load %arg12[%c32, %c0_109] : memref<800x512xbf16, #tpu.memory_space<vmem>>, vector<25x512xbf16>
      tpu.vector_store %arg12[%c32, %c0_109], %142 {strides = array<i32>} : memref<800x512xbf16, #tpu.memory_space<vmem>>, vector<25x512xbf16>,
      %c32_i32 = arith.constant 32 : i32
      %144 = tpu.dynamic_rotate %131 by %c32_i32 dim 1 : vector<25x512xf32>, i32 -> vector<25x512xf32>
      %c2_110 = arith.constant 2 : index
      %c0_111 = arith.constant 0 : index
      %145 = vector.load %arg6[%c2_110, %c0_111] : memref<25x512xf32, #tpu.memory_space<vmem>>, vector<1x512xf32>
      %146 = vector.broadcast %145 : vector<1x512xf32> to vector<25x512xf32>
      %147 = arith.mulf %144, %146 : vector<25x512xf32>
      %148 = arith.truncf %147 : vector<25x512xf32> to vector<25x512xbf16>
      %c64 = arith.constant 64 : index
      %c0_112 = arith.constant 0 : index
      %149 = vector.load %arg12[%c64, %c0_112] : memref<800x512xbf16, #tpu.memory_space<vmem>>, vector<25x512xbf16>
      tpu.vector_store %arg12[%c64, %c0_112], %148 {strides = array<i32>} : memref<800x512xbf16, #tpu.memory_space<vmem>>, vector<25x512xbf16>,
      %c31_i32 = arith.constant 31 : i32
      %150 = tpu.dynamic_rotate %131 by %c31_i32 dim 1 : vector<25x512xf32>, i32 -> vector<25x512xf32>
      %c3_113 = arith.constant 3 : index
      %c0_114 = arith.constant 0 : index
      %151 = vector.load %arg6[%c3_113, %c0_114] : memref<25x512xf32, #tpu.memory_space<vmem>>, vector<1x512xf32>
      %152 = vector.broadcast %151 : vector<1x512xf32> to vector<25x512xf32>
      %153 = arith.mulf %150, %152 : vector<25x512xf32>
      %154 = arith.truncf %153 : vector<25x512xf32> to vector<25x512xbf16>
      %c96 = arith.constant 96 : index
      %c0_115 = arith.constant 0 : index
      %155 = vector.load %arg12[%c96, %c0_115] : memref<800x512xbf16, #tpu.memory_space<vmem>>, vector<25x512xbf16>
      tpu.vector_store %arg12[%c96, %c0_115], %154 {strides = array<i32>} : memref<800x512xbf16, #tpu.memory_space<vmem>>, vector<25x512xbf16>,
      %c30_i32 = arith.constant 30 : i32
      %156 = tpu.dynamic_rotate %131 by %c30_i32 dim 1 : vector<25x512xf32>, i32 -> vector<25x512xf32>
      %c4_116 = arith.constant 4 : index
      %c0_117 = arith.constant 0 : index
      %157 = vector.load %arg6[%c4_116, %c0_117] : memref<25x512xf32, #tpu.memory_space<vmem>>, vector<1x512xf32>
      %158 = vector.broadcast %157 : vector<1x512xf32> to vector<25x512xf32>
      %159 = arith.mulf %156, %158 : vector<25x512xf32>
      %160 = arith.truncf %159 : vector<25x512xf32> to vector<25x512xbf16>
      %c128 = arith.constant 128 : index
      %c0_118 = arith.constant 0 : index
      %161 = vector.load %arg12[%c128, %c0_118] : memref<800x512xbf16, #tpu.memory_space<vmem>>, vector<25x512xbf16>
      tpu.vector_store %arg12[%c128, %c0_118], %160 {strides = array<i32>} : memref<800x512xbf16, #tpu.memory_space<vmem>>, vector<25x512xbf16>,
      %c18_i32 = arith.constant 18 : i32
      %162 = tpu.dynamic_rotate %131 by %c18_i32 dim 1 : vector<25x512xf32>, i32 -> vector<25x512xf32>
      %c5_119 = arith.constant 5 : index
      %c0_120 = arith.constant 0 : index
      %163 = vector.load %arg6[%c5_119, %c0_120] : memref<25x512xf32, #tpu.memory_space<vmem>>, vector<1x512xf32>
      %164 = vector.broadcast %163 : vector<1x512xf32> to vector<25x512xf32>
      %165 = arith.mulf %162, %164 : vector<25x512xf32>
      %166 = arith.truncf %165 : vector<25x512xf32> to vector<25x512xbf16>
      %c160 = arith.constant 160 : index
      %c0_121 = arith.constant 0 : index
      %167 = vector.load %arg12[%c160, %c0_121] : memref<800x512xbf16, #tpu.memory_space<vmem>>, vector<25x512xbf16>
      tpu.vector_store %arg12[%c160, %c0_121], %166 {strides = array<i32>} : memref<800x512xbf16, #tpu.memory_space<vmem>>, vector<25x512xbf16>,
      %c17_i32 = arith.constant 17 : i32
      %168 = tpu.dynamic_rotate %131 by %c17_i32 dim 1 : vector<25x512xf32>, i32 -> vector<25x512xf32>
      %c6_122 = arith.constant 6 : index
      %c0_123 = arith.constant 0 : index
      %169 = vector.load %arg6[%c6_122, %c0_123] : memref<25x512xf32, #tpu.memory_space<vmem>>, vector<1x512xf32>
      %170 = vector.broadcast %169 : vector<1x512xf32> to vector<25x512xf32>
      %171 = arith.mulf %168, %170 : vector<25x512xf32>
      %172 = arith.truncf %171 : vector<25x512xf32> to vector<25x512xbf16>
      %c192 = arith.constant 192 : index
      %c0_124 = arith.constant 0 : index
      %173 = vector.load %arg12[%c192, %c0_124] : memref<800x512xbf16, #tpu.memory_space<vmem>>, vector<25x512xbf16>
      tpu.vector_store %arg12[%c192, %c0_124], %172 {strides = array<i32>} : memref<800x512xbf16, #tpu.memory_space<vmem>>, vector<25x512xbf16>,
      %c16_i32 = arith.constant 16 : i32
      %174 = tpu.dynamic_rotate %131 by %c16_i32 dim 1 : vector<25x512xf32>, i32 -> vector<25x512xf32>
      %c7 = arith.constant 7 : index
      %c0_125 = arith.constant 0 : index
      %175 = vector.load %arg6[%c7, %c0_125] : memref<25x512xf32, #tpu.memory_space<vmem>>, vector<1x512xf32>
      %176 = vector.broadcast %175 : vector<1x512xf32> to vector<25x512xf32>
      %177 = arith.mulf %174, %176 : vector<25x512xf32>
      %178 = arith.truncf %177 : vector<25x512xf32> to vector<25x512xbf16>
      %c224 = arith.constant 224 : index
      %c0_126 = arith.constant 0 : index
      %179 = vector.load %arg12[%c224, %c0_126] : memref<800x512xbf16, #tpu.memory_space<vmem>>, vector<25x512xbf16>
      tpu.vector_store %arg12[%c224, %c0_126], %178 {strides = array<i32>} : memref<800x512xbf16, #tpu.memory_space<vmem>>, vector<25x512xbf16>,
      %c15_i32 = arith.constant 15 : i32
      %180 = tpu.dynamic_rotate %131 by %c15_i32 dim 1 : vector<25x512xf32>, i32 -> vector<25x512xf32>
      %c8 = arith.constant 8 : index
      %c0_127 = arith.constant 0 : index
      %181 = vector.load %arg6[%c8, %c0_127] : memref<25x512xf32, #tpu.memory_space<vmem>>, vector<1x512xf32>
      %182 = vector.broadcast %181 : vector<1x512xf32> to vector<25x512xf32>
      %183 = arith.mulf %180, %182 : vector<25x512xf32>
      %184 = arith.truncf %183 : vector<25x512xf32> to vector<25x512xbf16>
      %c256 = arith.constant 256 : index
      %c0_128 = arith.constant 0 : index
      %185 = vector.load %arg12[%c256, %c0_128] : memref<800x512xbf16, #tpu.memory_space<vmem>>, vector<25x512xbf16>
      tpu.vector_store %arg12[%c256, %c0_128], %184 {strides = array<i32>} : memref<800x512xbf16, #tpu.memory_space<vmem>>, vector<25x512xbf16>,
      %c14_i32 = arith.constant 14 : i32
      %186 = tpu.dynamic_rotate %131 by %c14_i32 dim 1 : vector<25x512xf32>, i32 -> vector<25x512xf32>
      %c9 = arith.constant 9 : index
      %c0_129 = arith.constant 0 : index
      %187 = vector.load %arg6[%c9, %c0_129] : memref<25x512xf32, #tpu.memory_space<vmem>>, vector<1x512xf32>
      %188 = vector.broadcast %187 : vector<1x512xf32> to vector<25x512xf32>
      %189 = arith.mulf %186, %188 : vector<25x512xf32>
      %190 = arith.truncf %189 : vector<25x512xf32> to vector<25x512xbf16>
      %c288 = arith.constant 288 : index
      %c0_130 = arith.constant 0 : index
      %191 = vector.load %arg12[%c288, %c0_130] : memref<800x512xbf16, #tpu.memory_space<vmem>>, vector<25x512xbf16>
      tpu.vector_store %arg12[%c288, %c0_130], %190 {strides = array<i32>} : memref<800x512xbf16, #tpu.memory_space<vmem>>, vector<25x512xbf16>,
      %c2_i32 = arith.constant 2 : i32
      %192 = tpu.dynamic_rotate %131 by %c2_i32 dim 1 : vector<25x512xf32>, i32 -> vector<25x512xf32>
      %c10 = arith.constant 10 : index
      %c0_131 = arith.constant 0 : index
      %193 = vector.load %arg6[%c10, %c0_131] : memref<25x512xf32, #tpu.memory_space<vmem>>, vector<1x512xf32>
      %194 = vector.broadcast %193 : vector<1x512xf32> to vector<25x512xf32>
      %195 = arith.mulf %192, %194 : vector<25x512xf32>
      %196 = arith.truncf %195 : vector<25x512xf32> to vector<25x512xbf16>
      %c320 = arith.constant 320 : index
      %c0_132 = arith.constant 0 : index
      %197 = vector.load %arg12[%c320, %c0_132] : memref<800x512xbf16, #tpu.memory_space<vmem>>, vector<25x512xbf16>
      tpu.vector_store %arg12[%c320, %c0_132], %196 {strides = array<i32>} : memref<800x512xbf16, #tpu.memory_space<vmem>>, vector<25x512xbf16>,
      %c1_i32_133 = arith.constant 1 : i32
      %198 = tpu.dynamic_rotate %131 by %c1_i32_133 dim 1 : vector<25x512xf32>, i32 -> vector<25x512xf32>
      %c11 = arith.constant 11 : index
      %c0_134 = arith.constant 0 : index
      %199 = vector.load %arg6[%c11, %c0_134] : memref<25x512xf32, #tpu.memory_space<vmem>>, vector<1x512xf32>
      %200 = vector.broadcast %199 : vector<1x512xf32> to vector<25x512xf32>
      %201 = arith.mulf %198, %200 : vector<25x512xf32>
      %202 = arith.truncf %201 : vector<25x512xf32> to vector<25x512xbf16>
      %c352 = arith.constant 352 : index
      %c0_135 = arith.constant 0 : index
      %203 = vector.load %arg12[%c352, %c0_135] : memref<800x512xbf16, #tpu.memory_space<vmem>>, vector<25x512xbf16>
      tpu.vector_store %arg12[%c352, %c0_135], %202 {strides = array<i32>} : memref<800x512xbf16, #tpu.memory_space<vmem>>, vector<25x512xbf16>,
      %204 = arith.truncf %131 : vector<25x512xf32> to vector<25x512xbf16>
      %c384 = arith.constant 384 : index
      %c0_136 = arith.constant 0 : index
      %205 = vector.load %arg12[%c384, %c0_136] : memref<800x512xbf16, #tpu.memory_space<vmem>>, vector<25x512xbf16>
      tpu.vector_store %arg12[%c384, %c0_136], %204 {strides = array<i32>} : memref<800x512xbf16, #tpu.memory_space<vmem>>, vector<25x512xbf16>,
      %c511_i32 = arith.constant 511 : i32
      %206 = tpu.dynamic_rotate %131 by %c511_i32 dim 1 : vector<25x512xf32>, i32 -> vector<25x512xf32>
      %c13 = arith.constant 13 : index
      %c0_137 = arith.constant 0 : index
      %207 = vector.load %arg6[%c13, %c0_137] : memref<25x512xf32, #tpu.memory_space<vmem>>, vector<1x512xf32>
      %208 = vector.broadcast %207 : vector<1x512xf32> to vector<25x512xf32>
      %209 = arith.mulf %206, %208 : vector<25x512xf32>
      %210 = arith.truncf %209 : vector<25x512xf32> to vector<25x512xbf16>
      %c416 = arith.constant 416 : index
      %c0_138 = arith.constant 0 : index
      %211 = vector.load %arg12[%c416, %c0_138] : memref<800x512xbf16, #tpu.memory_space<vmem>>, vector<25x512xbf16>
      tpu.vector_store %arg12[%c416, %c0_138], %210 {strides = array<i32>} : memref<800x512xbf16, #tpu.memory_space<vmem>>, vector<25x512xbf16>,
      %c510_i32 = arith.constant 510 : i32
      %212 = tpu.dynamic_rotate %131 by %c510_i32 dim 1 : vector<25x512xf32>, i32 -> vector<25x512xf32>
      %c14 = arith.constant 14 : index
      %c0_139 = arith.constant 0 : index
      %213 = vector.load %arg6[%c14, %c0_139] : memref<25x512xf32, #tpu.memory_space<vmem>>, vector<1x512xf32>
      %214 = vector.broadcast %213 : vector<1x512xf32> to vector<25x512xf32>
      %215 = arith.mulf %212, %214 : vector<25x512xf32>
      %216 = arith.truncf %215 : vector<25x512xf32> to vector<25x512xbf16>
      %c448 = arith.constant 448 : index
      %c0_140 = arith.constant 0 : index
      %217 = vector.load %arg12[%c448, %c0_140] : memref<800x512xbf16, #tpu.memory_space<vmem>>, vector<25x512xbf16>
      tpu.vector_store %arg12[%c448, %c0_140], %216 {strides = array<i32>} : memref<800x512xbf16, #tpu.memory_space<vmem>>, vector<25x512xbf16>,
      %c498_i32 = arith.constant 498 : i32
      %218 = tpu.dynamic_rotate %131 by %c498_i32 dim 1 : vector<25x512xf32>, i32 -> vector<25x512xf32>
      %c15 = arith.constant 15 : index
      %c0_141 = arith.constant 0 : index
      %219 = vector.load %arg6[%c15, %c0_141] : memref<25x512xf32, #tpu.memory_space<vmem>>, vector<1x512xf32>
      %220 = vector.broadcast %219 : vector<1x512xf32> to vector<25x512xf32>
      %221 = arith.mulf %218, %220 : vector<25x512xf32>
      %222 = arith.truncf %221 : vector<25x512xf32> to vector<25x512xbf16>
      %c480 = arith.constant 480 : index
      %c0_142 = arith.constant 0 : index
      %223 = vector.load %arg12[%c480, %c0_142] : memref<800x512xbf16, #tpu.memory_space<vmem>>, vector<25x512xbf16>
      tpu.vector_store %arg12[%c480, %c0_142], %222 {strides = array<i32>} : memref<800x512xbf16, #tpu.memory_space<vmem>>, vector<25x512xbf16>,
      %c497_i32 = arith.constant 497 : i32
      %224 = tpu.dynamic_rotate %131 by %c497_i32 dim 1 : vector<25x512xf32>, i32 -> vector<25x512xf32>
      %c16 = arith.constant 16 : index
      %c0_143 = arith.constant 0 : index
      %225 = vector.load %arg6[%c16, %c0_143] : memref<25x512xf32, #tpu.memory_space<vmem>>, vector<1x512xf32>
      %226 = vector.broadcast %225 : vector<1x512xf32> to vector<25x512xf32>
      %227 = arith.mulf %224, %226 : vector<25x512xf32>
      %228 = arith.truncf %227 : vector<25x512xf32> to vector<25x512xbf16>
      %c512 = arith.constant 512 : index
      %c0_144 = arith.constant 0 : index
      %229 = vector.load %arg12[%c512, %c0_144] : memref<800x512xbf16, #tpu.memory_space<vmem>>, vector<25x512xbf16>
      tpu.vector_store %arg12[%c512, %c0_144], %228 {strides = array<i32>} : memref<800x512xbf16, #tpu.memory_space<vmem>>, vector<25x512xbf16>,
      %c496_i32 = arith.constant 496 : i32
      %230 = tpu.dynamic_rotate %131 by %c496_i32 dim 1 : vector<25x512xf32>, i32 -> vector<25x512xf32>
      %c17 = arith.constant 17 : index
      %c0_145 = arith.constant 0 : index
      %231 = vector.load %arg6[%c17, %c0_145] : memref<25x512xf32, #tpu.memory_space<vmem>>, vector<1x512xf32>
      %232 = vector.broadcast %231 : vector<1x512xf32> to vector<25x512xf32>
      %233 = arith.mulf %230, %232 : vector<25x512xf32>
      %234 = arith.truncf %233 : vector<25x512xf32> to vector<25x512xbf16>
      %c544 = arith.constant 544 : index
      %c0_146 = arith.constant 0 : index
      %235 = vector.load %arg12[%c544, %c0_146] : memref<800x512xbf16, #tpu.memory_space<vmem>>, vector<25x512xbf16>
      tpu.vector_store %arg12[%c544, %c0_146], %234 {strides = array<i32>} : memref<800x512xbf16, #tpu.memory_space<vmem>>, vector<25x512xbf16>,
      %c495_i32 = arith.constant 495 : i32
      %236 = tpu.dynamic_rotate %131 by %c495_i32 dim 1 : vector<25x512xf32>, i32 -> vector<25x512xf32>
      %c18 = arith.constant 18 : index
      %c0_147 = arith.constant 0 : index
      %237 = vector.load %arg6[%c18, %c0_147] : memref<25x512xf32, #tpu.memory_space<vmem>>, vector<1x512xf32>
      %238 = vector.broadcast %237 : vector<1x512xf32> to vector<25x512xf32>
      %239 = arith.mulf %236, %238 : vector<25x512xf32>
      %240 = arith.truncf %239 : vector<25x512xf32> to vector<25x512xbf16>
      %c576 = arith.constant 576 : index
      %c0_148 = arith.constant 0 : index
      %241 = vector.load %arg12[%c576, %c0_148] : memref<800x512xbf16, #tpu.memory_space<vmem>>, vector<25x512xbf16>
      tpu.vector_store %arg12[%c576, %c0_148], %240 {strides = array<i32>} : memref<800x512xbf16, #tpu.memory_space<vmem>>, vector<25x512xbf16>,
      %c494_i32 = arith.constant 494 : i32
      %242 = tpu.dynamic_rotate %131 by %c494_i32 dim 1 : vector<25x512xf32>, i32 -> vector<25x512xf32>
      %c19 = arith.constant 19 : index
      %c0_149 = arith.constant 0 : index
      %243 = vector.load %arg6[%c19, %c0_149] : memref<25x512xf32, #tpu.memory_space<vmem>>, vector<1x512xf32>
      %244 = vector.broadcast %243 : vector<1x512xf32> to vector<25x512xf32>
      %245 = arith.mulf %242, %244 : vector<25x512xf32>
      %246 = arith.truncf %245 : vector<25x512xf32> to vector<25x512xbf16>
      %c608 = arith.constant 608 : index
      %c0_150 = arith.constant 0 : index
      %247 = vector.load %arg12[%c608, %c0_150] : memref<800x512xbf16, #tpu.memory_space<vmem>>, vector<25x512xbf16>
      tpu.vector_store %arg12[%c608, %c0_150], %246 {strides = array<i32>} : memref<800x512xbf16, #tpu.memory_space<vmem>>, vector<25x512xbf16>,
      %c482_i32 = arith.constant 482 : i32
      %248 = tpu.dynamic_rotate %131 by %c482_i32 dim 1 : vector<25x512xf32>, i32 -> vector<25x512xf32>
      %c20 = arith.constant 20 : index
      %c0_151 = arith.constant 0 : index
      %249 = vector.load %arg6[%c20, %c0_151] : memref<25x512xf32, #tpu.memory_space<vmem>>, vector<1x512xf32>
      %250 = vector.broadcast %249 : vector<1x512xf32> to vector<25x512xf32>
      %251 = arith.mulf %248, %250 : vector<25x512xf32>
      %252 = arith.truncf %251 : vector<25x512xf32> to vector<25x512xbf16>
      %c640 = arith.constant 640 : index
      %c0_152 = arith.constant 0 : index
      %253 = vector.load %arg12[%c640, %c0_152] : memref<800x512xbf16, #tpu.memory_space<vmem>>, vector<25x512xbf16>
      tpu.vector_store %arg12[%c640, %c0_152], %252 {strides = array<i32>} : memref<800x512xbf16, #tpu.memory_space<vmem>>, vector<25x512xbf16>,
      %c481_i32 = arith.constant 481 : i32
      %254 = tpu.dynamic_rotate %131 by %c481_i32 dim 1 : vector<25x512xf32>, i32 -> vector<25x512xf32>
      %c21 = arith.constant 21 : index
      %c0_153 = arith.constant 0 : index
      %255 = vector.load %arg6[%c21, %c0_153] : memref<25x512xf32, #tpu.memory_space<vmem>>, vector<1x512xf32>
      %256 = vector.broadcast %255 : vector<1x512xf32> to vector<25x512xf32>
      %257 = arith.mulf %254, %256 : vector<25x512xf32>
      %258 = arith.truncf %257 : vector<25x512xf32> to vector<25x512xbf16>
      %c672 = arith.constant 672 : index
      %c0_154 = arith.constant 0 : index
      %259 = vector.load %arg12[%c672, %c0_154] : memref<800x512xbf16, #tpu.memory_space<vmem>>, vector<25x512xbf16>
      tpu.vector_store %arg12[%c672, %c0_154], %258 {strides = array<i32>} : memref<800x512xbf16, #tpu.memory_space<vmem>>, vector<25x512xbf16>,
      %c480_i32 = arith.constant 480 : i32
      %260 = tpu.dynamic_rotate %131 by %c480_i32 dim 1 : vector<25x512xf32>, i32 -> vector<25x512xf32>
      %c22 = arith.constant 22 : index
      %c0_155 = arith.constant 0 : index
      %261 = vector.load %arg6[%c22, %c0_155] : memref<25x512xf32, #tpu.memory_space<vmem>>, vector<1x512xf32>
      %262 = vector.broadcast %261 : vector<1x512xf32> to vector<25x512xf32>
      %263 = arith.mulf %260, %262 : vector<25x512xf32>
      %264 = arith.truncf %263 : vector<25x512xf32> to vector<25x512xbf16>
      %c704 = arith.constant 704 : index
      %c0_156 = arith.constant 0 : index
      %265 = vector.load %arg12[%c704, %c0_156] : memref<800x512xbf16, #tpu.memory_space<vmem>>, vector<25x512xbf16>
      tpu.vector_store %arg12[%c704, %c0_156], %264 {strides = array<i32>} : memref<800x512xbf16, #tpu.memory_space<vmem>>, vector<25x512xbf16>,
      %c479_i32 = arith.constant 479 : i32
      %266 = tpu.dynamic_rotate %131 by %c479_i32 dim 1 : vector<25x512xf32>, i32 -> vector<25x512xf32>
      %c23 = arith.constant 23 : index
      %c0_157 = arith.constant 0 : index
      %267 = vector.load %arg6[%c23, %c0_157] : memref<25x512xf32, #tpu.memory_space<vmem>>, vector<1x512xf32>
      %268 = vector.broadcast %267 : vector<1x512xf32> to vector<25x512xf32>
      %269 = arith.mulf %266, %268 : vector<25x512xf32>
      %270 = arith.truncf %269 : vector<25x512xf32> to vector<25x512xbf16>
      %c736 = arith.constant 736 : index
      %c0_158 = arith.constant 0 : index
      %271 = vector.load %arg12[%c736, %c0_158] : memref<800x512xbf16, #tpu.memory_space<vmem>>, vector<25x512xbf16>
      tpu.vector_store %arg12[%c736, %c0_158], %270 {strides = array<i32>} : memref<800x512xbf16, #tpu.memory_space<vmem>>, vector<25x512xbf16>,
      %c478_i32 = arith.constant 478 : i32
      %272 = tpu.dynamic_rotate %131 by %c478_i32 dim 1 : vector<25x512xf32>, i32 -> vector<25x512xf32>
      %c24 = arith.constant 24 : index
      %c0_159 = arith.constant 0 : index
      %273 = vector.load %arg6[%c24, %c0_159] : memref<25x512xf32, #tpu.memory_space<vmem>>, vector<1x512xf32>
      %274 = vector.broadcast %273 : vector<1x512xf32> to vector<25x512xf32>
      %275 = arith.mulf %272, %274 : vector<25x512xf32>
      %276 = arith.truncf %275 : vector<25x512xf32> to vector<25x512xbf16>
      %c768 = arith.constant 768 : index
      %c0_160 = arith.constant 0 : index
      %277 = vector.load %arg12[%c768, %c0_160] : memref<800x512xbf16, #tpu.memory_space<vmem>>, vector<25x512xbf16>
      tpu.vector_store %arg12[%c768, %c0_160], %276 {strides = array<i32>} : memref<800x512xbf16, #tpu.memory_space<vmem>>, vector<25x512xbf16>,
      %c0_161 = arith.constant 0 : index
      %c0_162 = arith.constant 0 : index
      %278 = vector.load %arg4[%c0_161, %c0_162] : memref<25x800xbf16, #tpu.memory_space<vmem>>, vector<25x800xbf16>
      %c0_163 = arith.constant 0 : index
      %c0_164 = arith.constant 0 : index
      %279 = vector.load %arg12[%c0_163, %c0_164] : memref<800x512xbf16, #tpu.memory_space<vmem>>, vector<800x512xbf16>
      %cst_165 = arith.constant dense<0.000000e+00> : vector<25x512xf32>
      %280 = tpu.matmul %278, %279, %cst_165 {dimension_numbers = #tpu.dot_dimension_numbers<[1], [0], [0], [1], [0, 0, 1, 1], [], []>} : vector<25x800xbf16>, vector<800x512xbf16>, vector<25x512xf32> -> vector<25x512xf32>
      %c0_166 = arith.constant 0 : index
      %c0_167 = arith.constant 0 : index
      %c0_168 = arith.constant 0 : index
      %281 = vector.load %arg8[%c0_166, %c0_167, %c0_168] : memref<5x25x1xf32, #tpu.memory_space<vmem>>, vector<1x25x1xf32>
      %282 = vector.shape_cast %281 : vector<1x25x1xf32> to vector<25x1xf32>
      %cst_169 = arith.constant dense<0.000000e+00> : vector<25xf32>
      %283 = vector.multi_reduction <add>, %280, %cst_169 [1] : vector<25x512xf32> to vector<25xf32>
      %284 = vector.shape_cast %283 : vector<25xf32> to vector<25x1xf32>
      %285 = arith.mulf %280, %280 : vector<25x512xf32>
      %cst_170 = arith.constant dense<0.000000e+00> : vector<25xf32>
      %286 = vector.multi_reduction <add>, %285, %cst_170 [1] : vector<25x512xf32> to vector<25xf32>
      %287 = vector.shape_cast %286 : vector<25xf32> to vector<25x1xf32>
      %cst_171 = arith.constant 0.001953125 : f32
      %288 = vector.broadcast %cst_171 : f32 to vector<25x1xf32>
      %289 = arith.mulf %284, %288 : vector<25x1xf32>
      %cst_172 = arith.constant 0.001953125 : f32
      %290 = vector.broadcast %cst_172 : f32 to vector<25x1xf32>
      %291 = arith.mulf %287, %290 : vector<25x1xf32>
      %292 = arith.mulf %289, %289 : vector<25x1xf32>
      %293 = arith.subf %291, %292 : vector<25x1xf32>
      %cst_173 = arith.constant 1.000000e-03 : f32
      %294 = vector.broadcast %cst_173 : f32 to vector<25x1xf32>
      %295 = arith.addf %293, %294 : vector<25x1xf32>
      %296 = math.rsqrt %295 : vector<25x1xf32>
      %297 = arith.mulf %296, %282 : vector<25x1xf32>
      %cst_174 = arith.constant 0.000000e+00 : f32
      %298 = vector.broadcast %cst_174 : f32 to vector<25x1xf32>
      %299 = arith.subf %298, %289 : vector<25x1xf32>
      %300 = arith.mulf %299, %297 : vector<25x1xf32>
      %301 = vector.broadcast %297 : vector<25x1xf32> to vector<25x512xf32>
      %302 = arith.mulf %280, %301 : vector<25x512xf32>
      %303 = vector.broadcast %300 : vector<25x1xf32> to vector<25x512xf32>
      %304 = arith.addf %302, %303 : vector<25x512xf32>
      %c0_175 = arith.constant 0 : index
      %c0_176 = arith.constant 0 : index
      %305 = vector.load %arg13[%c0_175, %c0_176] : memref<25x512xf32, #tpu.memory_space<vmem>>, vector<25x512xf32>
      %c0_177 = arith.constant 0 : index
      %c0_178 = arith.constant 0 : index
      %c0_179 = arith.constant 0 : index
      %306 = vector.load %arg14[%c0_177, %c0_178, %c0_179] : memref<7x25x512xf32, #tpu.memory_space<vmem>>, vector<1x25x512xf32>
      %307 = vector.shape_cast %306 : vector<1x25x512xf32> to vector<25x512xf32>
      %308 = arith.mulf %307, %119 : vector<25x512xf32>
      %c1_180 = arith.constant 1 : index
      %c0_181 = arith.constant 0 : index
      %c0_182 = arith.constant 0 : index
      %309 = vector.load %arg14[%c1_180, %c0_181, %c0_182] : memref<7x25x512xf32, #tpu.memory_space<vmem>>, vector<1x25x512xf32>
      %310 = vector.shape_cast %309 : vector<1x25x512xf32> to vector<25x512xf32>
      %311 = arith.addf %308, %310 : vector<25x512xf32>
      %312 = arith.mulf %304, %311 : vector<25x512xf32>
      %cst_183 = arith.constant 0.000000e+00 : f32
      %313 = vector.broadcast %cst_183 : f32 to vector<25x512xf32>
      %314 = arith.maximumf %312, %313 : vector<25x512xf32>
      %315 = math.absf %312 : vector<25x512xf32>
      %cst_184 = arith.constant 0.000000e+00 : f32
      %316 = vector.broadcast %cst_184 : f32 to vector<25x512xf32>
      %317 = arith.subf %316, %315 : vector<25x512xf32>
      %318 = math.exp %317 : vector<25x512xf32>
      %cst_185 = arith.constant 1.000000e+00 : f32
      %319 = vector.broadcast %cst_185 : f32 to vector<25x512xf32>
      %320 = arith.addf %319, %318 : vector<25x512xf32>
      %321 = math.log %320 : vector<25x512xf32>
      %322 = arith.addf %314, %321 : vector<25x512xf32>
      %323 = arith.subf %305, %322 : vector<25x512xf32>
      %cst_186 = arith.constant 0.000000e+00 : f32
      %324 = vector.broadcast %cst_186 : f32 to vector<25x512xf32>
      %325 = arith.maximumf %323, %324 : vector<25x512xf32>
      %326 = math.absf %323 : vector<25x512xf32>
      %cst_187 = arith.constant 0.000000e+00 : f32
      %327 = vector.broadcast %cst_187 : f32 to vector<25x512xf32>
      %328 = arith.subf %327, %326 : vector<25x512xf32>
      %329 = math.exp %328 : vector<25x512xf32>
      %cst_188 = arith.constant 1.000000e+00 : f32
      %330 = vector.broadcast %cst_188 : f32 to vector<25x512xf32>
      %331 = arith.addf %330, %329 : vector<25x512xf32>
      %332 = math.log %331 : vector<25x512xf32>
      %333 = arith.addf %325, %332 : vector<25x512xf32>
      %c0_189 = arith.constant 0 : index
      %c0_190 = arith.constant 0 : index
      %334 = vector.load %arg3[%c0_189, %c0_190] : memref<25x25xf32, #tpu.memory_space<vmem>>, vector<25x25xf32>
      %cst_191 = arith.constant dense<0.000000e+00> : vector<25x512xf32>
      %335 = tpu.matmul %334, %333, %cst_191 {dimension_numbers = #tpu.dot_dimension_numbers<[1], [0], [0], [1], [0, 0, 1, 1], [], []>} : vector<25x25xf32>, vector<25x512xf32>, vector<25x512xf32> -> vector<25x512xf32>
      %c6_192 = arith.constant 6 : index
      %c0_193 = arith.constant 0 : index
      %c0_194 = arith.constant 0 : index
      %336 = vector.load %arg14[%c6_192, %c0_193, %c0_194] : memref<7x25x512xf32, #tpu.memory_space<vmem>>, vector<1x25x512xf32>
      %337 = vector.shape_cast %336 : vector<1x25x512xf32> to vector<25x512xf32>
      %338 = arith.addf %335, %337 : vector<25x512xf32>
      %cst_195 = arith.constant 0.000000e+00 : f32
      %339 = vector.broadcast %cst_195 : f32 to vector<25x512xf32>
      %340 = arith.subf %339, %338 : vector<25x512xf32>
      %341 = math.exp %340 : vector<25x512xf32>
      %cst_196 = arith.constant 1.000000e+00 : f32
      %342 = vector.broadcast %cst_196 : f32 to vector<25x512xf32>
      %343 = arith.addf %342, %341 : vector<25x512xf32>
      %344 = tpu.reciprocal %343 {approx = true} : vector<25x512xf32> -> vector<25x512xf32>
      %c34_i32_197 = arith.constant 34 : i32
      %345 = tpu.dynamic_rotate %333 by %c34_i32_197 dim 1 : vector<25x512xf32>, i32 -> vector<25x512xf32>
      %c0_198 = arith.constant 0 : index
      %c0_199 = arith.constant 0 : index
      %346 = vector.load %arg6[%c0_198, %c0_199] : memref<25x512xf32, #tpu.memory_space<vmem>>, vector<1x512xf32>
      %347 = vector.broadcast %346 : vector<1x512xf32> to vector<25x512xf32>
      %348 = arith.mulf %345, %347 : vector<25x512xf32>
      %349 = arith.truncf %348 : vector<25x512xf32> to vector<25x512xbf16>
      %c0_200 = arith.constant 0 : index
      %c0_201 = arith.constant 0 : index
      %350 = vector.load %arg12[%c0_200, %c0_201] : memref<800x512xbf16, #tpu.memory_space<vmem>>, vector<25x512xbf16>
      tpu.vector_store %arg12[%c0_200, %c0_201], %349 {strides = array<i32>} : memref<800x512xbf16, #tpu.memory_space<vmem>>, vector<25x512xbf16>,
      %c33_i32_202 = arith.constant 33 : i32
      %351 = tpu.dynamic_rotate %333 by %c33_i32_202 dim 1 : vector<25x512xf32>, i32 -> vector<25x512xf32>
      %c1_203 = arith.constant 1 : index
      %c0_204 = arith.constant 0 : index
      %352 = vector.load %arg6[%c1_203, %c0_204] : memref<25x512xf32, #tpu.memory_space<vmem>>, vector<1x512xf32>
      %353 = vector.broadcast %352 : vector<1x512xf32> to vector<25x512xf32>
      %354 = arith.mulf %351, %353 : vector<25x512xf32>
      %355 = arith.truncf %354 : vector<25x512xf32> to vector<25x512xbf16>
      %c32_205 = arith.constant 32 : index
      %c0_206 = arith.constant 0 : index
      %356 = vector.load %arg12[%c32_205, %c0_206] : memref<800x512xbf16, #tpu.memory_space<vmem>>, vector<25x512xbf16>
      tpu.vector_store %arg12[%c32_205, %c0_206], %355 {strides = array<i32>} : memref<800x512xbf16, #tpu.memory_space<vmem>>, vector<25x512xbf16>,
      %c32_i32_207 = arith.constant 32 : i32
      %357 = tpu.dynamic_rotate %333 by %c32_i32_207 dim 1 : vector<25x512xf32>, i32 -> vector<25x512xf32>
      %c2_208 = arith.constant 2 : index
      %c0_209 = arith.constant 0 : index
      %358 = vector.load %arg6[%c2_208, %c0_209] : memref<25x512xf32, #tpu.memory_space<vmem>>, vector<1x512xf32>
      %359 = vector.broadcast %358 : vector<1x512xf32> to vector<25x512xf32>
      %360 = arith.mulf %357, %359 : vector<25x512xf32>
      %361 = arith.truncf %360 : vector<25x512xf32> to vector<25x512xbf16>
      %c64_210 = arith.constant 64 : index
      %c0_211 = arith.constant 0 : index
      %362 = vector.load %arg12[%c64_210, %c0_211] : memref<800x512xbf16, #tpu.memory_space<vmem>>, vector<25x512xbf16>
      tpu.vector_store %arg12[%c64_210, %c0_211], %361 {strides = array<i32>} : memref<800x512xbf16, #tpu.memory_space<vmem>>, vector<25x512xbf16>,
      %c31_i32_212 = arith.constant 31 : i32
      %363 = tpu.dynamic_rotate %333 by %c31_i32_212 dim 1 : vector<25x512xf32>, i32 -> vector<25x512xf32>
      %c3_213 = arith.constant 3 : index
      %c0_214 = arith.constant 0 : index
      %364 = vector.load %arg6[%c3_213, %c0_214] : memref<25x512xf32, #tpu.memory_space<vmem>>, vector<1x512xf32>
      %365 = vector.broadcast %364 : vector<1x512xf32> to vector<25x512xf32>
      %366 = arith.mulf %363, %365 : vector<25x512xf32>
      %367 = arith.truncf %366 : vector<25x512xf32> to vector<25x512xbf16>
      %c96_215 = arith.constant 96 : index
      %c0_216 = arith.constant 0 : index
      %368 = vector.load %arg12[%c96_215, %c0_216] : memref<800x512xbf16, #tpu.memory_space<vmem>>, vector<25x512xbf16>
      tpu.vector_store %arg12[%c96_215, %c0_216], %367 {strides = array<i32>} : memref<800x512xbf16, #tpu.memory_space<vmem>>, vector<25x512xbf16>,
      %c30_i32_217 = arith.constant 30 : i32
      %369 = tpu.dynamic_rotate %333 by %c30_i32_217 dim 1 : vector<25x512xf32>, i32 -> vector<25x512xf32>
      %c4_218 = arith.constant 4 : index
      %c0_219 = arith.constant 0 : index
      %370 = vector.load %arg6[%c4_218, %c0_219] : memref<25x512xf32, #tpu.memory_space<vmem>>, vector<1x512xf32>
      %371 = vector.broadcast %370 : vector<1x512xf32> to vector<25x512xf32>
      %372 = arith.mulf %369, %371 : vector<25x512xf32>
      %373 = arith.truncf %372 : vector<25x512xf32> to vector<25x512xbf16>
      %c128_220 = arith.constant 128 : index
      %c0_221 = arith.constant 0 : index
      %374 = vector.load %arg12[%c128_220, %c0_221] : memref<800x512xbf16, #tpu.memory_space<vmem>>, vector<25x512xbf16>
      tpu.vector_store %arg12[%c128_220, %c0_221], %373 {strides = array<i32>} : memref<800x512xbf16, #tpu.memory_space<vmem>>, vector<25x512xbf16>,
      %c18_i32_222 = arith.constant 18 : i32
      %375 = tpu.dynamic_rotate %333 by %c18_i32_222 dim 1 : vector<25x512xf32>, i32 -> vector<25x512xf32>
      %c5_223 = arith.constant 5 : index
      %c0_224 = arith.constant 0 : index
      %376 = vector.load %arg6[%c5_223, %c0_224] : memref<25x512xf32, #tpu.memory_space<vmem>>, vector<1x512xf32>
      %377 = vector.broadcast %376 : vector<1x512xf32> to vector<25x512xf32>
      %378 = arith.mulf %375, %377 : vector<25x512xf32>
      %379 = arith.truncf %378 : vector<25x512xf32> to vector<25x512xbf16>
      %c160_225 = arith.constant 160 : index
      %c0_226 = arith.constant 0 : index
      %380 = vector.load %arg12[%c160_225, %c0_226] : memref<800x512xbf16, #tpu.memory_space<vmem>>, vector<25x512xbf16>
      tpu.vector_store %arg12[%c160_225, %c0_226], %379 {strides = array<i32>} : memref<800x512xbf16, #tpu.memory_space<vmem>>, vector<25x512xbf16>,
      %c17_i32_227 = arith.constant 17 : i32
      %381 = tpu.dynamic_rotate %333 by %c17_i32_227 dim 1 : vector<25x512xf32>, i32 -> vector<25x512xf32>
      %c6_228 = arith.constant 6 : index
      %c0_229 = arith.constant 0 : index
      %382 = vector.load %arg6[%c6_228, %c0_229] : memref<25x512xf32, #tpu.memory_space<vmem>>, vector<1x512xf32>
      %383 = vector.broadcast %382 : vector<1x512xf32> to vector<25x512xf32>
      %384 = arith.mulf %381, %383 : vector<25x512xf32>
      %385 = arith.truncf %384 : vector<25x512xf32> to vector<25x512xbf16>
      %c192_230 = arith.constant 192 : index
      %c0_231 = arith.constant 0 : index
      %386 = vector.load %arg12[%c192_230, %c0_231] : memref<800x512xbf16, #tpu.memory_space<vmem>>, vector<25x512xbf16>
      tpu.vector_store %arg12[%c192_230, %c0_231], %385 {strides = array<i32>} : memref<800x512xbf16, #tpu.memory_space<vmem>>, vector<25x512xbf16>,
      %c16_i32_232 = arith.constant 16 : i32
      %387 = tpu.dynamic_rotate %333 by %c16_i32_232 dim 1 : vector<25x512xf32>, i32 -> vector<25x512xf32>
      %c7_233 = arith.constant 7 : index
      %c0_234 = arith.constant 0 : index
      %388 = vector.load %arg6[%c7_233, %c0_234] : memref<25x512xf32, #tpu.memory_space<vmem>>, vector<1x512xf32>
      %389 = vector.broadcast %388 : vector<1x512xf32> to vector<25x512xf32>
      %390 = arith.mulf %387, %389 : vector<25x512xf32>
      %391 = arith.truncf %390 : vector<25x512xf32> to vector<25x512xbf16>
      %c224_235 = arith.constant 224 : index
      %c0_236 = arith.constant 0 : index
      %392 = vector.load %arg12[%c224_235, %c0_236] : memref<800x512xbf16, #tpu.memory_space<vmem>>, vector<25x512xbf16>
      tpu.vector_store %arg12[%c224_235, %c0_236], %391 {strides = array<i32>} : memref<800x512xbf16, #tpu.memory_space<vmem>>, vector<25x512xbf16>,
      %c15_i32_237 = arith.constant 15 : i32
      %393 = tpu.dynamic_rotate %333 by %c15_i32_237 dim 1 : vector<25x512xf32>, i32 -> vector<25x512xf32>
      %c8_238 = arith.constant 8 : index
      %c0_239 = arith.constant 0 : index
      %394 = vector.load %arg6[%c8_238, %c0_239] : memref<25x512xf32, #tpu.memory_space<vmem>>, vector<1x512xf32>
      %395 = vector.broadcast %394 : vector<1x512xf32> to vector<25x512xf32>
      %396 = arith.mulf %393, %395 : vector<25x512xf32>
      %397 = arith.truncf %396 : vector<25x512xf32> to vector<25x512xbf16>
      %c256_240 = arith.constant 256 : index
      %c0_241 = arith.constant 0 : index
      %398 = vector.load %arg12[%c256_240, %c0_241] : memref<800x512xbf16, #tpu.memory_space<vmem>>, vector<25x512xbf16>
      tpu.vector_store %arg12[%c256_240, %c0_241], %397 {strides = array<i32>} : memref<800x512xbf16, #tpu.memory_space<vmem>>, vector<25x512xbf16>,
      %c14_i32_242 = arith.constant 14 : i32
      %399 = tpu.dynamic_rotate %333 by %c14_i32_242 dim 1 : vector<25x512xf32>, i32 -> vector<25x512xf32>
      %c9_243 = arith.constant 9 : index
      %c0_244 = arith.constant 0 : index
      %400 = vector.load %arg6[%c9_243, %c0_244] : memref<25x512xf32, #tpu.memory_space<vmem>>, vector<1x512xf32>
      %401 = vector.broadcast %400 : vector<1x512xf32> to vector<25x512xf32>
      %402 = arith.mulf %399, %401 : vector<25x512xf32>
      %403 = arith.truncf %402 : vector<25x512xf32> to vector<25x512xbf16>
      %c288_245 = arith.constant 288 : index
      %c0_246 = arith.constant 0 : index
      %404 = vector.load %arg12[%c288_245, %c0_246] : memref<800x512xbf16, #tpu.memory_space<vmem>>, vector<25x512xbf16>
      tpu.vector_store %arg12[%c288_245, %c0_246], %403 {strides = array<i32>} : memref<800x512xbf16, #tpu.memory_space<vmem>>, vector<25x512xbf16>,
      %c2_i32_247 = arith.constant 2 : i32
      %405 = tpu.dynamic_rotate %333 by %c2_i32_247 dim 1 : vector<25x512xf32>, i32 -> vector<25x512xf32>
      %c10_248 = arith.constant 10 : index
      %c0_249 = arith.constant 0 : index
      %406 = vector.load %arg6[%c10_248, %c0_249] : memref<25x512xf32, #tpu.memory_space<vmem>>, vector<1x512xf32>
      %407 = vector.broadcast %406 : vector<1x512xf32> to vector<25x512xf32>
      %408 = arith.mulf %405, %407 : vector<25x512xf32>
      %409 = arith.truncf %408 : vector<25x512xf32> to vector<25x512xbf16>
      %c320_250 = arith.constant 320 : index
      %c0_251 = arith.constant 0 : index
      %410 = vector.load %arg12[%c320_250, %c0_251] : memref<800x512xbf16, #tpu.memory_space<vmem>>, vector<25x512xbf16>
      tpu.vector_store %arg12[%c320_250, %c0_251], %409 {strides = array<i32>} : memref<800x512xbf16, #tpu.memory_space<vmem>>, vector<25x512xbf16>,
      %c1_i32_252 = arith.constant 1 : i32
      %411 = tpu.dynamic_rotate %333 by %c1_i32_252 dim 1 : vector<25x512xf32>, i32 -> vector<25x512xf32>
      %c11_253 = arith.constant 11 : index
      %c0_254 = arith.constant 0 : index
      %412 = vector.load %arg6[%c11_253, %c0_254] : memref<25x512xf32, #tpu.memory_space<vmem>>, vector<1x512xf32>
      %413 = vector.broadcast %412 : vector<1x512xf32> to vector<25x512xf32>
      %414 = arith.mulf %411, %413 : vector<25x512xf32>
      %415 = arith.truncf %414 : vector<25x512xf32> to vector<25x512xbf16>
      %c352_255 = arith.constant 352 : index
      %c0_256 = arith.constant 0 : index
      %416 = vector.load %arg12[%c352_255, %c0_256] : memref<800x512xbf16, #tpu.memory_space<vmem>>, vector<25x512xbf16>
      tpu.vector_store %arg12[%c352_255, %c0_256], %415 {strides = array<i32>} : memref<800x512xbf16, #tpu.memory_space<vmem>>, vector<25x512xbf16>,
      %417 = arith.truncf %333 : vector<25x512xf32> to vector<25x512xbf16>
      %c384_257 = arith.constant 384 : index
      %c0_258 = arith.constant 0 : index
      %418 = vector.load %arg12[%c384_257, %c0_258] : memref<800x512xbf16, #tpu.memory_space<vmem>>, vector<25x512xbf16>
      tpu.vector_store %arg12[%c384_257, %c0_258], %417 {strides = array<i32>} : memref<800x512xbf16, #tpu.memory_space<vmem>>, vector<25x512xbf16>,
      %c511_i32_259 = arith.constant 511 : i32
      %419 = tpu.dynamic_rotate %333 by %c511_i32_259 dim 1 : vector<25x512xf32>, i32 -> vector<25x512xf32>
      %c13_260 = arith.constant 13 : index
      %c0_261 = arith.constant 0 : index
      %420 = vector.load %arg6[%c13_260, %c0_261] : memref<25x512xf32, #tpu.memory_space<vmem>>, vector<1x512xf32>
      %421 = vector.broadcast %420 : vector<1x512xf32> to vector<25x512xf32>
      %422 = arith.mulf %419, %421 : vector<25x512xf32>
      %423 = arith.truncf %422 : vector<25x512xf32> to vector<25x512xbf16>
      %c416_262 = arith.constant 416 : index
      %c0_263 = arith.constant 0 : index
      %424 = vector.load %arg12[%c416_262, %c0_263] : memref<800x512xbf16, #tpu.memory_space<vmem>>, vector<25x512xbf16>
      tpu.vector_store %arg12[%c416_262, %c0_263], %423 {strides = array<i32>} : memref<800x512xbf16, #tpu.memory_space<vmem>>, vector<25x512xbf16>,
      %c510_i32_264 = arith.constant 510 : i32
      %425 = tpu.dynamic_rotate %333 by %c510_i32_264 dim 1 : vector<25x512xf32>, i32 -> vector<25x512xf32>
      %c14_265 = arith.constant 14 : index
      %c0_266 = arith.constant 0 : index
      %426 = vector.load %arg6[%c14_265, %c0_266] : memref<25x512xf32, #tpu.memory_space<vmem>>, vector<1x512xf32>
      %427 = vector.broadcast %426 : vector<1x512xf32> to vector<25x512xf32>
      %428 = arith.mulf %425, %427 : vector<25x512xf32>
      %429 = arith.truncf %428 : vector<25x512xf32> to vector<25x512xbf16>
      %c448_267 = arith.constant 448 : index
      %c0_268 = arith.constant 0 : index
      %430 = vector.load %arg12[%c448_267, %c0_268] : memref<800x512xbf16, #tpu.memory_space<vmem>>, vector<25x512xbf16>
      tpu.vector_store %arg12[%c448_267, %c0_268], %429 {strides = array<i32>} : memref<800x512xbf16, #tpu.memory_space<vmem>>, vector<25x512xbf16>,
      %c498_i32_269 = arith.constant 498 : i32
      %431 = tpu.dynamic_rotate %333 by %c498_i32_269 dim 1 : vector<25x512xf32>, i32 -> vector<25x512xf32>
      %c15_270 = arith.constant 15 : index
      %c0_271 = arith.constant 0 : index
      %432 = vector.load %arg6[%c15_270, %c0_271] : memref<25x512xf32, #tpu.memory_space<vmem>>, vector<1x512xf32>
      %433 = vector.broadcast %432 : vector<1x512xf32> to vector<25x512xf32>
      %434 = arith.mulf %431, %433 : vector<25x512xf32>
      %435 = arith.truncf %434 : vector<25x512xf32> to vector<25x512xbf16>
      %c480_272 = arith.constant 480 : index
      %c0_273 = arith.constant 0 : index
      %436 = vector.load %arg12[%c480_272, %c0_273] : memref<800x512xbf16, #tpu.memory_space<vmem>>, vector<25x512xbf16>
      tpu.vector_store %arg12[%c480_272, %c0_273], %435 {strides = array<i32>} : memref<800x512xbf16, #tpu.memory_space<vmem>>, vector<25x512xbf16>,
      %c497_i32_274 = arith.constant 497 : i32
      %437 = tpu.dynamic_rotate %333 by %c497_i32_274 dim 1 : vector<25x512xf32>, i32 -> vector<25x512xf32>
      %c16_275 = arith.constant 16 : index
      %c0_276 = arith.constant 0 : index
      %438 = vector.load %arg6[%c16_275, %c0_276] : memref<25x512xf32, #tpu.memory_space<vmem>>, vector<1x512xf32>
      %439 = vector.broadcast %438 : vector<1x512xf32> to vector<25x512xf32>
      %440 = arith.mulf %437, %439 : vector<25x512xf32>
      %441 = arith.truncf %440 : vector<25x512xf32> to vector<25x512xbf16>
      %c512_277 = arith.constant 512 : index
      %c0_278 = arith.constant 0 : index
      %442 = vector.load %arg12[%c512_277, %c0_278] : memref<800x512xbf16, #tpu.memory_space<vmem>>, vector<25x512xbf16>
      tpu.vector_store %arg12[%c512_277, %c0_278], %441 {strides = array<i32>} : memref<800x512xbf16, #tpu.memory_space<vmem>>, vector<25x512xbf16>,
      %c496_i32_279 = arith.constant 496 : i32
      %443 = tpu.dynamic_rotate %333 by %c496_i32_279 dim 1 : vector<25x512xf32>, i32 -> vector<25x512xf32>
      %c17_280 = arith.constant 17 : index
      %c0_281 = arith.constant 0 : index
      %444 = vector.load %arg6[%c17_280, %c0_281] : memref<25x512xf32, #tpu.memory_space<vmem>>, vector<1x512xf32>
      %445 = vector.broadcast %444 : vector<1x512xf32> to vector<25x512xf32>
      %446 = arith.mulf %443, %445 : vector<25x512xf32>
      %447 = arith.truncf %446 : vector<25x512xf32> to vector<25x512xbf16>
      %c544_282 = arith.constant 544 : index
      %c0_283 = arith.constant 0 : index
      %448 = vector.load %arg12[%c544_282, %c0_283] : memref<800x512xbf16, #tpu.memory_space<vmem>>, vector<25x512xbf16>
      tpu.vector_store %arg12[%c544_282, %c0_283], %447 {strides = array<i32>} : memref<800x512xbf16, #tpu.memory_space<vmem>>, vector<25x512xbf16>,
      %c495_i32_284 = arith.constant 495 : i32
      %449 = tpu.dynamic_rotate %333 by %c495_i32_284 dim 1 : vector<25x512xf32>, i32 -> vector<25x512xf32>
      %c18_285 = arith.constant 18 : index
      %c0_286 = arith.constant 0 : index
      %450 = vector.load %arg6[%c18_285, %c0_286] : memref<25x512xf32, #tpu.memory_space<vmem>>, vector<1x512xf32>
      %451 = vector.broadcast %450 : vector<1x512xf32> to vector<25x512xf32>
      %452 = arith.mulf %449, %451 : vector<25x512xf32>
      %453 = arith.truncf %452 : vector<25x512xf32> to vector<25x512xbf16>
      %c576_287 = arith.constant 576 : index
      %c0_288 = arith.constant 0 : index
      %454 = vector.load %arg12[%c576_287, %c0_288] : memref<800x512xbf16, #tpu.memory_space<vmem>>, vector<25x512xbf16>
      tpu.vector_store %arg12[%c576_287, %c0_288], %453 {strides = array<i32>} : memref<800x512xbf16, #tpu.memory_space<vmem>>, vector<25x512xbf16>,
      %c494_i32_289 = arith.constant 494 : i32
      %455 = tpu.dynamic_rotate %333 by %c494_i32_289 dim 1 : vector<25x512xf32>, i32 -> vector<25x512xf32>
      %c19_290 = arith.constant 19 : index
      %c0_291 = arith.constant 0 : index
      %456 = vector.load %arg6[%c19_290, %c0_291] : memref<25x512xf32, #tpu.memory_space<vmem>>, vector<1x512xf32>
      %457 = vector.broadcast %456 : vector<1x512xf32> to vector<25x512xf32>
      %458 = arith.mulf %455, %457 : vector<25x512xf32>
      %459 = arith.truncf %458 : vector<25x512xf32> to vector<25x512xbf16>
      %c608_292 = arith.constant 608 : index
      %c0_293 = arith.constant 0 : index
      %460 = vector.load %arg12[%c608_292, %c0_293] : memref<800x512xbf16, #tpu.memory_space<vmem>>, vector<25x512xbf16>
      tpu.vector_store %arg12[%c608_292, %c0_293], %459 {strides = array<i32>} : memref<800x512xbf16, #tpu.memory_space<vmem>>, vector<25x512xbf16>,
      %c482_i32_294 = arith.constant 482 : i32
      %461 = tpu.dynamic_rotate %333 by %c482_i32_294 dim 1 : vector<25x512xf32>, i32 -> vector<25x512xf32>
      %c20_295 = arith.constant 20 : index
      %c0_296 = arith.constant 0 : index
      %462 = vector.load %arg6[%c20_295, %c0_296] : memref<25x512xf32, #tpu.memory_space<vmem>>, vector<1x512xf32>
      %463 = vector.broadcast %462 : vector<1x512xf32> to vector<25x512xf32>
      %464 = arith.mulf %461, %463 : vector<25x512xf32>
      %465 = arith.truncf %464 : vector<25x512xf32> to vector<25x512xbf16>
      %c640_297 = arith.constant 640 : index
      %c0_298 = arith.constant 0 : index
      %466 = vector.load %arg12[%c640_297, %c0_298] : memref<800x512xbf16, #tpu.memory_space<vmem>>, vector<25x512xbf16>
      tpu.vector_store %arg12[%c640_297, %c0_298], %465 {strides = array<i32>} : memref<800x512xbf16, #tpu.memory_space<vmem>>, vector<25x512xbf16>,
      %c481_i32_299 = arith.constant 481 : i32
      %467 = tpu.dynamic_rotate %333 by %c481_i32_299 dim 1 : vector<25x512xf32>, i32 -> vector<25x512xf32>
      %c21_300 = arith.constant 21 : index
      %c0_301 = arith.constant 0 : index
      %468 = vector.load %arg6[%c21_300, %c0_301] : memref<25x512xf32, #tpu.memory_space<vmem>>, vector<1x512xf32>
      %469 = vector.broadcast %468 : vector<1x512xf32> to vector<25x512xf32>
      %470 = arith.mulf %467, %469 : vector<25x512xf32>
      %471 = arith.truncf %470 : vector<25x512xf32> to vector<25x512xbf16>
      %c672_302 = arith.constant 672 : index
      %c0_303 = arith.constant 0 : index
      %472 = vector.load %arg12[%c672_302, %c0_303] : memref<800x512xbf16, #tpu.memory_space<vmem>>, vector<25x512xbf16>
      tpu.vector_store %arg12[%c672_302, %c0_303], %471 {strides = array<i32>} : memref<800x512xbf16, #tpu.memory_space<vmem>>, vector<25x512xbf16>,
      %c480_i32_304 = arith.constant 480 : i32
      %473 = tpu.dynamic_rotate %333 by %c480_i32_304 dim 1 : vector<25x512xf32>, i32 -> vector<25x512xf32>
      %c22_305 = arith.constant 22 : index
      %c0_306 = arith.constant 0 : index
      %474 = vector.load %arg6[%c22_305, %c0_306] : memref<25x512xf32, #tpu.memory_space<vmem>>, vector<1x512xf32>
      %475 = vector.broadcast %474 : vector<1x512xf32> to vector<25x512xf32>
      %476 = arith.mulf %473, %475 : vector<25x512xf32>
      %477 = arith.truncf %476 : vector<25x512xf32> to vector<25x512xbf16>
      %c704_307 = arith.constant 704 : index
      %c0_308 = arith.constant 0 : index
      %478 = vector.load %arg12[%c704_307, %c0_308] : memref<800x512xbf16, #tpu.memory_space<vmem>>, vector<25x512xbf16>
      tpu.vector_store %arg12[%c704_307, %c0_308], %477 {strides = array<i32>} : memref<800x512xbf16, #tpu.memory_space<vmem>>, vector<25x512xbf16>,
      %c479_i32_309 = arith.constant 479 : i32
      %479 = tpu.dynamic_rotate %333 by %c479_i32_309 dim 1 : vector<25x512xf32>, i32 -> vector<25x512xf32>
      %c23_310 = arith.constant 23 : index
      %c0_311 = arith.constant 0 : index
      %480 = vector.load %arg6[%c23_310, %c0_311] : memref<25x512xf32, #tpu.memory_space<vmem>>, vector<1x512xf32>
      %481 = vector.broadcast %480 : vector<1x512xf32> to vector<25x512xf32>
      %482 = arith.mulf %479, %481 : vector<25x512xf32>
      %483 = arith.truncf %482 : vector<25x512xf32> to vector<25x512xbf16>
      %c736_312 = arith.constant 736 : index
      %c0_313 = arith.constant 0 : index
      %484 = vector.load %arg12[%c736_312, %c0_313] : memref<800x512xbf16, #tpu.memory_space<vmem>>, vector<25x512xbf16>
      tpu.vector_store %arg12[%c736_312, %c0_313], %483 {strides = array<i32>} : memref<800x512xbf16, #tpu.memory_space<vmem>>, vector<25x512xbf16>,
      %c478_i32_314 = arith.constant 478 : i32
      %485 = tpu.dynamic_rotate %333 by %c478_i32_314 dim 1 : vector<25x512xf32>, i32 -> vector<25x512xf32>
      %c24_315 = arith.constant 24 : index
      %c0_316 = arith.constant 0 : index
      %486 = vector.load %arg6[%c24_315, %c0_316] : memref<25x512xf32, #tpu.memory_space<vmem>>, vector<1x512xf32>
      %487 = vector.broadcast %486 : vector<1x512xf32> to vector<25x512xf32>
      %488 = arith.mulf %485, %487 : vector<25x512xf32>
      %489 = arith.truncf %488 : vector<25x512xf32> to vector<25x512xbf16>
      %c768_317 = arith.constant 768 : index
      %c0_318 = arith.constant 0 : index
      %490 = vector.load %arg12[%c768_317, %c0_318] : memref<800x512xbf16, #tpu.memory_space<vmem>>, vector<25x512xbf16>
      tpu.vector_store %arg12[%c768_317, %c0_318], %489 {strides = array<i32>} : memref<800x512xbf16, #tpu.memory_space<vmem>>, vector<25x512xbf16>,
      %c0_319 = arith.constant 0 : index
      %c0_320 = arith.constant 0 : index
      %491 = vector.load %arg5[%c0_319, %c0_320] : memref<25x800xbf16, #tpu.memory_space<vmem>>, vector<25x800xbf16>
      %c0_321 = arith.constant 0 : index
      %c0_322 = arith.constant 0 : index
      %492 = vector.load %arg12[%c0_321, %c0_322] : memref<800x512xbf16, #tpu.memory_space<vmem>>, vector<800x512xbf16>
      %cst_323 = arith.constant dense<0.000000e+00> : vector<25x512xf32>
      %493 = tpu.matmul %491, %492, %cst_323 {dimension_numbers = #tpu.dot_dimension_numbers<[1], [0], [0], [1], [0, 0, 1, 1], [], []>} : vector<25x800xbf16>, vector<800x512xbf16>, vector<25x512xf32> -> vector<25x512xf32>
      %c1_324 = arith.constant 1 : index
      %c0_325 = arith.constant 0 : index
      %c0_326 = arith.constant 0 : index
      %494 = vector.load %arg8[%c1_324, %c0_325, %c0_326] : memref<5x25x1xf32, #tpu.memory_space<vmem>>, vector<1x25x1xf32>
      %495 = vector.shape_cast %494 : vector<1x25x1xf32> to vector<25x1xf32>
      %cst_327 = arith.constant dense<0.000000e+00> : vector<25xf32>
      %496 = vector.multi_reduction <add>, %493, %cst_327 [1] : vector<25x512xf32> to vector<25xf32>
      %497 = vector.shape_cast %496 : vector<25xf32> to vector<25x1xf32>
      %498 = arith.mulf %493, %493 : vector<25x512xf32>
      %cst_328 = arith.constant dense<0.000000e+00> : vector<25xf32>
      %499 = vector.multi_reduction <add>, %498, %cst_328 [1] : vector<25x512xf32> to vector<25xf32>
      %500 = vector.shape_cast %499 : vector<25xf32> to vector<25x1xf32>
      %cst_329 = arith.constant 0.001953125 : f32
      %501 = vector.broadcast %cst_329 : f32 to vector<25x1xf32>
      %502 = arith.mulf %497, %501 : vector<25x1xf32>
      %cst_330 = arith.constant 0.001953125 : f32
      %503 = vector.broadcast %cst_330 : f32 to vector<25x1xf32>
      %504 = arith.mulf %500, %503 : vector<25x1xf32>
      %505 = arith.mulf %502, %502 : vector<25x1xf32>
      %506 = arith.subf %504, %505 : vector<25x1xf32>
      %cst_331 = arith.constant 1.000000e-03 : f32
      %507 = vector.broadcast %cst_331 : f32 to vector<25x1xf32>
      %508 = arith.addf %506, %507 : vector<25x1xf32>
      %509 = math.rsqrt %508 : vector<25x1xf32>
      %510 = arith.mulf %509, %495 : vector<25x1xf32>
      %cst_332 = arith.constant 0.000000e+00 : f32
      %511 = vector.broadcast %cst_332 : f32 to vector<25x1xf32>
      %512 = arith.subf %511, %502 : vector<25x1xf32>
      %513 = arith.mulf %512, %510 : vector<25x1xf32>
      %514 = vector.broadcast %510 : vector<25x1xf32> to vector<25x512xf32>
      %515 = arith.mulf %493, %514 : vector<25x512xf32>
      %516 = vector.broadcast %513 : vector<25x1xf32> to vector<25x512xf32>
      %517 = arith.addf %515, %516 : vector<25x512xf32>
      %c2_333 = arith.constant 2 : index
      %c0_334 = arith.constant 0 : index
      %c0_335 = arith.constant 0 : index
      %518 = vector.load %arg14[%c2_333, %c0_334, %c0_335] : memref<7x25x512xf32, #tpu.memory_space<vmem>>, vector<1x25x512xf32>
      %519 = vector.shape_cast %518 : vector<1x25x512xf32> to vector<25x512xf32>
      %520 = arith.mulf %519, %333 : vector<25x512xf32>
      %c3_336 = arith.constant 3 : index
      %c0_337 = arith.constant 0 : index
      %c0_338 = arith.constant 0 : index
      %521 = vector.load %arg14[%c3_336, %c0_337, %c0_338] : memref<7x25x512xf32, #tpu.memory_space<vmem>>, vector<1x25x512xf32>
      %522 = vector.shape_cast %521 : vector<1x25x512xf32> to vector<25x512xf32>
      %523 = arith.mulf %522, %517 : vector<25x512xf32>
      %524 = arith.addf %520, %523 : vector<25x512xf32>
      %c4_339 = arith.constant 4 : index
      %c0_340 = arith.constant 0 : index
      %c0_341 = arith.constant 0 : index
      %525 = vector.load %arg14[%c4_339, %c0_340, %c0_341] : memref<7x25x512xf32, #tpu.memory_space<vmem>>, vector<1x25x512xf32>
      %526 = vector.shape_cast %525 : vector<1x25x512xf32> to vector<25x512xf32>
      %527 = arith.mulf %526, %333 : vector<25x512xf32>
      %528 = arith.mulf %527, %517 : vector<25x512xf32>
      %529 = arith.addf %524, %528 : vector<25x512xf32>
      %cst_342 = arith.constant 0.000000e+00 : f32
      %530 = vector.broadcast %cst_342 : f32 to vector<25x512xf32>
      %531 = arith.maximumf %529, %530 : vector<25x512xf32>
      %532 = math.absf %529 : vector<25x512xf32>
      %cst_343 = arith.constant 0.000000e+00 : f32
      %533 = vector.broadcast %cst_343 : f32 to vector<25x512xf32>
      %534 = arith.subf %533, %532 : vector<25x512xf32>
      %535 = math.exp %534 : vector<25x512xf32>
      %cst_344 = arith.constant 1.000000e+00 : f32
      %536 = vector.broadcast %cst_344 : f32 to vector<25x512xf32>
      %537 = arith.addf %536, %535 : vector<25x512xf32>
      %538 = math.log %537 : vector<25x512xf32>
      %539 = arith.addf %531, %538 : vector<25x512xf32>
      %cst_345 = arith.constant 1.000000e+00 : f32
      %540 = vector.broadcast %cst_345 : f32 to vector<25x512xf32>
      %541 = arith.subf %540, %344 : vector<25x512xf32>
      %542 = arith.mulf %541, %119 : vector<25x512xf32>
      %543 = arith.mulf %344, %539 : vector<25x512xf32>
      %544 = arith.addf %542, %543 : vector<25x512xf32>
      %cst_346 = arith.constant 0.000000e+00 : f32
      %545 = vector.broadcast %cst_346 : f32 to vector<25x512xf32>
      %546 = arith.maximumf %544, %545 : vector<25x512xf32>
      %547 = math.absf %544 : vector<25x512xf32>
      %cst_347 = arith.constant 0.000000e+00 : f32
      %548 = vector.broadcast %cst_347 : f32 to vector<25x512xf32>
      %549 = arith.subf %548, %547 : vector<25x512xf32>
      %550 = math.exp %549 : vector<25x512xf32>
      %cst_348 = arith.constant 1.000000e+00 : f32
      %551 = vector.broadcast %cst_348 : f32 to vector<25x512xf32>
      %552 = arith.addf %551, %550 : vector<25x512xf32>
      %553 = math.log %552 : vector<25x512xf32>
      %554 = arith.addf %546, %553 : vector<25x512xf32>
      %c0_349 = arith.constant 0 : index
      %c0_350 = arith.constant 0 : index
      %555 = vector.load %arg15[%c0_349, %c0_350] : memref<25x512xf32, #tpu.memory_space<vmem>>, vector<25x512xf32>
      tpu.vector_store %arg15[%c0_349, %c0_350], %554 {strides = array<i32>} : memref<25x512xf32, #tpu.memory_space<vmem>>, vector<25x512xf32>,
    }
    %c0_73 = arith.constant 0 : index
    %c0_74 = arith.constant 0 : index
    %87 = vector.load %arg15[%c0_73, %c0_74] : memref<25x512xf32, #tpu.memory_space<vmem>>, vector<25x512xf32>
    %c2_75 = arith.constant 2 : index
    %c0_76 = arith.constant 0 : index
    %c0_77 = arith.constant 0 : index
    %88 = vector.load %arg8[%c2_75, %c0_76, %c0_77] : memref<5x25x1xf32, #tpu.memory_space<vmem>>, vector<1x25x1xf32>
    %89 = vector.shape_cast %88 : vector<1x25x1xf32> to vector<25x1xf32>
    %c3_78 = arith.constant 3 : index
    %c0_79 = arith.constant 0 : index
    %c0_80 = arith.constant 0 : index
    %90 = vector.load %arg8[%c3_78, %c0_79, %c0_80] : memref<5x25x1xf32, #tpu.memory_space<vmem>>, vector<1x25x1xf32>
    %91 = vector.shape_cast %90 : vector<1x25x1xf32> to vector<25x1xf32>
    %cst_81 = arith.constant dense<0.000000e+00> : vector<25xf32>
    %92 = vector.multi_reduction <add>, %87, %cst_81 [1] : vector<25x512xf32> to vector<25xf32>
    %93 = vector.shape_cast %92 : vector<25xf32> to vector<25x1xf32>
    %94 = arith.mulf %87, %87 : vector<25x512xf32>
    %cst_82 = arith.constant dense<0.000000e+00> : vector<25xf32>
    %95 = vector.multi_reduction <add>, %94, %cst_82 [1] : vector<25x512xf32> to vector<25xf32>
    %96 = vector.shape_cast %95 : vector<25xf32> to vector<25x1xf32>
    %cst_83 = arith.constant 0.001953125 : f32
    %97 = vector.broadcast %cst_83 : f32 to vector<25x1xf32>
    %98 = arith.mulf %93, %97 : vector<25x1xf32>
    %cst_84 = arith.constant 0.001953125 : f32
    %99 = vector.broadcast %cst_84 : f32 to vector<25x1xf32>
    %100 = arith.mulf %96, %99 : vector<25x1xf32>
    %101 = arith.mulf %98, %98 : vector<25x1xf32>
    %102 = arith.subf %100, %101 : vector<25x1xf32>
    %cst_85 = arith.constant 1.000000e-03 : f32
    %103 = vector.broadcast %cst_85 : f32 to vector<25x1xf32>
    %104 = arith.addf %102, %103 : vector<25x1xf32>
    %105 = math.rsqrt %104 : vector<25x1xf32>
    %106 = arith.mulf %105, %89 : vector<25x1xf32>
    %107 = arith.mulf %98, %106 : vector<25x1xf32>
    %108 = arith.subf %91, %107 : vector<25x1xf32>
    %109 = vector.broadcast %106 : vector<25x1xf32> to vector<25x512xf32>
    %110 = arith.mulf %87, %109 : vector<25x512xf32>
    %111 = vector.broadcast %108 : vector<25x1xf32> to vector<25x512xf32>
    %112 = arith.addf %110, %111 : vector<25x512xf32>
    %c0_86 = arith.constant 0 : index
    %c0_87 = arith.constant 0 : index
    %113 = vector.load %arg9[%c0_86, %c0_87] : memref<2x25xf32, #tpu.memory_space<vmem>>, vector<2x25xf32>
    %cst_88 = arith.constant dense<0.000000e+00> : vector<2x512xf32>
    %114 = tpu.matmul %113, %112, %cst_88 {dimension_numbers = #tpu.dot_dimension_numbers<[1], [0], [0], [1], [0, 0, 1, 1], [], []>} : vector<2x25xf32>, vector<25x512xf32>, vector<2x512xf32> -> vector<2x512xf32>
    %c0_89 = arith.constant 0 : index
    %c0_90 = arith.constant 0 : index
    %115 = vector.load %arg10[%c0_89, %c0_90] : memref<2x1xf32, #tpu.memory_space<vmem>>, vector<2x1xf32>
    %116 = vector.broadcast %115 : vector<2x1xf32> to vector<2x512xf32>
    %117 = arith.addf %114, %116 : vector<2x512xf32>
    %c0_91 = arith.constant 0 : index
    %c0_92 = arith.constant 0 : index
    %118 = vector.load %arg11[%c0_91, %c0_92] : memref<2x512xf32, #tpu.memory_space<vmem>>, vector<2x512xf32>
    tpu.vector_store %arg11[%c0_91, %c0_92], %117 {strides = array<i32>} : memref<2x512xf32, #tpu.memory_space<vmem>>, vector<2x512xf32>,
    return
  }
}

</mosaic_0001>

<llo_original>
// kernel: _lambda_.1
$region0: #{_lambda_.1}
  #allocation0 [shape = 'u32[]', space=smem, size = 0x4, offset = 0x4, fixed_abs, tag = 'smem constant byte address 0x4 - core index']
  #allocation1 [shape = 'u32[144,128]{1,0:T(1,128)}', space=vmem, size = 0x12000, scoped, tag = 'internal scratch']
  #allocation2 [shape = 'bf16[800,512]{1,0:T(16,128)(2,1)}', space=vmem, size = 0xc8000, scoped, tag = 'scratch operand']
  #allocation3 [shape = 'f32[25,512]{1,0:T(8,128)}', space=vmem, size = 0x10000, scoped, tag = 'scratch operand']
  #allocation4 [shape = 'f32[7,25,512]{2,1,0:T(8,128)}', space=vmem, size = 0x70000, scoped, tag = 'scratch operand']
  #allocation5 [shape = 'f32[25,512]{1,0:T(8,128)}', space=vmem, size = 0x10000, scoped, tag = 'scratch operand']
  %s0 = inlined_call_operand.vmem [shape: f32[56,512], index: 0, kind: input, shape index: {}]
  %s1 = inlined_call_operand.vmem [shape: f32[25,56], index: 1, kind: input, shape index: {}]
  %s2 = inlined_call_operand.vmem [shape: f32[25,25], index: 2, kind: input, shape index: {}]
  %s3 = inlined_call_operand.vmem [shape: f32[25,25], index: 3, kind: input, shape index: {}]
  %s4 = inlined_call_operand.vmem [shape: bf16[25,800], index: 4, kind: input, shape index: {}]
  %s5 = inlined_call_operand.vmem [shape: bf16[25,800], index: 5, kind: input, shape index: {}]
  %s6 = inlined_call_operand.vmem [shape: f32[25,512], index: 6, kind: input, shape index: {}]
  %s7 = inlined_call_operand.vmem [shape: f32[7,25,1], index: 7, kind: input, shape index: {}]
  %s8 = inlined_call_operand.vmem [shape: f32[5,25,1], index: 8, kind: input, shape index: {}]
  %s9 = inlined_call_operand.vmem [shape: f32[2,25], index: 9, kind: input, shape index: {}]
  %s10 = inlined_call_operand.vmem [shape: f32[2,1], index: 10, kind: input, shape index: {}]
  %s11 = inlined_call_operand.vmem [shape: f32[2,512], index: 11, kind: output, shape index: {}]
  %s12 = sld [smem:[#allocation0]]
  $region61: #{_lambda_.1} parent=0
    _
  %s14 = ssub.s32 1, %s12
  %s15 = scalar_select 0, %s14, %s12
  // Predicated region
  $region2: #{_lambda_.1} parent=0 // pred_check
    _
  $region3: #{_lambda_.1} parent=0 // pred_check_branch
    %17 = sbr.rel (0) target = $region5
  $region4: #{_lambda_.1} parent=0 // pred_region
    _
  $region5: #{_lambda_.1} parent=0 // pred_fallthru
    _
  // Predicated region
  $region6: #{_lambda_.1} parent=0 // pred_check
    _
  $region7: #{_lambda_.1} parent=0 // pred_check_branch
    %19 = sbr.rel (0) target = $region9
  $region8: #{_lambda_.1} parent=0 // pred_region
    _
  $region9: #{_lambda_.1} parent=0 // pred_fallthru
    _
  // Predicated region
  $region10: #{_lambda_.1} parent=0 // pred_check
    _
  $region11: #{_lambda_.1} parent=0 // pred_check_branch
    %21 = sbr.rel (0) target = $region13
  $region12: #{_lambda_.1} parent=0 // pred_region
    _
  $region13: #{_lambda_.1} parent=0 // pred_fallthru
    _
  // Predicated region
  $region14: #{_lambda_.1} parent=0 // pred_check
    _
  $region15: #{_lambda_.1} parent=0 // pred_check_branch
    %23 = sbr.rel (0) target = $region17
  $region16: #{_lambda_.1} parent=0 // pred_region
    _
  $region17: #{_lambda_.1} parent=0 // pred_fallthru
    _
  // Predicated region
  $region18: #{_lambda_.1} parent=0 // pred_check
    _
  $region19: #{_lambda_.1} parent=0 // pred_check_branch
    %25 = sbr.rel (0) target = $region21
  $region20: #{_lambda_.1} parent=0 // pred_region
    _
  $region21: #{_lambda_.1} parent=0 // pred_fallthru
    _
  // Predicated region
  $region22: #{_lambda_.1} parent=0 // pred_check
    _
  $region23: #{_lambda_.1} parent=0 // pred_check_branch
    %27 = sbr.rel (0) target = $region25
  $region24: #{_lambda_.1} parent=0 // pred_region
    _
  $region25: #{_lambda_.1} parent=0 // pred_fallthru
    _
  // Predicated region
  $region26: #{_lambda_.1} parent=0 // pred_check
    _
  $region27: #{_lambda_.1} parent=0 // pred_check_branch
    %29 = sbr.rel (0) target = $region29
  $region28: #{_lambda_.1} parent=0 // pred_region
    _
  $region29: #{_lambda_.1} parent=0 // pred_fallthru
    _
  // Predicated region
  $region30: #{_lambda_.1} parent=0 // pred_check
    _
  $region31: #{_lambda_.1} parent=0 // pred_check_branch
    %31 = sbr.rel (0) target = $region33
  $region32: #{_lambda_.1} parent=0 // pred_region
    _
  $region33: #{_lambda_.1} parent=0 // pred_fallthru
    _
  // Predicated region
  $region34: #{_lambda_.1} parent=0 // pred_check
    _
  $region35: #{_lambda_.1} parent=0 // pred_check_branch
    %33 = sbr.rel (0) target = $region37
  $region36: #{_lambda_.1} parent=0 // pred_region
    _
  $region37: #{_lambda_.1} parent=0 // pred_fallthru
    _
  // Predicated region
  $region38: #{_lambda_.1} parent=0 // pred_check
    _
  $region39: #{_lambda_.1} parent=0 // pred_check_branch
    %35 = sbr.rel (0) target = $region41
  $region40: #{_lambda_.1} parent=0 // pred_region
    _
  $region41: #{_lambda_.1} parent=0 // pred_fallthru
    _
  // Predicated region
  $region42: #{_lambda_.1} parent=0 // pred_check
    _
  $region43: #{_lambda_.1} parent=0 // pred_check_branch
    %37 = sbr.rel (0) target = $region45
  $region44: #{_lambda_.1} parent=0 // pred_region
    _
  $region45: #{_lambda_.1} parent=0 // pred_fallthru
    _
  %v39 = vld [vmem:[%s7] sm:$0xff]
  %v40 = vld [vmem:[%s7 + $0x8] sm:$0xff]
  %v41 = vld [vmem:[%s7 + $0x10] sm:$0xff]
  %v42 = vld [vmem:[%s7 + $0x18] sm:$0x1]
  %44 = vset.pattern.permute.xlu0 0
  %45 = vperm.xlu0 %44, %v39
  %v46 = vpop.permute.xlu0 %45
  %49 = vset.pattern.permute.xlu0 0
  %50 = vperm.xlu0 %49, %v40
  %v51 = vpop.permute.xlu0 %50
  %54 = vset.pattern.permute.xlu0 0
  %55 = vperm.xlu0 %54, %v41
  %v56 = vpop.permute.xlu0 %55
  %59 = vset.pattern.permute.xlu0 0
  %60 = vperm.xlu0 %59, %v42
  %v61 = vpop.permute.xlu0 %60
  %63 = vst [vmem:[#allocation4] sm:$0xff] %v46
  %64 = vst [vmem:[#allocation4 + $0x8] sm:$0xff] %v46
  %65 = vst [vmem:[#allocation4 + $0x10] sm:$0xff] %v46
  %66 = vst [vmem:[#allocation4 + $0x18] sm:$0xff] %v46
  %67 = vst [vmem:[#allocation4 + $0x20] sm:$0xff] %v51
  %68 = vst [vmem:[#allocation4 + $0x28] sm:$0xff] %v51
  %69 = vst [vmem:[#allocation4 + $0x30] sm:$0xff] %v51
  %70 = vst [vmem:[#allocation4 + $0x38] sm:$0xff] %v51
  %71 = vst [vmem:[#allocation4 + $0x40] sm:$0xff] %v56
  %72 = vst [vmem:[#allocation4 + $0x48] sm:$0xff] %v56
  %73 = vst [vmem:[#allocation4 + $0x50] sm:$0xff] %v56
  %74 = vst [vmem:[#allocation4 + $0x58] sm:$0xff] %v56
  %75 = vst [vmem:[#allocation4 + $0x60] sm:$0x1] %v61
  %76 = vst [vmem:[#allocation4 + $0x68] sm:$0x1] %v61
  %77 = vst [vmem:[#allocation4 + $0x70] sm:$0x1] %v61
  %78 = vst [vmem:[#allocation4 + $0x78] sm:$0x1] %v61
  %s79 = scalar_lea.vmem %s7, 32
  %v80 = vld [vmem:[%s79] sm:$0xff]
  %v81 = vld [vmem:[%s79 + $0x8] sm:$0xff]
  %v82 = vld [vmem:[%s79 + $0x10] sm:$0xff]
  %v83 = vld [vmem:[%s79 + $0x18] sm:$0x1]
  %85 = vset.pattern.permute.xlu0 0
  %86 = vperm.xlu0 %85, %v80
  %v87 = vpop.permute.xlu0 %86
  %90 = vset.pattern.permute.xlu0 0
  %91 = vperm.xlu0 %90, %v81
  %v92 = vpop.permute.xlu0 %91
  %95 = vset.pattern.permute.xlu0 0
  %96 = vperm.xlu0 %95, %v82
  %v97 = vpop.permute.xlu0 %96
  %100 = vset.pattern.permute.xlu0 0
  %101 = vperm.xlu0 %100, %v83
  %v102 = vpop.permute.xlu0 %101
  %s104 = scalar_lea.vmem [#allocation4], 128
  %105 = vst [vmem:[%s104] sm:$0xff] %v87
  %106 = vst [vmem:[%s104 + $0x8] sm:$0xff] %v87
  %107 = vst [vmem:[%s104 + $0x10] sm:$0xff] %v87
  %108 = vst [vmem:[%s104 + $0x18] sm:$0xff] %v87
  %109 = vst [vmem:[%s104 + $0x20] sm:$0xff] %v92
  %110 = vst [vmem:[%s104 + $0x28] sm:$0xff] %v92
  %111 = vst [vmem:[%s104 + $0x30] sm:$0xff] %v92
  %112 = vst [vmem:[%s104 + $0x38] sm:$0xff] %v92
  %113 = vst [vmem:[%s104 + $0x40] sm:$0xff] %v97
  %114 = vst [vmem:[%s104 + $0x48] sm:$0xff] %v97
  %115 = vst [vmem:[%s104 + $0x50] sm:$0xff] %v97
  %116 = vst [vmem:[%s104 + $0x58] sm:$0xff] %v97
  %117 = vst [vmem:[%s104 + $0x60] sm:$0x1] %v102
  %118 = vst [vmem:[%s104 + $0x68] sm:$0x1] %v102
  %119 = vst [vmem:[%s104 + $0x70] sm:$0x1] %v102
  %120 = vst [vmem:[%s104 + $0x78] sm:$0x1] %v102
  %s121 = scalar_lea.vmem %s7, 64
  %v122 = vld [vmem:[%s121] sm:$0xff]
  %v123 = vld [vmem:[%s121 + $0x8] sm:$0xff]
  %v124 = vld [vmem:[%s121 + $0x10] sm:$0xff]
  %v125 = vld [vmem:[%s121 + $0x18] sm:$0x1]
  %127 = vset.pattern.permute.xlu0 0
  %128 = vperm.xlu0 %127, %v122
  %v129 = vpop.permute.xlu0 %128
  %132 = vset.pattern.permute.xlu0 0
  %133 = vperm.xlu0 %132, %v123
  %v134 = vpop.permute.xlu0 %133
  %137 = vset.pattern.permute.xlu0 0
  %138 = vperm.xlu0 %137, %v124
  %v139 = vpop.permute.xlu0 %138
  %142 = vset.pattern.permute.xlu0 0
  %143 = vperm.xlu0 %142, %v125
  %v144 = vpop.permute.xlu0 %143
  %s146 = scalar_lea.vmem [#allocation4], 256
  %147 = vst [vmem:[%s146] sm:$0xff] %v129
  %148 = vst [vmem:[%s146 + $0x8] sm:$0xff] %v129
  %149 = vst [vmem:[%s146 + $0x10] sm:$0xff] %v129
  %150 = vst [vmem:[%s146 + $0x18] sm:$0xff] %v129
  %151 = vst [vmem:[%s146 + $0x20] sm:$0xff] %v134
  %152 = vst [vmem:[%s146 + $0x28] sm:$0xff] %v134
  %153 = vst [vmem:[%s146 + $0x30] sm:$0xff] %v134
  %154 = vst [vmem:[%s146 + $0x38] sm:$0xff] %v134
  %155 = vst [vmem:[%s146 + $0x40] sm:$0xff] %v139
  %156 = vst [vmem:[%s146 + $0x48] sm:$0xff] %v139
  %157 = vst [vmem:[%s146 + $0x50] sm:$0xff] %v139
  %158 = vst [vmem:[%s146 + $0x58] sm:$0xff] %v139
  %159 = vst [vmem:[%s146 + $0x60] sm:$0x1] %v144
  %160 = vst [vmem:[%s146 + $0x68] sm:$0x1] %v144
  %161 = vst [vmem:[%s146 + $0x70] sm:$0x1] %v144
  %162 = vst [vmem:[%s146 + $0x78] sm:$0x1] %v144
  %s163 = scalar_lea.vmem %s7, 96
  %v164 = vld [vmem:[%s163] sm:$0xff]
  %v165 = vld [vmem:[%s163 + $0x8] sm:$0xff]
  %v166 = vld [vmem:[%s163 + $0x10] sm:$0xff]
  %v167 = vld [vmem:[%s163 + $0x18] sm:$0x1]
  %169 = vset.pattern.permute.xlu0 0
  %170 = vperm.xlu0 %169, %v164
  %v171 = vpop.permute.xlu0 %170
  %174 = vset.pattern.permute.xlu0 0
  %175 = vperm.xlu0 %174, %v165
  %v176 = vpop.permute.xlu0 %175
  %179 = vset.pattern.permute.xlu0 0
  %180 = vperm.xlu0 %179, %v166
  %v181 = vpop.permute.xlu0 %180
  %184 = vset.pattern.permute.xlu0 0
  %185 = vperm.xlu0 %184, %v167
  %v186 = vpop.permute.xlu0 %185
  %s188 = scalar_lea.vmem [#allocation4], 384
  %189 = vst [vmem:[%s188] sm:$0xff] %v171
  %190 = vst [vmem:[%s188 + $0x8] sm:$0xff] %v171
  %191 = vst [vmem:[%s188 + $0x10] sm:$0xff] %v171
  %192 = vst [vmem:[%s188 + $0x18] sm:$0xff] %v171
  %193 = vst [vmem:[%s188 + $0x20] sm:$0xff] %v176
  %194 = vst [vmem:[%s188 + $0x28] sm:$0xff] %v176
  %195 = vst [vmem:[%s188 + $0x30] sm:$0xff] %v176
  %196 = vst [vmem:[%s188 + $0x38] sm:$0xff] %v176
  %197 = vst [vmem:[%s188 + $0x40] sm:$0xff] %v181
  %198 = vst [vmem:[%s188 + $0x48] sm:$0xff] %v181
  %199 = vst [vmem:[%s188 + $0x50] sm:$0xff] %v181
  %200 = vst [vmem:[%s188 + $0x58] sm:$0xff] %v181
  %201 = vst [vmem:[%s188 + $0x60] sm:$0x1] %v186
  %202 = vst [vmem:[%s188 + $0x68] sm:$0x1] %v186
  %203 = vst [vmem:[%s188 + $0x70] sm:$0x1] %v186
  %204 = vst [vmem:[%s188 + $0x78] sm:$0x1] %v186
  %s205 = scalar_lea.vmem %s7, 128
  %v206 = vld [vmem:[%s205] sm:$0xff]
  %v207 = vld [vmem:[%s205 + $0x8] sm:$0xff]
  %v208 = vld [vmem:[%s205 + $0x10] sm:$0xff]
  %v209 = vld [vmem:[%s205 + $0x18] sm:$0x1]
  %211 = vset.pattern.permute.xlu0 0
  %212 = vperm.xlu0 %211, %v206
  %v213 = vpop.permute.xlu0 %212
  %216 = vset.pattern.permute.xlu0 0
  %217 = vperm.xlu0 %216, %v207
  %v218 = vpop.permute.xlu0 %217
  %221 = vset.pattern.permute.xlu0 0
  %222 = vperm.xlu0 %221, %v208
  %v223 = vpop.permute.xlu0 %222
  %226 = vset.pattern.permute.xlu0 0
  %227 = vperm.xlu0 %226, %v209
  %v228 = vpop.permute.xlu0 %227
  %s230 = scalar_lea.vmem [#allocation4], 512
  %231 = vst [vmem:[%s230] sm:$0xff] %v213
  %232 = vst [vmem:[%s230 + $0x8] sm:$0xff] %v213
  %233 = vst [vmem:[%s230 + $0x10] sm:$0xff] %v213
  %234 = vst [vmem:[%s230 + $0x18] sm:$0xff] %v213
  %235 = vst [vmem:[%s230 + $0x20] sm:$0xff] %v218
  %236 = vst [vmem:[%s230 + $0x28] sm:$0xff] %v218
  %237 = vst [vmem:[%s230 + $0x30] sm:$0xff] %v218
  %238 = vst [vmem:[%s230 + $0x38] sm:$0xff] %v218
  %239 = vst [vmem:[%s230 + $0x40] sm:$0xff] %v223
  %240 = vst [vmem:[%s230 + $0x48] sm:$0xff] %v223
  %241 = vst [vmem:[%s230 + $0x50] sm:$0xff] %v223
  %242 = vst [vmem:[%s230 + $0x58] sm:$0xff] %v223
  %243 = vst [vmem:[%s230 + $0x60] sm:$0x1] %v228
  %244 = vst [vmem:[%s230 + $0x68] sm:$0x1] %v228
  %245 = vst [vmem:[%s230 + $0x70] sm:$0x1] %v228
  %246 = vst [vmem:[%s230 + $0x78] sm:$0x1] %v228
  %s247 = scalar_lea.vmem %s7, 160
  %v248 = vld [vmem:[%s247] sm:$0xff]
  %v249 = vld [vmem:[%s247 + $0x8] sm:$0xff]
  %v250 = vld [vmem:[%s247 + $0x10] sm:$0xff]
  %v251 = vld [vmem:[%s247 + $0x18] sm:$0x1]
  %253 = vset.pattern.permute.xlu0 0
  %254 = vperm.xlu0 %253, %v248
  %v255 = vpop.permute.xlu0 %254
  %258 = vset.pattern.permute.xlu0 0
  %259 = vperm.xlu0 %258, %v249
  %v260 = vpop.permute.xlu0 %259
  %263 = vset.pattern.permute.xlu0 0
  %264 = vperm.xlu0 %263, %v250
  %v265 = vpop.permute.xlu0 %264
  %268 = vset.pattern.permute.xlu0 0
  %269 = vperm.xlu0 %268, %v251
  %v270 = vpop.permute.xlu0 %269
  %s272 = scalar_lea.vmem [#allocation4], 640
  %273 = vst [vmem:[%s272] sm:$0xff] %v255
  %274 = vst [vmem:[%s272 + $0x8] sm:$0xff] %v255
  %275 = vst [vmem:[%s272 + $0x10] sm:$0xff] %v255
  %276 = vst [vmem:[%s272 + $0x18] sm:$0xff] %v255
  %277 = vst [vmem:[%s272 + $0x20] sm:$0xff] %v260
  %278 = vst [vmem:[%s272 + $0x28] sm:$0xff] %v260
  %279 = vst [vmem:[%s272 + $0x30] sm:$0xff] %v260
  %280 = vst [vmem:[%s272 + $0x38] sm:$0xff] %v260
  %281 = vst [vmem:[%s272 + $0x40] sm:$0xff] %v265
  %282 = vst [vmem:[%s272 + $0x48] sm:$0xff] %v265
  %283 = vst [vmem:[%s272 + $0x50] sm:$0xff] %v265
  %284 = vst [vmem:[%s272 + $0x58] sm:$0xff] %v265
  %285 = vst [vmem:[%s272 + $0x60] sm:$0x1] %v270
  %286 = vst [vmem:[%s272 + $0x68] sm:$0x1] %v270
  %287 = vst [vmem:[%s272 + $0x70] sm:$0x1] %v270
  %288 = vst [vmem:[%s272 + $0x78] sm:$0x1] %v270
  %s289 = scalar_lea.vmem %s7, 192
  %v290 = vld [vmem:[%s289] sm:$0xff]
  %v291 = vld [vmem:[%s289 + $0x8] sm:$0xff]
  %v292 = vld [vmem:[%s289 + $0x10] sm:$0xff]
  %v293 = vld [vmem:[%s289 + $0x18] sm:$0x1]
  %295 = vset.pattern.permute.xlu0 0
  %296 = vperm.xlu0 %295, %v290
  %v297 = vpop.permute.xlu0 %296
  %300 = vset.pattern.permute.xlu0 0
  %301 = vperm.xlu0 %300, %v291
  %v302 = vpop.permute.xlu0 %301
  %305 = vset.pattern.permute.xlu0 0
  %306 = vperm.xlu0 %305, %v292
  %v307 = vpop.permute.xlu0 %306
  %310 = vset.pattern.permute.xlu0 0
  %311 = vperm.xlu0 %310, %v293
  %v312 = vpop.permute.xlu0 %311
  %s314 = scalar_lea.vmem [#allocation4], 768
  %315 = vst [vmem:[%s314] sm:$0xff] %v297
  %316 = vst [vmem:[%s314 + $0x8] sm:$0xff] %v297
  %317 = vst [vmem:[%s314 + $0x10] sm:$0xff] %v297
  %318 = vst [vmem:[%s314 + $0x18] sm:$0xff] %v297
  %319 = vst [vmem:[%s314 + $0x20] sm:$0xff] %v302
  %320 = vst [vmem:[%s314 + $0x28] sm:$0xff] %v302
  %321 = vst [vmem:[%s314 + $0x30] sm:$0xff] %v302
  %322 = vst [vmem:[%s314 + $0x38] sm:$0xff] %v302
  %323 = vst [vmem:[%s314 + $0x40] sm:$0xff] %v307
  %324 = vst [vmem:[%s314 + $0x48] sm:$0xff] %v307
  %325 = vst [vmem:[%s314 + $0x50] sm:$0xff] %v307
  %326 = vst [vmem:[%s314 + $0x58] sm:$0xff] %v307
  %327 = vst [vmem:[%s314 + $0x60] sm:$0x1] %v312
  %328 = vst [vmem:[%s314 + $0x68] sm:$0x1] %v312
  %329 = vst [vmem:[%s314 + $0x70] sm:$0x1] %v312
  %330 = vst [vmem:[%s314 + $0x78] sm:$0x1] %v312
  %vm331 = vcmask 1047556
  %vm332 = vsmask.f32 7954
  %vm333 = vmand %vm331, %vm332
  %v334 = vld [vmem:[#allocation2 + $0x20] sm:$0xf0]
  %v335 = vsel %vm333, 0, %v334
  %336 = vst [vmem:[#allocation2 + $0x20] sm:$0xf0] %v335
  %v337 = vld [vmem:[#allocation2 + $0x28] sm:$0xf0]
  %v338 = vsel %vm333, 0, %v337
  %339 = vst [vmem:[#allocation2 + $0x28] sm:$0xf0] %v338
  %v340 = vld [vmem:[#allocation2 + $0x30] sm:$0xf0]
  %v341 = vsel %vm333, 0, %v340
  %342 = vst [vmem:[#allocation2 + $0x30] sm:$0xf0] %v341
  %v343 = vld [vmem:[#allocation2 + $0x38] sm:$0xf0]
  %v344 = vsel %vm333, 0, %v343
  %345 = vst [vmem:[#allocation2 + $0x38] sm:$0xf0] %v344
  %v346 = vld [vmem:[#allocation2 + $0x60] sm:$0xf0]
  %v347 = vsel %vm333, 0, %v346
  %348 = vst [vmem:[#allocation2 + $0x60] sm:$0xf0] %v347
  %v349 = vld [vmem:[#allocation2 + $0x68] sm:$0xf0]
  %v350 = vsel %vm333, 0, %v349
  %351 = vst [vmem:[#allocation2 + $0x68] sm:$0xf0] %v350
  %v352 = vld [vmem:[#allocation2 + $0x70] sm:$0xf0]
  %v353 = vsel %vm333, 0, %v352
  %354 = vst [vmem:[#allocation2 + $0x70] sm:$0xf0] %v353
  %v355 = vld [vmem:[#allocation2 + $0x78] sm:$0xf0]
  %v356 = vsel %vm333, 0, %v355
  %357 = vst [vmem:[#allocation2 + $0x78] sm:$0xf0] %v356
  %v358 = vld [vmem:[#allocation2 + $0xa0] sm:$0xf0]
  %v359 = vsel %vm333, 0, %v358
  %360 = vst [vmem:[#allocation2 + $0xa0] sm:$0xf0] %v359
  %v361 = vld [vmem:[#allocation2 + $0xa8] sm:$0xf0]
  %v362 = vsel %vm333, 0, %v361
  %363 = vst [vmem:[#allocation2 + $0xa8] sm:$0xf0] %v362
  %v364 = vld [vmem:[#allocation2 + $0xb0] sm:$0xf0]
  %v365 = vsel %vm333, 0, %v364
  %366 = vst [vmem:[#allocation2 + $0xb0] sm:$0xf0] %v365
  %v367 = vld [vmem:[#allocation2 + $0xb8] sm:$0xf0]
  %v368 = vsel %vm333, 0, %v367
  %369 = vst [vmem:[#allocation2 + $0xb8] sm:$0xf0] %v368
  %v370 = vld [vmem:[#allocation2 + $0xe0] sm:$0xf0]
  %v371 = vsel %vm333, 0, %v370
  %372 = vst [vmem:[#allocation2 + $0xe0] sm:$0xf0] %v371
  %v373 = vld [vmem:[#allocation2 + $0xe8] sm:$0xf0]
  %v374 = vsel %vm333, 0, %v373
  %375 = vst [vmem:[#allocation2 + $0xe8] sm:$0xf0] %v374
  %v376 = vld [vmem:[#allocation2 + $0xf0] sm:$0xf0]
  %v377 = vsel %vm333, 0, %v376
  %378 = vst [vmem:[#allocation2 + $0xf0] sm:$0xf0] %v377
  %v379 = vld [vmem:[#allocation2 + $0xf8] sm:$0xf0]
  %v380 = vsel %vm333, 0, %v379
  %381 = vst [vmem:[#allocation2 + $0xf8] sm:$0xf0] %v380
  %v382 = vld [vmem:[#allocation2 + $0x120] sm:$0xf0]
  %v383 = vsel %vm333, 0, %v382
  %384 = vst [vmem:[#allocation2 + $0x120] sm:$0xf0] %v383
  %v385 = vld [vmem:[#allocation2 + $0x128] sm:$0xf0]
  %v386 = vsel %vm333, 0, %v385
  %387 = vst [vmem:[#allocation2 + $0x128] sm:$0xf0] %v386
  %v388 = vld [vmem:[#allocation2 + $0x130] sm:$0xf0]
  %v389 = vsel %vm333, 0, %v388
  %390 = vst [vmem:[#allocation2 + $0x130] sm:$0xf0] %v389
  %v391 = vld [vmem:[#allocation2 + $0x138] sm:$0xf0]
  %v392 = vsel %vm333, 0, %v391
  %393 = vst [vmem:[#allocation2 + $0x138] sm:$0xf0] %v392
  %v394 = vld [vmem:[#allocation2 + $0x160] sm:$0xf0]
  %v395 = vsel %vm333, 0, %v394
  %396 = vst [vmem:[#allocation2 + $0x160] sm:$0xf0] %v395
  %v397 = vld [vmem:[#allocation2 + $0x168] sm:$0xf0]
  %v398 = vsel %vm333, 0, %v397
  %399 = vst [vmem:[#allocation2 + $0x168] sm:$0xf0] %v398
  %v400 = vld [vmem:[#allocation2 + $0x170] sm:$0xf0]
  %v401 = vsel %vm333, 0, %v400
  %402 = vst [vmem:[#allocation2 + $0x170] sm:$0xf0] %v401
  %v403 = vld [vmem:[#allocation2 + $0x178] sm:$0xf0]
  %v404 = vsel %vm333, 0, %v403
  %405 = vst [vmem:[#allocation2 + $0x178] sm:$0xf0] %v404
  %v406 = vld [vmem:[#allocation2 + $0x1a0] sm:$0xf0]
  %v407 = vsel %vm333, 0, %v406
  %408 = vst [vmem:[#allocation2 + $0x1a0] sm:$0xf0] %v407
  %v409 = vld [vmem:[#allocation2 + $0x1a8] sm:$0xf0]
  %v410 = vsel %vm333, 0, %v409
  %411 = vst [vmem:[#allocation2 + $0x1a8] sm:$0xf0] %v410
  %v412 = vld [vmem:[#allocation2 + $0x1b0] sm:$0xf0]
  %v413 = vsel %vm333, 0, %v412
  %414 = vst [vmem:[#allocation2 + $0x1b0] sm:$0xf0] %v413
  %v415 = vld [vmem:[#allocation2 + $0x1b8] sm:$0xf0]
  %v416 = vsel %vm333, 0, %v415
  %417 = vst [vmem:[#allocation2 + $0x1b8] sm:$0xf0] %v416
  %v418 = vld [vmem:[#allocation2 + $0x1e0] sm:$0xf0]
  %v419 = vsel %vm333, 0, %v418
  %420 = vst [vmem:[#allocation2 + $0x1e0] sm:$0xf0] %v419
  %v421 = vld [vmem:[#allocation2 + $0x1e8] sm:$0xf0]
  %v422 = vsel %vm333, 0, %v421
  %423 = vst [vmem:[#allocation2 + $0x1e8] sm:$0xf0] %v422
  %v424 = vld [vmem:[#allocation2 + $0x1f0] sm:$0xf0]
  %v425 = vsel %vm333, 0, %v424
  %426 = vst [vmem:[#allocation2 + $0x1f0] sm:$0xf0] %v425
  %v427 = vld [vmem:[#allocation2 + $0x1f8] sm:$0xf0]
  %v428 = vsel %vm333, 0, %v427
  %429 = vst [vmem:[#allocation2 + $0x1f8] sm:$0xf0] %v428
  %v430 = vld [vmem:[#allocation2 + $0x220] sm:$0xf0]
  %v431 = vsel %vm333, 0, %v430
  %432 = vst [vmem:[#allocation2 + $0x220] sm:$0xf0] %v431
  %v433 = vld [vmem:[#allocation2 + $0x228] sm:$0xf0]
  %v434 = vsel %vm333, 0, %v433
  %435 = vst [vmem:[#allocation2 + $0x228] sm:$0xf0] %v434
  %v436 = vld [vmem:[#allocation2 + $0x230] sm:$0xf0]
  %v437 = vsel %vm333, 0, %v436
  %438 = vst [vmem:[#allocation2 + $0x230] sm:$0xf0] %v437
  %v439 = vld [vmem:[#allocation2 + $0x238] sm:$0xf0]
  %v440 = vsel %vm333, 0, %v439
  %441 = vst [vmem:[#allocation2 + $0x238] sm:$0xf0] %v440
  %v442 = vld [vmem:[#allocation2 + $0x260] sm:$0xf0]
  %v443 = vsel %vm333, 0, %v442
  %444 = vst [vmem:[#allocation2 + $0x260] sm:$0xf0] %v443
  %v445 = vld [vmem:[#allocation2 + $0x268] sm:$0xf0]
  %v446 = vsel %vm333, 0, %v445
  %447 = vst [vmem:[#allocation2 + $0x268] sm:$0xf0] %v446
  %v448 = vld [vmem:[#allocation2 + $0x270] sm:$0xf0]
  %v449 = vsel %vm333, 0, %v448
  %450 = vst [vmem:[#allocation2 + $0x270] sm:$0xf0] %v449
  %v451 = vld [vmem:[#allocation2 + $0x278] sm:$0xf0]
  %v452 = vsel %vm333, 0, %v451
  %453 = vst [vmem:[#allocation2 + $0x278] sm:$0xf0] %v452
  %v454 = vld [vmem:[#allocation2 + $0x2a0] sm:$0xf0]
  %v455 = vsel %vm333, 0, %v454
  %456 = vst [vmem:[#allocation2 + $0x2a0] sm:$0xf0] %v455
  %v457 = vld [vmem:[#allocation2 + $0x2a8] sm:$0xf0]
  %v458 = vsel %vm333, 0, %v457
  %459 = vst [vmem:[#allocation2 + $0x2a8] sm:$0xf0] %v458
  %v460 = vld [vmem:[#allocation2 + $0x2b0] sm:$0xf0]
  %v461 = vsel %vm333, 0, %v460
  %462 = vst [vmem:[#allocation2 + $0x2b0] sm:$0xf0] %v461
  %v463 = vld [vmem:[#allocation2 + $0x2b8] sm:$0xf0]
  %v464 = vsel %vm333, 0, %v463
  %465 = vst [vmem:[#allocation2 + $0x2b8] sm:$0xf0] %v464
  %v466 = vld [vmem:[#allocation2 + $0x2e0] sm:$0xf0]
  %v467 = vsel %vm333, 0, %v466
  %468 = vst [vmem:[#allocation2 + $0x2e0] sm:$0xf0] %v467
  %v469 = vld [vmem:[#allocation2 + $0x2e8] sm:$0xf0]
  %v470 = vsel %vm333, 0, %v469
  %471 = vst [vmem:[#allocation2 + $0x2e8] sm:$0xf0] %v470
  %v472 = vld [vmem:[#allocation2 + $0x2f0] sm:$0xf0]
  %v473 = vsel %vm333, 0, %v472
  %474 = vst [vmem:[#allocation2 + $0x2f0] sm:$0xf0] %v473
  %v475 = vld [vmem:[#allocation2 + $0x2f8] sm:$0xf0]
  %v476 = vsel %vm333, 0, %v475
  %477 = vst [vmem:[#allocation2 + $0x2f8] sm:$0xf0] %v476
  %v478 = vld [vmem:[#allocation2 + $0x320] sm:$0xf0]
  %v479 = vsel %vm333, 0, %v478
  %480 = vst [vmem:[#allocation2 + $0x320] sm:$0xf0] %v479
  %v481 = vld [vmem:[#allocation2 + $0x328] sm:$0xf0]
  %v482 = vsel %vm333, 0, %v481
  %483 = vst [vmem:[#allocation2 + $0x328] sm:$0xf0] %v482
  %v484 = vld [vmem:[#allocation2 + $0x330] sm:$0xf0]
  %v485 = vsel %vm333, 0, %v484
  %486 = vst [vmem:[#allocation2 + $0x330] sm:$0xf0] %v485
  %v487 = vld [vmem:[#allocation2 + $0x338] sm:$0xf0]
  %v488 = vsel %vm333, 0, %v487
  %489 = vst [vmem:[#allocation2 + $0x338] sm:$0xf0] %v488
  %v490 = vld [vmem:[#allocation2 + $0x360] sm:$0xf0]
  %v491 = vsel %vm333, 0, %v490
  %492 = vst [vmem:[#allocation2 + $0x360] sm:$0xf0] %v491
  %v493 = vld [vmem:[#allocation2 + $0x368] sm:$0xf0]
  %v494 = vsel %vm333, 0, %v493
  %495 = vst [vmem:[#allocation2 + $0x368] sm:$0xf0] %v494
  %v496 = vld [vmem:[#allocation2 + $0x370] sm:$0xf0]
  %v497 = vsel %vm333, 0, %v496
  %498 = vst [vmem:[#allocation2 + $0x370] sm:$0xf0] %v497
  %v499 = vld [vmem:[#allocation2 + $0x378] sm:$0xf0]
  %v500 = vsel %vm333, 0, %v499
  %501 = vst [vmem:[#allocation2 + $0x378] sm:$0xf0] %v500
  %v502 = vld [vmem:[#allocation2 + $0x3a0] sm:$0xf0]
  %v503 = vsel %vm333, 0, %v502
  %504 = vst [vmem:[#allocation2 + $0x3a0] sm:$0xf0] %v503
  %v505 = vld [vmem:[#allocation2 + $0x3a8] sm:$0xf0]
  %v506 = vsel %vm333, 0, %v505
  %507 = vst [vmem:[#allocation2 + $0x3a8] sm:$0xf0] %v506
  %v508 = vld [vmem:[#allocation2 + $0x3b0] sm:$0xf0]
  %v509 = vsel %vm333, 0, %v508
  %510 = vst [vmem:[#allocation2 + $0x3b0] sm:$0xf0] %v509
  %v511 = vld [vmem:[#allocation2 + $0x3b8] sm:$0xf0]
  %v512 = vsel %vm333, 0, %v511
  %513 = vst [vmem:[#allocation2 + $0x3b8] sm:$0xf0] %v512
  %v514 = vld [vmem:[#allocation2 + $0x3e0] sm:$0xf0]
  %v515 = vsel %vm333, 0, %v514
  %516 = vst [vmem:[#allocation2 + $0x3e0] sm:$0xf0] %v515
  %v517 = vld [vmem:[#allocation2 + $0x3e8] sm:$0xf0]
  %v518 = vsel %vm333, 0, %v517
  %519 = vst [vmem:[#allocation2 + $0x3e8] sm:$0xf0] %v518
  %v520 = vld [vmem:[#allocation2 + $0x3f0] sm:$0xf0]
  %v521 = vsel %vm333, 0, %v520
  %522 = vst [vmem:[#allocation2 + $0x3f0] sm:$0xf0] %v521
  %v523 = vld [vmem:[#allocation2 + $0x3f8] sm:$0xf0]
  %v524 = vsel %vm333, 0, %v523
  %525 = vst [vmem:[#allocation2 + $0x3f8] sm:$0xf0] %v524
  %v526 = vld [vmem:[#allocation2 + $0x420] sm:$0xf0]
  %v527 = vsel %vm333, 0, %v526
  %528 = vst [vmem:[#allocation2 + $0x420] sm:$0xf0] %v527
  %v529 = vld [vmem:[#allocation2 + $0x428] sm:$0xf0]
  %v530 = vsel %vm333, 0, %v529
  %531 = vst [vmem:[#allocation2 + $0x428] sm:$0xf0] %v530
  %v532 = vld [vmem:[#allocation2 + $0x430] sm:$0xf0]
  %v533 = vsel %vm333, 0, %v532
  %534 = vst [vmem:[#allocation2 + $0x430] sm:$0xf0] %v533
  %v535 = vld [vmem:[#allocation2 + $0x438] sm:$0xf0]
  %v536 = vsel %vm333, 0, %v535
  %537 = vst [vmem:[#allocation2 + $0x438] sm:$0xf0] %v536
  %v538 = vld [vmem:[#allocation2 + $0x460] sm:$0xf0]
  %v539 = vsel %vm333, 0, %v538
  %540 = vst [vmem:[#allocation2 + $0x460] sm:$0xf0] %v539
  %v541 = vld [vmem:[#allocation2 + $0x468] sm:$0xf0]
  %v542 = vsel %vm333, 0, %v541
  %543 = vst [vmem:[#allocation2 + $0x468] sm:$0xf0] %v542
  %v544 = vld [vmem:[#allocation2 + $0x470] sm:$0xf0]
  %v545 = vsel %vm333, 0, %v544
  %546 = vst [vmem:[#allocation2 + $0x470] sm:$0xf0] %v545
  %v547 = vld [vmem:[#allocation2 + $0x478] sm:$0xf0]
  %v548 = vsel %vm333, 0, %v547
  %549 = vst [vmem:[#allocation2 + $0x478] sm:$0xf0] %v548
  %v550 = vld [vmem:[#allocation2 + $0x4a0] sm:$0xf0]
  %v551 = vsel %vm333, 0, %v550
  %552 = vst [vmem:[#allocation2 + $0x4a0] sm:$0xf0] %v551
  %v553 = vld [vmem:[#allocation2 + $0x4a8] sm:$0xf0]
  %v554 = vsel %vm333, 0, %v553
  %555 = vst [vmem:[#allocation2 + $0x4a8] sm:$0xf0] %v554
  %v556 = vld [vmem:[#allocation2 + $0x4b0] sm:$0xf0]
  %v557 = vsel %vm333, 0, %v556
  %558 = vst [vmem:[#allocation2 + $0x4b0] sm:$0xf0] %v557
  %v559 = vld [vmem:[#allocation2 + $0x4b8] sm:$0xf0]
  %v560 = vsel %vm333, 0, %v559
  %561 = vst [vmem:[#allocation2 + $0x4b8] sm:$0xf0] %v560
  %v562 = vld [vmem:[#allocation2 + $0x4e0] sm:$0xf0]
  %v563 = vsel %vm333, 0, %v562
  %564 = vst [vmem:[#allocation2 + $0x4e0] sm:$0xf0] %v563
  %v565 = vld [vmem:[#allocation2 + $0x4e8] sm:$0xf0]
  %v566 = vsel %vm333, 0, %v565
  %567 = vst [vmem:[#allocation2 + $0x4e8] sm:$0xf0] %v566
  %v568 = vld [vmem:[#allocation2 + $0x4f0] sm:$0xf0]
  %v569 = vsel %vm333, 0, %v568
  %570 = vst [vmem:[#allocation2 + $0x4f0] sm:$0xf0] %v569
  %v571 = vld [vmem:[#allocation2 + $0x4f8] sm:$0xf0]
  %v572 = vsel %vm333, 0, %v571
  %573 = vst [vmem:[#allocation2 + $0x4f8] sm:$0xf0] %v572
  %v574 = vld [vmem:[#allocation2 + $0x520] sm:$0xf0]
  %v575 = vsel %vm333, 0, %v574
  %576 = vst [vmem:[#allocation2 + $0x520] sm:$0xf0] %v575
  %v577 = vld [vmem:[#allocation2 + $0x528] sm:$0xf0]
  %v578 = vsel %vm333, 0, %v577
  %579 = vst [vmem:[#allocation2 + $0x528] sm:$0xf0] %v578
  %v580 = vld [vmem:[#allocation2 + $0x530] sm:$0xf0]
  %v581 = vsel %vm333, 0, %v580
  %582 = vst [vmem:[#allocation2 + $0x530] sm:$0xf0] %v581
  %v583 = vld [vmem:[#allocation2 + $0x538] sm:$0xf0]
  %v584 = vsel %vm333, 0, %v583
  %585 = vst [vmem:[#allocation2 + $0x538] sm:$0xf0] %v584
  %v586 = vld [vmem:[#allocation2 + $0x560] sm:$0xf0]
  %v587 = vsel %vm333, 0, %v586
  %588 = vst [vmem:[#allocation2 + $0x560] sm:$0xf0] %v587
  %v589 = vld [vmem:[#allocation2 + $0x568] sm:$0xf0]
  %v590 = vsel %vm333, 0, %v589
  %591 = vst [vmem:[#allocation2 + $0x568] sm:$0xf0] %v590
  %v592 = vld [vmem:[#allocation2 + $0x570] sm:$0xf0]
  %v593 = vsel %vm333, 0, %v592
  %594 = vst [vmem:[#allocation2 + $0x570] sm:$0xf0] %v593
  %v595 = vld [vmem:[#allocation2 + $0x578] sm:$0xf0]
  %v596 = vsel %vm333, 0, %v595
  %597 = vst [vmem:[#allocation2 + $0x578] sm:$0xf0] %v596
  %v598 = vld [vmem:[#allocation2 + $0x5a0] sm:$0xf0]
  %v599 = vsel %vm333, 0, %v598
  %600 = vst [vmem:[#allocation2 + $0x5a0] sm:$0xf0] %v599
  %v601 = vld [vmem:[#allocation2 + $0x5a8] sm:$0xf0]
  %v602 = vsel %vm333, 0, %v601
  %603 = vst [vmem:[#allocation2 + $0x5a8] sm:$0xf0] %v602
  %v604 = vld [vmem:[#allocation2 + $0x5b0] sm:$0xf0]
  %v605 = vsel %vm333, 0, %v604
  %606 = vst [vmem:[#allocation2 + $0x5b0] sm:$0xf0] %v605
  %v607 = vld [vmem:[#allocation2 + $0x5b8] sm:$0xf0]
  %v608 = vsel %vm333, 0, %v607
  %609 = vst [vmem:[#allocation2 + $0x5b8] sm:$0xf0] %v608
  %v610 = vld [vmem:[#allocation2 + $0x5e0] sm:$0xf0]
  %v611 = vsel %vm333, 0, %v610
  %612 = vst [vmem:[#allocation2 + $0x5e0] sm:$0xf0] %v611
  %v613 = vld [vmem:[#allocation2 + $0x5e8] sm:$0xf0]
  %v614 = vsel %vm333, 0, %v613
  %615 = vst [vmem:[#allocation2 + $0x5e8] sm:$0xf0] %v614
  %v616 = vld [vmem:[#allocation2 + $0x5f0] sm:$0xf0]
  %v617 = vsel %vm333, 0, %v616
  %618 = vst [vmem:[#allocation2 + $0x5f0] sm:$0xf0] %v617
  %v619 = vld [vmem:[#allocation2 + $0x5f8] sm:$0xf0]
  %v620 = vsel %vm333, 0, %v619
  %621 = vst [vmem:[#allocation2 + $0x5f8] sm:$0xf0] %v620
  %v622 = vld [vmem:[#allocation2 + $0x620] sm:$0xf0]
  %v623 = vsel %vm333, 0, %v622
  %624 = vst [vmem:[#allocation2 + $0x620] sm:$0xf0] %v623
  %v625 = vld [vmem:[#allocation2 + $0x628] sm:$0xf0]
  %v626 = vsel %vm333, 0, %v625
  %627 = vst [vmem:[#allocation2 + $0x628] sm:$0xf0] %v626
  %v628 = vld [vmem:[#allocation2 + $0x630] sm:$0xf0]
  %v629 = vsel %vm333, 0, %v628
  %630 = vst [vmem:[#allocation2 + $0x630] sm:$0xf0] %v629
  %v631 = vld [vmem:[#allocation2 + $0x638] sm:$0xf0]
  %v632 = vsel %vm333, 0, %v631
  %633 = vst [vmem:[#allocation2 + $0x638] sm:$0xf0] %v632
  %v634 = vld [vmem:[%s1] sm:$0xff]
  %v635 = vld [vmem:[%s1 + $0x8] sm:$0xff]
  %v636 = vld [vmem:[%s1 + $0x10] sm:$0xff]
  %v637 = vld [vmem:[%s1 + $0x18] sm:$0x1]
  %v638 = vld [vmem:[%s0] sm:$0xff]
  %v639 = vld [vmem:[%s0 + $0x8] sm:$0xff]
  %v640 = vld [vmem:[%s0 + $0x10] sm:$0xff]
  %v641 = vld [vmem:[%s0 + $0x18] sm:$0xff]
  %v642 = vld [vmem:[%s0 + $0x20] sm:$0xff]
  %v643 = vld [vmem:[%s0 + $0x28] sm:$0xff]
  %v644 = vld [vmem:[%s0 + $0x30] sm:$0xff]
  %v645 = vld [vmem:[%s0 + $0x38] sm:$0xff]
  %v646 = vld [vmem:[%s0 + $0x40] sm:$0xff]
  %v647 = vld [vmem:[%s0 + $0x48] sm:$0xff]
  %v648 = vld [vmem:[%s0 + $0x50] sm:$0xff]
  %v649 = vld [vmem:[%s0 + $0x58] sm:$0xff]
  %v650 = vld [vmem:[%s0 + $0x60] sm:$0xff]
  %v651 = vld [vmem:[%s0 + $0x68] sm:$0xff]
  %v652 = vld [vmem:[%s0 + $0x70] sm:$0xff]
  %v653 = vld [vmem:[%s0 + $0x78] sm:$0xff]
  %v654 = vld [vmem:[%s0 + $0x80] sm:$0xff]
  %v655 = vld [vmem:[%s0 + $0x88] sm:$0xff]
  %v656 = vld [vmem:[%s0 + $0x90] sm:$0xff]
  %v657 = vld [vmem:[%s0 + $0x98] sm:$0xff]
  %v658 = vld [vmem:[%s0 + $0xa0] sm:$0xff]
  %v659 = vld [vmem:[%s0 + $0xa8] sm:$0xff]
  %v660 = vld [vmem:[%s0 + $0xb0] sm:$0xff]
  %v661 = vld [vmem:[%s0 + $0xb8] sm:$0xff]
  %v662 = vld [vmem:[%s0 + $0xc0] sm:$0xff]
  %v663 = vld [vmem:[%s0 + $0xc8] sm:$0xff]
  %v664 = vld [vmem:[%s0 + $0xd0] sm:$0xff]
  %v665 = vld [vmem:[%s0 + $0xd8] sm:$0xff]
  %s666 = scalar_lea.vmem %s8, 128
  %v667 = vld [vmem:[%s666] sm:$0xff]
  %v668 = vld [vmem:[%s666 + $0x8] sm:$0xff]
  %v669 = vld [vmem:[%s666 + $0x10] sm:$0xff]
  %v670 = vld [vmem:[%s666 + $0x18] sm:$0x1]
  %672 = vset.pattern.permute.xlu0 0
  %673 = vperm.xlu0 %672, %v667
  %v674 = vpop.permute.xlu0 %673
  %677 = vset.pattern.permute.xlu0 0
  %678 = vperm.xlu0 %677, %v668
  %v679 = vpop.permute.xlu0 %678
  %682 = vset.pattern.permute.xlu0 0
  %683 = vperm.xlu0 %682, %v669
  %v684 = vpop.permute.xlu0 %683
  %687 = vset.pattern.permute.xlu0 0
  %688 = vperm.xlu0 %687, %v670
  %v689 = vpop.permute.xlu0 %688
  %vm691 = vcmask 457728
  %v693 = vsel %vm691, %v634, 0
  %v696 = vsel %vm691, %v635, 0
  %v699 = vsel %vm691, %v636, 0
  %v702 = vsel %vm691, %v637, 0
  %704 = vmatprep.subr.mxu0 %v639
  %705 = vmatpush1.msra.mxu0 %v638
  %706 = vmatprep.subr.mxu0 %v643
  %707 = vmatpush1.msra.mxu0 %v642
  %708 = vmatprep.subr.mxu0 %v647
  %709 = vmatpush1.msra.mxu0 %v646
  %710 = vmatprep.subr.mxu0 %v651
  %711 = vmatpush1.msra.mxu0 %v650
  %712 = vmatprep.subr.mxu0 %v655
  %713 = vmatpush1.msra.mxu0 %v654
  %714 = vmatprep.subr.mxu0 %v659
  %715 = vmatpush1.msra.mxu0 %v658
  %716 = vmatprep.subr.mxu0 %v663
  %717 = vmatpush1.msra.mxu0 %v662
  %718 = vmatprep.subr.mxu0 0.0
  %719 = vmatpush1.msra.mxu0 0.0
  %720 = vmatprep.subr.mxu0 0.0
  %721 = vmatpush1.msra.mxu0 0.0
  %722 = vmatprep.subr.mxu0 0.0
  %723 = vmatpush1.msra.mxu0 0.0
  %724 = vmatprep.subr.mxu0 0.0
  %725 = vmatpush1.msra.mxu0 0.0
  %726 = vmatprep.subr.mxu0 0.0
  %727 = vmatpush1.msra.mxu0 0.0
  %728 = vmatprep.subr.mxu0 0.0
  %729 = vmatpush1.msra.mxu0 0.0
  %730 = vmatprep.subr.mxu0 0.0
  %731 = vmatpush1.msra.mxu0 0.0
  %732 = vmatprep.subr.mxu0 0.0
  %733 = vmatpush1.msra.mxu0 0.0
  %734 = vmatprep.subr.mxu0 0.0
  %735 = vmatpush1.msra.mxu0 0.0
  %736 = vmatprep.subr.mxu0 0.0
  %737 = vmatpush1.msra.mxu0 0.0
  %738 = vmatprep.subr.mxu0 0.0
  %739 = vmatpush1.msra.mxu0 0.0
  %740 = vmatprep.subr.mxu0 0.0
  %741 = vmatpush1.msra.mxu0 0.0
  %742 = vmatprep.subr.mxu0 0.0
  %743 = vmatpush1.msra.mxu0 0.0
  %744 = vmatprep.subr.mxu0 0.0
  %745 = vmatpush1.msra.mxu0 0.0
  %746 = vmatprep.subr.mxu0 0.0
  %747 = vmatpush1.msra.mxu0 0.0
  %748 = vmatprep.subr.mxu0 0.0
  %749 = vmatpush1.msra.mxu0 0.0
  %750 = vmatprep.subr.mxu0 0.0
  %751 = vmatpush1.msra.mxu0 0.0
  %752 = vmatprep.subr.mxu0 0.0
  %753 = vmatpush1.msra.mxu0 0.0
  %754 = vmatprep.subr.mxu0 0.0
  %755 = vmatpush1.msra.mxu0 0.0
  %756 = vmatprep.subr.mxu0 0.0
  %757 = vmatpush1.msra.mxu0 0.0
  %758 = vmatprep.subr.mxu0 0.0
  %759 = vmatpush1.msra.mxu0 0.0
  %760 = vmatprep.subr.mxu0 0.0
  %761 = vmatpush1.msra.mxu0 0.0
  %762 = vmatprep.subr.mxu0 0.0
  %763 = vmatpush1.msra.mxu0 0.0
  %764 = vmatprep.subr.mxu0 0.0
  %765 = vmatpush1.msra.mxu0 0.0
  %766 = vmatprep.subr.mxu0 0.0
  %767 = vmatpush1.msra.mxu0 0.0
  %768 = vmatprep.mubr.f32.mxu0 0.0
  %769 = vmatmul.mubr.f32.gmra.mrb[0].mxu0 %v693
  %v770 = vpop.f32.mrb[0].mxu0
  %v771 = vadd.f32 %v674, %v770
  %v772 = vpop.f32.mrb[0].mxu0
  %v773 = vadd.f32 %v674, %v772
  %774 = vmatprep.mubr.f32.mxu0 0.0
  %775 = vmatmul.mubr.f32.gmra.mrb[0].mxu0 %v696
  %v776 = vpop.f32.mrb[0].mxu0
  %v777 = vadd.f32 %v679, %v776
  %v778 = vpop.f32.mrb[0].mxu0
  %v779 = vadd.f32 %v679, %v778
  %780 = vmatprep.mubr.f32.mxu0 0.0
  %781 = vmatmul.mubr.f32.gmra.mrb[0].mxu0 %v699
  %v782 = vpop.f32.mrb[0].mxu0
  %v783 = vadd.f32 %v684, %v782
  %v784 = vpop.f32.mrb[0].mxu0
  %v785 = vadd.f32 %v684, %v784
  %786 = vmatprep.mubr.f32.mxu0 0.0
  %787 = vmatmul.mubr.f32.gmra.mrb[0].mxu0 %v702
  %v788 = vpop.f32.mrb[0].mxu0
  %v789 = vadd.f32 %v689, %v788
  %v790 = vpop.f32.mrb[0].mxu0
  %v791 = vadd.f32 %v689, %v790
  %792 = vdwg.mxu0
  %793 = vmatprep.subr.mxu0 %v641
  %794 = vmatpush1.msra.mxu0 %v640
  %795 = vmatprep.subr.mxu0 %v645
  %796 = vmatpush1.msra.mxu0 %v644
  %797 = vmatprep.subr.mxu0 %v649
  %798 = vmatpush1.msra.mxu0 %v648
  %799 = vmatprep.subr.mxu0 %v653
  %800 = vmatpush1.msra.mxu0 %v652
  %801 = vmatprep.subr.mxu0 %v657
  %802 = vmatpush1.msra.mxu0 %v656
  %803 = vmatprep.subr.mxu0 %v661
  %804 = vmatpush1.msra.mxu0 %v660
  %805 = vmatprep.subr.mxu0 %v665
  %806 = vmatpush1.msra.mxu0 %v664
  %807 = vmatprep.subr.mxu0 0.0
  %808 = vmatpush1.msra.mxu0 0.0
  %809 = vmatprep.subr.mxu0 0.0
  %810 = vmatpush1.msra.mxu0 0.0
  %811 = vmatprep.subr.mxu0 0.0
  %812 = vmatpush1.msra.mxu0 0.0
  %813 = vmatprep.subr.mxu0 0.0
  %814 = vmatpush1.msra.mxu0 0.0
  %815 = vmatprep.subr.mxu0 0.0
  %816 = vmatpush1.msra.mxu0 0.0
  %817 = vmatprep.subr.mxu0 0.0
  %818 = vmatpush1.msra.mxu0 0.0
  %819 = vmatprep.subr.mxu0 0.0
  %820 = vmatpush1.msra.mxu0 0.0
  %821 = vmatprep.subr.mxu0 0.0
  %822 = vmatpush1.msra.mxu0 0.0
  %823 = vmatprep.subr.mxu0 0.0
  %824 = vmatpush1.msra.mxu0 0.0
  %825 = vmatprep.subr.mxu0 0.0
  %826 = vmatpush1.msra.mxu0 0.0
  %827 = vmatprep.subr.mxu0 0.0
  %828 = vmatpush1.msra.mxu0 0.0
  %829 = vmatprep.subr.mxu0 0.0
  %830 = vmatpush1.msra.mxu0 0.0
  %831 = vmatprep.subr.mxu0 0.0
  %832 = vmatpush1.msra.mxu0 0.0
  %833 = vmatprep.subr.mxu0 0.0
  %834 = vmatpush1.msra.mxu0 0.0
  %835 = vmatprep.subr.mxu0 0.0
  %836 = vmatpush1.msra.mxu0 0.0
  %837 = vmatprep.subr.mxu0 0.0
  %838 = vmatpush1.msra.mxu0 0.0
  %839 = vmatprep.subr.mxu0 0.0
  %840 = vmatpush1.msra.mxu0 0.0
  %841 = vmatprep.subr.mxu0 0.0
  %842 = vmatpush1.msra.mxu0 0.0
  %843 = vmatprep.subr.mxu0 0.0
  %844 = vmatpush1.msra.mxu0 0.0
  %845 = vmatprep.subr.mxu0 0.0
  %846 = vmatpush1.msra.mxu0 0.0
  %847 = vmatprep.subr.mxu0 0.0
  %848 = vmatpush1.msra.mxu0 0.0
  %849 = vmatprep.subr.mxu0 0.0
  %850 = vmatpush1.msra.mxu0 0.0
  %851 = vmatprep.subr.mxu0 0.0
  %852 = vmatpush1.msra.mxu0 0.0
  %853 = vmatprep.subr.mxu0 0.0
  %854 = vmatpush1.msra.mxu0 0.0
  %855 = vmatprep.subr.mxu0 0.0
  %856 = vmatpush1.msra.mxu0 0.0
  %857 = vmatprep.mubr.f32.mxu0 0.0
  %858 = vmatmul.mubr.f32.gmra.mrb[0].mxu0 %v693
  %v859 = vpop.f32.mrb[0].mxu0
  %v860 = vadd.f32 %v674, %v859
  %v861 = vpop.f32.mrb[0].mxu0
  %v862 = vadd.f32 %v674, %v861
  %863 = vmatprep.mubr.f32.mxu0 0.0
  %864 = vmatmul.mubr.f32.gmra.mrb[0].mxu0 %v696
  %v865 = vpop.f32.mrb[0].mxu0
  %v866 = vadd.f32 %v679, %v865
  %v867 = vpop.f32.mrb[0].mxu0
  %v868 = vadd.f32 %v679, %v867
  %869 = vmatprep.mubr.f32.mxu0 0.0
  %870 = vmatmul.mubr.f32.gmra.mrb[0].mxu0 %v699
  %v871 = vpop.f32.mrb[0].mxu0
  %v872 = vadd.f32 %v684, %v871
  %v873 = vpop.f32.mrb[0].mxu0
  %v874 = vadd.f32 %v684, %v873
  %875 = vmatprep.mubr.f32.mxu0 0.0
  %876 = vmatmul.mubr.f32.gmra.mrb[0].mxu0 %v702
  %v877 = vpop.f32.mrb[0].mxu0
  %v878 = vadd.f32 %v689, %v877
  %v879 = vpop.f32.mrb[0].mxu0
  %v880 = vadd.f32 %v689, %v879
  %881 = vdwg.mxu0
  %v882 = vmul.f32 %v771, %v771
  %v883 = vmul.f32 %v773, %v773
  %v884 = vmul.f32 %v860, %v860
  %v885 = vmul.f32 %v862, %v862
  %v886 = vmul.f32 %v777, %v777
  %v887 = vmul.f32 %v779, %v779
  %v888 = vmul.f32 %v866, %v866
  %v889 = vmul.f32 %v868, %v868
  %v890 = vmul.f32 %v783, %v783
  %v891 = vmul.f32 %v785, %v785
  %v892 = vmul.f32 %v872, %v872
  %v893 = vmul.f32 %v874, %v874
  %v894 = vmul.f32 %v789, %v789
  %v895 = vmul.f32 %v791, %v791
  %v896 = vmul.f32 %v878, %v878
  %v897 = vmul.f32 %v880, %v880
  %898 = vst [vmem:[#allocation3] sm:$0xff] %v882
  %899 = vst [vmem:[#allocation3 + $0x8] sm:$0xff] %v883
  %900 = vst [vmem:[#allocation3 + $0x10] sm:$0xff] %v884
  %901 = vst [vmem:[#allocation3 + $0x18] sm:$0xff] %v885
  %902 = vst [vmem:[#allocation3 + $0x20] sm:$0xff] %v886
  %903 = vst [vmem:[#allocation3 + $0x28] sm:$0xff] %v887
  %904 = vst [vmem:[#allocation3 + $0x30] sm:$0xff] %v888
  %905 = vst [vmem:[#allocation3 + $0x38] sm:$0xff] %v889
  %906 = vst [vmem:[#allocation3 + $0x40] sm:$0xff] %v890
  %907 = vst [vmem:[#allocation3 + $0x48] sm:$0xff] %v891
  %908 = vst [vmem:[#allocation3 + $0x50] sm:$0xff] %v892
  %909 = vst [vmem:[#allocation3 + $0x58] sm:$0xff] %v893
  %910 = vst [vmem:[#allocation3 + $0x60] sm:$0x1] %v894
  %911 = vst [vmem:[#allocation3 + $0x68] sm:$0x1] %v895
  %912 = vst [vmem:[#allocation3 + $0x70] sm:$0x1] %v896
  %913 = vst [vmem:[#allocation3 + $0x78] sm:$0x1] %v897
  %914 = vst [vmem:[#allocation5] sm:$0xff] 0.0
  %915 = vst [vmem:[#allocation5 + $0x8] sm:$0xff] 0.0
  %916 = vst [vmem:[#allocation5 + $0x10] sm:$0xff] 0.0
  %917 = vst [vmem:[#allocation5 + $0x18] sm:$0xff] 0.0
  %918 = vst [vmem:[#allocation5 + $0x20] sm:$0xff] 0.0
  %919 = vst [vmem:[#allocation5 + $0x28] sm:$0xff] 0.0
  %920 = vst [vmem:[#allocation5 + $0x30] sm:$0xff] 0.0
  %921 = vst [vmem:[#allocation5 + $0x38] sm:$0xff] 0.0
  %922 = vst [vmem:[#allocation5 + $0x40] sm:$0xff] 0.0
  %923 = vst [vmem:[#allocation5 + $0x48] sm:$0xff] 0.0
  %924 = vst [vmem:[#allocation5 + $0x50] sm:$0xff] 0.0
  %925 = vst [vmem:[#allocation5 + $0x58] sm:$0xff] 0.0
  %926 = vst [vmem:[#allocation5 + $0x60] sm:$0x1] 0.0
  %927 = vst [vmem:[#allocation5 + $0x68] sm:$0x1] 0.0
  %928 = vst [vmem:[#allocation5 + $0x70] sm:$0x1] 0.0
  %929 = vst [vmem:[#allocation5 + $0x78] sm:$0x1] 0.0
  loop: start=0, step=1, limit=8
  $region46: #{_lambda_.1} parent=0 // loop_pre_header
    _
  $region47: #{_lambda_.1} parent=0 // loop_header
    %s931 = sphi 0, %s935
    %p932 = scmp.ge.s32.totalorder %s931, 8
  $region48: #{_lambda_.1} parent=0 // loop_header_branch
    %934 = sbr.rel (%p932) target = $region52
  $region49: #{_lambda_.1} parent=0 // loop_body
    %v936 = vld [vmem:[#allocation5] sm:$0xff]
    %v937 = vld [vmem:[#allocation5 + $0x8] sm:$0xff]
    %v938 = vld [vmem:[#allocation5 + $0x10] sm:$0xff]
    %v939 = vld [vmem:[#allocation5 + $0x18] sm:$0xff]
    %v940 = vld [vmem:[#allocation5 + $0x20] sm:$0xff]
    %v941 = vld [vmem:[#allocation5 + $0x28] sm:$0xff]
    %v942 = vld [vmem:[#allocation5 + $0x30] sm:$0xff]
    %v943 = vld [vmem:[#allocation5 + $0x38] sm:$0xff]
    %v944 = vld [vmem:[#allocation5 + $0x40] sm:$0xff]
    %v945 = vld [vmem:[#allocation5 + $0x48] sm:$0xff]
    %v946 = vld [vmem:[#allocation5 + $0x50] sm:$0xff]
    %v947 = vld [vmem:[#allocation5 + $0x58] sm:$0xff]
    %v948 = vld [vmem:[#allocation5 + $0x60] sm:$0x1]
    %v949 = vld [vmem:[#allocation5 + $0x68] sm:$0x1]
    %v950 = vld [vmem:[#allocation5 + $0x70] sm:$0x1]
    %v951 = vld [vmem:[#allocation5 + $0x78] sm:$0x1]
    %v952 = vld [vmem:[%s2] sm:$0xff]
    %v953 = vld [vmem:[%s2 + $0x8] sm:$0xff]
    %v954 = vld [vmem:[%s2 + $0x10] sm:$0xff]
    %v955 = vld [vmem:[%s2 + $0x18] sm:$0x1]
    %v956 = vld [vmem:[%s272] sm:$0xff]
    %v957 = vld [vmem:[%s272 + $0x8] sm:$0xff]
    %v958 = vld [vmem:[%s272 + $0x10] sm:$0xff]
    %v959 = vld [vmem:[%s272 + $0x18] sm:$0xff]
    %v960 = vld [vmem:[%s272 + $0x20] sm:$0xff]
    %v961 = vld [vmem:[%s272 + $0x28] sm:$0xff]
    %v962 = vld [vmem:[%s272 + $0x30] sm:$0xff]
    %v963 = vld [vmem:[%s272 + $0x38] sm:$0xff]
    %v964 = vld [vmem:[%s272 + $0x40] sm:$0xff]
    %v965 = vld [vmem:[%s272 + $0x48] sm:$0xff]
    %v966 = vld [vmem:[%s272 + $0x50] sm:$0xff]
    %v967 = vld [vmem:[%s272 + $0x58] sm:$0xff]
    %v968 = vld [vmem:[%s272 + $0x60] sm:$0x1]
    %v969 = vld [vmem:[%s272 + $0x68] sm:$0x1]
    %v970 = vld [vmem:[%s272 + $0x70] sm:$0x1]
    %v971 = vld [vmem:[%s272 + $0x78] sm:$0x1]
    %vm972 = vcmask 203776
    %v974 = vsel %vm972, %v952, 0
    %v977 = vsel %vm972, %v953, 0
    %v980 = vsel %vm972, %v954, 0
    %v983 = vsel %vm972, %v955, 0
    %vm985 = vcmask 1040384
    %v987 = vsel %vm985, %v948, 0
    %v990 = vsel %vm985, %v949, 0
    %v993 = vsel %vm985, %v950, 0
    %v996 = vsel %vm985, %v951, 0
    %998 = vmatprep.subr.mxu0 %v937
    %999 = vmatpush1.msra.mxu0 %v936
    %1000 = vmatprep.subr.mxu0 %v941
    %1001 = vmatpush1.msra.mxu0 %v940
    %1002 = vmatprep.subr.mxu0 %v945
    %1003 = vmatpush1.msra.mxu0 %v944
    %1004 = vmatprep.subr.mxu0 %v990
    %1005 = vmatpush1.msra.mxu0 %v987
    %1006 = vmatprep.subr.mxu0 0.0
    %1007 = vmatpush1.msra.mxu0 0.0
    %1008 = vmatprep.subr.mxu0 0.0
    %1009 = vmatpush1.msra.mxu0 0.0
    %1010 = vmatprep.subr.mxu0 0.0
    %1011 = vmatpush1.msra.mxu0 0.0
    %1012 = vmatprep.subr.mxu0 0.0
    %1013 = vmatpush1.msra.mxu0 0.0
    %1014 = vmatprep.subr.mxu0 0.0
    %1015 = vmatpush1.msra.mxu0 0.0
    %1016 = vmatprep.subr.mxu0 0.0
    %1017 = vmatpush1.msra.mxu0 0.0
    %1018 = vmatprep.subr.mxu0 0.0
    %1019 = vmatpush1.msra.mxu0 0.0
    %1020 = vmatprep.subr.mxu0 0.0
    %1021 = vmatpush1.msra.mxu0 0.0
    %1022 = vmatprep.subr.mxu0 0.0
    %1023 = vmatpush1.msra.mxu0 0.0
    %1024 = vmatprep.subr.mxu0 0.0
    %1025 = vmatpush1.msra.mxu0 0.0
    %1026 = vmatprep.subr.mxu0 0.0
    %1027 = vmatpush1.msra.mxu0 0.0
    %1028 = vmatprep.subr.mxu0 0.0
    %1029 = vmatpush1.msra.mxu0 0.0
    %1030 = vmatprep.subr.mxu0 0.0
    %1031 = vmatpush1.msra.mxu0 0.0
    %1032 = vmatprep.subr.mxu0 0.0
    %1033 = vmatpush1.msra.mxu0 0.0
    %1034 = vmatprep.subr.mxu0 0.0
    %1035 = vmatpush1.msra.mxu0 0.0
    %1036 = vmatprep.subr.mxu0 0.0
    %1037 = vmatpush1.msra.mxu0 0.0
    %1038 = vmatprep.subr.mxu0 0.0
    %1039 = vmatpush1.msra.mxu0 0.0
    %1040 = vmatprep.subr.mxu0 0.0
    %1041 = vmatpush1.msra.mxu0 0.0
    %1042 = vmatprep.subr.mxu0 0.0
    %1043 = vmatpush1.msra.mxu0 0.0
    %1044 = vmatprep.subr.mxu0 0.0
    %1045 = vmatpush1.msra.mxu0 0.0
    %1046 = vmatprep.subr.mxu0 0.0
    %1047 = vmatpush1.msra.mxu0 0.0
    %1048 = vmatprep.subr.mxu0 0.0
    %1049 = vmatpush1.msra.mxu0 0.0
    %1050 = vmatprep.subr.mxu0 0.0
    %1051 = vmatpush1.msra.mxu0 0.0
    %1052 = vmatprep.subr.mxu0 0.0
    %1053 = vmatpush1.msra.mxu0 0.0
    %1054 = vmatprep.subr.mxu0 0.0
    %1055 = vmatpush1.msra.mxu0 0.0
    %1056 = vmatprep.subr.mxu0 0.0
    %1057 = vmatpush1.msra.mxu0 0.0
    %1058 = vmatprep.subr.mxu0 0.0
    %1059 = vmatpush1.msra.mxu0 0.0
    %1060 = vmatprep.subr.mxu0 0.0
    %1061 = vmatpush1.msra.mxu0 0.0
    %1062 = vmatprep.mubr.f32.mxu0 0.0
    %1063 = vmatmul.mubr.f32.gmra.mrb[0].mxu0 %v974
    %v1064 = vpop.f32.mrb[0].mxu0
    %v1065 = vadd.f32 %v956, %v1064
    %v1066 = vpop.f32.mrb[0].mxu0
    %v1067 = vadd.f32 %v957, %v1066
    %1068 = vmatprep.mubr.f32.mxu0 0.0
    %1069 = vmatmul.mubr.f32.gmra.mrb[0].mxu0 %v977
    %v1070 = vpop.f32.mrb[0].mxu0
    %v1071 = vadd.f32 %v960, %v1070
    %v1072 = vpop.f32.mrb[0].mxu0
    %v1073 = vadd.f32 %v961, %v1072
    %1074 = vmatprep.mubr.f32.mxu0 0.0
    %1075 = vmatmul.mubr.f32.gmra.mrb[0].mxu0 %v980
    %v1076 = vpop.f32.mrb[0].mxu0
    %v1077 = vadd.f32 %v964, %v1076
    %v1078 = vpop.f32.mrb[0].mxu0
    %v1079 = vadd.f32 %v965, %v1078
    %1080 = vmatprep.mubr.f32.mxu0 0.0
    %1081 = vmatmul.mubr.f32.gmra.mrb[0].mxu0 %v983
    %v1082 = vpop.f32.mrb[0].mxu0
    %v1083 = vadd.f32 %v968, %v1082
    %v1084 = vpop.f32.mrb[0].mxu0
    %v1085 = vadd.f32 %v969, %v1084
    %1086 = vdwg.mxu0
    %1087 = vmatprep.subr.mxu0 %v939
    %1088 = vmatpush1.msra.mxu0 %v938
    %1089 = vmatprep.subr.mxu0 %v943
    %1090 = vmatpush1.msra.mxu0 %v942
    %1091 = vmatprep.subr.mxu0 %v947
    %1092 = vmatpush1.msra.mxu0 %v946
    %1093 = vmatprep.subr.mxu0 %v996
    %1094 = vmatpush1.msra.mxu0 %v993
    %1095 = vmatprep.subr.mxu0 0.0
    %1096 = vmatpush1.msra.mxu0 0.0
    %1097 = vmatprep.subr.mxu0 0.0
    %1098 = vmatpush1.msra.mxu0 0.0
    %1099 = vmatprep.subr.mxu0 0.0
    %1100 = vmatpush1.msra.mxu0 0.0
    %1101 = vmatprep.subr.mxu0 0.0
    %1102 = vmatpush1.msra.mxu0 0.0
    %1103 = vmatprep.subr.mxu0 0.0
    %1104 = vmatpush1.msra.mxu0 0.0
    %1105 = vmatprep.subr.mxu0 0.0
    %1106 = vmatpush1.msra.mxu0 0.0
    %1107 = vmatprep.subr.mxu0 0.0
    %1108 = vmatpush1.msra.mxu0 0.0
    %1109 = vmatprep.subr.mxu0 0.0
    %1110 = vmatpush1.msra.mxu0 0.0
    %1111 = vmatprep.subr.mxu0 0.0
    %1112 = vmatpush1.msra.mxu0 0.0
    %1113 = vmatprep.subr.mxu0 0.0
    %1114 = vmatpush1.msra.mxu0 0.0
    %1115 = vmatprep.subr.mxu0 0.0
    %1116 = vmatpush1.msra.mxu0 0.0
    %1117 = vmatprep.subr.mxu0 0.0
    %1118 = vmatpush1.msra.mxu0 0.0
    %1119 = vmatprep.subr.mxu0 0.0
    %1120 = vmatpush1.msra.mxu0 0.0
    %1121 = vmatprep.subr.mxu0 0.0
    %1122 = vmatpush1.msra.mxu0 0.0
    %1123 = vmatprep.subr.mxu0 0.0
    %1124 = vmatpush1.msra.mxu0 0.0
    %1125 = vmatprep.subr.mxu0 0.0
    %1126 = vmatpush1.msra.mxu0 0.0
    %1127 = vmatprep.subr.mxu0 0.0
    %1128 = vmatpush1.msra.mxu0 0.0
    %1129 = vmatprep.subr.mxu0 0.0
    %1130 = vmatpush1.msra.mxu0 0.0
    %1131 = vmatprep.subr.mxu0 0.0
    %1132 = vmatpush1.msra.mxu0 0.0
    %1133 = vmatprep.subr.mxu0 0.0
    %1134 = vmatpush1.msra.mxu0 0.0
    %1135 = vmatprep.subr.mxu0 0.0
    %1136 = vmatpush1.msra.mxu0 0.0
    %1137 = vmatprep.subr.mxu0 0.0
    %1138 = vmatpush1.msra.mxu0 0.0
    %1139 = vmatprep.subr.mxu0 0.0
    %1140 = vmatpush1.msra.mxu0 0.0
    %1141 = vmatprep.subr.mxu0 0.0
    %1142 = vmatpush1.msra.mxu0 0.0
    %1143 = vmatprep.subr.mxu0 0.0
    %1144 = vmatpush1.msra.mxu0 0.0
    %1145 = vmatprep.subr.mxu0 0.0
    %1146 = vmatpush1.msra.mxu0 0.0
    %1147 = vmatprep.subr.mxu0 0.0
    %1148 = vmatpush1.msra.mxu0 0.0
    %1149 = vmatprep.subr.mxu0 0.0
    %1150 = vmatpush1.msra.mxu0 0.0
    %1151 = vmatprep.mubr.f32.mxu0 0.0
    %1152 = vmatmul.mubr.f32.gmra.mrb[0].mxu0 %v974
    %v1153 = vpop.f32.mrb[0].mxu0
    %v1154 = vadd.f32 %v958, %v1153
    %v1155 = vpop.f32.mrb[0].mxu0
    %v1156 = vadd.f32 %v959, %v1155
    %1157 = vmatprep.mubr.f32.mxu0 0.0
    %1158 = vmatmul.mubr.f32.gmra.mrb[0].mxu0 %v977
    %v1159 = vpop.f32.mrb[0].mxu0
    %v1160 = vadd.f32 %v962, %v1159
    %v1161 = vpop.f32.mrb[0].mxu0
    %v1162 = vadd.f32 %v963, %v1161
    %1163 = vmatprep.mubr.f32.mxu0 0.0
    %1164 = vmatmul.mubr.f32.gmra.mrb[0].mxu0 %v980
    %v1165 = vpop.f32.mrb[0].mxu0
    %v1166 = vadd.f32 %v966, %v1165
    %v1167 = vpop.f32.mrb[0].mxu0
    %v1168 = vadd.f32 %v967, %v1167
    %1169 = vmatprep.mubr.f32.mxu0 0.0
    %1170 = vmatmul.mubr.f32.gmra.mrb[0].mxu0 %v983
    %v1171 = vpop.f32.mrb[0].mxu0
    %v1172 = vadd.f32 %v970, %v1171
    %v1173 = vpop.f32.mrb[0].mxu0
    %v1174 = vadd.f32 %v971, %v1173
    %1175 = vdwg.mxu0
    %v1176 = vsub.f32 0.0, %v1065
    %v1177 = vsub.f32 0.0, %v1067
    %v1178 = vsub.f32 0.0, %v1154
    %v1179 = vsub.f32 0.0, %v1156
    %v1180 = vsub.f32 0.0, %v1071
    %v1181 = vsub.f32 0.0, %v1073
    %v1182 = vsub.f32 0.0, %v1160
    %v1183 = vsub.f32 0.0, %v1162
    %v1184 = vsub.f32 0.0, %v1077
    %v1185 = vsub.f32 0.0, %v1079
    %v1186 = vsub.f32 0.0, %v1166
    %v1187 = vsub.f32 0.0, %v1168
    %v1188 = vsub.f32 0.0, %v1083
    %v1189 = vsub.f32 0.0, %v1085
    %v1190 = vsub.f32 0.0, %v1172
    %v1191 = vsub.f32 0.0, %v1174
    %v1192 = vmul.f32 %v1176, 1.442695
    %v1193 = vpow.pop %v1192
    %v1194 = vmul.f32 %v1177, 1.442695
    %v1195 = vpow.pop %v1194
    %v1196 = vmul.f32 %v1178, 1.442695
    %v1197 = vpow.pop %v1196
    %v1198 = vmul.f32 %v1179, 1.442695
    %v1199 = vpow.pop %v1198
    %v1200 = vmul.f32 %v1180, 1.442695
    %v1201 = vpow.pop %v1200
    %v1202 = vmul.f32 %v1181, 1.442695
    %v1203 = vpow.pop %v1202
    %v1204 = vmul.f32 %v1182, 1.442695
    %v1205 = vpow.pop %v1204
    %v1206 = vmul.f32 %v1183, 1.442695
    %v1207 = vpow.pop %v1206
    %v1208 = vmul.f32 %v1184, 1.442695
    %v1209 = vpow.pop %v1208
    %v1210 = vmul.f32 %v1185, 1.442695
    %v1211 = vpow.pop %v1210
    %v1212 = vmul.f32 %v1186, 1.442695
    %v1213 = vpow.pop %v1212
    %v1214 = vmul.f32 %v1187, 1.442695
    %v1215 = vpow.pop %v1214
    %v1216 = vmul.f32 %v1188, 1.442695
    %v1217 = vpow.pop %v1216
    %v1218 = vmul.f32 %v1189, 1.442695
    %v1219 = vpow.pop %v1218
    %v1220 = vmul.f32 %v1190, 1.442695
    %v1221 = vpow.pop %v1220
    %v1222 = vmul.f32 %v1191, 1.442695
    %v1223 = vpow.pop %v1222
    %v1224 = vadd.f32 %v1193, 1.0
    %v1225 = vadd.f32 %v1195, 1.0
    %v1226 = vadd.f32 %v1197, 1.0
    %v1227 = vadd.f32 %v1199, 1.0
    %v1228 = vadd.f32 %v1201, 1.0
    %v1229 = vadd.f32 %v1203, 1.0
    %v1230 = vadd.f32 %v1205, 1.0
    %v1231 = vadd.f32 %v1207, 1.0
    %v1232 = vadd.f32 %v1209, 1.0
    %v1233 = vadd.f32 %v1211, 1.0
    %v1234 = vadd.f32 %v1213, 1.0
    %v1235 = vadd.f32 %v1215, 1.0
    %v1236 = vadd.f32 %v1217, 1.0
    %v1237 = vadd.f32 %v1219, 1.0
    %v1238 = vadd.f32 %v1221, 1.0
    %v1239 = vadd.f32 %v1223, 1.0
    %v1240 = vrcp.pop %v1224
    %v1241 = vrcp.pop %v1225
    %v1242 = vrcp.pop %v1226
    %v1243 = vrcp.pop %v1227
    %v1244 = vrcp.pop %v1228
    %v1245 = vrcp.pop %v1229
    %v1246 = vrcp.pop %v1230
    %v1247 = vrcp.pop %v1231
    %v1248 = vrcp.pop %v1232
    %v1249 = vrcp.pop %v1233
    %v1250 = vrcp.pop %v1234
    %v1251 = vrcp.pop %v1235
    %v1252 = vrcp.pop %v1236
    %v1253 = vrcp.pop %v1237
    %v1254 = vrcp.pop %v1238
    %v1255 = vrcp.pop %v1239
    %v1256 = vmul.f32 %v936, %v1240
    %v1257 = vmul.f32 %v937, %v1241
    %v1258 = vmul.f32 %v938, %v1242
    %v1259 = vmul.f32 %v939, %v1243
    %v1260 = vmul.f32 %v940, %v1244
    %v1261 = vmul.f32 %v941, %v1245
    %v1262 = vmul.f32 %v942, %v1246
    %v1263 = vmul.f32 %v943, %v1247
    %v1264 = vmul.f32 %v944, %v1248
    %v1265 = vmul.f32 %v945, %v1249
    %v1266 = vmul.f32 %v946, %v1250
    %v1267 = vmul.f32 %v947, %v1251
    %v1268 = vmul.f32 %v948, %v1252
    %v1269 = vmul.f32 %v949, %v1253
    %v1270 = vmul.f32 %v950, %v1254
    %v1271 = vmul.f32 %v951, %v1255
    %1272 = vrot.lane.b32.xlu0 %v1256, 34
    %v1273 = vpop.permute.xlu0 %1272
    %1274 = vrot.lane.b32.xlu0 %v1260, 34
    %v1275 = vpop.permute.xlu0 %1274
    %1276 = vrot.lane.b32.xlu0 %v1264, 34
    %v1277 = vpop.permute.xlu0 %1276
    %1278 = vrot.lane.b32.xlu0 %v1268, 34
    %v1279 = vpop.permute.xlu0 %1278
    %1280 = vrot.lane.b32.xlu0 %v1257, 34
    %v1281 = vpop.permute.xlu0 %1280
    %1282 = vrot.lane.b32.xlu0 %v1261, 34
    %v1283 = vpop.permute.xlu0 %1282
    %1284 = vrot.lane.b32.xlu0 %v1265, 34
    %v1285 = vpop.permute.xlu0 %1284
    %1286 = vrot.lane.b32.xlu0 %v1269, 34
    %v1287 = vpop.permute.xlu0 %1286
    %1288 = vrot.lane.b32.xlu0 %v1258, 34
    %v1289 = vpop.permute.xlu0 %1288
    %1290 = vrot.lane.b32.xlu0 %v1262, 34
    %v1291 = vpop.permute.xlu0 %1290
    %1292 = vrot.lane.b32.xlu0 %v1266, 34
    %v1293 = vpop.permute.xlu0 %1292
    %1294 = vrot.lane.b32.xlu0 %v1270, 34
    %v1295 = vpop.permute.xlu0 %1294
    %1296 = vrot.lane.b32.xlu0 %v1259, 34
    %v1297 = vpop.permute.xlu0 %1296
    %1298 = vrot.lane.b32.xlu0 %v1263, 34
    %v1299 = vpop.permute.xlu0 %1298
    %1300 = vrot.lane.b32.xlu0 %v1267, 34
    %v1301 = vpop.permute.xlu0 %1300
    %1302 = vrot.lane.b32.xlu0 %v1271, 34
    %v1303 = vpop.permute.xlu0 %1302
    %v1304 = vlaneseq
    %v1305 = vand.u32 %v1304, 127
    %vm1306 = vcmp.lt.s32.totalorder %v1305, 34
    %v1307 = vsel %vm1306, %v1289, %v1297
    %v1308 = vsel %vm1306, %v1291, %v1299
    %v1309 = vsel %vm1306, %v1293, %v1301
    %v1310 = vsel %vm1306, %v1295, %v1303
    %v1311 = vsel %vm1306, %v1281, %v1289
    %v1312 = vsel %vm1306, %v1283, %v1291
    %v1313 = vsel %vm1306, %v1285, %v1293
    %v1314 = vsel %vm1306, %v1287, %v1295
    %v1315 = vsel %vm1306, %v1273, %v1281
    %v1316 = vsel %vm1306, %v1275, %v1283
    %v1317 = vsel %vm1306, %v1277, %v1285
    %v1318 = vsel %vm1306, %v1279, %v1287
    %v1319 = vsel %vm1306, %v1297, %v1273
    %v1320 = vsel %vm1306, %v1299, %v1275
    %v1321 = vsel %vm1306, %v1301, %v1277
    %v1322 = vsel %vm1306, %v1303, %v1279
    %v1323 = vld [vmem:[%s6] ss:$8 sm:$0xf]
    %v1325 = vlaneseq
    %v1326 = vshrl.u32 %v1325, 7
    %v1327 = vsub.s32 0, %v1326
    %v1328 = vrot.slane %v1323, %v1327
    %v1329 = vlaneseq
    %v1330 = vshrl.u32 %v1329, 7
    %v1331 = vsub.s32 1, %v1330
    %v1332 = vrot.slane %v1323, %v1331
    %v1333 = vlaneseq
    %v1334 = vshrl.u32 %v1333, 7
    %v1335 = vsub.s32 2, %v1334
    %v1336 = vrot.slane %v1323, %v1335
    %v1337 = vlaneseq
    %v1338 = vshrl.u32 %v1337, 7
    %v1339 = vsub.s32 3, %v1338
    %v1340 = vrot.slane %v1323, %v1339
    %v1345 = vmul.f32 %v1319, %v1328
    %v1346 = vmul.f32 %v1315, %v1332
    %v1347 = vmul.f32 %v1311, %v1336
    %v1348 = vmul.f32 %v1307, %v1340
    %v1349 = vmul.f32 %v1320, %v1328
    %v1350 = vmul.f32 %v1316, %v1332
    %v1351 = vmul.f32 %v1312, %v1336
    %v1352 = vmul.f32 %v1308, %v1340
    %v1353 = vmul.f32 %v1321, %v1328
    %v1354 = vmul.f32 %v1317, %v1332
    %v1355 = vmul.f32 %v1313, %v1336
    %v1356 = vmul.f32 %v1309, %v1340
    %v1357 = vmul.f32 %v1322, %v1328
    %v1358 = vmul.f32 %v1318, %v1332
    %v1359 = vmul.f32 %v1314, %v1336
    %v1360 = vmul.f32 %v1310, %v1340
    %v1361 = vpack.c.bf16 %v1349, %v1345
    %v1362 = vpack.c.bf16 %v1350, %v1346
    %v1363 = vpack.c.bf16 %v1351, %v1347
    %v1364 = vpack.c.bf16 %v1352, %v1348
    %v1365 = vpack.c.bf16 %v1357, %v1353
    %v1366 = vpack.c.bf16 %v1358, %v1354
    %v1367 = vpack.c.bf16 %v1359, %v1355
    %v1368 = vpack.c.bf16 %v1360, %v1356
    %1369 = vst [vmem:[#allocation2] sm:$0xff] %v1361
    %1370 = vst [vmem:[#allocation2 + $0x8] sm:$0xff] %v1362
    %1371 = vst [vmem:[#allocation2 + $0x10] sm:$0xff] %v1363
    %1372 = vst [vmem:[#allocation2 + $0x18] sm:$0xff] %v1364
    %vm1373 = vcmask 1044480
    %vm1374 = vsmask.f32 4352
    %vm1375 = vmand %vm1373, %vm1374
    %v1376 = vld [vmem:[#allocation2 + $0x20] sm:$0x1f]
    %v1377 = vsel %vm1375, %v1365, %v1376
    %1378 = vst [vmem:[#allocation2 + $0x20] sm:$0x1f] %v1377
    %v1379 = vld [vmem:[#allocation2 + $0x28] sm:$0x1f]
    %v1380 = vsel %vm1375, %v1366, %v1379
    %1381 = vst [vmem:[#allocation2 + $0x28] sm:$0x1f] %v1380
    %v1382 = vld [vmem:[#allocation2 + $0x30] sm:$0x1f]
    %v1383 = vsel %vm1375, %v1367, %v1382
    %1384 = vst [vmem:[#allocation2 + $0x30] sm:$0x1f] %v1383
    %v1385 = vld [vmem:[#allocation2 + $0x38] sm:$0x1f]
    %v1386 = vsel %vm1375, %v1368, %v1385
    %1387 = vst [vmem:[#allocation2 + $0x38] sm:$0x1f] %v1386
    %1388 = vrot.lane.b32.xlu0 %v1256, 33
    %v1389 = vpop.permute.xlu0 %1388
    %1390 = vrot.lane.b32.xlu0 %v1260, 33
    %v1391 = vpop.permute.xlu0 %1390
    %1392 = vrot.lane.b32.xlu0 %v1264, 33
    %v1393 = vpop.permute.xlu0 %1392
    %1394 = vrot.lane.b32.xlu0 %v1268, 33
    %v1395 = vpop.permute.xlu0 %1394
    %1396 = vrot.lane.b32.xlu0 %v1257, 33
    %v1397 = vpop.permute.xlu0 %1396
    %1398 = vrot.lane.b32.xlu0 %v1261, 33
    %v1399 = vpop.permute.xlu0 %1398
    %1400 = vrot.lane.b32.xlu0 %v1265, 33
    %v1401 = vpop.permute.xlu0 %1400
    %1402 = vrot.lane.b32.xlu0 %v1269, 33
    %v1403 = vpop.permute.xlu0 %1402
    %1404 = vrot.lane.b32.xlu0 %v1258, 33
    %v1405 = vpop.permute.xlu0 %1404
    %1406 = vrot.lane.b32.xlu0 %v1262, 33
    %v1407 = vpop.permute.xlu0 %1406
    %1408 = vrot.lane.b32.xlu0 %v1266, 33
    %v1409 = vpop.permute.xlu0 %1408
    %1410 = vrot.lane.b32.xlu0 %v1270, 33
    %v1411 = vpop.permute.xlu0 %1410
    %1412 = vrot.lane.b32.xlu0 %v1259, 33
    %v1413 = vpop.permute.xlu0 %1412
    %1414 = vrot.lane.b32.xlu0 %v1263, 33
    %v1415 = vpop.permute.xlu0 %1414
    %1416 = vrot.lane.b32.xlu0 %v1267, 33
    %v1417 = vpop.permute.xlu0 %1416
    %1418 = vrot.lane.b32.xlu0 %v1271, 33
    %v1419 = vpop.permute.xlu0 %1418
    %vm1420 = vcmp.lt.s32.totalorder %v1305, 33
    %v1421 = vsel %vm1420, %v1405, %v1413
    %v1422 = vsel %vm1420, %v1407, %v1415
    %v1423 = vsel %vm1420, %v1409, %v1417
    %v1424 = vsel %vm1420, %v1411, %v1419
    %v1425 = vsel %vm1420, %v1397, %v1405
    %v1426 = vsel %vm1420, %v1399, %v1407
    %v1427 = vsel %vm1420, %v1401, %v1409
    %v1428 = vsel %vm1420, %v1403, %v1411
    %v1429 = vsel %vm1420, %v1389, %v1397
    %v1430 = vsel %vm1420, %v1391, %v1399
    %v1431 = vsel %vm1420, %v1393, %v1401
    %v1432 = vsel %vm1420, %v1395, %v1403
    %v1433 = vsel %vm1420, %v1413, %v1389
    %v1434 = vsel %vm1420, %v1415, %v1391
    %v1435 = vsel %vm1420, %v1417, %v1393
    %v1436 = vsel %vm1420, %v1419, %v1395
    %s1437 = scalar_lea.vmem %s6, 1
    %v1438 = vld [vmem:[%s1437] ss:$8 sm:$0xf]
    %v1440 = vlaneseq
    %v1441 = vshrl.u32 %v1440, 7
    %v1442 = vsub.s32 0, %v1441
    %v1443 = vrot.slane %v1438, %v1442
    %v1444 = vlaneseq
    %v1445 = vshrl.u32 %v1444, 7
    %v1446 = vsub.s32 1, %v1445
    %v1447 = vrot.slane %v1438, %v1446
    %v1448 = vlaneseq
    %v1449 = vshrl.u32 %v1448, 7
    %v1450 = vsub.s32 2, %v1449
    %v1451 = vrot.slane %v1438, %v1450
    %v1452 = vlaneseq
    %v1453 = vshrl.u32 %v1452, 7
    %v1454 = vsub.s32 3, %v1453
    %v1455 = vrot.slane %v1438, %v1454
    %v1460 = vmul.f32 %v1433, %v1443
    %v1461 = vmul.f32 %v1429, %v1447
    %v1462 = vmul.f32 %v1425, %v1451
    %v1463 = vmul.f32 %v1421, %v1455
    %v1464 = vmul.f32 %v1434, %v1443
    %v1465 = vmul.f32 %v1430, %v1447
    %v1466 = vmul.f32 %v1426, %v1451
    %v1467 = vmul.f32 %v1422, %v1455
    %v1468 = vmul.f32 %v1435, %v1443
    %v1469 = vmul.f32 %v1431, %v1447
    %v1470 = vmul.f32 %v1427, %v1451
    %v1471 = vmul.f32 %v1423, %v1455
    %v1472 = vmul.f32 %v1436, %v1443
    %v1473 = vmul.f32 %v1432, %v1447
    %v1474 = vmul.f32 %v1428, %v1451
    %v1475 = vmul.f32 %v1424, %v1455
    %v1476 = vpack.c.bf16 %v1464, %v1460
    %v1477 = vpack.c.bf16 %v1465, %v1461
    %v1478 = vpack.c.bf16 %v1466, %v1462
    %v1479 = vpack.c.bf16 %v1467, %v1463
    %v1480 = vpack.c.bf16 %v1472, %v1468
    %v1481 = vpack.c.bf16 %v1473, %v1469
    %v1482 = vpack.c.bf16 %v1474, %v1470
    %v1483 = vpack.c.bf16 %v1475, %v1471
    %1484 = vst [vmem:[#allocation2 + $0x40] sm:$0xff] %v1476
    %1485 = vst [vmem:[#allocation2 + $0x48] sm:$0xff] %v1477
    %1486 = vst [vmem:[#allocation2 + $0x50] sm:$0xff] %v1478
    %1487 = vst [vmem:[#allocation2 + $0x58] sm:$0xff] %v1479
    %v1488 = vld [vmem:[#allocation2 + $0x60] sm:$0x1f]
    %v1489 = vsel %vm1375, %v1480, %v1488
    %1490 = vst [vmem:[#allocation2 + $0x60] sm:$0x1f] %v1489
    %v1491 = vld [vmem:[#allocation2 + $0x68] sm:$0x1f]
    %v1492 = vsel %vm1375, %v1481, %v1491
    %1493 = vst [vmem:[#allocation2 + $0x68] sm:$0x1f] %v1492
    %v1494 = vld [vmem:[#allocation2 + $0x70] sm:$0x1f]
    %v1495 = vsel %vm1375, %v1482, %v1494
    %1496 = vst [vmem:[#allocation2 + $0x70] sm:$0x1f] %v1495
    %v1497 = vld [vmem:[#allocation2 + $0x78] sm:$0x1f]
    %v1498 = vsel %vm1375, %v1483, %v1497
    %1499 = vst [vmem:[#allocation2 + $0x78] sm:$0x1f] %v1498
    %1500 = vrot.lane.b32.xlu0 %v1256, 32
    %v1501 = vpop.permute.xlu0 %1500
    %1502 = vrot.lane.b32.xlu0 %v1260, 32
    %v1503 = vpop.permute.xlu0 %1502
    %1504 = vrot.lane.b32.xlu0 %v1264, 32
    %v1505 = vpop.permute.xlu0 %1504
    %1506 = vrot.lane.b32.xlu0 %v1268, 32
    %v1507 = vpop.permute.xlu0 %1506
    %1508 = vrot.lane.b32.xlu0 %v1257, 32
    %v1509 = vpop.permute.xlu0 %1508
    %1510 = vrot.lane.b32.xlu0 %v1261, 32
    %v1511 = vpop.permute.xlu0 %1510
    %1512 = vrot.lane.b32.xlu0 %v1265, 32
    %v1513 = vpop.permute.xlu0 %1512
    %1514 = vrot.lane.b32.xlu0 %v1269, 32
    %v1515 = vpop.permute.xlu0 %1514
    %1516 = vrot.lane.b32.xlu0 %v1258, 32
    %v1517 = vpop.permute.xlu0 %1516
    %1518 = vrot.lane.b32.xlu0 %v1262, 32
    %v1519 = vpop.permute.xlu0 %1518
    %1520 = vrot.lane.b32.xlu0 %v1266, 32
    %v1521 = vpop.permute.xlu0 %1520
    %1522 = vrot.lane.b32.xlu0 %v1270, 32
    %v1523 = vpop.permute.xlu0 %1522
    %1524 = vrot.lane.b32.xlu0 %v1259, 32
    %v1525 = vpop.permute.xlu0 %1524
    %1526 = vrot.lane.b32.xlu0 %v1263, 32
    %v1527 = vpop.permute.xlu0 %1526
    %1528 = vrot.lane.b32.xlu0 %v1267, 32
    %v1529 = vpop.permute.xlu0 %1528
    %1530 = vrot.lane.b32.xlu0 %v1271, 32
    %v1531 = vpop.permute.xlu0 %1530
    %vm1532 = vcmp.lt.s32.totalorder %v1305, 32
    %v1533 = vsel %vm1532, %v1517, %v1525
    %v1534 = vsel %vm1532, %v1519, %v1527
    %v1535 = vsel %vm1532, %v1521, %v1529
    %v1536 = vsel %vm1532, %v1523, %v1531
    %v1537 = vsel %vm1532, %v1509, %v1517
    %v1538 = vsel %vm1532, %v1511, %v1519
    %v1539 = vsel %vm1532, %v1513, %v1521
    %v1540 = vsel %vm1532, %v1515, %v1523
    %v1541 = vsel %vm1532, %v1501, %v1509
    %v1542 = vsel %vm1532, %v1503, %v1511
    %v1543 = vsel %vm1532, %v1505, %v1513
    %v1544 = vsel %vm1532, %v1507, %v1515
    %v1545 = vsel %vm1532, %v1525, %v1501
    %v1546 = vsel %vm1532, %v1527, %v1503
    %v1547 = vsel %vm1532, %v1529, %v1505
    %v1548 = vsel %vm1532, %v1531, %v1507
    %s1549 = scalar_lea.vmem %s6, 2
    %v1550 = vld [vmem:[%s1549] ss:$8 sm:$0xf]
    %v1552 = vlaneseq
    %v1553 = vshrl.u32 %v1552, 7
    %v1554 = vsub.s32 0, %v1553
    %v1555 = vrot.slane %v1550, %v1554
    %v1556 = vlaneseq
    %v1557 = vshrl.u32 %v1556, 7
    %v1558 = vsub.s32 1, %v1557
    %v1559 = vrot.slane %v1550, %v1558
    %v1560 = vlaneseq
    %v1561 = vshrl.u32 %v1560, 7
    %v1562 = vsub.s32 2, %v1561
    %v1563 = vrot.slane %v1550, %v1562
    %v1564 = vlaneseq
    %v1565 = vshrl.u32 %v1564, 7
    %v1566 = vsub.s32 3, %v1565
    %v1567 = vrot.slane %v1550, %v1566
    %v1572 = vmul.f32 %v1545, %v1555
    %v1573 = vmul.f32 %v1541, %v1559
    %v1574 = vmul.f32 %v1537, %v1563
    %v1575 = vmul.f32 %v1533, %v1567
    %v1576 = vmul.f32 %v1546, %v1555
    %v1577 = vmul.f32 %v1542, %v1559
    %v1578 = vmul.f32 %v1538, %v1563
    %v1579 = vmul.f32 %v1534, %v1567
    %v1580 = vmul.f32 %v1547, %v1555
    %v1581 = vmul.f32 %v1543, %v1559
    %v1582 = vmul.f32 %v1539, %v1563
    %v1583 = vmul.f32 %v1535, %v1567
    %v1584 = vmul.f32 %v1548, %v1555
    %v1585 = vmul.f32 %v1544, %v1559
    %v1586 = vmul.f32 %v1540, %v1563
    %v1587 = vmul.f32 %v1536, %v1567
    %v1588 = vpack.c.bf16 %v1576, %v1572
    %v1589 = vpack.c.bf16 %v1577, %v1573
    %v1590 = vpack.c.bf16 %v1578, %v1574
    %v1591 = vpack.c.bf16 %v1579, %v1575
    %v1592 = vpack.c.bf16 %v1584, %v1580
    %v1593 = vpack.c.bf16 %v1585, %v1581
    %v1594 = vpack.c.bf16 %v1586, %v1582
    %v1595 = vpack.c.bf16 %v1587, %v1583
    %1596 = vst [vmem:[#allocation2 + $0x80] sm:$0xff] %v1588
    %1597 = vst [vmem:[#allocation2 + $0x88] sm:$0xff] %v1589
    %1598 = vst [vmem:[#allocation2 + $0x90] sm:$0xff] %v1590
    %1599 = vst [vmem:[#allocation2 + $0x98] sm:$0xff] %v1591
    %v1600 = vld [vmem:[#allocation2 + $0xa0] sm:$0x1f]
    %v1601 = vsel %vm1375, %v1592, %v1600
    %1602 = vst [vmem:[#allocation2 + $0xa0] sm:$0x1f] %v1601
    %v1603 = vld [vmem:[#allocation2 + $0xa8] sm:$0x1f]
    %v1604 = vsel %vm1375, %v1593, %v1603
    %1605 = vst [vmem:[#allocation2 + $0xa8] sm:$0x1f] %v1604
    %v1606 = vld [vmem:[#allocation2 + $0xb0] sm:$0x1f]
    %v1607 = vsel %vm1375, %v1594, %v1606
    %1608 = vst [vmem:[#allocation2 + $0xb0] sm:$0x1f] %v1607
    %v1609 = vld [vmem:[#allocation2 + $0xb8] sm:$0x1f]
    %v1610 = vsel %vm1375, %v1595, %v1609
    %1611 = vst [vmem:[#allocation2 + $0xb8] sm:$0x1f] %v1610
    %1612 = vrot.lane.b32.xlu0 %v1256, 31
    %v1613 = vpop.permute.xlu0 %1612
    %1614 = vrot.lane.b32.xlu0 %v1260, 31
    %v1615 = vpop.permute.xlu0 %1614
    %1616 = vrot.lane.b32.xlu0 %v1264, 31
    %v1617 = vpop.permute.xlu0 %1616
    %1618 = vrot.lane.b32.xlu0 %v1268, 31
    %v1619 = vpop.permute.xlu0 %1618
    %1620 = vrot.lane.b32.xlu0 %v1257, 31
    %v1621 = vpop.permute.xlu0 %1620
    %1622 = vrot.lane.b32.xlu0 %v1261, 31
    %v1623 = vpop.permute.xlu0 %1622
    %1624 = vrot.lane.b32.xlu0 %v1265, 31
    %v1625 = vpop.permute.xlu0 %1624
    %1626 = vrot.lane.b32.xlu0 %v1269, 31
    %v1627 = vpop.permute.xlu0 %1626
    %1628 = vrot.lane.b32.xlu0 %v1258, 31
    %v1629 = vpop.permute.xlu0 %1628
    %1630 = vrot.lane.b32.xlu0 %v1262, 31
    %v1631 = vpop.permute.xlu0 %1630
    %1632 = vrot.lane.b32.xlu0 %v1266, 31
    %v1633 = vpop.permute.xlu0 %1632
    %1634 = vrot.lane.b32.xlu0 %v1270, 31
    %v1635 = vpop.permute.xlu0 %1634
    %1636 = vrot.lane.b32.xlu0 %v1259, 31
    %v1637 = vpop.permute.xlu0 %1636
    %1638 = vrot.lane.b32.xlu0 %v1263, 31
    %v1639 = vpop.permute.xlu0 %1638
    %1640 = vrot.lane.b32.xlu0 %v1267, 31
    %v1641 = vpop.permute.xlu0 %1640
    %1642 = vrot.lane.b32.xlu0 %v1271, 31
    %v1643 = vpop.permute.xlu0 %1642
    %vm1644 = vcmp.lt.s32.totalorder %v1305, 31
    %v1645 = vsel %vm1644, %v1629, %v1637
    %v1646 = vsel %vm1644, %v1631, %v1639
    %v1647 = vsel %vm1644, %v1633, %v1641
    %v1648 = vsel %vm1644, %v1635, %v1643
    %v1649 = vsel %vm1644, %v1621, %v1629
    %v1650 = vsel %vm1644, %v1623, %v1631
    %v1651 = vsel %vm1644, %v1625, %v1633
    %v1652 = vsel %vm1644, %v1627, %v1635
    %v1653 = vsel %vm1644, %v1613, %v1621
    %v1654 = vsel %vm1644, %v1615, %v1623
    %v1655 = vsel %vm1644, %v1617, %v1625
    %v1656 = vsel %vm1644, %v1619, %v1627
    %v1657 = vsel %vm1644, %v1637, %v1613
    %v1658 = vsel %vm1644, %v1639, %v1615
    %v1659 = vsel %vm1644, %v1641, %v1617
    %v1660 = vsel %vm1644, %v1643, %v1619
    %s1661 = scalar_lea.vmem %s6, 3
    %v1662 = vld [vmem:[%s1661] ss:$8 sm:$0xf]
    %v1664 = vlaneseq
    %v1665 = vshrl.u32 %v1664, 7
    %v1666 = vsub.s32 0, %v1665
    %v1667 = vrot.slane %v1662, %v1666
    %v1668 = vlaneseq
    %v1669 = vshrl.u32 %v1668, 7
    %v1670 = vsub.s32 1, %v1669
    %v1671 = vrot.slane %v1662, %v1670
    %v1672 = vlaneseq
    %v1673 = vshrl.u32 %v1672, 7
    %v1674 = vsub.s32 2, %v1673
    %v1675 = vrot.slane %v1662, %v1674
    %v1676 = vlaneseq
    %v1677 = vshrl.u32 %v1676, 7
    %v1678 = vsub.s32 3, %v1677
    %v1679 = vrot.slane %v1662, %v1678
    %v1684 = vmul.f32 %v1657, %v1667
    %v1685 = vmul.f32 %v1653, %v1671
    %v1686 = vmul.f32 %v1649, %v1675
    %v1687 = vmul.f32 %v1645, %v1679
    %v1688 = vmul.f32 %v1658, %v1667
    %v1689 = vmul.f32 %v1654, %v1671
    %v1690 = vmul.f32 %v1650, %v1675
    %v1691 = vmul.f32 %v1646, %v1679
    %v1692 = vmul.f32 %v1659, %v1667
    %v1693 = vmul.f32 %v1655, %v1671
    %v1694 = vmul.f32 %v1651, %v1675
    %v1695 = vmul.f32 %v1647, %v1679
    %v1696 = vmul.f32 %v1660, %v1667
    %v1697 = vmul.f32 %v1656, %v1671
    %v1698 = vmul.f32 %v1652, %v1675
    %v1699 = vmul.f32 %v1648, %v1679
    %v1700 = vpack.c.bf16 %v1688, %v1684
    %v1701 = vpack.c.bf16 %v1689, %v1685
    %v1702 = vpack.c.bf16 %v1690, %v1686
    %v1703 = vpack.c.bf16 %v1691, %v1687
    %v1704 = vpack.c.bf16 %v1696, %v1692
    %v1705 = vpack.c.bf16 %v1697, %v1693
    %v1706 = vpack.c.bf16 %v1698, %v1694
    %v1707 = vpack.c.bf16 %v1699, %v1695
    %1708 = vst [vmem:[#allocation2 + $0xc0] sm:$0xff] %v1700
    %1709 = vst [vmem:[#allocation2 + $0xc8] sm:$0xff] %v1701
    %1710 = vst [vmem:[#allocation2 + $0xd0] sm:$0xff] %v1702
    %1711 = vst [vmem:[#allocation2 + $0xd8] sm:$0xff] %v1703
    %v1712 = vld [vmem:[#allocation2 + $0xe0] sm:$0x1f]
    %v1713 = vsel %vm1375, %v1704, %v1712
    %1714 = vst [vmem:[#allocation2 + $0xe0] sm:$0x1f] %v1713
    %v1715 = vld [vmem:[#allocation2 + $0xe8] sm:$0x1f]
    %v1716 = vsel %vm1375, %v1705, %v1715
    %1717 = vst [vmem:[#allocation2 + $0xe8] sm:$0x1f] %v1716
    %v1718 = vld [vmem:[#allocation2 + $0xf0] sm:$0x1f]
    %v1719 = vsel %vm1375, %v1706, %v1718
    %1720 = vst [vmem:[#allocation2 + $0xf0] sm:$0x1f] %v1719
    %v1721 = vld [vmem:[#allocation2 + $0xf8] sm:$0x1f]
    %v1722 = vsel %vm1375, %v1707, %v1721
    %1723 = vst [vmem:[#allocation2 + $0xf8] sm:$0x1f] %v1722
    %1724 = vrot.lane.b32.xlu0 %v1256, 30
    %v1725 = vpop.permute.xlu0 %1724
    %1726 = vrot.lane.b32.xlu0 %v1260, 30
    %v1727 = vpop.permute.xlu0 %1726
    %1728 = vrot.lane.b32.xlu0 %v1264, 30
    %v1729 = vpop.permute.xlu0 %1728
    %1730 = vrot.lane.b32.xlu0 %v1268, 30
    %v1731 = vpop.permute.xlu0 %1730
    %1732 = vrot.lane.b32.xlu0 %v1257, 30
    %v1733 = vpop.permute.xlu0 %1732
    %1734 = vrot.lane.b32.xlu0 %v1261, 30
    %v1735 = vpop.permute.xlu0 %1734
    %1736 = vrot.lane.b32.xlu0 %v1265, 30
    %v1737 = vpop.permute.xlu0 %1736
    %1738 = vrot.lane.b32.xlu0 %v1269, 30
    %v1739 = vpop.permute.xlu0 %1738
    %1740 = vrot.lane.b32.xlu0 %v1258, 30
    %v1741 = vpop.permute.xlu0 %1740
    %1742 = vrot.lane.b32.xlu0 %v1262, 30
    %v1743 = vpop.permute.xlu0 %1742
    %1744 = vrot.lane.b32.xlu0 %v1266, 30
    %v1745 = vpop.permute.xlu0 %1744
    %1746 = vrot.lane.b32.xlu0 %v1270, 30
    %v1747 = vpop.permute.xlu0 %1746
    %1748 = vrot.lane.b32.xlu0 %v1259, 30
    %v1749 = vpop.permute.xlu0 %1748
    %1750 = vrot.lane.b32.xlu0 %v1263, 30
    %v1751 = vpop.permute.xlu0 %1750
    %1752 = vrot.lane.b32.xlu0 %v1267, 30
    %v1753 = vpop.permute.xlu0 %1752
    %1754 = vrot.lane.b32.xlu0 %v1271, 30
    %v1755 = vpop.permute.xlu0 %1754
    %vm1756 = vcmp.lt.s32.totalorder %v1305, 30
    %v1757 = vsel %vm1756, %v1741, %v1749
    %v1758 = vsel %vm1756, %v1743, %v1751
    %v1759 = vsel %vm1756, %v1745, %v1753
    %v1760 = vsel %vm1756, %v1747, %v1755
    %v1761 = vsel %vm1756, %v1733, %v1741
    %v1762 = vsel %vm1756, %v1735, %v1743
    %v1763 = vsel %vm1756, %v1737, %v1745
    %v1764 = vsel %vm1756, %v1739, %v1747
    %v1765 = vsel %vm1756, %v1725, %v1733
    %v1766 = vsel %vm1756, %v1727, %v1735
    %v1767 = vsel %vm1756, %v1729, %v1737
    %v1768 = vsel %vm1756, %v1731, %v1739
    %v1769 = vsel %vm1756, %v1749, %v1725
    %v1770 = vsel %vm1756, %v1751, %v1727
    %v1771 = vsel %vm1756, %v1753, %v1729
    %v1772 = vsel %vm1756, %v1755, %v1731
    %s1773 = scalar_lea.vmem %s6, 4
    %v1774 = vld [vmem:[%s1773] ss:$8 sm:$0xf]
    %v1776 = vlaneseq
    %v1777 = vshrl.u32 %v1776, 7
    %v1778 = vsub.s32 0, %v1777
    %v1779 = vrot.slane %v1774, %v1778
    %v1780 = vlaneseq
    %v1781 = vshrl.u32 %v1780, 7
    %v1782 = vsub.s32 1, %v1781
    %v1783 = vrot.slane %v1774, %v1782
    %v1784 = vlaneseq
    %v1785 = vshrl.u32 %v1784, 7
    %v1786 = vsub.s32 2, %v1785
    %v1787 = vrot.slane %v1774, %v1786
    %v1788 = vlaneseq
    %v1789 = vshrl.u32 %v1788, 7
    %v1790 = vsub.s32 3, %v1789
    %v1791 = vrot.slane %v1774, %v1790
    %v1796 = vmul.f32 %v1769, %v1779
    %v1797 = vmul.f32 %v1765, %v1783
    %v1798 = vmul.f32 %v1761, %v1787
    %v1799 = vmul.f32 %v1757, %v1791
    %v1800 = vmul.f32 %v1770, %v1779
    %v1801 = vmul.f32 %v1766, %v1783
    %v1802 = vmul.f32 %v1762, %v1787
    %v1803 = vmul.f32 %v1758, %v1791
    %v1804 = vmul.f32 %v1771, %v1779
    %v1805 = vmul.f32 %v1767, %v1783
    %v1806 = vmul.f32 %v1763, %v1787
    %v1807 = vmul.f32 %v1759, %v1791
    %v1808 = vmul.f32 %v1772, %v1779
    %v1809 = vmul.f32 %v1768, %v1783
    %v1810 = vmul.f32 %v1764, %v1787
    %v1811 = vmul.f32 %v1760, %v1791
    %v1812 = vpack.c.bf16 %v1800, %v1796
    %v1813 = vpack.c.bf16 %v1801, %v1797
    %v1814 = vpack.c.bf16 %v1802, %v1798
    %v1815 = vpack.c.bf16 %v1803, %v1799
    %v1816 = vpack.c.bf16 %v1808, %v1804
    %v1817 = vpack.c.bf16 %v1809, %v1805
    %v1818 = vpack.c.bf16 %v1810, %v1806
    %v1819 = vpack.c.bf16 %v1811, %v1807
    %1820 = vst [vmem:[#allocation2 + $0x100] sm:$0xff] %v1812
    %1821 = vst [vmem:[#allocation2 + $0x108] sm:$0xff] %v1813
    %1822 = vst [vmem:[#allocation2 + $0x110] sm:$0xff] %v1814
    %1823 = vst [vmem:[#allocation2 + $0x118] sm:$0xff] %v1815
    %v1824 = vld [vmem:[#allocation2 + $0x120] sm:$0x1f]
    %v1825 = vsel %vm1375, %v1816, %v1824
    %1826 = vst [vmem:[#allocation2 + $0x120] sm:$0x1f] %v1825
    %v1827 = vld [vmem:[#allocation2 + $0x128] sm:$0x1f]
    %v1828 = vsel %vm1375, %v1817, %v1827
    %1829 = vst [vmem:[#allocation2 + $0x128] sm:$0x1f] %v1828
    %v1830 = vld [vmem:[#allocation2 + $0x130] sm:$0x1f]
    %v1831 = vsel %vm1375, %v1818, %v1830
    %1832 = vst [vmem:[#allocation2 + $0x130] sm:$0x1f] %v1831
    %v1833 = vld [vmem:[#allocation2 + $0x138] sm:$0x1f]
    %v1834 = vsel %vm1375, %v1819, %v1833
    %1835 = vst [vmem:[#allocation2 + $0x138] sm:$0x1f] %v1834
    %1836 = vrot.lane.b32.xlu0 %v1256, 18
    %v1837 = vpop.permute.xlu0 %1836
    %1838 = vrot.lane.b32.xlu0 %v1260, 18
    %v1839 = vpop.permute.xlu0 %1838
    %1840 = vrot.lane.b32.xlu0 %v1264, 18
    %v1841 = vpop.permute.xlu0 %1840
    %1842 = vrot.lane.b32.xlu0 %v1268, 18
    %v1843 = vpop.permute.xlu0 %1842
    %1844 = vrot.lane.b32.xlu0 %v1257, 18
    %v1845 = vpop.permute.xlu0 %1844
    %1846 = vrot.lane.b32.xlu0 %v1261, 18
    %v1847 = vpop.permute.xlu0 %1846
    %1848 = vrot.lane.b32.xlu0 %v1265, 18
    %v1849 = vpop.permute.xlu0 %1848
    %1850 = vrot.lane.b32.xlu0 %v1269, 18
    %v1851 = vpop.permute.xlu0 %1850
    %1852 = vrot.lane.b32.xlu0 %v1258, 18
    %v1853 = vpop.permute.xlu0 %1852
    %1854 = vrot.lane.b32.xlu0 %v1262, 18
    %v1855 = vpop.permute.xlu0 %1854
    %1856 = vrot.lane.b32.xlu0 %v1266, 18
    %v1857 = vpop.permute.xlu0 %1856
    %1858 = vrot.lane.b32.xlu0 %v1270, 18
    %v1859 = vpop.permute.xlu0 %1858
    %1860 = vrot.lane.b32.xlu0 %v1259, 18
    %v1861 = vpop.permute.xlu0 %1860
    %1862 = vrot.lane.b32.xlu0 %v1263, 18
    %v1863 = vpop.permute.xlu0 %1862
    %1864 = vrot.lane.b32.xlu0 %v1267, 18
    %v1865 = vpop.permute.xlu0 %1864
    %1866 = vrot.lane.b32.xlu0 %v1271, 18
    %v1867 = vpop.permute.xlu0 %1866
    %vm1868 = vcmp.lt.s32.totalorder %v1305, 18
    %v1869 = vsel %vm1868, %v1853, %v1861
    %v1870 = vsel %vm1868, %v1855, %v1863
    %v1871 = vsel %vm1868, %v1857, %v1865
    %v1872 = vsel %vm1868, %v1859, %v1867
    %v1873 = vsel %vm1868, %v1845, %v1853
    %v1874 = vsel %vm1868, %v1847, %v1855
    %v1875 = vsel %vm1868, %v1849, %v1857
    %v1876 = vsel %vm1868, %v1851, %v1859
    %v1877 = vsel %vm1868, %v1837, %v1845
    %v1878 = vsel %vm1868, %v1839, %v1847
    %v1879 = vsel %vm1868, %v1841, %v1849
    %v1880 = vsel %vm1868, %v1843, %v1851
    %v1881 = vsel %vm1868, %v1861, %v1837
    %v1882 = vsel %vm1868, %v1863, %v1839
    %v1883 = vsel %vm1868, %v1865, %v1841
    %v1884 = vsel %vm1868, %v1867, %v1843
    %s1885 = scalar_lea.vmem %s6, 5
    %v1886 = vld [vmem:[%s1885] ss:$8 sm:$0xf]
    %v1888 = vlaneseq
    %v1889 = vshrl.u32 %v1888, 7
    %v1890 = vsub.s32 0, %v1889
    %v1891 = vrot.slane %v1886, %v1890
    %v1892 = vlaneseq
    %v1893 = vshrl.u32 %v1892, 7
    %v1894 = vsub.s32 1, %v1893
    %v1895 = vrot.slane %v1886, %v1894
    %v1896 = vlaneseq
    %v1897 = vshrl.u32 %v1896, 7
    %v1898 = vsub.s32 2, %v1897
    %v1899 = vrot.slane %v1886, %v1898
    %v1900 = vlaneseq
    %v1901 = vshrl.u32 %v1900, 7
    %v1902 = vsub.s32 3, %v1901
    %v1903 = vrot.slane %v1886, %v1902
    %v1908 = vmul.f32 %v1881, %v1891
    %v1909 = vmul.f32 %v1877, %v1895
    %v1910 = vmul.f32 %v1873, %v1899
    %v1911 = vmul.f32 %v1869, %v1903
    %v1912 = vmul.f32 %v1882, %v1891
    %v1913 = vmul.f32 %v1878, %v1895
    %v1914 = vmul.f32 %v1874, %v1899
    %v1915 = vmul.f32 %v1870, %v1903
    %v1916 = vmul.f32 %v1883, %v1891
    %v1917 = vmul.f32 %v1879, %v1895
    %v1918 = vmul.f32 %v1875, %v1899
    %v1919 = vmul.f32 %v1871, %v1903
    %v1920 = vmul.f32 %v1884, %v1891
    %v1921 = vmul.f32 %v1880, %v1895
    %v1922 = vmul.f32 %v1876, %v1899
    %v1923 = vmul.f32 %v1872, %v1903
    %v1924 = vpack.c.bf16 %v1912, %v1908
    %v1925 = vpack.c.bf16 %v1913, %v1909
    %v1926 = vpack.c.bf16 %v1914, %v1910
    %v1927 = vpack.c.bf16 %v1915, %v1911
    %v1928 = vpack.c.bf16 %v1920, %v1916
    %v1929 = vpack.c.bf16 %v1921, %v1917
    %v1930 = vpack.c.bf16 %v1922, %v1918
    %v1931 = vpack.c.bf16 %v1923, %v1919
    %1932 = vst [vmem:[#allocation2 + $0x140] sm:$0xff] %v1924
    %1933 = vst [vmem:[#allocation2 + $0x148] sm:$0xff] %v1925
    %1934 = vst [vmem:[#allocation2 + $0x150] sm:$0xff] %v1926
    %1935 = vst [vmem:[#allocation2 + $0x158] sm:$0xff] %v1927
    %v1936 = vld [vmem:[#allocation2 + $0x160] sm:$0x1f]
    %v1937 = vsel %vm1375, %v1928, %v1936
    %1938 = vst [vmem:[#allocation2 + $0x160] sm:$0x1f] %v1937
    %v1939 = vld [vmem:[#allocation2 + $0x168] sm:$0x1f]
    %v1940 = vsel %vm1375, %v1929, %v1939
    %1941 = vst [vmem:[#allocation2 + $0x168] sm:$0x1f] %v1940
    %v1942 = vld [vmem:[#allocation2 + $0x170] sm:$0x1f]
    %v1943 = vsel %vm1375, %v1930, %v1942
    %1944 = vst [vmem:[#allocation2 + $0x170] sm:$0x1f] %v1943
    %v1945 = vld [vmem:[#allocation2 + $0x178] sm:$0x1f]
    %v1946 = vsel %vm1375, %v1931, %v1945
    %1947 = vst [vmem:[#allocation2 + $0x178] sm:$0x1f] %v1946
    %1948 = vrot.lane.b32.xlu0 %v1256, 17
    %v1949 = vpop.permute.xlu0 %1948
    %1950 = vrot.lane.b32.xlu0 %v1260, 17
    %v1951 = vpop.permute.xlu0 %1950
    %1952 = vrot.lane.b32.xlu0 %v1264, 17
    %v1953 = vpop.permute.xlu0 %1952
    %1954 = vrot.lane.b32.xlu0 %v1268, 17
    %v1955 = vpop.permute.xlu0 %1954
    %1956 = vrot.lane.b32.xlu0 %v1257, 17
    %v1957 = vpop.permute.xlu0 %1956
    %1958 = vrot.lane.b32.xlu0 %v1261, 17
    %v1959 = vpop.permute.xlu0 %1958
    %1960 = vrot.lane.b32.xlu0 %v1265, 17
    %v1961 = vpop.permute.xlu0 %1960
    %1962 = vrot.lane.b32.xlu0 %v1269, 17
    %v1963 = vpop.permute.xlu0 %1962
    %1964 = vrot.lane.b32.xlu0 %v1258, 17
    %v1965 = vpop.permute.xlu0 %1964
    %1966 = vrot.lane.b32.xlu0 %v1262, 17
    %v1967 = vpop.permute.xlu0 %1966
    %1968 = vrot.lane.b32.xlu0 %v1266, 17
    %v1969 = vpop.permute.xlu0 %1968
    %1970 = vrot.lane.b32.xlu0 %v1270, 17
    %v1971 = vpop.permute.xlu0 %1970
    %1972 = vrot.lane.b32.xlu0 %v1259, 17
    %v1973 = vpop.permute.xlu0 %1972
    %1974 = vrot.lane.b32.xlu0 %v1263, 17
    %v1975 = vpop.permute.xlu0 %1974
    %1976 = vrot.lane.b32.xlu0 %v1267, 17
    %v1977 = vpop.permute.xlu0 %1976
    %1978 = vrot.lane.b32.xlu0 %v1271, 17
    %v1979 = vpop.permute.xlu0 %1978
    %vm1980 = vcmp.lt.s32.totalorder %v1305, 17
    %v1981 = vsel %vm1980, %v1965, %v1973
    %v1982 = vsel %vm1980, %v1967, %v1975
    %v1983 = vsel %vm1980, %v1969, %v1977
    %v1984 = vsel %vm1980, %v1971, %v1979
    %v1985 = vsel %vm1980, %v1957, %v1965
    %v1986 = vsel %vm1980, %v1959, %v1967
    %v1987 = vsel %vm1980, %v1961, %v1969
    %v1988 = vsel %vm1980, %v1963, %v1971
    %v1989 = vsel %vm1980, %v1949, %v1957
    %v1990 = vsel %vm1980, %v1951, %v1959
    %v1991 = vsel %vm1980, %v1953, %v1961
    %v1992 = vsel %vm1980, %v1955, %v1963
    %v1993 = vsel %vm1980, %v1973, %v1949
    %v1994 = vsel %vm1980, %v1975, %v1951
    %v1995 = vsel %vm1980, %v1977, %v1953
    %v1996 = vsel %vm1980, %v1979, %v1955
    %s1997 = scalar_lea.vmem %s6, 6
    %v1998 = vld [vmem:[%s1997] ss:$8 sm:$0xf]
    %v2000 = vlaneseq
    %v2001 = vshrl.u32 %v2000, 7
    %v2002 = vsub.s32 0, %v2001
    %v2003 = vrot.slane %v1998, %v2002
    %v2004 = vlaneseq
    %v2005 = vshrl.u32 %v2004, 7
    %v2006 = vsub.s32 1, %v2005
    %v2007 = vrot.slane %v1998, %v2006
    %v2008 = vlaneseq
    %v2009 = vshrl.u32 %v2008, 7
    %v2010 = vsub.s32 2, %v2009
    %v2011 = vrot.slane %v1998, %v2010
    %v2012 = vlaneseq
    %v2013 = vshrl.u32 %v2012, 7
    %v2014 = vsub.s32 3, %v2013
    %v2015 = vrot.slane %v1998, %v2014
    %v2020 = vmul.f32 %v1993, %v2003
    %v2021 = vmul.f32 %v1989, %v2007
    %v2022 = vmul.f32 %v1985, %v2011
    %v2023 = vmul.f32 %v1981, %v2015
    %v2024 = vmul.f32 %v1994, %v2003
    %v2025 = vmul.f32 %v1990, %v2007
    %v2026 = vmul.f32 %v1986, %v2011
    %v2027 = vmul.f32 %v1982, %v2015
    %v2028 = vmul.f32 %v1995, %v2003
    %v2029 = vmul.f32 %v1991, %v2007
    %v2030 = vmul.f32 %v1987, %v2011
    %v2031 = vmul.f32 %v1983, %v2015
    %v2032 = vmul.f32 %v1996, %v2003
    %v2033 = vmul.f32 %v1992, %v2007
    %v2034 = vmul.f32 %v1988, %v2011
    %v2035 = vmul.f32 %v1984, %v2015
    %v2036 = vpack.c.bf16 %v2024, %v2020
    %v2037 = vpack.c.bf16 %v2025, %v2021
    %v2038 = vpack.c.bf16 %v2026, %v2022
    %v2039 = vpack.c.bf16 %v2027, %v2023
    %v2040 = vpack.c.bf16 %v2032, %v2028
    %v2041 = vpack.c.bf16 %v2033, %v2029
    %v2042 = vpack.c.bf16 %v2034, %v2030
    %v2043 = vpack.c.bf16 %v2035, %v2031
    %2044 = vst [vmem:[#allocation2 + $0x180] sm:$0xff] %v2036
    %2045 = vst [vmem:[#allocation2 + $0x188] sm:$0xff] %v2037
    %2046 = vst [vmem:[#allocation2 + $0x190] sm:$0xff] %v2038
    %2047 = vst [vmem:[#allocation2 + $0x198] sm:$0xff] %v2039
    %v2048 = vld [vmem:[#allocation2 + $0x1a0] sm:$0x1f]
    %v2049 = vsel %vm1375, %v2040, %v2048
    %2050 = vst [vmem:[#allocation2 + $0x1a0] sm:$0x1f] %v2049
    %v2051 = vld [vmem:[#allocation2 + $0x1a8] sm:$0x1f]
    %v2052 = vsel %vm1375, %v2041, %v2051
    %2053 = vst [vmem:[#allocation2 + $0x1a8] sm:$0x1f] %v2052
    %v2054 = vld [vmem:[#allocation2 + $0x1b0] sm:$0x1f]
    %v2055 = vsel %vm1375, %v2042, %v2054
    %2056 = vst [vmem:[#allocation2 + $0x1b0] sm:$0x1f] %v2055
    %v2057 = vld [vmem:[#allocation2 + $0x1b8] sm:$0x1f]
    %v2058 = vsel %vm1375, %v2043, %v2057
    %2059 = vst [vmem:[#allocation2 + $0x1b8] sm:$0x1f] %v2058
    %2060 = vrot.lane.b32.xlu0 %v1256, 16
    %v2061 = vpop.permute.xlu0 %2060
    %2062 = vrot.lane.b32.xlu0 %v1260, 16
    %v2063 = vpop.permute.xlu0 %2062
    %2064 = vrot.lane.b32.xlu0 %v1264, 16
    %v2065 = vpop.permute.xlu0 %2064
    %2066 = vrot.lane.b32.xlu0 %v1268, 16
    %v2067 = vpop.permute.xlu0 %2066
    %2068 = vrot.lane.b32.xlu0 %v1257, 16
    %v2069 = vpop.permute.xlu0 %2068
    %2070 = vrot.lane.b32.xlu0 %v1261, 16
    %v2071 = vpop.permute.xlu0 %2070
    %2072 = vrot.lane.b32.xlu0 %v1265, 16
    %v2073 = vpop.permute.xlu0 %2072
    %2074 = vrot.lane.b32.xlu0 %v1269, 16
    %v2075 = vpop.permute.xlu0 %2074
    %2076 = vrot.lane.b32.xlu0 %v1258, 16
    %v2077 = vpop.permute.xlu0 %2076
    %2078 = vrot.lane.b32.xlu0 %v1262, 16
    %v2079 = vpop.permute.xlu0 %2078
    %2080 = vrot.lane.b32.xlu0 %v1266, 16
    %v2081 = vpop.permute.xlu0 %2080
    %2082 = vrot.lane.b32.xlu0 %v1270, 16
    %v2083 = vpop.permute.xlu0 %2082
    %2084 = vrot.lane.b32.xlu0 %v1259, 16
    %v2085 = vpop.permute.xlu0 %2084
    %2086 = vrot.lane.b32.xlu0 %v1263, 16
    %v2087 = vpop.permute.xlu0 %2086
    %2088 = vrot.lane.b32.xlu0 %v1267, 16
    %v2089 = vpop.permute.xlu0 %2088
    %2090 = vrot.lane.b32.xlu0 %v1271, 16
    %v2091 = vpop.permute.xlu0 %2090
    %vm2092 = vcmp.lt.s32.totalorder %v1305, 16
    %v2093 = vsel %vm2092, %v2077, %v2085
    %v2094 = vsel %vm2092, %v2079, %v2087
    %v2095 = vsel %vm2092, %v2081, %v2089
    %v2096 = vsel %vm2092, %v2083, %v2091
    %v2097 = vsel %vm2092, %v2069, %v2077
    %v2098 = vsel %vm2092, %v2071, %v2079
    %v2099 = vsel %vm2092, %v2073, %v2081
    %v2100 = vsel %vm2092, %v2075, %v2083
    %v2101 = vsel %vm2092, %v2061, %v2069
    %v2102 = vsel %vm2092, %v2063, %v2071
    %v2103 = vsel %vm2092, %v2065, %v2073
    %v2104 = vsel %vm2092, %v2067, %v2075
    %v2105 = vsel %vm2092, %v2085, %v2061
    %v2106 = vsel %vm2092, %v2087, %v2063
    %v2107 = vsel %vm2092, %v2089, %v2065
    %v2108 = vsel %vm2092, %v2091, %v2067
    %s2109 = scalar_lea.vmem %s6, 7
    %v2110 = vld [vmem:[%s2109] ss:$8 sm:$0xf]
    %v2112 = vlaneseq
    %v2113 = vshrl.u32 %v2112, 7
    %v2114 = vsub.s32 0, %v2113
    %v2115 = vrot.slane %v2110, %v2114
    %v2116 = vlaneseq
    %v2117 = vshrl.u32 %v2116, 7
    %v2118 = vsub.s32 1, %v2117
    %v2119 = vrot.slane %v2110, %v2118
    %v2120 = vlaneseq
    %v2121 = vshrl.u32 %v2120, 7
    %v2122 = vsub.s32 2, %v2121
    %v2123 = vrot.slane %v2110, %v2122
    %v2124 = vlaneseq
    %v2125 = vshrl.u32 %v2124, 7
    %v2126 = vsub.s32 3, %v2125
    %v2127 = vrot.slane %v2110, %v2126
    %v2132 = vmul.f32 %v2105, %v2115
    %v2133 = vmul.f32 %v2101, %v2119
    %v2134 = vmul.f32 %v2097, %v2123
    %v2135 = vmul.f32 %v2093, %v2127
    %v2136 = vmul.f32 %v2106, %v2115
    %v2137 = vmul.f32 %v2102, %v2119
    %v2138 = vmul.f32 %v2098, %v2123
    %v2139 = vmul.f32 %v2094, %v2127
    %v2140 = vmul.f32 %v2107, %v2115
    %v2141 = vmul.f32 %v2103, %v2119
    %v2142 = vmul.f32 %v2099, %v2123
    %v2143 = vmul.f32 %v2095, %v2127
    %v2144 = vmul.f32 %v2108, %v2115
    %v2145 = vmul.f32 %v2104, %v2119
    %v2146 = vmul.f32 %v2100, %v2123
    %v2147 = vmul.f32 %v2096, %v2127
    %v2148 = vpack.c.bf16 %v2136, %v2132
    %v2149 = vpack.c.bf16 %v2137, %v2133
    %v2150 = vpack.c.bf16 %v2138, %v2134
    %v2151 = vpack.c.bf16 %v2139, %v2135
    %v2152 = vpack.c.bf16 %v2144, %v2140
    %v2153 = vpack.c.bf16 %v2145, %v2141
    %v2154 = vpack.c.bf16 %v2146, %v2142
    %v2155 = vpack.c.bf16 %v2147, %v2143
    %2156 = vst [vmem:[#allocation2 + $0x1c0] sm:$0xff] %v2148
    %2157 = vst [vmem:[#allocation2 + $0x1c8] sm:$0xff] %v2149
    %2158 = vst [vmem:[#allocation2 + $0x1d0] sm:$0xff] %v2150
    %2159 = vst [vmem:[#allocation2 + $0x1d8] sm:$0xff] %v2151
    %v2160 = vld [vmem:[#allocation2 + $0x1e0] sm:$0x1f]
    %v2161 = vsel %vm1375, %v2152, %v2160
    %2162 = vst [vmem:[#allocation2 + $0x1e0] sm:$0x1f] %v2161
    %v2163 = vld [vmem:[#allocation2 + $0x1e8] sm:$0x1f]
    %v2164 = vsel %vm1375, %v2153, %v2163
    %2165 = vst [vmem:[#allocation2 + $0x1e8] sm:$0x1f] %v2164
    %v2166 = vld [vmem:[#allocation2 + $0x1f0] sm:$0x1f]
    %v2167 = vsel %vm1375, %v2154, %v2166
    %2168 = vst [vmem:[#allocation2 + $0x1f0] sm:$0x1f] %v2167
    %v2169 = vld [vmem:[#allocation2 + $0x1f8] sm:$0x1f]
    %v2170 = vsel %vm1375, %v2155, %v2169
    %2171 = vst [vmem:[#allocation2 + $0x1f8] sm:$0x1f] %v2170
    %2172 = vrot.lane.b32.xlu0 %v1256, 15
    %v2173 = vpop.permute.xlu0 %2172
    %2174 = vrot.lane.b32.xlu0 %v1260, 15
    %v2175 = vpop.permute.xlu0 %2174
    %2176 = vrot.lane.b32.xlu0 %v1264, 15
    %v2177 = vpop.permute.xlu0 %2176
    %2178 = vrot.lane.b32.xlu0 %v1268, 15
    %v2179 = vpop.permute.xlu0 %2178
    %2180 = vrot.lane.b32.xlu0 %v1257, 15
    %v2181 = vpop.permute.xlu0 %2180
    %2182 = vrot.lane.b32.xlu0 %v1261, 15
    %v2183 = vpop.permute.xlu0 %2182
    %2184 = vrot.lane.b32.xlu0 %v1265, 15
    %v2185 = vpop.permute.xlu0 %2184
    %2186 = vrot.lane.b32.xlu0 %v1269, 15
    %v2187 = vpop.permute.xlu0 %2186
    %2188 = vrot.lane.b32.xlu0 %v1258, 15
    %v2189 = vpop.permute.xlu0 %2188
    %2190 = vrot.lane.b32.xlu0 %v1262, 15
    %v2191 = vpop.permute.xlu0 %2190
    %2192 = vrot.lane.b32.xlu0 %v1266, 15
    %v2193 = vpop.permute.xlu0 %2192
    %2194 = vrot.lane.b32.xlu0 %v1270, 15
    %v2195 = vpop.permute.xlu0 %2194
    %2196 = vrot.lane.b32.xlu0 %v1259, 15
    %v2197 = vpop.permute.xlu0 %2196
    %2198 = vrot.lane.b32.xlu0 %v1263, 15
    %v2199 = vpop.permute.xlu0 %2198
    %2200 = vrot.lane.b32.xlu0 %v1267, 15
    %v2201 = vpop.permute.xlu0 %2200
    %2202 = vrot.lane.b32.xlu0 %v1271, 15
    %v2203 = vpop.permute.xlu0 %2202
    %vm2204 = vcmp.lt.s32.totalorder %v1305, 15
    %v2205 = vsel %vm2204, %v2189, %v2197
    %v2206 = vsel %vm2204, %v2191, %v2199
    %v2207 = vsel %vm2204, %v2193, %v2201
    %v2208 = vsel %vm2204, %v2195, %v2203
    %v2209 = vsel %vm2204, %v2181, %v2189
    %v2210 = vsel %vm2204, %v2183, %v2191
    %v2211 = vsel %vm2204, %v2185, %v2193
    %v2212 = vsel %vm2204, %v2187, %v2195
    %v2213 = vsel %vm2204, %v2173, %v2181
    %v2214 = vsel %vm2204, %v2175, %v2183
    %v2215 = vsel %vm2204, %v2177, %v2185
    %v2216 = vsel %vm2204, %v2179, %v2187
    %v2217 = vsel %vm2204, %v2197, %v2173
    %v2218 = vsel %vm2204, %v2199, %v2175
    %v2219 = vsel %vm2204, %v2201, %v2177
    %v2220 = vsel %vm2204, %v2203, %v2179
    %s2221 = scalar_lea.vmem %s6, 32
    %v2222 = vld [vmem:[%s2221] ss:$8 sm:$0xf]
    %v2224 = vlaneseq
    %v2225 = vshrl.u32 %v2224, 7
    %v2226 = vsub.s32 0, %v2225
    %v2227 = vrot.slane %v2222, %v2226
    %v2228 = vlaneseq
    %v2229 = vshrl.u32 %v2228, 7
    %v2230 = vsub.s32 1, %v2229
    %v2231 = vrot.slane %v2222, %v2230
    %v2232 = vlaneseq
    %v2233 = vshrl.u32 %v2232, 7
    %v2234 = vsub.s32 2, %v2233
    %v2235 = vrot.slane %v2222, %v2234
    %v2236 = vlaneseq
    %v2237 = vshrl.u32 %v2236, 7
    %v2238 = vsub.s32 3, %v2237
    %v2239 = vrot.slane %v2222, %v2238
    %v2244 = vmul.f32 %v2217, %v2227
    %v2245 = vmul.f32 %v2213, %v2231
    %v2246 = vmul.f32 %v2209, %v2235
    %v2247 = vmul.f32 %v2205, %v2239
    %v2248 = vmul.f32 %v2218, %v2227
    %v2249 = vmul.f32 %v2214, %v2231
    %v2250 = vmul.f32 %v2210, %v2235
    %v2251 = vmul.f32 %v2206, %v2239
    %v2252 = vmul.f32 %v2219, %v2227
    %v2253 = vmul.f32 %v2215, %v2231
    %v2254 = vmul.f32 %v2211, %v2235
    %v2255 = vmul.f32 %v2207, %v2239
    %v2256 = vmul.f32 %v2220, %v2227
    %v2257 = vmul.f32 %v2216, %v2231
    %v2258 = vmul.f32 %v2212, %v2235
    %v2259 = vmul.f32 %v2208, %v2239
    %v2260 = vpack.c.bf16 %v2248, %v2244
    %v2261 = vpack.c.bf16 %v2249, %v2245
    %v2262 = vpack.c.bf16 %v2250, %v2246
    %v2263 = vpack.c.bf16 %v2251, %v2247
    %v2264 = vpack.c.bf16 %v2256, %v2252
    %v2265 = vpack.c.bf16 %v2257, %v2253
    %v2266 = vpack.c.bf16 %v2258, %v2254
    %v2267 = vpack.c.bf16 %v2259, %v2255
    %2268 = vst [vmem:[#allocation2 + $0x200] sm:$0xff] %v2260
    %2269 = vst [vmem:[#allocation2 + $0x208] sm:$0xff] %v2261
    %2270 = vst [vmem:[#allocation2 + $0x210] sm:$0xff] %v2262
    %2271 = vst [vmem:[#allocation2 + $0x218] sm:$0xff] %v2263
    %v2272 = vld [vmem:[#allocation2 + $0x220] sm:$0x1f]
    %v2273 = vsel %vm1375, %v2264, %v2272
    %2274 = vst [vmem:[#allocation2 + $0x220] sm:$0x1f] %v2273
    %v2275 = vld [vmem:[#allocation2 + $0x228] sm:$0x1f]
    %v2276 = vsel %vm1375, %v2265, %v2275
    %2277 = vst [vmem:[#allocation2 + $0x228] sm:$0x1f] %v2276
    %v2278 = vld [vmem:[#allocation2 + $0x230] sm:$0x1f]
    %v2279 = vsel %vm1375, %v2266, %v2278
    %2280 = vst [vmem:[#allocation2 + $0x230] sm:$0x1f] %v2279
    %v2281 = vld [vmem:[#allocation2 + $0x238] sm:$0x1f]
    %v2282 = vsel %vm1375, %v2267, %v2281
    %2283 = vst [vmem:[#allocation2 + $0x238] sm:$0x1f] %v2282
    %2284 = vrot.lane.b32.xlu0 %v1256, 14
    %v2285 = vpop.permute.xlu0 %2284
    %2286 = vrot.lane.b32.xlu0 %v1260, 14
    %v2287 = vpop.permute.xlu0 %2286
    %2288 = vrot.lane.b32.xlu0 %v1264, 14
    %v2289 = vpop.permute.xlu0 %2288
    %2290 = vrot.lane.b32.xlu0 %v1268, 14
    %v2291 = vpop.permute.xlu0 %2290
    %2292 = vrot.lane.b32.xlu0 %v1257, 14
    %v2293 = vpop.permute.xlu0 %2292
    %2294 = vrot.lane.b32.xlu0 %v1261, 14
    %v2295 = vpop.permute.xlu0 %2294
    %2296 = vrot.lane.b32.xlu0 %v1265, 14
    %v2297 = vpop.permute.xlu0 %2296
    %2298 = vrot.lane.b32.xlu0 %v1269, 14
    %v2299 = vpop.permute.xlu0 %2298
    %2300 = vrot.lane.b32.xlu0 %v1258, 14
    %v2301 = vpop.permute.xlu0 %2300
    %2302 = vrot.lane.b32.xlu0 %v1262, 14
    %v2303 = vpop.permute.xlu0 %2302
    %2304 = vrot.lane.b32.xlu0 %v1266, 14
    %v2305 = vpop.permute.xlu0 %2304
    %2306 = vrot.lane.b32.xlu0 %v1270, 14
    %v2307 = vpop.permute.xlu0 %2306
    %2308 = vrot.lane.b32.xlu0 %v1259, 14
    %v2309 = vpop.permute.xlu0 %2308
    %2310 = vrot.lane.b32.xlu0 %v1263, 14
    %v2311 = vpop.permute.xlu0 %2310
    %2312 = vrot.lane.b32.xlu0 %v1267, 14
    %v2313 = vpop.permute.xlu0 %2312
    %2314 = vrot.lane.b32.xlu0 %v1271, 14
    %v2315 = vpop.permute.xlu0 %2314
    %vm2316 = vcmp.lt.s32.totalorder %v1305, 14
    %v2317 = vsel %vm2316, %v2301, %v2309
    %v2318 = vsel %vm2316, %v2303, %v2311
    %v2319 = vsel %vm2316, %v2305, %v2313
    %v2320 = vsel %vm2316, %v2307, %v2315
    %v2321 = vsel %vm2316, %v2293, %v2301
    %v2322 = vsel %vm2316, %v2295, %v2303
    %v2323 = vsel %vm2316, %v2297, %v2305
    %v2324 = vsel %vm2316, %v2299, %v2307
    %v2325 = vsel %vm2316, %v2285, %v2293
    %v2326 = vsel %vm2316, %v2287, %v2295
    %v2327 = vsel %vm2316, %v2289, %v2297
    %v2328 = vsel %vm2316, %v2291, %v2299
    %v2329 = vsel %vm2316, %v2309, %v2285
    %v2330 = vsel %vm2316, %v2311, %v2287
    %v2331 = vsel %vm2316, %v2313, %v2289
    %v2332 = vsel %vm2316, %v2315, %v2291
    %s2333 = scalar_lea.vmem %s6, 33
    %v2334 = vld [vmem:[%s2333] ss:$8 sm:$0xf]
    %v2336 = vlaneseq
    %v2337 = vshrl.u32 %v2336, 7
    %v2338 = vsub.s32 0, %v2337
    %v2339 = vrot.slane %v2334, %v2338
    %v2340 = vlaneseq
    %v2341 = vshrl.u32 %v2340, 7
    %v2342 = vsub.s32 1, %v2341
    %v2343 = vrot.slane %v2334, %v2342
    %v2344 = vlaneseq
    %v2345 = vshrl.u32 %v2344, 7
    %v2346 = vsub.s32 2, %v2345
    %v2347 = vrot.slane %v2334, %v2346
    %v2348 = vlaneseq
    %v2349 = vshrl.u32 %v2348, 7
    %v2350 = vsub.s32 3, %v2349
    %v2351 = vrot.slane %v2334, %v2350
    %v2356 = vmul.f32 %v2329, %v2339
    %v2357 = vmul.f32 %v2325, %v2343
    %v2358 = vmul.f32 %v2321, %v2347
    %v2359 = vmul.f32 %v2317, %v2351
    %v2360 = vmul.f32 %v2330, %v2339
    %v2361 = vmul.f32 %v2326, %v2343
    %v2362 = vmul.f32 %v2322, %v2347
    %v2363 = vmul.f32 %v2318, %v2351
    %v2364 = vmul.f32 %v2331, %v2339
    %v2365 = vmul.f32 %v2327, %v2343
    %v2366 = vmul.f32 %v2323, %v2347
    %v2367 = vmul.f32 %v2319, %v2351
    %v2368 = vmul.f32 %v2332, %v2339
    %v2369 = vmul.f32 %v2328, %v2343
    %v2370 = vmul.f32 %v2324, %v2347
    %v2371 = vmul.f32 %v2320, %v2351
    %v2372 = vpack.c.bf16 %v2360, %v2356
    %v2373 = vpack.c.bf16 %v2361, %v2357
    %v2374 = vpack.c.bf16 %v2362, %v2358
    %v2375 = vpack.c.bf16 %v2363, %v2359
    %v2376 = vpack.c.bf16 %v2368, %v2364
    %v2377 = vpack.c.bf16 %v2369, %v2365
    %v2378 = vpack.c.bf16 %v2370, %v2366
    %v2379 = vpack.c.bf16 %v2371, %v2367
    %2380 = vst [vmem:[#allocation2 + $0x240] sm:$0xff] %v2372
    %2381 = vst [vmem:[#allocation2 + $0x248] sm:$0xff] %v2373
    %2382 = vst [vmem:[#allocation2 + $0x250] sm:$0xff] %v2374
    %2383 = vst [vmem:[#allocation2 + $0x258] sm:$0xff] %v2375
    %v2384 = vld [vmem:[#allocation2 + $0x260] sm:$0x1f]
    %v2385 = vsel %vm1375, %v2376, %v2384
    %2386 = vst [vmem:[#allocation2 + $0x260] sm:$0x1f] %v2385
    %v2387 = vld [vmem:[#allocation2 + $0x268] sm:$0x1f]
    %v2388 = vsel %vm1375, %v2377, %v2387
    %2389 = vst [vmem:[#allocation2 + $0x268] sm:$0x1f] %v2388
    %v2390 = vld [vmem:[#allocation2 + $0x270] sm:$0x1f]
    %v2391 = vsel %vm1375, %v2378, %v2390
    %2392 = vst [vmem:[#allocation2 + $0x270] sm:$0x1f] %v2391
    %v2393 = vld [vmem:[#allocation2 + $0x278] sm:$0x1f]
    %v2394 = vsel %vm1375, %v2379, %v2393
    %2395 = vst [vmem:[#allocation2 + $0x278] sm:$0x1f] %v2394
    %2396 = vrot.lane.b32.xlu0 %v1256, 2
    %v2397 = vpop.permute.xlu0 %2396
    %2398 = vrot.lane.b32.xlu0 %v1260, 2
    %v2399 = vpop.permute.xlu0 %2398
    %2400 = vrot.lane.b32.xlu0 %v1264, 2
    %v2401 = vpop.permute.xlu0 %2400
    %2402 = vrot.lane.b32.xlu0 %v1268, 2
    %v2403 = vpop.permute.xlu0 %2402
    %2404 = vrot.lane.b32.xlu0 %v1257, 2
    %v2405 = vpop.permute.xlu0 %2404
    %2406 = vrot.lane.b32.xlu0 %v1261, 2
    %v2407 = vpop.permute.xlu0 %2406
    %2408 = vrot.lane.b32.xlu0 %v1265, 2
    %v2409 = vpop.permute.xlu0 %2408
    %2410 = vrot.lane.b32.xlu0 %v1269, 2
    %v2411 = vpop.permute.xlu0 %2410
    %2412 = vrot.lane.b32.xlu0 %v1258, 2
    %v2413 = vpop.permute.xlu0 %2412
    %2414 = vrot.lane.b32.xlu0 %v1262, 2
    %v2415 = vpop.permute.xlu0 %2414
    %2416 = vrot.lane.b32.xlu0 %v1266, 2
    %v2417 = vpop.permute.xlu0 %2416
    %2418 = vrot.lane.b32.xlu0 %v1270, 2
    %v2419 = vpop.permute.xlu0 %2418
    %2420 = vrot.lane.b32.xlu0 %v1259, 2
    %v2421 = vpop.permute.xlu0 %2420
    %2422 = vrot.lane.b32.xlu0 %v1263, 2
    %v2423 = vpop.permute.xlu0 %2422
    %2424 = vrot.lane.b32.xlu0 %v1267, 2
    %v2425 = vpop.permute.xlu0 %2424
    %2426 = vrot.lane.b32.xlu0 %v1271, 2
    %v2427 = vpop.permute.xlu0 %2426
    %vm2428 = vcmp.lt.s32.totalorder %v1305, 2
    %v2429 = vsel %vm2428, %v2413, %v2421
    %v2430 = vsel %vm2428, %v2415, %v2423
    %v2431 = vsel %vm2428, %v2417, %v2425
    %v2432 = vsel %vm2428, %v2419, %v2427
    %v2433 = vsel %vm2428, %v2405, %v2413
    %v2434 = vsel %vm2428, %v2407, %v2415
    %v2435 = vsel %vm2428, %v2409, %v2417
    %v2436 = vsel %vm2428, %v2411, %v2419
    %v2437 = vsel %vm2428, %v2397, %v2405
    %v2438 = vsel %vm2428, %v2399, %v2407
    %v2439 = vsel %vm2428, %v2401, %v2409
    %v2440 = vsel %vm2428, %v2403, %v2411
    %v2441 = vsel %vm2428, %v2421, %v2397
    %v2442 = vsel %vm2428, %v2423, %v2399
    %v2443 = vsel %vm2428, %v2425, %v2401
    %v2444 = vsel %vm2428, %v2427, %v2403
    %s2445 = scalar_lea.vmem %s6, 34
    %v2446 = vld [vmem:[%s2445] ss:$8 sm:$0xf]
    %v2448 = vlaneseq
    %v2449 = vshrl.u32 %v2448, 7
    %v2450 = vsub.s32 0, %v2449
    %v2451 = vrot.slane %v2446, %v2450
    %v2452 = vlaneseq
    %v2453 = vshrl.u32 %v2452, 7
    %v2454 = vsub.s32 1, %v2453
    %v2455 = vrot.slane %v2446, %v2454
    %v2456 = vlaneseq
    %v2457 = vshrl.u32 %v2456, 7
    %v2458 = vsub.s32 2, %v2457
    %v2459 = vrot.slane %v2446, %v2458
    %v2460 = vlaneseq
    %v2461 = vshrl.u32 %v2460, 7
    %v2462 = vsub.s32 3, %v2461
    %v2463 = vrot.slane %v2446, %v2462
    %v2468 = vmul.f32 %v2441, %v2451
    %v2469 = vmul.f32 %v2437, %v2455
    %v2470 = vmul.f32 %v2433, %v2459
    %v2471 = vmul.f32 %v2429, %v2463
    %v2472 = vmul.f32 %v2442, %v2451
    %v2473 = vmul.f32 %v2438, %v2455
    %v2474 = vmul.f32 %v2434, %v2459
    %v2475 = vmul.f32 %v2430, %v2463
    %v2476 = vmul.f32 %v2443, %v2451
    %v2477 = vmul.f32 %v2439, %v2455
    %v2478 = vmul.f32 %v2435, %v2459
    %v2479 = vmul.f32 %v2431, %v2463
    %v2480 = vmul.f32 %v2444, %v2451
    %v2481 = vmul.f32 %v2440, %v2455
    %v2482 = vmul.f32 %v2436, %v2459
    %v2483 = vmul.f32 %v2432, %v2463
    %v2484 = vpack.c.bf16 %v2472, %v2468
    %v2485 = vpack.c.bf16 %v2473, %v2469
    %v2486 = vpack.c.bf16 %v2474, %v2470
    %v2487 = vpack.c.bf16 %v2475, %v2471
    %v2488 = vpack.c.bf16 %v2480, %v2476
    %v2489 = vpack.c.bf16 %v2481, %v2477
    %v2490 = vpack.c.bf16 %v2482, %v2478
    %v2491 = vpack.c.bf16 %v2483, %v2479
    %2492 = vst [vmem:[#allocation2 + $0x280] sm:$0xff] %v2484
    %2493 = vst [vmem:[#allocation2 + $0x288] sm:$0xff] %v2485
    %2494 = vst [vmem:[#allocation2 + $0x290] sm:$0xff] %v2486
    %2495 = vst [vmem:[#allocation2 + $0x298] sm:$0xff] %v2487
    %v2496 = vld [vmem:[#allocation2 + $0x2a0] sm:$0x1f]
    %v2497 = vsel %vm1375, %v2488, %v2496
    %2498 = vst [vmem:[#allocation2 + $0x2a0] sm:$0x1f] %v2497
    %v2499 = vld [vmem:[#allocation2 + $0x2a8] sm:$0x1f]
    %v2500 = vsel %vm1375, %v2489, %v2499
    %2501 = vst [vmem:[#allocation2 + $0x2a8] sm:$0x1f] %v2500
    %v2502 = vld [vmem:[#allocation2 + $0x2b0] sm:$0x1f]
    %v2503 = vsel %vm1375, %v2490, %v2502
    %2504 = vst [vmem:[#allocation2 + $0x2b0] sm:$0x1f] %v2503
    %v2505 = vld [vmem:[#allocation2 + $0x2b8] sm:$0x1f]
    %v2506 = vsel %vm1375, %v2491, %v2505
    %2507 = vst [vmem:[#allocation2 + $0x2b8] sm:$0x1f] %v2506
    %2508 = vrot.lane.b32.xlu0 %v1256, 1
    %v2509 = vpop.permute.xlu0 %2508
    %2510 = vrot.lane.b32.xlu0 %v1260, 1
    %v2511 = vpop.permute.xlu0 %2510
    %2512 = vrot.lane.b32.xlu0 %v1264, 1
    %v2513 = vpop.permute.xlu0 %2512
    %2514 = vrot.lane.b32.xlu0 %v1268, 1
    %v2515 = vpop.permute.xlu0 %2514
    %2516 = vrot.lane.b32.xlu0 %v1257, 1
    %v2517 = vpop.permute.xlu0 %2516
    %2518 = vrot.lane.b32.xlu0 %v1261, 1
    %v2519 = vpop.permute.xlu0 %2518
    %2520 = vrot.lane.b32.xlu0 %v1265, 1
    %v2521 = vpop.permute.xlu0 %2520
    %2522 = vrot.lane.b32.xlu0 %v1269, 1
    %v2523 = vpop.permute.xlu0 %2522
    %2524 = vrot.lane.b32.xlu0 %v1258, 1
    %v2525 = vpop.permute.xlu0 %2524
    %2526 = vrot.lane.b32.xlu0 %v1262, 1
    %v2527 = vpop.permute.xlu0 %2526
    %2528 = vrot.lane.b32.xlu0 %v1266, 1
    %v2529 = vpop.permute.xlu0 %2528
    %2530 = vrot.lane.b32.xlu0 %v1270, 1
    %v2531 = vpop.permute.xlu0 %2530
    %2532 = vrot.lane.b32.xlu0 %v1259, 1
    %v2533 = vpop.permute.xlu0 %2532
    %2534 = vrot.lane.b32.xlu0 %v1263, 1
    %v2535 = vpop.permute.xlu0 %2534
    %2536 = vrot.lane.b32.xlu0 %v1267, 1
    %v2537 = vpop.permute.xlu0 %2536
    %2538 = vrot.lane.b32.xlu0 %v1271, 1
    %v2539 = vpop.permute.xlu0 %2538
    %vm2540 = vcmp.lt.s32.totalorder %v1305, 1
    %v2541 = vsel %vm2540, %v2525, %v2533
    %v2542 = vsel %vm2540, %v2527, %v2535
    %v2543 = vsel %vm2540, %v2529, %v2537
    %v2544 = vsel %vm2540, %v2531, %v2539
    %v2545 = vsel %vm2540, %v2517, %v2525
    %v2546 = vsel %vm2540, %v2519, %v2527
    %v2547 = vsel %vm2540, %v2521, %v2529
    %v2548 = vsel %vm2540, %v2523, %v2531
    %v2549 = vsel %vm2540, %v2509, %v2517
    %v2550 = vsel %vm2540, %v2511, %v2519
    %v2551 = vsel %vm2540, %v2513, %v2521
    %v2552 = vsel %vm2540, %v2515, %v2523
    %v2553 = vsel %vm2540, %v2533, %v2509
    %v2554 = vsel %vm2540, %v2535, %v2511
    %v2555 = vsel %vm2540, %v2537, %v2513
    %v2556 = vsel %vm2540, %v2539, %v2515
    %s2557 = scalar_lea.vmem %s6, 35
    %v2558 = vld [vmem:[%s2557] ss:$8 sm:$0xf]
    %v2560 = vlaneseq
    %v2561 = vshrl.u32 %v2560, 7
    %v2562 = vsub.s32 0, %v2561
    %v2563 = vrot.slane %v2558, %v2562
    %v2564 = vlaneseq
    %v2565 = vshrl.u32 %v2564, 7
    %v2566 = vsub.s32 1, %v2565
    %v2567 = vrot.slane %v2558, %v2566
    %v2568 = vlaneseq
    %v2569 = vshrl.u32 %v2568, 7
    %v2570 = vsub.s32 2, %v2569
    %v2571 = vrot.slane %v2558, %v2570
    %v2572 = vlaneseq
    %v2573 = vshrl.u32 %v2572, 7
    %v2574 = vsub.s32 3, %v2573
    %v2575 = vrot.slane %v2558, %v2574
    %v2580 = vmul.f32 %v2553, %v2563
    %v2581 = vmul.f32 %v2549, %v2567
    %v2582 = vmul.f32 %v2545, %v2571
    %v2583 = vmul.f32 %v2541, %v2575
    %v2584 = vmul.f32 %v2554, %v2563
    %v2585 = vmul.f32 %v2550, %v2567
    %v2586 = vmul.f32 %v2546, %v2571
    %v2587 = vmul.f32 %v2542, %v2575
    %v2588 = vmul.f32 %v2555, %v2563
    %v2589 = vmul.f32 %v2551, %v2567
    %v2590 = vmul.f32 %v2547, %v2571
    %v2591 = vmul.f32 %v2543, %v2575
    %v2592 = vmul.f32 %v2556, %v2563
    %v2593 = vmul.f32 %v2552, %v2567
    %v2594 = vmul.f32 %v2548, %v2571
    %v2595 = vmul.f32 %v2544, %v2575
    %v2596 = vpack.c.bf16 %v2584, %v2580
    %v2597 = vpack.c.bf16 %v2585, %v2581
    %v2598 = vpack.c.bf16 %v2586, %v2582
    %v2599 = vpack.c.bf16 %v2587, %v2583
    %v2600 = vpack.c.bf16 %v2592, %v2588
    %v2601 = vpack.c.bf16 %v2593, %v2589
    %v2602 = vpack.c.bf16 %v2594, %v2590
    %v2603 = vpack.c.bf16 %v2595, %v2591
    %2604 = vst [vmem:[#allocation2 + $0x2c0] sm:$0xff] %v2596
    %2605 = vst [vmem:[#allocation2 + $0x2c8] sm:$0xff] %v2597
    %2606 = vst [vmem:[#allocation2 + $0x2d0] sm:$0xff] %v2598
    %2607 = vst [vmem:[#allocation2 + $0x2d8] sm:$0xff] %v2599
    %v2608 = vld [vmem:[#allocation2 + $0x2e0] sm:$0x1f]
    %v2609 = vsel %vm1375, %v2600, %v2608
    %2610 = vst [vmem:[#allocation2 + $0x2e0] sm:$0x1f] %v2609
    %v2611 = vld [vmem:[#allocation2 + $0x2e8] sm:$0x1f]
    %v2612 = vsel %vm1375, %v2601, %v2611
    %2613 = vst [vmem:[#allocation2 + $0x2e8] sm:$0x1f] %v2612
    %v2614 = vld [vmem:[#allocation2 + $0x2f0] sm:$0x1f]
    %v2615 = vsel %vm1375, %v2602, %v2614
    %2616 = vst [vmem:[#allocation2 + $0x2f0] sm:$0x1f] %v2615
    %v2617 = vld [vmem:[#allocation2 + $0x2f8] sm:$0x1f]
    %v2618 = vsel %vm1375, %v2603, %v2617
    %2619 = vst [vmem:[#allocation2 + $0x2f8] sm:$0x1f] %v2618
    %v2620 = vpack.c.bf16 %v1260, %v1256
    %v2621 = vpack.c.bf16 %v1261, %v1257
    %v2622 = vpack.c.bf16 %v1262, %v1258
    %v2623 = vpack.c.bf16 %v1263, %v1259
    %v2624 = vpack.c.bf16 %v1268, %v1264
    %v2625 = vpack.c.bf16 %v1269, %v1265
    %v2626 = vpack.c.bf16 %v1270, %v1266
    %v2627 = vpack.c.bf16 %v1271, %v1267
    %2628 = vst [vmem:[#allocation2 + $0x300] sm:$0xff] %v2620
    %2629 = vst [vmem:[#allocation2 + $0x308] sm:$0xff] %v2621
    %2630 = vst [vmem:[#allocation2 + $0x310] sm:$0xff] %v2622
    %2631 = vst [vmem:[#allocation2 + $0x318] sm:$0xff] %v2623
    %v2632 = vld [vmem:[#allocation2 + $0x320] sm:$0x1f]
    %v2633 = vsel %vm1375, %v2624, %v2632
    %2634 = vst [vmem:[#allocation2 + $0x320] sm:$0x1f] %v2633
    %v2635 = vld [vmem:[#allocation2 + $0x328] sm:$0x1f]
    %v2636 = vsel %vm1375, %v2625, %v2635
    %2637 = vst [vmem:[#allocation2 + $0x328] sm:$0x1f] %v2636
    %v2638 = vld [vmem:[#allocation2 + $0x330] sm:$0x1f]
    %v2639 = vsel %vm1375, %v2626, %v2638
    %2640 = vst [vmem:[#allocation2 + $0x330] sm:$0x1f] %v2639
    %v2641 = vld [vmem:[#allocation2 + $0x338] sm:$0x1f]
    %v2642 = vsel %vm1375, %v2627, %v2641
    %2643 = vst [vmem:[#allocation2 + $0x338] sm:$0x1f] %v2642
    %2644 = vrot.lane.b32.xlu0 %v1256, 127
    %v2645 = vpop.permute.xlu0 %2644
    %2646 = vrot.lane.b32.xlu0 %v1260, 127
    %v2647 = vpop.permute.xlu0 %2646
    %2648 = vrot.lane.b32.xlu0 %v1264, 127
    %v2649 = vpop.permute.xlu0 %2648
    %2650 = vrot.lane.b32.xlu0 %v1268, 127
    %v2651 = vpop.permute.xlu0 %2650
    %2652 = vrot.lane.b32.xlu0 %v1257, 127
    %v2653 = vpop.permute.xlu0 %2652
    %2654 = vrot.lane.b32.xlu0 %v1261, 127
    %v2655 = vpop.permute.xlu0 %2654
    %2656 = vrot.lane.b32.xlu0 %v1265, 127
    %v2657 = vpop.permute.xlu0 %2656
    %2658 = vrot.lane.b32.xlu0 %v1269, 127
    %v2659 = vpop.permute.xlu0 %2658
    %2660 = vrot.lane.b32.xlu0 %v1258, 127
    %v2661 = vpop.permute.xlu0 %2660
    %2662 = vrot.lane.b32.xlu0 %v1262, 127
    %v2663 = vpop.permute.xlu0 %2662
    %2664 = vrot.lane.b32.xlu0 %v1266, 127
    %v2665 = vpop.permute.xlu0 %2664
    %2666 = vrot.lane.b32.xlu0 %v1270, 127
    %v2667 = vpop.permute.xlu0 %2666
    %2668 = vrot.lane.b32.xlu0 %v1259, 127
    %v2669 = vpop.permute.xlu0 %2668
    %2670 = vrot.lane.b32.xlu0 %v1263, 127
    %v2671 = vpop.permute.xlu0 %2670
    %2672 = vrot.lane.b32.xlu0 %v1267, 127
    %v2673 = vpop.permute.xlu0 %2672
    %2674 = vrot.lane.b32.xlu0 %v1271, 127
    %v2675 = vpop.permute.xlu0 %2674
    %vm2676 = vcmp.lt.s32.totalorder %v1305, 127
    %v2677 = vsel %vm2676, %v2661, %v2669
    %v2678 = vsel %vm2676, %v2663, %v2671
    %v2679 = vsel %vm2676, %v2665, %v2673
    %v2680 = vsel %vm2676, %v2667, %v2675
    %v2681 = vsel %vm2676, %v2653, %v2661
    %v2682 = vsel %vm2676, %v2655, %v2663
    %v2683 = vsel %vm2676, %v2657, %v2665
    %v2684 = vsel %vm2676, %v2659, %v2667
    %v2685 = vsel %vm2676, %v2645, %v2653
    %v2686 = vsel %vm2676, %v2647, %v2655
    %v2687 = vsel %vm2676, %v2649, %v2657
    %v2688 = vsel %vm2676, %v2651, %v2659
    %v2689 = vsel %vm2676, %v2669, %v2645
    %v2690 = vsel %vm2676, %v2671, %v2647
    %v2691 = vsel %vm2676, %v2673, %v2649
    %v2692 = vsel %vm2676, %v2675, %v2651
    %s2693 = scalar_lea.vmem %s6, 37
    %v2694 = vld [vmem:[%s2693] ss:$8 sm:$0xf]
    %v2696 = vlaneseq
    %v2697 = vshrl.u32 %v2696, 7
    %v2698 = vsub.s32 0, %v2697
    %v2699 = vrot.slane %v2694, %v2698
    %v2700 = vlaneseq
    %v2701 = vshrl.u32 %v2700, 7
    %v2702 = vsub.s32 1, %v2701
    %v2703 = vrot.slane %v2694, %v2702
    %v2704 = vlaneseq
    %v2705 = vshrl.u32 %v2704, 7
    %v2706 = vsub.s32 2, %v2705
    %v2707 = vrot.slane %v2694, %v2706
    %v2708 = vlaneseq
    %v2709 = vshrl.u32 %v2708, 7
    %v2710 = vsub.s32 3, %v2709
    %v2711 = vrot.slane %v2694, %v2710
    %v2716 = vmul.f32 %v2685, %v2699
    %v2717 = vmul.f32 %v2681, %v2703
    %v2718 = vmul.f32 %v2677, %v2707
    %v2719 = vmul.f32 %v2689, %v2711
    %v2720 = vmul.f32 %v2686, %v2699
    %v2721 = vmul.f32 %v2682, %v2703
    %v2722 = vmul.f32 %v2678, %v2707
    %v2723 = vmul.f32 %v2690, %v2711
    %v2724 = vmul.f32 %v2687, %v2699
    %v2725 = vmul.f32 %v2683, %v2703
    %v2726 = vmul.f32 %v2679, %v2707
    %v2727 = vmul.f32 %v2691, %v2711
    %v2728 = vmul.f32 %v2688, %v2699
    %v2729 = vmul.f32 %v2684, %v2703
    %v2730 = vmul.f32 %v2680, %v2707
    %v2731 = vmul.f32 %v2692, %v2711
    %v2732 = vpack.c.bf16 %v2720, %v2716
    %v2733 = vpack.c.bf16 %v2721, %v2717
    %v2734 = vpack.c.bf16 %v2722, %v2718
    %v2735 = vpack.c.bf16 %v2723, %v2719
    %v2736 = vpack.c.bf16 %v2728, %v2724
    %v2737 = vpack.c.bf16 %v2729, %v2725
    %v2738 = vpack.c.bf16 %v2730, %v2726
    %v2739 = vpack.c.bf16 %v2731, %v2727
    %2740 = vst [vmem:[#allocation2 + $0x340] sm:$0xff] %v2732
    %2741 = vst [vmem:[#allocation2 + $0x348] sm:$0xff] %v2733
    %2742 = vst [vmem:[#allocation2 + $0x350] sm:$0xff] %v2734
    %2743 = vst [vmem:[#allocation2 + $0x358] sm:$0xff] %v2735
    %v2744 = vld [vmem:[#allocation2 + $0x360] sm:$0x1f]
    %v2745 = vsel %vm1375, %v2736, %v2744
    %2746 = vst [vmem:[#allocation2 + $0x360] sm:$0x1f] %v2745
    %v2747 = vld [vmem:[#allocation2 + $0x368] sm:$0x1f]
    %v2748 = vsel %vm1375, %v2737, %v2747
    %2749 = vst [vmem:[#allocation2 + $0x368] sm:$0x1f] %v2748
    %v2750 = vld [vmem:[#allocation2 + $0x370] sm:$0x1f]
    %v2751 = vsel %vm1375, %v2738, %v2750
    %2752 = vst [vmem:[#allocation2 + $0x370] sm:$0x1f] %v2751
    %v2753 = vld [vmem:[#allocation2 + $0x378] sm:$0x1f]
    %v2754 = vsel %vm1375, %v2739, %v2753
    %2755 = vst [vmem:[#allocation2 + $0x378] sm:$0x1f] %v2754
    %2756 = vrot.lane.b32.xlu0 %v1256, 126
    %v2757 = vpop.permute.xlu0 %2756
    %2758 = vrot.lane.b32.xlu0 %v1260, 126
    %v2759 = vpop.permute.xlu0 %2758
    %2760 = vrot.lane.b32.xlu0 %v1264, 126
    %v2761 = vpop.permute.xlu0 %2760
    %2762 = vrot.lane.b32.xlu0 %v1268, 126
    %v2763 = vpop.permute.xlu0 %2762
    %2764 = vrot.lane.b32.xlu0 %v1257, 126
    %v2765 = vpop.permute.xlu0 %2764
    %2766 = vrot.lane.b32.xlu0 %v1261, 126
    %v2767 = vpop.permute.xlu0 %2766
    %2768 = vrot.lane.b32.xlu0 %v1265, 126
    %v2769 = vpop.permute.xlu0 %2768
    %2770 = vrot.lane.b32.xlu0 %v1269, 126
    %v2771 = vpop.permute.xlu0 %2770
    %2772 = vrot.lane.b32.xlu0 %v1258, 126
    %v2773 = vpop.permute.xlu0 %2772
    %2774 = vrot.lane.b32.xlu0 %v1262, 126
    %v2775 = vpop.permute.xlu0 %2774
    %2776 = vrot.lane.b32.xlu0 %v1266, 126
    %v2777 = vpop.permute.xlu0 %2776
    %2778 = vrot.lane.b32.xlu0 %v1270, 126
    %v2779 = vpop.permute.xlu0 %2778
    %2780 = vrot.lane.b32.xlu0 %v1259, 126
    %v2781 = vpop.permute.xlu0 %2780
    %2782 = vrot.lane.b32.xlu0 %v1263, 126
    %v2783 = vpop.permute.xlu0 %2782
    %2784 = vrot.lane.b32.xlu0 %v1267, 126
    %v2785 = vpop.permute.xlu0 %2784
    %2786 = vrot.lane.b32.xlu0 %v1271, 126
    %v2787 = vpop.permute.xlu0 %2786
    %vm2788 = vcmp.lt.s32.totalorder %v1305, 126
    %v2789 = vsel %vm2788, %v2773, %v2781
    %v2790 = vsel %vm2788, %v2775, %v2783
    %v2791 = vsel %vm2788, %v2777, %v2785
    %v2792 = vsel %vm2788, %v2779, %v2787
    %v2793 = vsel %vm2788, %v2765, %v2773
    %v2794 = vsel %vm2788, %v2767, %v2775
    %v2795 = vsel %vm2788, %v2769, %v2777
    %v2796 = vsel %vm2788, %v2771, %v2779
    %v2797 = vsel %vm2788, %v2757, %v2765
    %v2798 = vsel %vm2788, %v2759, %v2767
    %v2799 = vsel %vm2788, %v2761, %v2769
    %v2800 = vsel %vm2788, %v2763, %v2771
    %v2801 = vsel %vm2788, %v2781, %v2757
    %v2802 = vsel %vm2788, %v2783, %v2759
    %v2803 = vsel %vm2788, %v2785, %v2761
    %v2804 = vsel %vm2788, %v2787, %v2763
    %s2805 = scalar_lea.vmem %s6, 38
    %v2806 = vld [vmem:[%s2805] ss:$8 sm:$0xf]
    %v2808 = vlaneseq
    %v2809 = vshrl.u32 %v2808, 7
    %v2810 = vsub.s32 0, %v2809
    %v2811 = vrot.slane %v2806, %v2810
    %v2812 = vlaneseq
    %v2813 = vshrl.u32 %v2812, 7
    %v2814 = vsub.s32 1, %v2813
    %v2815 = vrot.slane %v2806, %v2814
    %v2816 = vlaneseq
    %v2817 = vshrl.u32 %v2816, 7
    %v2818 = vsub.s32 2, %v2817
    %v2819 = vrot.slane %v2806, %v2818
    %v2820 = vlaneseq
    %v2821 = vshrl.u32 %v2820, 7
    %v2822 = vsub.s32 3, %v2821
    %v2823 = vrot.slane %v2806, %v2822
    %v2828 = vmul.f32 %v2797, %v2811
    %v2829 = vmul.f32 %v2793, %v2815
    %v2830 = vmul.f32 %v2789, %v2819
    %v2831 = vmul.f32 %v2801, %v2823
    %v2832 = vmul.f32 %v2798, %v2811
    %v2833 = vmul.f32 %v2794, %v2815
    %v2834 = vmul.f32 %v2790, %v2819
    %v2835 = vmul.f32 %v2802, %v2823
    %v2836 = vmul.f32 %v2799, %v2811
    %v2837 = vmul.f32 %v2795, %v2815
    %v2838 = vmul.f32 %v2791, %v2819
    %v2839 = vmul.f32 %v2803, %v2823
    %v2840 = vmul.f32 %v2800, %v2811
    %v2841 = vmul.f32 %v2796, %v2815
    %v2842 = vmul.f32 %v2792, %v2819
    %v2843 = vmul.f32 %v2804, %v2823
    %v2844 = vpack.c.bf16 %v2832, %v2828
    %v2845 = vpack.c.bf16 %v2833, %v2829
    %v2846 = vpack.c.bf16 %v2834, %v2830
    %v2847 = vpack.c.bf16 %v2835, %v2831
    %v2848 = vpack.c.bf16 %v2840, %v2836
    %v2849 = vpack.c.bf16 %v2841, %v2837
    %v2850 = vpack.c.bf16 %v2842, %v2838
    %v2851 = vpack.c.bf16 %v2843, %v2839
    %2852 = vst [vmem:[#allocation2 + $0x380] sm:$0xff] %v2844
    %2853 = vst [vmem:[#allocation2 + $0x388] sm:$0xff] %v2845
    %2854 = vst [vmem:[#allocation2 + $0x390] sm:$0xff] %v2846
    %2855 = vst [vmem:[#allocation2 + $0x398] sm:$0xff] %v2847
    %v2856 = vld [vmem:[#allocation2 + $0x3a0] sm:$0x1f]
    %v2857 = vsel %vm1375, %v2848, %v2856
    %2858 = vst [vmem:[#allocation2 + $0x3a0] sm:$0x1f] %v2857
    %v2859 = vld [vmem:[#allocation2 + $0x3a8] sm:$0x1f]
    %v2860 = vsel %vm1375, %v2849, %v2859
    %2861 = vst [vmem:[#allocation2 + $0x3a8] sm:$0x1f] %v2860
    %v2862 = vld [vmem:[#allocation2 + $0x3b0] sm:$0x1f]
    %v2863 = vsel %vm1375, %v2850, %v2862
    %2864 = vst [vmem:[#allocation2 + $0x3b0] sm:$0x1f] %v2863
    %v2865 = vld [vmem:[#allocation2 + $0x3b8] sm:$0x1f]
    %v2866 = vsel %vm1375, %v2851, %v2865
    %2867 = vst [vmem:[#allocation2 + $0x3b8] sm:$0x1f] %v2866
    %2868 = vrot.lane.b32.xlu0 %v1256, 114
    %v2869 = vpop.permute.xlu0 %2868
    %2870 = vrot.lane.b32.xlu0 %v1260, 114
    %v2871 = vpop.permute.xlu0 %2870
    %2872 = vrot.lane.b32.xlu0 %v1264, 114
    %v2873 = vpop.permute.xlu0 %2872
    %2874 = vrot.lane.b32.xlu0 %v1268, 114
    %v2875 = vpop.permute.xlu0 %2874
    %2876 = vrot.lane.b32.xlu0 %v1257, 114
    %v2877 = vpop.permute.xlu0 %2876
    %2878 = vrot.lane.b32.xlu0 %v1261, 114
    %v2879 = vpop.permute.xlu0 %2878
    %2880 = vrot.lane.b32.xlu0 %v1265, 114
    %v2881 = vpop.permute.xlu0 %2880
    %2882 = vrot.lane.b32.xlu0 %v1269, 114
    %v2883 = vpop.permute.xlu0 %2882
    %2884 = vrot.lane.b32.xlu0 %v1258, 114
    %v2885 = vpop.permute.xlu0 %2884
    %2886 = vrot.lane.b32.xlu0 %v1262, 114
    %v2887 = vpop.permute.xlu0 %2886
    %2888 = vrot.lane.b32.xlu0 %v1266, 114
    %v2889 = vpop.permute.xlu0 %2888
    %2890 = vrot.lane.b32.xlu0 %v1270, 114
    %v2891 = vpop.permute.xlu0 %2890
    %2892 = vrot.lane.b32.xlu0 %v1259, 114
    %v2893 = vpop.permute.xlu0 %2892
    %2894 = vrot.lane.b32.xlu0 %v1263, 114
    %v2895 = vpop.permute.xlu0 %2894
    %2896 = vrot.lane.b32.xlu0 %v1267, 114
    %v2897 = vpop.permute.xlu0 %2896
    %2898 = vrot.lane.b32.xlu0 %v1271, 114
    %v2899 = vpop.permute.xlu0 %2898
    %vm2900 = vcmp.lt.s32.totalorder %v1305, 114
    %v2901 = vsel %vm2900, %v2885, %v2893
    %v2902 = vsel %vm2900, %v2887, %v2895
    %v2903 = vsel %vm2900, %v2889, %v2897
    %v2904 = vsel %vm2900, %v2891, %v2899
    %v2905 = vsel %vm2900, %v2877, %v2885
    %v2906 = vsel %vm2900, %v2879, %v2887
    %v2907 = vsel %vm2900, %v2881, %v2889
    %v2908 = vsel %vm2900, %v2883, %v2891
    %v2909 = vsel %vm2900, %v2869, %v2877
    %v2910 = vsel %vm2900, %v2871, %v2879
    %v2911 = vsel %vm2900, %v2873, %v2881
    %v2912 = vsel %vm2900, %v2875, %v2883
    %v2913 = vsel %vm2900, %v2893, %v2869
    %v2914 = vsel %vm2900, %v2895, %v2871
    %v2915 = vsel %vm2900, %v2897, %v2873
    %v2916 = vsel %vm2900, %v2899, %v2875
    %s2917 = scalar_lea.vmem %s6, 39
    %v2918 = vld [vmem:[%s2917] ss:$8 sm:$0xf]
    %v2920 = vlaneseq
    %v2921 = vshrl.u32 %v2920, 7
    %v2922 = vsub.s32 0, %v2921
    %v2923 = vrot.slane %v2918, %v2922
    %v2924 = vlaneseq
    %v2925 = vshrl.u32 %v2924, 7
    %v2926 = vsub.s32 1, %v2925
    %v2927 = vrot.slane %v2918, %v2926
    %v2928 = vlaneseq
    %v2929 = vshrl.u32 %v2928, 7
    %v2930 = vsub.s32 2, %v2929
    %v2931 = vrot.slane %v2918, %v2930
    %v2932 = vlaneseq
    %v2933 = vshrl.u32 %v2932, 7
    %v2934 = vsub.s32 3, %v2933
    %v2935 = vrot.slane %v2918, %v2934
    %v2940 = vmul.f32 %v2909, %v2923
    %v2941 = vmul.f32 %v2905, %v2927
    %v2942 = vmul.f32 %v2901, %v2931
    %v2943 = vmul.f32 %v2913, %v2935
    %v2944 = vmul.f32 %v2910, %v2923
    %v2945 = vmul.f32 %v2906, %v2927
    %v2946 = vmul.f32 %v2902, %v2931
    %v2947 = vmul.f32 %v2914, %v2935
    %v2948 = vmul.f32 %v2911, %v2923
    %v2949 = vmul.f32 %v2907, %v2927
    %v2950 = vmul.f32 %v2903, %v2931
    %v2951 = vmul.f32 %v2915, %v2935
    %v2952 = vmul.f32 %v2912, %v2923
    %v2953 = vmul.f32 %v2908, %v2927
    %v2954 = vmul.f32 %v2904, %v2931
    %v2955 = vmul.f32 %v2916, %v2935
    %v2956 = vpack.c.bf16 %v2944, %v2940
    %v2957 = vpack.c.bf16 %v2945, %v2941
    %v2958 = vpack.c.bf16 %v2946, %v2942
    %v2959 = vpack.c.bf16 %v2947, %v2943
    %v2960 = vpack.c.bf16 %v2952, %v2948
    %v2961 = vpack.c.bf16 %v2953, %v2949
    %v2962 = vpack.c.bf16 %v2954, %v2950
    %v2963 = vpack.c.bf16 %v2955, %v2951
    %2964 = vst [vmem:[#allocation2 + $0x3c0] sm:$0xff] %v2956
    %2965 = vst [vmem:[#allocation2 + $0x3c8] sm:$0xff] %v2957
    %2966 = vst [vmem:[#allocation2 + $0x3d0] sm:$0xff] %v2958
    %2967 = vst [vmem:[#allocation2 + $0x3d8] sm:$0xff] %v2959
    %v2968 = vld [vmem:[#allocation2 + $0x3e0] sm:$0x1f]
    %v2969 = vsel %vm1375, %v2960, %v2968
    %2970 = vst [vmem:[#allocation2 + $0x3e0] sm:$0x1f] %v2969
    %v2971 = vld [vmem:[#allocation2 + $0x3e8] sm:$0x1f]
    %v2972 = vsel %vm1375, %v2961, %v2971
    %2973 = vst [vmem:[#allocation2 + $0x3e8] sm:$0x1f] %v2972
    %v2974 = vld [vmem:[#allocation2 + $0x3f0] sm:$0x1f]
    %v2975 = vsel %vm1375, %v2962, %v2974
    %2976 = vst [vmem:[#allocation2 + $0x3f0] sm:$0x1f] %v2975
    %v2977 = vld [vmem:[#allocation2 + $0x3f8] sm:$0x1f]
    %v2978 = vsel %vm1375, %v2963, %v2977
    %2979 = vst [vmem:[#allocation2 + $0x3f8] sm:$0x1f] %v2978
    %2980 = vrot.lane.b32.xlu0 %v1256, 113
    %v2981 = vpop.permute.xlu0 %2980
    %2982 = vrot.lane.b32.xlu0 %v1260, 113
    %v2983 = vpop.permute.xlu0 %2982
    %2984 = vrot.lane.b32.xlu0 %v1264, 113
    %v2985 = vpop.permute.xlu0 %2984
    %2986 = vrot.lane.b32.xlu0 %v1268, 113
    %v2987 = vpop.permute.xlu0 %2986
    %2988 = vrot.lane.b32.xlu0 %v1257, 113
    %v2989 = vpop.permute.xlu0 %2988
    %2990 = vrot.lane.b32.xlu0 %v1261, 113
    %v2991 = vpop.permute.xlu0 %2990
    %2992 = vrot.lane.b32.xlu0 %v1265, 113
    %v2993 = vpop.permute.xlu0 %2992
    %2994 = vrot.lane.b32.xlu0 %v1269, 113
    %v2995 = vpop.permute.xlu0 %2994
    %2996 = vrot.lane.b32.xlu0 %v1258, 113
    %v2997 = vpop.permute.xlu0 %2996
    %2998 = vrot.lane.b32.xlu0 %v1262, 113
    %v2999 = vpop.permute.xlu0 %2998
    %3000 = vrot.lane.b32.xlu0 %v1266, 113
    %v3001 = vpop.permute.xlu0 %3000
    %3002 = vrot.lane.b32.xlu0 %v1270, 113
    %v3003 = vpop.permute.xlu0 %3002
    %3004 = vrot.lane.b32.xlu0 %v1259, 113
    %v3005 = vpop.permute.xlu0 %3004
    %3006 = vrot.lane.b32.xlu0 %v1263, 113
    %v3007 = vpop.permute.xlu0 %3006
    %3008 = vrot.lane.b32.xlu0 %v1267, 113
    %v3009 = vpop.permute.xlu0 %3008
    %3010 = vrot.lane.b32.xlu0 %v1271, 113
    %v3011 = vpop.permute.xlu0 %3010
    %vm3012 = vcmp.lt.s32.totalorder %v1305, 113
    %v3013 = vsel %vm3012, %v2997, %v3005
    %v3014 = vsel %vm3012, %v2999, %v3007
    %v3015 = vsel %vm3012, %v3001, %v3009
    %v3016 = vsel %vm3012, %v3003, %v3011
    %v3017 = vsel %vm3012, %v2989, %v2997
    %v3018 = vsel %vm3012, %v2991, %v2999
    %v3019 = vsel %vm3012, %v2993, %v3001
    %v3020 = vsel %vm3012, %v2995, %v3003
    %v3021 = vsel %vm3012, %v2981, %v2989
    %v3022 = vsel %vm3012, %v2983, %v2991
    %v3023 = vsel %vm3012, %v2985, %v2993
    %v3024 = vsel %vm3012, %v2987, %v2995
    %v3025 = vsel %vm3012, %v3005, %v2981
    %v3026 = vsel %vm3012, %v3007, %v2983
    %v3027 = vsel %vm3012, %v3009, %v2985
    %v3028 = vsel %vm3012, %v3011, %v2987
    %s3029 = scalar_lea.vmem %s6, 64
    %v3030 = vld [vmem:[%s3029] ss:$8 sm:$0xf]
    %v3032 = vlaneseq
    %v3033 = vshrl.u32 %v3032, 7
    %v3034 = vsub.s32 0, %v3033
    %v3035 = vrot.slane %v3030, %v3034
    %v3036 = vlaneseq
    %v3037 = vshrl.u32 %v3036, 7
    %v3038 = vsub.s32 1, %v3037
    %v3039 = vrot.slane %v3030, %v3038
    %v3040 = vlaneseq
    %v3041 = vshrl.u32 %v3040, 7
    %v3042 = vsub.s32 2, %v3041
    %v3043 = vrot.slane %v3030, %v3042
    %v3044 = vlaneseq
    %v3045 = vshrl.u32 %v3044, 7
    %v3046 = vsub.s32 3, %v3045
    %v3047 = vrot.slane %v3030, %v3046
    %v3052 = vmul.f32 %v3021, %v3035
    %v3053 = vmul.f32 %v3017, %v3039
    %v3054 = vmul.f32 %v3013, %v3043
    %v3055 = vmul.f32 %v3025, %v3047
    %v3056 = vmul.f32 %v3022, %v3035
    %v3057 = vmul.f32 %v3018, %v3039
    %v3058 = vmul.f32 %v3014, %v3043
    %v3059 = vmul.f32 %v3026, %v3047
    %v3060 = vmul.f32 %v3023, %v3035
    %v3061 = vmul.f32 %v3019, %v3039
    %v3062 = vmul.f32 %v3015, %v3043
    %v3063 = vmul.f32 %v3027, %v3047
    %v3064 = vmul.f32 %v3024, %v3035
    %v3065 = vmul.f32 %v3020, %v3039
    %v3066 = vmul.f32 %v3016, %v3043
    %v3067 = vmul.f32 %v3028, %v3047
    %v3068 = vpack.c.bf16 %v3056, %v3052
    %v3069 = vpack.c.bf16 %v3057, %v3053
    %v3070 = vpack.c.bf16 %v3058, %v3054
    %v3071 = vpack.c.bf16 %v3059, %v3055
    %v3072 = vpack.c.bf16 %v3064, %v3060
    %v3073 = vpack.c.bf16 %v3065, %v3061
    %v3074 = vpack.c.bf16 %v3066, %v3062
    %v3075 = vpack.c.bf16 %v3067, %v3063
    %3076 = vst [vmem:[#allocation2 + $0x400] sm:$0xff] %v3068
    %3077 = vst [vmem:[#allocation2 + $0x408] sm:$0xff] %v3069
    %3078 = vst [vmem:[#allocation2 + $0x410] sm:$0xff] %v3070
    %3079 = vst [vmem:[#allocation2 + $0x418] sm:$0xff] %v3071
    %v3080 = vld [vmem:[#allocation2 + $0x420] sm:$0x1f]
    %v3081 = vsel %vm1375, %v3072, %v3080
    %3082 = vst [vmem:[#allocation2 + $0x420] sm:$0x1f] %v3081
    %v3083 = vld [vmem:[#allocation2 + $0x428] sm:$0x1f]
    %v3084 = vsel %vm1375, %v3073, %v3083
    %3085 = vst [vmem:[#allocation2 + $0x428] sm:$0x1f] %v3084
    %v3086 = vld [vmem:[#allocation2 + $0x430] sm:$0x1f]
    %v3087 = vsel %vm1375, %v3074, %v3086
    %3088 = vst [vmem:[#allocation2 + $0x430] sm:$0x1f] %v3087
    %v3089 = vld [vmem:[#allocation2 + $0x438] sm:$0x1f]
    %v3090 = vsel %vm1375, %v3075, %v3089
    %3091 = vst [vmem:[#allocation2 + $0x438] sm:$0x1f] %v3090
    %3092 = vrot.lane.b32.xlu0 %v1256, 112
    %v3093 = vpop.permute.xlu0 %3092
    %3094 = vrot.lane.b32.xlu0 %v1260, 112
    %v3095 = vpop.permute.xlu0 %3094
    %3096 = vrot.lane.b32.xlu0 %v1264, 112
    %v3097 = vpop.permute.xlu0 %3096
    %3098 = vrot.lane.b32.xlu0 %v1268, 112
    %v3099 = vpop.permute.xlu0 %3098
    %3100 = vrot.lane.b32.xlu0 %v1257, 112
    %v3101 = vpop.permute.xlu0 %3100
    %3102 = vrot.lane.b32.xlu0 %v1261, 112
    %v3103 = vpop.permute.xlu0 %3102
    %3104 = vrot.lane.b32.xlu0 %v1265, 112
    %v3105 = vpop.permute.xlu0 %3104
    %3106 = vrot.lane.b32.xlu0 %v1269, 112
    %v3107 = vpop.permute.xlu0 %3106
    %3108 = vrot.lane.b32.xlu0 %v1258, 112
    %v3109 = vpop.permute.xlu0 %3108
    %3110 = vrot.lane.b32.xlu0 %v1262, 112
    %v3111 = vpop.permute.xlu0 %3110
    %3112 = vrot.lane.b32.xlu0 %v1266, 112
    %v3113 = vpop.permute.xlu0 %3112
    %3114 = vrot.lane.b32.xlu0 %v1270, 112
    %v3115 = vpop.permute.xlu0 %3114
    %3116 = vrot.lane.b32.xlu0 %v1259, 112
    %v3117 = vpop.permute.xlu0 %3116
    %3118 = vrot.lane.b32.xlu0 %v1263, 112
    %v3119 = vpop.permute.xlu0 %3118
    %3120 = vrot.lane.b32.xlu0 %v1267, 112
    %v3121 = vpop.permute.xlu0 %3120
    %3122 = vrot.lane.b32.xlu0 %v1271, 112
    %v3123 = vpop.permute.xlu0 %3122
    %vm3124 = vcmp.lt.s32.totalorder %v1305, 112
    %v3125 = vsel %vm3124, %v3109, %v3117
    %v3126 = vsel %vm3124, %v3111, %v3119
    %v3127 = vsel %vm3124, %v3113, %v3121
    %v3128 = vsel %vm3124, %v3115, %v3123
    %v3129 = vsel %vm3124, %v3101, %v3109
    %v3130 = vsel %vm3124, %v3103, %v3111
    %v3131 = vsel %vm3124, %v3105, %v3113
    %v3132 = vsel %vm3124, %v3107, %v3115
    %v3133 = vsel %vm3124, %v3093, %v3101
    %v3134 = vsel %vm3124, %v3095, %v3103
    %v3135 = vsel %vm3124, %v3097, %v3105
    %v3136 = vsel %vm3124, %v3099, %v3107
    %v3137 = vsel %vm3124, %v3117, %v3093
    %v3138 = vsel %vm3124, %v3119, %v3095
    %v3139 = vsel %vm3124, %v3121, %v3097
    %v3140 = vsel %vm3124, %v3123, %v3099
    %s3141 = scalar_lea.vmem %s6, 65
    %v3142 = vld [vmem:[%s3141] ss:$8 sm:$0xf]
    %v3144 = vlaneseq
    %v3145 = vshrl.u32 %v3144, 7
    %v3146 = vsub.s32 0, %v3145
    %v3147 = vrot.slane %v3142, %v3146
    %v3148 = vlaneseq
    %v3149 = vshrl.u32 %v3148, 7
    %v3150 = vsub.s32 1, %v3149
    %v3151 = vrot.slane %v3142, %v3150
    %v3152 = vlaneseq
    %v3153 = vshrl.u32 %v3152, 7
    %v3154 = vsub.s32 2, %v3153
    %v3155 = vrot.slane %v3142, %v3154
    %v3156 = vlaneseq
    %v3157 = vshrl.u32 %v3156, 7
    %v3158 = vsub.s32 3, %v3157
    %v3159 = vrot.slane %v3142, %v3158
    %v3164 = vmul.f32 %v3133, %v3147
    %v3165 = vmul.f32 %v3129, %v3151
    %v3166 = vmul.f32 %v3125, %v3155
    %v3167 = vmul.f32 %v3137, %v3159
    %v3168 = vmul.f32 %v3134, %v3147
    %v3169 = vmul.f32 %v3130, %v3151
    %v3170 = vmul.f32 %v3126, %v3155
    %v3171 = vmul.f32 %v3138, %v3159
    %v3172 = vmul.f32 %v3135, %v3147
    %v3173 = vmul.f32 %v3131, %v3151
    %v3174 = vmul.f32 %v3127, %v3155
    %v3175 = vmul.f32 %v3139, %v3159
    %v3176 = vmul.f32 %v3136, %v3147
    %v3177 = vmul.f32 %v3132, %v3151
    %v3178 = vmul.f32 %v3128, %v3155
    %v3179 = vmul.f32 %v3140, %v3159
    %v3180 = vpack.c.bf16 %v3168, %v3164
    %v3181 = vpack.c.bf16 %v3169, %v3165
    %v3182 = vpack.c.bf16 %v3170, %v3166
    %v3183 = vpack.c.bf16 %v3171, %v3167
    %v3184 = vpack.c.bf16 %v3176, %v3172
    %v3185 = vpack.c.bf16 %v3177, %v3173
    %v3186 = vpack.c.bf16 %v3178, %v3174
    %v3187 = vpack.c.bf16 %v3179, %v3175
    %3188 = vst [vmem:[#allocation2 + $0x440] sm:$0xff] %v3180
    %3189 = vst [vmem:[#allocation2 + $0x448] sm:$0xff] %v3181
    %3190 = vst [vmem:[#allocation2 + $0x450] sm:$0xff] %v3182
    %3191 = vst [vmem:[#allocation2 + $0x458] sm:$0xff] %v3183
    %v3192 = vld [vmem:[#allocation2 + $0x460] sm:$0x1f]
    %v3193 = vsel %vm1375, %v3184, %v3192
    %3194 = vst [vmem:[#allocation2 + $0x460] sm:$0x1f] %v3193
    %v3195 = vld [vmem:[#allocation2 + $0x468] sm:$0x1f]
    %v3196 = vsel %vm1375, %v3185, %v3195
    %3197 = vst [vmem:[#allocation2 + $0x468] sm:$0x1f] %v3196
    %v3198 = vld [vmem:[#allocation2 + $0x470] sm:$0x1f]
    %v3199 = vsel %vm1375, %v3186, %v3198
    %3200 = vst [vmem:[#allocation2 + $0x470] sm:$0x1f] %v3199
    %v3201 = vld [vmem:[#allocation2 + $0x478] sm:$0x1f]
    %v3202 = vsel %vm1375, %v3187, %v3201
    %3203 = vst [vmem:[#allocation2 + $0x478] sm:$0x1f] %v3202
    %3204 = vrot.lane.b32.xlu0 %v1256, 111
    %v3205 = vpop.permute.xlu0 %3204
    %3206 = vrot.lane.b32.xlu0 %v1260, 111
    %v3207 = vpop.permute.xlu0 %3206
    %3208 = vrot.lane.b32.xlu0 %v1264, 111
    %v3209 = vpop.permute.xlu0 %3208
    %3210 = vrot.lane.b32.xlu0 %v1268, 111
    %v3211 = vpop.permute.xlu0 %3210
    %3212 = vrot.lane.b32.xlu0 %v1257, 111
    %v3213 = vpop.permute.xlu0 %3212
    %3214 = vrot.lane.b32.xlu0 %v1261, 111
    %v3215 = vpop.permute.xlu0 %3214
    %3216 = vrot.lane.b32.xlu0 %v1265, 111
    %v3217 = vpop.permute.xlu0 %3216
    %3218 = vrot.lane.b32.xlu0 %v1269, 111
    %v3219 = vpop.permute.xlu0 %3218
    %3220 = vrot.lane.b32.xlu0 %v1258, 111
    %v3221 = vpop.permute.xlu0 %3220
    %3222 = vrot.lane.b32.xlu0 %v1262, 111
    %v3223 = vpop.permute.xlu0 %3222
    %3224 = vrot.lane.b32.xlu0 %v1266, 111
    %v3225 = vpop.permute.xlu0 %3224
    %3226 = vrot.lane.b32.xlu0 %v1270, 111
    %v3227 = vpop.permute.xlu0 %3226
    %3228 = vrot.lane.b32.xlu0 %v1259, 111
    %v3229 = vpop.permute.xlu0 %3228
    %3230 = vrot.lane.b32.xlu0 %v1263, 111
    %v3231 = vpop.permute.xlu0 %3230
    %3232 = vrot.lane.b32.xlu0 %v1267, 111
    %v3233 = vpop.permute.xlu0 %3232
    %3234 = vrot.lane.b32.xlu0 %v1271, 111
    %v3235 = vpop.permute.xlu0 %3234
    %vm3236 = vcmp.lt.s32.totalorder %v1305, 111
    %v3237 = vsel %vm3236, %v3221, %v3229
    %v3238 = vsel %vm3236, %v3223, %v3231
    %v3239 = vsel %vm3236, %v3225, %v3233
    %v3240 = vsel %vm3236, %v3227, %v3235
    %v3241 = vsel %vm3236, %v3213, %v3221
    %v3242 = vsel %vm3236, %v3215, %v3223
    %v3243 = vsel %vm3236, %v3217, %v3225
    %v3244 = vsel %vm3236, %v3219, %v3227
    %v3245 = vsel %vm3236, %v3205, %v3213
    %v3246 = vsel %vm3236, %v3207, %v3215
    %v3247 = vsel %vm3236, %v3209, %v3217
    %v3248 = vsel %vm3236, %v3211, %v3219
    %v3249 = vsel %vm3236, %v3229, %v3205
    %v3250 = vsel %vm3236, %v3231, %v3207
    %v3251 = vsel %vm3236, %v3233, %v3209
    %v3252 = vsel %vm3236, %v3235, %v3211
    %s3253 = scalar_lea.vmem %s6, 66
    %v3254 = vld [vmem:[%s3253] ss:$8 sm:$0xf]
    %v3256 = vlaneseq
    %v3257 = vshrl.u32 %v3256, 7
    %v3258 = vsub.s32 0, %v3257
    %v3259 = vrot.slane %v3254, %v3258
    %v3260 = vlaneseq
    %v3261 = vshrl.u32 %v3260, 7
    %v3262 = vsub.s32 1, %v3261
    %v3263 = vrot.slane %v3254, %v3262
    %v3264 = vlaneseq
    %v3265 = vshrl.u32 %v3264, 7
    %v3266 = vsub.s32 2, %v3265
    %v3267 = vrot.slane %v3254, %v3266
    %v3268 = vlaneseq
    %v3269 = vshrl.u32 %v3268, 7
    %v3270 = vsub.s32 3, %v3269
    %v3271 = vrot.slane %v3254, %v3270
    %v3276 = vmul.f32 %v3245, %v3259
    %v3277 = vmul.f32 %v3241, %v3263
    %v3278 = vmul.f32 %v3237, %v3267
    %v3279 = vmul.f32 %v3249, %v3271
    %v3280 = vmul.f32 %v3246, %v3259
    %v3281 = vmul.f32 %v3242, %v3263
    %v3282 = vmul.f32 %v3238, %v3267
    %v3283 = vmul.f32 %v3250, %v3271
    %v3284 = vmul.f32 %v3247, %v3259
    %v3285 = vmul.f32 %v3243, %v3263
    %v3286 = vmul.f32 %v3239, %v3267
    %v3287 = vmul.f32 %v3251, %v3271
    %v3288 = vmul.f32 %v3248, %v3259
    %v3289 = vmul.f32 %v3244, %v3263
    %v3290 = vmul.f32 %v3240, %v3267
    %v3291 = vmul.f32 %v3252, %v3271
    %v3292 = vpack.c.bf16 %v3280, %v3276
    %v3293 = vpack.c.bf16 %v3281, %v3277
    %v3294 = vpack.c.bf16 %v3282, %v3278
    %v3295 = vpack.c.bf16 %v3283, %v3279
    %v3296 = vpack.c.bf16 %v3288, %v3284
    %v3297 = vpack.c.bf16 %v3289, %v3285
    %v3298 = vpack.c.bf16 %v3290, %v3286
    %v3299 = vpack.c.bf16 %v3291, %v3287
    %3300 = vst [vmem:[#allocation2 + $0x480] sm:$0xff] %v3292
    %3301 = vst [vmem:[#allocation2 + $0x488] sm:$0xff] %v3293
    %3302 = vst [vmem:[#allocation2 + $0x490] sm:$0xff] %v3294
    %3303 = vst [vmem:[#allocation2 + $0x498] sm:$0xff] %v3295
    %v3304 = vld [vmem:[#allocation2 + $0x4a0] sm:$0x1f]
    %v3305 = vsel %vm1375, %v3296, %v3304
    %3306 = vst [vmem:[#allocation2 + $0x4a0] sm:$0x1f] %v3305
    %v3307 = vld [vmem:[#allocation2 + $0x4a8] sm:$0x1f]
    %v3308 = vsel %vm1375, %v3297, %v3307
    %3309 = vst [vmem:[#allocation2 + $0x4a8] sm:$0x1f] %v3308
    %v3310 = vld [vmem:[#allocation2 + $0x4b0] sm:$0x1f]
    %v3311 = vsel %vm1375, %v3298, %v3310
    %3312 = vst [vmem:[#allocation2 + $0x4b0] sm:$0x1f] %v3311
    %v3313 = vld [vmem:[#allocation2 + $0x4b8] sm:$0x1f]
    %v3314 = vsel %vm1375, %v3299, %v3313
    %3315 = vst [vmem:[#allocation2 + $0x4b8] sm:$0x1f] %v3314
    %3316 = vrot.lane.b32.xlu0 %v1256, 110
    %v3317 = vpop.permute.xlu0 %3316
    %3318 = vrot.lane.b32.xlu0 %v1260, 110
    %v3319 = vpop.permute.xlu0 %3318
    %3320 = vrot.lane.b32.xlu0 %v1264, 110
    %v3321 = vpop.permute.xlu0 %3320
    %3322 = vrot.lane.b32.xlu0 %v1268, 110
    %v3323 = vpop.permute.xlu0 %3322
    %3324 = vrot.lane.b32.xlu0 %v1257, 110
    %v3325 = vpop.permute.xlu0 %3324
    %3326 = vrot.lane.b32.xlu0 %v1261, 110
    %v3327 = vpop.permute.xlu0 %3326
    %3328 = vrot.lane.b32.xlu0 %v1265, 110
    %v3329 = vpop.permute.xlu0 %3328
    %3330 = vrot.lane.b32.xlu0 %v1269, 110
    %v3331 = vpop.permute.xlu0 %3330
    %3332 = vrot.lane.b32.xlu0 %v1258, 110
    %v3333 = vpop.permute.xlu0 %3332
    %3334 = vrot.lane.b32.xlu0 %v1262, 110
    %v3335 = vpop.permute.xlu0 %3334
    %3336 = vrot.lane.b32.xlu0 %v1266, 110
    %v3337 = vpop.permute.xlu0 %3336
    %3338 = vrot.lane.b32.xlu0 %v1270, 110
    %v3339 = vpop.permute.xlu0 %3338
    %3340 = vrot.lane.b32.xlu0 %v1259, 110
    %v3341 = vpop.permute.xlu0 %3340
    %3342 = vrot.lane.b32.xlu0 %v1263, 110
    %v3343 = vpop.permute.xlu0 %3342
    %3344 = vrot.lane.b32.xlu0 %v1267, 110
    %v3345 = vpop.permute.xlu0 %3344
    %3346 = vrot.lane.b32.xlu0 %v1271, 110
    %v3347 = vpop.permute.xlu0 %3346
    %vm3348 = vcmp.lt.s32.totalorder %v1305, 110
    %v3349 = vsel %vm3348, %v3333, %v3341
    %v3350 = vsel %vm3348, %v3335, %v3343
    %v3351 = vsel %vm3348, %v3337, %v3345
    %v3352 = vsel %vm3348, %v3339, %v3347
    %v3353 = vsel %vm3348, %v3325, %v3333
    %v3354 = vsel %vm3348, %v3327, %v3335
    %v3355 = vsel %vm3348, %v3329, %v3337
    %v3356 = vsel %vm3348, %v3331, %v3339
    %v3357 = vsel %vm3348, %v3317, %v3325
    %v3358 = vsel %vm3348, %v3319, %v3327
    %v3359 = vsel %vm3348, %v3321, %v3329
    %v3360 = vsel %vm3348, %v3323, %v3331
    %v3361 = vsel %vm3348, %v3341, %v3317
    %v3362 = vsel %vm3348, %v3343, %v3319
    %v3363 = vsel %vm3348, %v3345, %v3321
    %v3364 = vsel %vm3348, %v3347, %v3323
    %s3365 = scalar_lea.vmem %s6, 67
    %v3366 = vld [vmem:[%s3365] ss:$8 sm:$0xf]
    %v3368 = vlaneseq
    %v3369 = vshrl.u32 %v3368, 7
    %v3370 = vsub.s32 0, %v3369
    %v3371 = vrot.slane %v3366, %v3370
    %v3372 = vlaneseq
    %v3373 = vshrl.u32 %v3372, 7
    %v3374 = vsub.s32 1, %v3373
    %v3375 = vrot.slane %v3366, %v3374
    %v3376 = vlaneseq
    %v3377 = vshrl.u32 %v3376, 7
    %v3378 = vsub.s32 2, %v3377
    %v3379 = vrot.slane %v3366, %v3378
    %v3380 = vlaneseq
    %v3381 = vshrl.u32 %v3380, 7
    %v3382 = vsub.s32 3, %v3381
    %v3383 = vrot.slane %v3366, %v3382
    %v3388 = vmul.f32 %v3357, %v3371
    %v3389 = vmul.f32 %v3353, %v3375
    %v3390 = vmul.f32 %v3349, %v3379
    %v3391 = vmul.f32 %v3361, %v3383
    %v3392 = vmul.f32 %v3358, %v3371
    %v3393 = vmul.f32 %v3354, %v3375
    %v3394 = vmul.f32 %v3350, %v3379
    %v3395 = vmul.f32 %v3362, %v3383
    %v3396 = vmul.f32 %v3359, %v3371
    %v3397 = vmul.f32 %v3355, %v3375
    %v3398 = vmul.f32 %v3351, %v3379
    %v3399 = vmul.f32 %v3363, %v3383
    %v3400 = vmul.f32 %v3360, %v3371
    %v3401 = vmul.f32 %v3356, %v3375
    %v3402 = vmul.f32 %v3352, %v3379
    %v3403 = vmul.f32 %v3364, %v3383
    %v3404 = vpack.c.bf16 %v3392, %v3388
    %v3405 = vpack.c.bf16 %v3393, %v3389
    %v3406 = vpack.c.bf16 %v3394, %v3390
    %v3407 = vpack.c.bf16 %v3395, %v3391
    %v3408 = vpack.c.bf16 %v3400, %v3396
    %v3409 = vpack.c.bf16 %v3401, %v3397
    %v3410 = vpack.c.bf16 %v3402, %v3398
    %v3411 = vpack.c.bf16 %v3403, %v3399
    %3412 = vst [vmem:[#allocation2 + $0x4c0] sm:$0xff] %v3404
    %3413 = vst [vmem:[#allocation2 + $0x4c8] sm:$0xff] %v3405
    %3414 = vst [vmem:[#allocation2 + $0x4d0] sm:$0xff] %v3406
    %3415 = vst [vmem:[#allocation2 + $0x4d8] sm:$0xff] %v3407
    %v3416 = vld [vmem:[#allocation2 + $0x4e0] sm:$0x1f]
    %v3417 = vsel %vm1375, %v3408, %v3416
    %3418 = vst [vmem:[#allocation2 + $0x4e0] sm:$0x1f] %v3417
    %v3419 = vld [vmem:[#allocation2 + $0x4e8] sm:$0x1f]
    %v3420 = vsel %vm1375, %v3409, %v3419
    %3421 = vst [vmem:[#allocation2 + $0x4e8] sm:$0x1f] %v3420
    %v3422 = vld [vmem:[#allocation2 + $0x4f0] sm:$0x1f]
    %v3423 = vsel %vm1375, %v3410, %v3422
    %3424 = vst [vmem:[#allocation2 + $0x4f0] sm:$0x1f] %v3423
    %v3425 = vld [vmem:[#allocation2 + $0x4f8] sm:$0x1f]
    %v3426 = vsel %vm1375, %v3411, %v3425
    %3427 = vst [vmem:[#allocation2 + $0x4f8] sm:$0x1f] %v3426
    %3428 = vrot.lane.b32.xlu0 %v1256, 98
    %v3429 = vpop.permute.xlu0 %3428
    %3430 = vrot.lane.b32.xlu0 %v1260, 98
    %v3431 = vpop.permute.xlu0 %3430
    %3432 = vrot.lane.b32.xlu0 %v1264, 98
    %v3433 = vpop.permute.xlu0 %3432
    %3434 = vrot.lane.b32.xlu0 %v1268, 98
    %v3435 = vpop.permute.xlu0 %3434
    %3436 = vrot.lane.b32.xlu0 %v1257, 98
    %v3437 = vpop.permute.xlu0 %3436
    %3438 = vrot.lane.b32.xlu0 %v1261, 98
    %v3439 = vpop.permute.xlu0 %3438
    %3440 = vrot.lane.b32.xlu0 %v1265, 98
    %v3441 = vpop.permute.xlu0 %3440
    %3442 = vrot.lane.b32.xlu0 %v1269, 98
    %v3443 = vpop.permute.xlu0 %3442
    %3444 = vrot.lane.b32.xlu0 %v1258, 98
    %v3445 = vpop.permute.xlu0 %3444
    %3446 = vrot.lane.b32.xlu0 %v1262, 98
    %v3447 = vpop.permute.xlu0 %3446
    %3448 = vrot.lane.b32.xlu0 %v1266, 98
    %v3449 = vpop.permute.xlu0 %3448
    %3450 = vrot.lane.b32.xlu0 %v1270, 98
    %v3451 = vpop.permute.xlu0 %3450
    %3452 = vrot.lane.b32.xlu0 %v1259, 98
    %v3453 = vpop.permute.xlu0 %3452
    %3454 = vrot.lane.b32.xlu0 %v1263, 98
    %v3455 = vpop.permute.xlu0 %3454
    %3456 = vrot.lane.b32.xlu0 %v1267, 98
    %v3457 = vpop.permute.xlu0 %3456
    %3458 = vrot.lane.b32.xlu0 %v1271, 98
    %v3459 = vpop.permute.xlu0 %3458
    %vm3460 = vcmp.lt.s32.totalorder %v1305, 98
    %v3461 = vsel %vm3460, %v3445, %v3453
    %v3462 = vsel %vm3460, %v3447, %v3455
    %v3463 = vsel %vm3460, %v3449, %v3457
    %v3464 = vsel %vm3460, %v3451, %v3459
    %v3465 = vsel %vm3460, %v3437, %v3445
    %v3466 = vsel %vm3460, %v3439, %v3447
    %v3467 = vsel %vm3460, %v3441, %v3449
    %v3468 = vsel %vm3460, %v3443, %v3451
    %v3469 = vsel %vm3460, %v3429, %v3437
    %v3470 = vsel %vm3460, %v3431, %v3439
    %v3471 = vsel %vm3460, %v3433, %v3441
    %v3472 = vsel %vm3460, %v3435, %v3443
    %v3473 = vsel %vm3460, %v3453, %v3429
    %v3474 = vsel %vm3460, %v3455, %v3431
    %v3475 = vsel %vm3460, %v3457, %v3433
    %v3476 = vsel %vm3460, %v3459, %v3435
    %s3477 = scalar_lea.vmem %s6, 68
    %v3478 = vld [vmem:[%s3477] ss:$8 sm:$0xf]
    %v3480 = vlaneseq
    %v3481 = vshrl.u32 %v3480, 7
    %v3482 = vsub.s32 0, %v3481
    %v3483 = vrot.slane %v3478, %v3482
    %v3484 = vlaneseq
    %v3485 = vshrl.u32 %v3484, 7
    %v3486 = vsub.s32 1, %v3485
    %v3487 = vrot.slane %v3478, %v3486
    %v3488 = vlaneseq
    %v3489 = vshrl.u32 %v3488, 7
    %v3490 = vsub.s32 2, %v3489
    %v3491 = vrot.slane %v3478, %v3490
    %v3492 = vlaneseq
    %v3493 = vshrl.u32 %v3492, 7
    %v3494 = vsub.s32 3, %v3493
    %v3495 = vrot.slane %v3478, %v3494
    %v3500 = vmul.f32 %v3469, %v3483
    %v3501 = vmul.f32 %v3465, %v3487
    %v3502 = vmul.f32 %v3461, %v3491
    %v3503 = vmul.f32 %v3473, %v3495
    %v3504 = vmul.f32 %v3470, %v3483
    %v3505 = vmul.f32 %v3466, %v3487
    %v3506 = vmul.f32 %v3462, %v3491
    %v3507 = vmul.f32 %v3474, %v3495
    %v3508 = vmul.f32 %v3471, %v3483
    %v3509 = vmul.f32 %v3467, %v3487
    %v3510 = vmul.f32 %v3463, %v3491
    %v3511 = vmul.f32 %v3475, %v3495
    %v3512 = vmul.f32 %v3472, %v3483
    %v3513 = vmul.f32 %v3468, %v3487
    %v3514 = vmul.f32 %v3464, %v3491
    %v3515 = vmul.f32 %v3476, %v3495
    %v3516 = vpack.c.bf16 %v3504, %v3500
    %v3517 = vpack.c.bf16 %v3505, %v3501
    %v3518 = vpack.c.bf16 %v3506, %v3502
    %v3519 = vpack.c.bf16 %v3507, %v3503
    %v3520 = vpack.c.bf16 %v3512, %v3508
    %v3521 = vpack.c.bf16 %v3513, %v3509
    %v3522 = vpack.c.bf16 %v3514, %v3510
    %v3523 = vpack.c.bf16 %v3515, %v3511
    %3524 = vst [vmem:[#allocation2 + $0x500] sm:$0xff] %v3516
    %3525 = vst [vmem:[#allocation2 + $0x508] sm:$0xff] %v3517
    %3526 = vst [vmem:[#allocation2 + $0x510] sm:$0xff] %v3518
    %3527 = vst [vmem:[#allocation2 + $0x518] sm:$0xff] %v3519
    %v3528 = vld [vmem:[#allocation2 + $0x520] sm:$0x1f]
    %v3529 = vsel %vm1375, %v3520, %v3528
    %3530 = vst [vmem:[#allocation2 + $0x520] sm:$0x1f] %v3529
    %v3531 = vld [vmem:[#allocation2 + $0x528] sm:$0x1f]
    %v3532 = vsel %vm1375, %v3521, %v3531
    %3533 = vst [vmem:[#allocation2 + $0x528] sm:$0x1f] %v3532
    %v3534 = vld [vmem:[#allocation2 + $0x530] sm:$0x1f]
    %v3535 = vsel %vm1375, %v3522, %v3534
    %3536 = vst [vmem:[#allocation2 + $0x530] sm:$0x1f] %v3535
    %v3537 = vld [vmem:[#allocation2 + $0x538] sm:$0x1f]
    %v3538 = vsel %vm1375, %v3523, %v3537
    %3539 = vst [vmem:[#allocation2 + $0x538] sm:$0x1f] %v3538
    %3540 = vrot.lane.b32.xlu0 %v1256, 97
    %v3541 = vpop.permute.xlu0 %3540
    %3542 = vrot.lane.b32.xlu0 %v1260, 97
    %v3543 = vpop.permute.xlu0 %3542
    %3544 = vrot.lane.b32.xlu0 %v1264, 97
    %v3545 = vpop.permute.xlu0 %3544
    %3546 = vrot.lane.b32.xlu0 %v1268, 97
    %v3547 = vpop.permute.xlu0 %3546
    %3548 = vrot.lane.b32.xlu0 %v1257, 97
    %v3549 = vpop.permute.xlu0 %3548
    %3550 = vrot.lane.b32.xlu0 %v1261, 97
    %v3551 = vpop.permute.xlu0 %3550
    %3552 = vrot.lane.b32.xlu0 %v1265, 97
    %v3553 = vpop.permute.xlu0 %3552
    %3554 = vrot.lane.b32.xlu0 %v1269, 97
    %v3555 = vpop.permute.xlu0 %3554
    %3556 = vrot.lane.b32.xlu0 %v1258, 97
    %v3557 = vpop.permute.xlu0 %3556
    %3558 = vrot.lane.b32.xlu0 %v1262, 97
    %v3559 = vpop.permute.xlu0 %3558
    %3560 = vrot.lane.b32.xlu0 %v1266, 97
    %v3561 = vpop.permute.xlu0 %3560
    %3562 = vrot.lane.b32.xlu0 %v1270, 97
    %v3563 = vpop.permute.xlu0 %3562
    %3564 = vrot.lane.b32.xlu0 %v1259, 97
    %v3565 = vpop.permute.xlu0 %3564
    %3566 = vrot.lane.b32.xlu0 %v1263, 97
    %v3567 = vpop.permute.xlu0 %3566
    %3568 = vrot.lane.b32.xlu0 %v1267, 97
    %v3569 = vpop.permute.xlu0 %3568
    %3570 = vrot.lane.b32.xlu0 %v1271, 97
    %v3571 = vpop.permute.xlu0 %3570
    %vm3572 = vcmp.lt.s32.totalorder %v1305, 97
    %v3573 = vsel %vm3572, %v3557, %v3565
    %v3574 = vsel %vm3572, %v3559, %v3567
    %v3575 = vsel %vm3572, %v3561, %v3569
    %v3576 = vsel %vm3572, %v3563, %v3571
    %v3577 = vsel %vm3572, %v3549, %v3557
    %v3578 = vsel %vm3572, %v3551, %v3559
    %v3579 = vsel %vm3572, %v3553, %v3561
    %v3580 = vsel %vm3572, %v3555, %v3563
    %v3581 = vsel %vm3572, %v3541, %v3549
    %v3582 = vsel %vm3572, %v3543, %v3551
    %v3583 = vsel %vm3572, %v3545, %v3553
    %v3584 = vsel %vm3572, %v3547, %v3555
    %v3585 = vsel %vm3572, %v3565, %v3541
    %v3586 = vsel %vm3572, %v3567, %v3543
    %v3587 = vsel %vm3572, %v3569, %v3545
    %v3588 = vsel %vm3572, %v3571, %v3547
    %s3589 = scalar_lea.vmem %s6, 69
    %v3590 = vld [vmem:[%s3589] ss:$8 sm:$0xf]
    %v3592 = vlaneseq
    %v3593 = vshrl.u32 %v3592, 7
    %v3594 = vsub.s32 0, %v3593
    %v3595 = vrot.slane %v3590, %v3594
    %v3596 = vlaneseq
    %v3597 = vshrl.u32 %v3596, 7
    %v3598 = vsub.s32 1, %v3597
    %v3599 = vrot.slane %v3590, %v3598
    %v3600 = vlaneseq
    %v3601 = vshrl.u32 %v3600, 7
    %v3602 = vsub.s32 2, %v3601
    %v3603 = vrot.slane %v3590, %v3602
    %v3604 = vlaneseq
    %v3605 = vshrl.u32 %v3604, 7
    %v3606 = vsub.s32 3, %v3605
    %v3607 = vrot.slane %v3590, %v3606
    %v3612 = vmul.f32 %v3581, %v3595
    %v3613 = vmul.f32 %v3577, %v3599
    %v3614 = vmul.f32 %v3573, %v3603
    %v3615 = vmul.f32 %v3585, %v3607
    %v3616 = vmul.f32 %v3582, %v3595
    %v3617 = vmul.f32 %v3578, %v3599
    %v3618 = vmul.f32 %v3574, %v3603
    %v3619 = vmul.f32 %v3586, %v3607
    %v3620 = vmul.f32 %v3583, %v3595
    %v3621 = vmul.f32 %v3579, %v3599
    %v3622 = vmul.f32 %v3575, %v3603
    %v3623 = vmul.f32 %v3587, %v3607
    %v3624 = vmul.f32 %v3584, %v3595
    %v3625 = vmul.f32 %v3580, %v3599
    %v3626 = vmul.f32 %v3576, %v3603
    %v3627 = vmul.f32 %v3588, %v3607
    %v3628 = vpack.c.bf16 %v3616, %v3612
    %v3629 = vpack.c.bf16 %v3617, %v3613
    %v3630 = vpack.c.bf16 %v3618, %v3614
    %v3631 = vpack.c.bf16 %v3619, %v3615
    %v3632 = vpack.c.bf16 %v3624, %v3620
    %v3633 = vpack.c.bf16 %v3625, %v3621
    %v3634 = vpack.c.bf16 %v3626, %v3622
    %v3635 = vpack.c.bf16 %v3627, %v3623
    %3636 = vst [vmem:[#allocation2 + $0x540] sm:$0xff] %v3628
    %3637 = vst [vmem:[#allocation2 + $0x548] sm:$0xff] %v3629
    %3638 = vst [vmem:[#allocation2 + $0x550] sm:$0xff] %v3630
    %3639 = vst [vmem:[#allocation2 + $0x558] sm:$0xff] %v3631
    %v3640 = vld [vmem:[#allocation2 + $0x560] sm:$0x1f]
    %v3641 = vsel %vm1375, %v3632, %v3640
    %3642 = vst [vmem:[#allocation2 + $0x560] sm:$0x1f] %v3641
    %v3643 = vld [vmem:[#allocation2 + $0x568] sm:$0x1f]
    %v3644 = vsel %vm1375, %v3633, %v3643
    %3645 = vst [vmem:[#allocation2 + $0x568] sm:$0x1f] %v3644
    %v3646 = vld [vmem:[#allocation2 + $0x570] sm:$0x1f]
    %v3647 = vsel %vm1375, %v3634, %v3646
    %3648 = vst [vmem:[#allocation2 + $0x570] sm:$0x1f] %v3647
    %v3649 = vld [vmem:[#allocation2 + $0x578] sm:$0x1f]
    %v3650 = vsel %vm1375, %v3635, %v3649
    %3651 = vst [vmem:[#allocation2 + $0x578] sm:$0x1f] %v3650
    %3652 = vrot.lane.b32.xlu0 %v1256, 96
    %v3653 = vpop.permute.xlu0 %3652
    %3654 = vrot.lane.b32.xlu0 %v1260, 96
    %v3655 = vpop.permute.xlu0 %3654
    %3656 = vrot.lane.b32.xlu0 %v1264, 96
    %v3657 = vpop.permute.xlu0 %3656
    %3658 = vrot.lane.b32.xlu0 %v1268, 96
    %v3659 = vpop.permute.xlu0 %3658
    %3660 = vrot.lane.b32.xlu0 %v1257, 96
    %v3661 = vpop.permute.xlu0 %3660
    %3662 = vrot.lane.b32.xlu0 %v1261, 96
    %v3663 = vpop.permute.xlu0 %3662
    %3664 = vrot.lane.b32.xlu0 %v1265, 96
    %v3665 = vpop.permute.xlu0 %3664
    %3666 = vrot.lane.b32.xlu0 %v1269, 96
    %v3667 = vpop.permute.xlu0 %3666
    %3668 = vrot.lane.b32.xlu0 %v1258, 96
    %v3669 = vpop.permute.xlu0 %3668
    %3670 = vrot.lane.b32.xlu0 %v1262, 96
    %v3671 = vpop.permute.xlu0 %3670
    %3672 = vrot.lane.b32.xlu0 %v1266, 96
    %v3673 = vpop.permute.xlu0 %3672
    %3674 = vrot.lane.b32.xlu0 %v1270, 96
    %v3675 = vpop.permute.xlu0 %3674
    %3676 = vrot.lane.b32.xlu0 %v1259, 96
    %v3677 = vpop.permute.xlu0 %3676
    %3678 = vrot.lane.b32.xlu0 %v1263, 96
    %v3679 = vpop.permute.xlu0 %3678
    %3680 = vrot.lane.b32.xlu0 %v1267, 96
    %v3681 = vpop.permute.xlu0 %3680
    %3682 = vrot.lane.b32.xlu0 %v1271, 96
    %v3683 = vpop.permute.xlu0 %3682
    %vm3684 = vcmp.lt.s32.totalorder %v1305, 96
    %v3685 = vsel %vm3684, %v3669, %v3677
    %v3686 = vsel %vm3684, %v3671, %v3679
    %v3687 = vsel %vm3684, %v3673, %v3681
    %v3688 = vsel %vm3684, %v3675, %v3683
    %v3689 = vsel %vm3684, %v3661, %v3669
    %v3690 = vsel %vm3684, %v3663, %v3671
    %v3691 = vsel %vm3684, %v3665, %v3673
    %v3692 = vsel %vm3684, %v3667, %v3675
    %v3693 = vsel %vm3684, %v3653, %v3661
    %v3694 = vsel %vm3684, %v3655, %v3663
    %v3695 = vsel %vm3684, %v3657, %v3665
    %v3696 = vsel %vm3684, %v3659, %v3667
    %v3697 = vsel %vm3684, %v3677, %v3653
    %v3698 = vsel %vm3684, %v3679, %v3655
    %v3699 = vsel %vm3684, %v3681, %v3657
    %v3700 = vsel %vm3684, %v3683, %v3659
    %s3701 = scalar_lea.vmem %s6, 70
    %v3702 = vld [vmem:[%s3701] ss:$8 sm:$0xf]
    %v3704 = vlaneseq
    %v3705 = vshrl.u32 %v3704, 7
    %v3706 = vsub.s32 0, %v3705
    %v3707 = vrot.slane %v3702, %v3706
    %v3708 = vlaneseq
    %v3709 = vshrl.u32 %v3708, 7
    %v3710 = vsub.s32 1, %v3709
    %v3711 = vrot.slane %v3702, %v3710
    %v3712 = vlaneseq
    %v3713 = vshrl.u32 %v3712, 7
    %v3714 = vsub.s32 2, %v3713
    %v3715 = vrot.slane %v3702, %v3714
    %v3716 = vlaneseq
    %v3717 = vshrl.u32 %v3716, 7
    %v3718 = vsub.s32 3, %v3717
    %v3719 = vrot.slane %v3702, %v3718
    %v3724 = vmul.f32 %v3693, %v3707
    %v3725 = vmul.f32 %v3689, %v3711
    %v3726 = vmul.f32 %v3685, %v3715
    %v3727 = vmul.f32 %v3697, %v3719
    %v3728 = vmul.f32 %v3694, %v3707
    %v3729 = vmul.f32 %v3690, %v3711
    %v3730 = vmul.f32 %v3686, %v3715
    %v3731 = vmul.f32 %v3698, %v3719
    %v3732 = vmul.f32 %v3695, %v3707
    %v3733 = vmul.f32 %v3691, %v3711
    %v3734 = vmul.f32 %v3687, %v3715
    %v3735 = vmul.f32 %v3699, %v3719
    %v3736 = vmul.f32 %v3696, %v3707
    %v3737 = vmul.f32 %v3692, %v3711
    %v3738 = vmul.f32 %v3688, %v3715
    %v3739 = vmul.f32 %v3700, %v3719
    %v3740 = vpack.c.bf16 %v3728, %v3724
    %v3741 = vpack.c.bf16 %v3729, %v3725
    %v3742 = vpack.c.bf16 %v3730, %v3726
    %v3743 = vpack.c.bf16 %v3731, %v3727
    %v3744 = vpack.c.bf16 %v3736, %v3732
    %v3745 = vpack.c.bf16 %v3737, %v3733
    %v3746 = vpack.c.bf16 %v3738, %v3734
    %v3747 = vpack.c.bf16 %v3739, %v3735
    %3748 = vst [vmem:[#allocation2 + $0x580] sm:$0xff] %v3740
    %3749 = vst [vmem:[#allocation2 + $0x588] sm:$0xff] %v3741
    %3750 = vst [vmem:[#allocation2 + $0x590] sm:$0xff] %v3742
    %3751 = vst [vmem:[#allocation2 + $0x598] sm:$0xff] %v3743
    %v3752 = vld [vmem:[#allocation2 + $0x5a0] sm:$0x1f]
    %v3753 = vsel %vm1375, %v3744, %v3752
    %3754 = vst [vmem:[#allocation2 + $0x5a0] sm:$0x1f] %v3753
    %v3755 = vld [vmem:[#allocation2 + $0x5a8] sm:$0x1f]
    %v3756 = vsel %vm1375, %v3745, %v3755
    %3757 = vst [vmem:[#allocation2 + $0x5a8] sm:$0x1f] %v3756
    %v3758 = vld [vmem:[#allocation2 + $0x5b0] sm:$0x1f]
    %v3759 = vsel %vm1375, %v3746, %v3758
    %3760 = vst [vmem:[#allocation2 + $0x5b0] sm:$0x1f] %v3759
    %v3761 = vld [vmem:[#allocation2 + $0x5b8] sm:$0x1f]
    %v3762 = vsel %vm1375, %v3747, %v3761
    %3763 = vst [vmem:[#allocation2 + $0x5b8] sm:$0x1f] %v3762
    %3764 = vrot.lane.b32.xlu0 %v1256, 95
    %v3765 = vpop.permute.xlu0 %3764
    %3766 = vrot.lane.b32.xlu0 %v1260, 95
    %v3767 = vpop.permute.xlu0 %3766
    %3768 = vrot.lane.b32.xlu0 %v1264, 95
    %v3769 = vpop.permute.xlu0 %3768
    %3770 = vrot.lane.b32.xlu0 %v1268, 95
    %v3771 = vpop.permute.xlu0 %3770
    %3772 = vrot.lane.b32.xlu0 %v1257, 95
    %v3773 = vpop.permute.xlu0 %3772
    %3774 = vrot.lane.b32.xlu0 %v1261, 95
    %v3775 = vpop.permute.xlu0 %3774
    %3776 = vrot.lane.b32.xlu0 %v1265, 95
    %v3777 = vpop.permute.xlu0 %3776
    %3778 = vrot.lane.b32.xlu0 %v1269, 95
    %v3779 = vpop.permute.xlu0 %3778
    %3780 = vrot.lane.b32.xlu0 %v1258, 95
    %v3781 = vpop.permute.xlu0 %3780
    %3782 = vrot.lane.b32.xlu0 %v1262, 95
    %v3783 = vpop.permute.xlu0 %3782
    %3784 = vrot.lane.b32.xlu0 %v1266, 95
    %v3785 = vpop.permute.xlu0 %3784
    %3786 = vrot.lane.b32.xlu0 %v1270, 95
    %v3787 = vpop.permute.xlu0 %3786
    %3788 = vrot.lane.b32.xlu0 %v1259, 95
    %v3789 = vpop.permute.xlu0 %3788
    %3790 = vrot.lane.b32.xlu0 %v1263, 95
    %v3791 = vpop.permute.xlu0 %3790
    %3792 = vrot.lane.b32.xlu0 %v1267, 95
    %v3793 = vpop.permute.xlu0 %3792
    %3794 = vrot.lane.b32.xlu0 %v1271, 95
    %v3795 = vpop.permute.xlu0 %3794
    %vm3796 = vcmp.lt.s32.totalorder %v1305, 95
    %v3797 = vsel %vm3796, %v3781, %v3789
    %v3798 = vsel %vm3796, %v3783, %v3791
    %v3799 = vsel %vm3796, %v3785, %v3793
    %v3800 = vsel %vm3796, %v3787, %v3795
    %v3801 = vsel %vm3796, %v3773, %v3781
    %v3802 = vsel %vm3796, %v3775, %v3783
    %v3803 = vsel %vm3796, %v3777, %v3785
    %v3804 = vsel %vm3796, %v3779, %v3787
    %v3805 = vsel %vm3796, %v3765, %v3773
    %v3806 = vsel %vm3796, %v3767, %v3775
    %v3807 = vsel %vm3796, %v3769, %v3777
    %v3808 = vsel %vm3796, %v3771, %v3779
    %v3809 = vsel %vm3796, %v3789, %v3765
    %v3810 = vsel %vm3796, %v3791, %v3767
    %v3811 = vsel %vm3796, %v3793, %v3769
    %v3812 = vsel %vm3796, %v3795, %v3771
    %s3813 = scalar_lea.vmem %s6, 71
    %v3814 = vld [vmem:[%s3813] ss:$8 sm:$0xf]
    %v3816 = vlaneseq
    %v3817 = vshrl.u32 %v3816, 7
    %v3818 = vsub.s32 0, %v3817
    %v3819 = vrot.slane %v3814, %v3818
    %v3820 = vlaneseq
    %v3821 = vshrl.u32 %v3820, 7
    %v3822 = vsub.s32 1, %v3821
    %v3823 = vrot.slane %v3814, %v3822
    %v3824 = vlaneseq
    %v3825 = vshrl.u32 %v3824, 7
    %v3826 = vsub.s32 2, %v3825
    %v3827 = vrot.slane %v3814, %v3826
    %v3828 = vlaneseq
    %v3829 = vshrl.u32 %v3828, 7
    %v3830 = vsub.s32 3, %v3829
    %v3831 = vrot.slane %v3814, %v3830
    %v3836 = vmul.f32 %v3805, %v3819
    %v3837 = vmul.f32 %v3801, %v3823
    %v3838 = vmul.f32 %v3797, %v3827
    %v3839 = vmul.f32 %v3809, %v3831
    %v3840 = vmul.f32 %v3806, %v3819
    %v3841 = vmul.f32 %v3802, %v3823
    %v3842 = vmul.f32 %v3798, %v3827
    %v3843 = vmul.f32 %v3810, %v3831
    %v3844 = vmul.f32 %v3807, %v3819
    %v3845 = vmul.f32 %v3803, %v3823
    %v3846 = vmul.f32 %v3799, %v3827
    %v3847 = vmul.f32 %v3811, %v3831
    %v3848 = vmul.f32 %v3808, %v3819
    %v3849 = vmul.f32 %v3804, %v3823
    %v3850 = vmul.f32 %v3800, %v3827
    %v3851 = vmul.f32 %v3812, %v3831
    %v3852 = vpack.c.bf16 %v3840, %v3836
    %v3853 = vpack.c.bf16 %v3841, %v3837
    %v3854 = vpack.c.bf16 %v3842, %v3838
    %v3855 = vpack.c.bf16 %v3843, %v3839
    %v3856 = vpack.c.bf16 %v3848, %v3844
    %v3857 = vpack.c.bf16 %v3849, %v3845
    %v3858 = vpack.c.bf16 %v3850, %v3846
    %v3859 = vpack.c.bf16 %v3851, %v3847
    %3860 = vst [vmem:[#allocation2 + $0x5c0] sm:$0xff] %v3852
    %3861 = vst [vmem:[#allocation2 + $0x5c8] sm:$0xff] %v3853
    %3862 = vst [vmem:[#allocation2 + $0x5d0] sm:$0xff] %v3854
    %3863 = vst [vmem:[#allocation2 + $0x5d8] sm:$0xff] %v3855
    %v3864 = vld [vmem:[#allocation2 + $0x5e0] sm:$0x1f]
    %v3865 = vsel %vm1375, %v3856, %v3864
    %3866 = vst [vmem:[#allocation2 + $0x5e0] sm:$0x1f] %v3865
    %v3867 = vld [vmem:[#allocation2 + $0x5e8] sm:$0x1f]
    %v3868 = vsel %vm1375, %v3857, %v3867
    %3869 = vst [vmem:[#allocation2 + $0x5e8] sm:$0x1f] %v3868
    %v3870 = vld [vmem:[#allocation2 + $0x5f0] sm:$0x1f]
    %v3871 = vsel %vm1375, %v3858, %v3870
    %3872 = vst [vmem:[#allocation2 + $0x5f0] sm:$0x1f] %v3871
    %v3873 = vld [vmem:[#allocation2 + $0x5f8] sm:$0x1f]
    %v3874 = vsel %vm1375, %v3859, %v3873
    %3875 = vst [vmem:[#allocation2 + $0x5f8] sm:$0x1f] %v3874
    %3876 = vrot.lane.b32.xlu0 %v1256, 94
    %v3877 = vpop.permute.xlu0 %3876
    %3878 = vrot.lane.b32.xlu0 %v1260, 94
    %v3879 = vpop.permute.xlu0 %3878
    %3880 = vrot.lane.b32.xlu0 %v1264, 94
    %v3881 = vpop.permute.xlu0 %3880
    %3882 = vrot.lane.b32.xlu0 %v1268, 94
    %v3883 = vpop.permute.xlu0 %3882
    %3884 = vrot.lane.b32.xlu0 %v1257, 94
    %v3885 = vpop.permute.xlu0 %3884
    %3886 = vrot.lane.b32.xlu0 %v1261, 94
    %v3887 = vpop.permute.xlu0 %3886
    %3888 = vrot.lane.b32.xlu0 %v1265, 94
    %v3889 = vpop.permute.xlu0 %3888
    %3890 = vrot.lane.b32.xlu0 %v1269, 94
    %v3891 = vpop.permute.xlu0 %3890
    %3892 = vrot.lane.b32.xlu0 %v1258, 94
    %v3893 = vpop.permute.xlu0 %3892
    %3894 = vrot.lane.b32.xlu0 %v1262, 94
    %v3895 = vpop.permute.xlu0 %3894
    %3896 = vrot.lane.b32.xlu0 %v1266, 94
    %v3897 = vpop.permute.xlu0 %3896
    %3898 = vrot.lane.b32.xlu0 %v1270, 94
    %v3899 = vpop.permute.xlu0 %3898
    %3900 = vrot.lane.b32.xlu0 %v1259, 94
    %v3901 = vpop.permute.xlu0 %3900
    %3902 = vrot.lane.b32.xlu0 %v1263, 94
    %v3903 = vpop.permute.xlu0 %3902
    %3904 = vrot.lane.b32.xlu0 %v1267, 94
    %v3905 = vpop.permute.xlu0 %3904
    %3906 = vrot.lane.b32.xlu0 %v1271, 94
    %v3907 = vpop.permute.xlu0 %3906
    %vm3908 = vcmp.lt.s32.totalorder %v1305, 94
    %v3909 = vsel %vm3908, %v3893, %v3901
    %v3910 = vsel %vm3908, %v3895, %v3903
    %v3911 = vsel %vm3908, %v3897, %v3905
    %v3912 = vsel %vm3908, %v3899, %v3907
    %v3913 = vsel %vm3908, %v3885, %v3893
    %v3914 = vsel %vm3908, %v3887, %v3895
    %v3915 = vsel %vm3908, %v3889, %v3897
    %v3916 = vsel %vm3908, %v3891, %v3899
    %v3917 = vsel %vm3908, %v3877, %v3885
    %v3918 = vsel %vm3908, %v3879, %v3887
    %v3919 = vsel %vm3908, %v3881, %v3889
    %v3920 = vsel %vm3908, %v3883, %v3891
    %v3921 = vsel %vm3908, %v3901, %v3877
    %v3922 = vsel %vm3908, %v3903, %v3879
    %v3923 = vsel %vm3908, %v3905, %v3881
    %v3924 = vsel %vm3908, %v3907, %v3883
    %s3925 = scalar_lea.vmem %s6, 96
    %v3926 = vld [vmem:[%s3925] ss:$8 sm:$0xf]
    %v3928 = vlaneseq
    %v3929 = vshrl.u32 %v3928, 7
    %v3930 = vsub.s32 0, %v3929
    %v3931 = vrot.slane %v3926, %v3930
    %v3932 = vlaneseq
    %v3933 = vshrl.u32 %v3932, 7
    %v3934 = vsub.s32 1, %v3933
    %v3935 = vrot.slane %v3926, %v3934
    %v3936 = vlaneseq
    %v3937 = vshrl.u32 %v3936, 7
    %v3938 = vsub.s32 2, %v3937
    %v3939 = vrot.slane %v3926, %v3938
    %v3940 = vlaneseq
    %v3941 = vshrl.u32 %v3940, 7
    %v3942 = vsub.s32 3, %v3941
    %v3943 = vrot.slane %v3926, %v3942
    %v3948 = vmul.f32 %v3917, %v3931
    %v3949 = vmul.f32 %v3913, %v3935
    %v3950 = vmul.f32 %v3909, %v3939
    %v3951 = vmul.f32 %v3921, %v3943
    %v3952 = vmul.f32 %v3918, %v3931
    %v3953 = vmul.f32 %v3914, %v3935
    %v3954 = vmul.f32 %v3910, %v3939
    %v3955 = vmul.f32 %v3922, %v3943
    %v3956 = vmul.f32 %v3919, %v3931
    %v3957 = vmul.f32 %v3915, %v3935
    %v3958 = vmul.f32 %v3911, %v3939
    %v3959 = vmul.f32 %v3923, %v3943
    %v3960 = vmul.f32 %v3920, %v3931
    %v3961 = vmul.f32 %v3916, %v3935
    %v3962 = vmul.f32 %v3912, %v3939
    %v3963 = vmul.f32 %v3924, %v3943
    %v3964 = vpack.c.bf16 %v3952, %v3948
    %v3965 = vpack.c.bf16 %v3953, %v3949
    %v3966 = vpack.c.bf16 %v3954, %v3950
    %v3967 = vpack.c.bf16 %v3955, %v3951
    %v3968 = vpack.c.bf16 %v3960, %v3956
    %v3969 = vpack.c.bf16 %v3961, %v3957
    %v3970 = vpack.c.bf16 %v3962, %v3958
    %v3971 = vpack.c.bf16 %v3963, %v3959
    %3972 = vst [vmem:[#allocation2 + $0x600] sm:$0xff] %v3964
    %3973 = vst [vmem:[#allocation2 + $0x608] sm:$0xff] %v3965
    %3974 = vst [vmem:[#allocation2 + $0x610] sm:$0xff] %v3966
    %3975 = vst [vmem:[#allocation2 + $0x618] sm:$0xff] %v3967
    %v3976 = vld [vmem:[#allocation2 + $0x620] sm:$0x1f]
    %v3977 = vsel %vm1375, %v3968, %v3976
    %3978 = vst [vmem:[#allocation2 + $0x620] sm:$0x1f] %v3977
    %v3979 = vld [vmem:[#allocation2 + $0x628] sm:$0x1f]
    %v3980 = vsel %vm1375, %v3969, %v3979
    %3981 = vst [vmem:[#allocation2 + $0x628] sm:$0x1f] %v3980
    %v3982 = vld [vmem:[#allocation2 + $0x630] sm:$0x1f]
    %v3983 = vsel %vm1375, %v3970, %v3982
    %3984 = vst [vmem:[#allocation2 + $0x630] sm:$0x1f] %v3983
    %v3985 = vld [vmem:[#allocation2 + $0x638] sm:$0x1f]
    %v3986 = vsel %vm1375, %v3971, %v3985
    %3987 = vst [vmem:[#allocation2 + $0x638] sm:$0x1f] %v3986
    %v3988 = vld [vmem:[%s4] sm:$0xff]
    %v3989 = vld [vmem:[%s4 + $0x8] sm:$0xff]
    %v3990 = vld [vmem:[%s4 + $0x10] sm:$0xff]
    %v3991 = vld [vmem:[%s4 + $0x18] sm:$0xf]
    %v3992 = vld [vmem:[%s4 + $0x1c] sm:$0xff]
    %v3993 = vld [vmem:[%s4 + $0x24] sm:$0xff]
    %v3994 = vld [vmem:[%s4 + $0x2c] sm:$0xff]
    %v3995 = vld [vmem:[%s4 + $0x34] sm:$0xf]
    %v3996 = vld [vmem:[%s4 + $0x38] sm:$0xff]
    %v3997 = vld [vmem:[%s4 + $0x40] sm:$0xff]
    %v3998 = vld [vmem:[%s4 + $0x48] sm:$0xff]
    %v3999 = vld [vmem:[%s4 + $0x50] sm:$0xf]
    %v4000 = vld [vmem:[%s4 + $0x54] sm:$0x11]
    %v4001 = vld [vmem:[%s4 + $0x5c] sm:$0x11]
    %v4002 = vld [vmem:[%s4 + $0x64] sm:$0x11]
    %v4003 = vld [vmem:[%s4 + $0x6c] sm:$0x1]
    %v4004 = vld [vmem:[#allocation2] sm:$0xff]
    %v4005 = vld [vmem:[#allocation2 + $0x8] sm:$0xff]
    %v4006 = vld [vmem:[#allocation2 + $0x10] sm:$0xff]
    %v4007 = vld [vmem:[#allocation2 + $0x18] sm:$0xff]
    %v4008 = vld [vmem:[#allocation2 + $0x20] sm:$0xff]
    %v4009 = vld [vmem:[#allocation2 + $0x28] sm:$0xff]
    %v4010 = vld [vmem:[#allocation2 + $0x30] sm:$0xff]
    %v4011 = vld [vmem:[#allocation2 + $0x38] sm:$0xff]
    %v4012 = vld [vmem:[#allocation2 + $0x40] sm:$0xff]
    %v4013 = vld [vmem:[#allocation2 + $0x48] sm:$0xff]
    %v4014 = vld [vmem:[#allocation2 + $0x50] sm:$0xff]
    %v4015 = vld [vmem:[#allocation2 + $0x58] sm:$0xff]
    %v4016 = vld [vmem:[#allocation2 + $0x60] sm:$0xff]
    %v4017 = vld [vmem:[#allocation2 + $0x68] sm:$0xff]
    %v4018 = vld [vmem:[#allocation2 + $0x70] sm:$0xff]
    %v4019 = vld [vmem:[#allocation2 + $0x78] sm:$0xff]
    %v4020 = vld [vmem:[#allocation2 + $0x80] sm:$0xff]
    %v4021 = vld [vmem:[#allocation2 + $0x88] sm:$0xff]
    %v4022 = vld [vmem:[#allocation2 + $0x90] sm:$0xff]
    %v4023 = vld [vmem:[#allocation2 + $0x98] sm:$0xff]
    %v4024 = vld [vmem:[#allocation2 + $0xa0] sm:$0xff]
    %v4025 = vld [vmem:[#allocation2 + $0xa8] sm:$0xff]
    %v4026 = vld [vmem:[#allocation2 + $0xb0] sm:$0xff]
    %v4027 = vld [vmem:[#allocation2 + $0xb8] sm:$0xff]
    %v4028 = vld [vmem:[#allocation2 + $0xc0] sm:$0xff]
    %v4029 = vld [vmem:[#allocation2 + $0xc8] sm:$0xff]
    %v4030 = vld [vmem:[#allocation2 + $0xd0] sm:$0xff]
    %v4031 = vld [vmem:[#allocation2 + $0xd8] sm:$0xff]
    %v4032 = vld [vmem:[#allocation2 + $0xe0] sm:$0xff]
    %v4033 = vld [vmem:[#allocation2 + $0xe8] sm:$0xff]
    %v4034 = vld [vmem:[#allocation2 + $0xf0] sm:$0xff]
    %v4035 = vld [vmem:[#allocation2 + $0xf8] sm:$0xff]
    %v4036 = vld [vmem:[#allocation2 + $0x100] sm:$0xff]
    %v4037 = vld [vmem:[#allocation2 + $0x108] sm:$0xff]
    %v4038 = vld [vmem:[#allocation2 + $0x110] sm:$0xff]
    %v4039 = vld [vmem:[#allocation2 + $0x118] sm:$0xff]
    %v4040 = vld [vmem:[#allocation2 + $0x120] sm:$0xff]
    %v4041 = vld [vmem:[#allocation2 + $0x128] sm:$0xff]
    %v4042 = vld [vmem:[#allocation2 + $0x130] sm:$0xff]
    %v4043 = vld [vmem:[#allocation2 + $0x138] sm:$0xff]
    %v4044 = vld [vmem:[#allocation2 + $0x140] sm:$0xff]
    %v4045 = vld [vmem:[#allocation2 + $0x148] sm:$0xff]
    %v4046 = vld [vmem:[#allocation2 + $0x150] sm:$0xff]
    %v4047 = vld [vmem:[#allocation2 + $0x158] sm:$0xff]
    %v4048 = vld [vmem:[#allocation2 + $0x160] sm:$0xff]
    %v4049 = vld [vmem:[#allocation2 + $0x168] sm:$0xff]
    %v4050 = vld [vmem:[#allocation2 + $0x170] sm:$0xff]
    %v4051 = vld [vmem:[#allocation2 + $0x178] sm:$0xff]
    %v4052 = vld [vmem:[#allocation2 + $0x180] sm:$0xff]
    %v4053 = vld [vmem:[#allocation2 + $0x188] sm:$0xff]
    %v4054 = vld [vmem:[#allocation2 + $0x190] sm:$0xff]
    %v4055 = vld [vmem:[#allocation2 + $0x198] sm:$0xff]
    %v4056 = vld [vmem:[#allocation2 + $0x1a0] sm:$0xff]
    %v4057 = vld [vmem:[#allocation2 + $0x1a8] sm:$0xff]
    %v4058 = vld [vmem:[#allocation2 + $0x1b0] sm:$0xff]
    %v4059 = vld [vmem:[#allocation2 + $0x1b8] sm:$0xff]
    %v4060 = vld [vmem:[#allocation2 + $0x1c0] sm:$0xff]
    %v4061 = vld [vmem:[#allocation2 + $0x1c8] sm:$0xff]
    %v4062 = vld [vmem:[#allocation2 + $0x1d0] sm:$0xff]
    %v4063 = vld [vmem:[#allocation2 + $0x1d8] sm:$0xff]
    %v4064 = vld [vmem:[#allocation2 + $0x1e0] sm:$0xff]
    %v4065 = vld [vmem:[#allocation2 + $0x1e8] sm:$0xff]
    %v4066 = vld [vmem:[#allocation2 + $0x1f0] sm:$0xff]
    %v4067 = vld [vmem:[#allocation2 + $0x1f8] sm:$0xff]
    %v4068 = vld [vmem:[#allocation2 + $0x200] sm:$0xff]
    %v4069 = vld [vmem:[#allocation2 + $0x208] sm:$0xff]
    %v4070 = vld [vmem:[#allocation2 + $0x210] sm:$0xff]
    %v4071 = vld [vmem:[#allocation2 + $0x218] sm:$0xff]
    %v4072 = vld [vmem:[#allocation2 + $0x220] sm:$0xff]
    %v4073 = vld [vmem:[#allocation2 + $0x228] sm:$0xff]
    %v4074 = vld [vmem:[#allocation2 + $0x230] sm:$0xff]
    %v4075 = vld [vmem:[#allocation2 + $0x238] sm:$0xff]
    %v4076 = vld [vmem:[#allocation2 + $0x240] sm:$0xff]
    %v4077 = vld [vmem:[#allocation2 + $0x248] sm:$0xff]
    %v4078 = vld [vmem:[#allocation2 + $0x250] sm:$0xff]
    %v4079 = vld [vmem:[#allocation2 + $0x258] sm:$0xff]
    %v4080 = vld [vmem:[#allocation2 + $0x260] sm:$0xff]
    %v4081 = vld [vmem:[#allocation2 + $0x268] sm:$0xff]
    %v4082 = vld [vmem:[#allocation2 + $0x270] sm:$0xff]
    %v4083 = vld [vmem:[#allocation2 + $0x278] sm:$0xff]
    %v4084 = vld [vmem:[#allocation2 + $0x280] sm:$0xff]
    %v4085 = vld [vmem:[#allocation2 + $0x288] sm:$0xff]
    %v4086 = vld [vmem:[#allocation2 + $0x290] sm:$0xff]
    %v4087 = vld [vmem:[#allocation2 + $0x298] sm:$0xff]
    %v4088 = vld [vmem:[#allocation2 + $0x2a0] sm:$0xff]
    %v4089 = vld [vmem:[#allocation2 + $0x2a8] sm:$0xff]
    %v4090 = vld [vmem:[#allocation2 + $0x2b0] sm:$0xff]
    %v4091 = vld [vmem:[#allocation2 + $0x2b8] sm:$0xff]
    %v4092 = vld [vmem:[#allocation2 + $0x2c0] sm:$0xff]
    %v4093 = vld [vmem:[#allocation2 + $0x2c8] sm:$0xff]
    %v4094 = vld [vmem:[#allocation2 + $0x2d0] sm:$0xff]
    %v4095 = vld [vmem:[#allocation2 + $0x2d8] sm:$0xff]
    %v4096 = vld [vmem:[#allocation2 + $0x2e0] sm:$0xff]
    %v4097 = vld [vmem:[#allocation2 + $0x2e8] sm:$0xff]
    %v4098 = vld [vmem:[#allocation2 + $0x2f0] sm:$0xff]
    %v4099 = vld [vmem:[#allocation2 + $0x2f8] sm:$0xff]
    %v4100 = vld [vmem:[#allocation2 + $0x300] sm:$0xff]
    %v4101 = vld [vmem:[#allocation2 + $0x308] sm:$0xff]
    %v4102 = vld [vmem:[#allocation2 + $0x310] sm:$0xff]
    %v4103 = vld [vmem:[#allocation2 + $0x318] sm:$0xff]
    %v4104 = vld [vmem:[#allocation2 + $0x320] sm:$0xff]
    %v4105 = vld [vmem:[#allocation2 + $0x328] sm:$0xff]
    %v4106 = vld [vmem:[#allocation2 + $0x330] sm:$0xff]
    %v4107 = vld [vmem:[#allocation2 + $0x338] sm:$0xff]
    %v4108 = vld [vmem:[#allocation2 + $0x340] sm:$0xff]
    %v4109 = vld [vmem:[#allocation2 + $0x348] sm:$0xff]
    %v4110 = vld [vmem:[#allocation2 + $0x350] sm:$0xff]
    %v4111 = vld [vmem:[#allocation2 + $0x358] sm:$0xff]
    %v4112 = vld [vmem:[#allocation2 + $0x360] sm:$0xff]
    %v4113 = vld [vmem:[#allocation2 + $0x368] sm:$0xff]
    %v4114 = vld [vmem:[#allocation2 + $0x370] sm:$0xff]
    %v4115 = vld [vmem:[#allocation2 + $0x378] sm:$0xff]
    %v4116 = vld [vmem:[#allocation2 + $0x380] sm:$0xff]
    %v4117 = vld [vmem:[#allocation2 + $0x388] sm:$0xff]
    %v4118 = vld [vmem:[#allocation2 + $0x390] sm:$0xff]
    %v4119 = vld [vmem:[#allocation2 + $0x398] sm:$0xff]
    %v4120 = vld [vmem:[#allocation2 + $0x3a0] sm:$0xff]
    %v4121 = vld [vmem:[#allocation2 + $0x3a8] sm:$0xff]
    %v4122 = vld [vmem:[#allocation2 + $0x3b0] sm:$0xff]
    %v4123 = vld [vmem:[#allocation2 + $0x3b8] sm:$0xff]
    %v4124 = vld [vmem:[#allocation2 + $0x3c0] sm:$0xff]
    %v4125 = vld [vmem:[#allocation2 + $0x3c8] sm:$0xff]
    %v4126 = vld [vmem:[#allocation2 + $0x3d0] sm:$0xff]
    %v4127 = vld [vmem:[#allocation2 + $0x3d8] sm:$0xff]
    %v4128 = vld [vmem:[#allocation2 + $0x3e0] sm:$0xff]
    %v4129 = vld [vmem:[#allocation2 + $0x3e8] sm:$0xff]
    %v4130 = vld [vmem:[#allocation2 + $0x3f0] sm:$0xff]
    %v4131 = vld [vmem:[#allocation2 + $0x3f8] sm:$0xff]
    %v4132 = vld [vmem:[#allocation2 + $0x400] sm:$0xff]
    %v4133 = vld [vmem:[#allocation2 + $0x408] sm:$0xff]
    %v4134 = vld [vmem:[#allocation2 + $0x410] sm:$0xff]
    %v4135 = vld [vmem:[#allocation2 + $0x418] sm:$0xff]
    %v4136 = vld [vmem:[#allocation2 + $0x420] sm:$0xff]
    %v4137 = vld [vmem:[#allocation2 + $0x428] sm:$0xff]
    %v4138 = vld [vmem:[#allocation2 + $0x430] sm:$0xff]
    %v4139 = vld [vmem:[#allocation2 + $0x438] sm:$0xff]
    %v4140 = vld [vmem:[#allocation2 + $0x440] sm:$0xff]
    %v4141 = vld [vmem:[#allocation2 + $0x448] sm:$0xff]
    %v4142 = vld [vmem:[#allocation2 + $0x450] sm:$0xff]
    %v4143 = vld [vmem:[#allocation2 + $0x458] sm:$0xff]
    %v4144 = vld [vmem:[#allocation2 + $0x460] sm:$0xff]
    %v4145 = vld [vmem:[#allocation2 + $0x468] sm:$0xff]
    %v4146 = vld [vmem:[#allocation2 + $0x470] sm:$0xff]
    %v4147 = vld [vmem:[#allocation2 + $0x478] sm:$0xff]
    %v4148 = vld [vmem:[#allocation2 + $0x480] sm:$0xff]
    %v4149 = vld [vmem:[#allocation2 + $0x488] sm:$0xff]
    %v4150 = vld [vmem:[#allocation2 + $0x490] sm:$0xff]
    %v4151 = vld [vmem:[#allocation2 + $0x498] sm:$0xff]
    %v4152 = vld [vmem:[#allocation2 + $0x4a0] sm:$0xff]
    %v4153 = vld [vmem:[#allocation2 + $0x4a8] sm:$0xff]
    %v4154 = vld [vmem:[#allocation2 + $0x4b0] sm:$0xff]
    %v4155 = vld [vmem:[#allocation2 + $0x4b8] sm:$0xff]
    %v4156 = vld [vmem:[#allocation2 + $0x4c0] sm:$0xff]
    %v4157 = vld [vmem:[#allocation2 + $0x4c8] sm:$0xff]
    %v4158 = vld [vmem:[#allocation2 + $0x4d0] sm:$0xff]
    %v4159 = vld [vmem:[#allocation2 + $0x4d8] sm:$0xff]
    %v4160 = vld [vmem:[#allocation2 + $0x4e0] sm:$0xff]
    %v4161 = vld [vmem:[#allocation2 + $0x4e8] sm:$0xff]
    %v4162 = vld [vmem:[#allocation2 + $0x4f0] sm:$0xff]
    %v4163 = vld [vmem:[#allocation2 + $0x4f8] sm:$0xff]
    %v4164 = vld [vmem:[#allocation2 + $0x500] sm:$0xff]
    %v4165 = vld [vmem:[#allocation2 + $0x508] sm:$0xff]
    %v4166 = vld [vmem:[#allocation2 + $0x510] sm:$0xff]
    %v4167 = vld [vmem:[#allocation2 + $0x518] sm:$0xff]
    %v4168 = vld [vmem:[#allocation2 + $0x520] sm:$0xff]
    %v4169 = vld [vmem:[#allocation2 + $0x528] sm:$0xff]
    %v4170 = vld [vmem:[#allocation2 + $0x530] sm:$0xff]
    %v4171 = vld [vmem:[#allocation2 + $0x538] sm:$0xff]
    %v4172 = vld [vmem:[#allocation2 + $0x540] sm:$0xff]
    %v4173 = vld [vmem:[#allocation2 + $0x548] sm:$0xff]
    %v4174 = vld [vmem:[#allocation2 + $0x550] sm:$0xff]
    %v4175 = vld [vmem:[#allocation2 + $0x558] sm:$0xff]
    %v4176 = vld [vmem:[#allocation2 + $0x560] sm:$0xff]
    %v4177 = vld [vmem:[#allocation2 + $0x568] sm:$0xff]
    %v4178 = vld [vmem:[#allocation2 + $0x570] sm:$0xff]
    %v4179 = vld [vmem:[#allocation2 + $0x578] sm:$0xff]
    %v4180 = vld [vmem:[#allocation2 + $0x580] sm:$0xff]
    %v4181 = vld [vmem:[#allocation2 + $0x588] sm:$0xff]
    %v4182 = vld [vmem:[#allocation2 + $0x590] sm:$0xff]
    %v4183 = vld [vmem:[#allocation2 + $0x598] sm:$0xff]
    %v4184 = vld [vmem:[#allocation2 + $0x5a0] sm:$0xff]
    %v4185 = vld [vmem:[#allocation2 + $0x5a8] sm:$0xff]
    %v4186 = vld [vmem:[#allocation2 + $0x5b0] sm:$0xff]
    %v4187 = vld [vmem:[#allocation2 + $0x5b8] sm:$0xff]
    %v4188 = vld [vmem:[#allocation2 + $0x5c0] sm:$0xff]
    %v4189 = vld [vmem:[#allocation2 + $0x5c8] sm:$0xff]
    %v4190 = vld [vmem:[#allocation2 + $0x5d0] sm:$0xff]
    %v4191 = vld [vmem:[#allocation2 + $0x5d8] sm:$0xff]
    %v4192 = vld [vmem:[#allocation2 + $0x5e0] sm:$0xff]
    %v4193 = vld [vmem:[#allocation2 + $0x5e8] sm:$0xff]
    %v4194 = vld [vmem:[#allocation2 + $0x5f0] sm:$0xff]
    %v4195 = vld [vmem:[#allocation2 + $0x5f8] sm:$0xff]
    %v4196 = vld [vmem:[#allocation2 + $0x600] sm:$0xff]
    %v4197 = vld [vmem:[#allocation2 + $0x608] sm:$0xff]
    %v4198 = vld [vmem:[#allocation2 + $0x610] sm:$0xff]
    %v4199 = vld [vmem:[#allocation2 + $0x618] sm:$0xff]
    %v4200 = vld [vmem:[#allocation2 + $0x620] sm:$0xff]
    %v4201 = vld [vmem:[#allocation2 + $0x628] sm:$0xff]
    %v4202 = vld [vmem:[#allocation2 + $0x630] sm:$0xff]
    %v4203 = vld [vmem:[#allocation2 + $0x638] sm:$0xff]
    %v4220 = vunpack.c.l.b16 %v3988
    %v4221 = vunpack.c.h.b16 %v3988
    %v4222 = vunpack.c.l.b16 %v3989
    %v4223 = vunpack.c.h.b16 %v3989
    %v4224 = vunpack.c.l.b16 %v3990
    %v4225 = vunpack.c.h.b16 %v3990
    %v4226 = vunpack.c.l.b16 %v3991
    %v4227 = vunpack.c.l.b16 %v3992
    %v4228 = vunpack.c.h.b16 %v3992
    %v4229 = vunpack.c.l.b16 %v3993
    %v4230 = vunpack.c.h.b16 %v3993
    %v4231 = vunpack.c.l.b16 %v3994
    %v4232 = vunpack.c.h.b16 %v3994
    %v4233 = vunpack.c.l.b16 %v3995
    %v4234 = vunpack.c.l.b16 %v3996
    %v4235 = vunpack.c.h.b16 %v3996
    %v4236 = vunpack.c.l.b16 %v3997
    %v4237 = vunpack.c.h.b16 %v3997
    %v4238 = vunpack.c.l.b16 %v3998
    %v4239 = vunpack.c.h.b16 %v3998
    %v4240 = vunpack.c.l.b16 %v3999
    %v4241 = vunpack.c.l.b16 %v4000
    %v4242 = vunpack.c.h.b16 %v4000
    %v4243 = vunpack.c.l.b16 %v4001
    %v4244 = vunpack.c.h.b16 %v4001
    %v4245 = vunpack.c.l.b16 %v4002
    %v4246 = vunpack.c.h.b16 %v4002
    %v4247 = vunpack.c.l.b16 %v4003
    %v4248 = vpack.c.b16 %v4227, %v4220
    %v4249 = vpack.c.b16 %v4228, %v4221
    %v4250 = vpack.c.b16 %v4229, %v4222
    %v4251 = vpack.c.b16 %v4230, %v4223
    %v4252 = vpack.c.b16 %v4231, %v4224
    %v4253 = vpack.c.b16 %v4232, %v4225
    %v4254 = vpack.c.b16 %v4233, %v4226
    %v4255 = vpack.c.b16 %v4241, %v4234
    %v4256 = vpack.c.b16 %v4242, %v4235
    %v4257 = vpack.c.b16 %v4243, %v4236
    %v4258 = vpack.c.b16 %v4244, %v4237
    %v4259 = vpack.c.b16 %v4245, %v4238
    %v4260 = vpack.c.b16 %v4246, %v4239
    %v4261 = vpack.c.b16 %v4247, %v4240
    %vm4274 = vcmask 261120
    %v4276 = vsel %vm4274, %v4254, 0
    %v4279 = vsel %vm4274, %v4261, 0
    %4281 = vmatprep.subr.bf16.mxu0 %v4005
    %4282 = vmatpush1.bf16.msra.mxu0 %v4004
    %4283 = vmatprep.subr.bf16.mxu0 %v4009
    %4284 = vmatpush1.bf16.msra.mxu0 %v4008
    %4285 = vmatprep.subr.bf16.mxu0 %v4013
    %4286 = vmatpush1.bf16.msra.mxu0 %v4012
    %4287 = vmatprep.subr.bf16.mxu0 %v4017
    %4288 = vmatpush1.bf16.msra.mxu0 %v4016
    %4289 = vmatprep.subr.bf16.mxu0 %v4021
    %4290 = vmatpush1.bf16.msra.mxu0 %v4020
    %4291 = vmatprep.subr.bf16.mxu0 %v4025
    %4292 = vmatpush1.bf16.msra.mxu0 %v4024
    %4293 = vmatprep.subr.bf16.mxu0 %v4029
    %4294 = vmatpush1.bf16.msra.mxu0 %v4028
    %4295 = vmatprep.subr.bf16.mxu0 %v4033
    %4296 = vmatpush1.bf16.msra.mxu0 %v4032
    %4297 = vmatprep.subr.bf16.mxu0 %v4037
    %4298 = vmatpush1.bf16.msra.mxu0 %v4036
    %4299 = vmatprep.subr.bf16.mxu0 %v4041
    %4300 = vmatpush1.bf16.msra.mxu0 %v4040
    %4301 = vmatprep.subr.bf16.mxu0 %v4045
    %4302 = vmatpush1.bf16.msra.mxu0 %v4044
    %4303 = vmatprep.subr.bf16.mxu0 %v4049
    %4304 = vmatpush1.bf16.msra.mxu0 %v4048
    %4305 = vmatprep.subr.bf16.mxu0 %v4053
    %4306 = vmatpush1.bf16.msra.mxu0 %v4052
    %4307 = vmatprep.subr.bf16.mxu0 %v4057
    %4308 = vmatpush1.bf16.msra.mxu0 %v4056
    %4309 = vmatprep.subr.bf16.mxu0 %v4061
    %4310 = vmatpush1.bf16.msra.mxu0 %v4060
    %4311 = vmatprep.subr.bf16.mxu0 %v4065
    %4312 = vmatpush1.bf16.msra.mxu0 %v4064
    %4313 = vmatprep.mubr.bf16.mxu0 %v4249
    %4314 = vmatmul.mubr.bf16.gmra.mrb[0].mxu0 %v4248
    %v4315 = vpop.f32.mrb[0].mxu0
    %v4316 = vadd.f32 0.0, %v4315
    %v4317 = vpop.f32.mrb[0].mxu0
    %v4318 = vadd.f32 0.0, %v4317
    %v4319 = vpop.f32.mrb[0].mxu0
    %v4320 = vadd.f32 0.0, %v4319
    %v4321 = vpop.f32.mrb[0].mxu0
    %v4322 = vadd.f32 0.0, %v4321
    %4323 = vmatprep.mubr.bf16.mxu0 %v4256
    %4324 = vmatmul.mubr.bf16.gmra.mrb[0].mxu0 %v4255
    %v4325 = vpop.f32.mrb[0].mxu0
    %v4326 = vadd.f32 0.0, %v4325
    %v4327 = vpop.f32.mrb[0].mxu0
    %v4328 = vadd.f32 0.0, %v4327
    %v4329 = vpop.f32.mrb[0].mxu0
    %v4330 = vadd.f32 0.0, %v4329
    %v4331 = vpop.f32.mrb[0].mxu0
    %v4332 = vadd.f32 0.0, %v4331
    %4333 = vdwg.mxu0
    %4334 = vmatprep.subr.bf16.mxu0 %v4069
    %4335 = vmatpush1.bf16.msra.mxu0 %v4068
    %4336 = vmatprep.subr.bf16.mxu0 %v4073
    %4337 = vmatpush1.bf16.msra.mxu0 %v4072
    %4338 = vmatprep.subr.bf16.mxu0 %v4077
    %4339 = vmatpush1.bf16.msra.mxu0 %v4076
    %4340 = vmatprep.subr.bf16.mxu0 %v4081
    %4341 = vmatpush1.bf16.msra.mxu0 %v4080
    %4342 = vmatprep.subr.bf16.mxu0 %v4085
    %4343 = vmatpush1.bf16.msra.mxu0 %v4084
    %4344 = vmatprep.subr.bf16.mxu0 %v4089
    %4345 = vmatpush1.bf16.msra.mxu0 %v4088
    %4346 = vmatprep.subr.bf16.mxu0 %v4093
    %4347 = vmatpush1.bf16.msra.mxu0 %v4092
    %4348 = vmatprep.subr.bf16.mxu0 %v4097
    %4349 = vmatpush1.bf16.msra.mxu0 %v4096
    %4350 = vmatprep.subr.bf16.mxu0 %v4101
    %4351 = vmatpush1.bf16.msra.mxu0 %v4100
    %4352 = vmatprep.subr.bf16.mxu0 %v4105
    %4353 = vmatpush1.bf16.msra.mxu0 %v4104
    %4354 = vmatprep.subr.bf16.mxu0 %v4109
    %4355 = vmatpush1.bf16.msra.mxu0 %v4108
    %4356 = vmatprep.subr.bf16.mxu0 %v4113
    %4357 = vmatpush1.bf16.msra.mxu0 %v4112
    %4358 = vmatprep.subr.bf16.mxu0 %v4117
    %4359 = vmatpush1.bf16.msra.mxu0 %v4116
    %4360 = vmatprep.subr.bf16.mxu0 %v4121
    %4361 = vmatpush1.bf16.msra.mxu0 %v4120
    %4362 = vmatprep.subr.bf16.mxu0 %v4125
    %4363 = vmatpush1.bf16.msra.mxu0 %v4124
    %4364 = vmatprep.subr.bf16.mxu0 %v4129
    %4365 = vmatpush1.bf16.msra.mxu0 %v4128
    %4366 = vmatprep.mubr.bf16.mxu0 %v4251
    %4367 = vmatmul.mubr.bf16.gmra.mrb[0].mxu0 %v4250
    %v4368 = vpop.f32.mrb[0].mxu0
    %v4369 = vadd.f32 %v4316, %v4368
    %v4370 = vpop.f32.mrb[0].mxu0
    %v4371 = vadd.f32 %v4318, %v4370
    %v4372 = vpop.f32.mrb[0].mxu0
    %v4373 = vadd.f32 %v4320, %v4372
    %v4374 = vpop.f32.mrb[0].mxu0
    %v4375 = vadd.f32 %v4322, %v4374
    %4376 = vmatprep.mubr.bf16.mxu0 %v4258
    %4377 = vmatmul.mubr.bf16.gmra.mrb[0].mxu0 %v4257
    %v4378 = vpop.f32.mrb[0].mxu0
    %v4379 = vadd.f32 %v4326, %v4378
    %v4380 = vpop.f32.mrb[0].mxu0
    %v4381 = vadd.f32 %v4328, %v4380
    %v4382 = vpop.f32.mrb[0].mxu0
    %v4383 = vadd.f32 %v4330, %v4382
    %v4384 = vpop.f32.mrb[0].mxu0
    %v4385 = vadd.f32 %v4332, %v4384
    %4386 = vdwg.mxu0
    %4387 = vmatprep.subr.bf16.mxu0 %v4133
    %4388 = vmatpush1.bf16.msra.mxu0 %v4132
    %4389 = vmatprep.subr.bf16.mxu0 %v4137
    %4390 = vmatpush1.bf16.msra.mxu0 %v4136
    %4391 = vmatprep.subr.bf16.mxu0 %v4141
    %4392 = vmatpush1.bf16.msra.mxu0 %v4140
    %4393 = vmatprep.subr.bf16.mxu0 %v4145
    %4394 = vmatpush1.bf16.msra.mxu0 %v4144
    %4395 = vmatprep.subr.bf16.mxu0 %v4149
    %4396 = vmatpush1.bf16.msra.mxu0 %v4148
    %4397 = vmatprep.subr.bf16.mxu0 %v4153
    %4398 = vmatpush1.bf16.msra.mxu0 %v4152
    %4399 = vmatprep.subr.bf16.mxu0 %v4157
    %4400 = vmatpush1.bf16.msra.mxu0 %v4156
    %4401 = vmatprep.subr.bf16.mxu0 %v4161
    %4402 = vmatpush1.bf16.msra.mxu0 %v4160
    %4403 = vmatprep.subr.bf16.mxu0 %v4165
    %4404 = vmatpush1.bf16.msra.mxu0 %v4164
    %4405 = vmatprep.subr.bf16.mxu0 %v4169
    %4406 = vmatpush1.bf16.msra.mxu0 %v4168
    %4407 = vmatprep.subr.bf16.mxu0 %v4173
    %4408 = vmatpush1.bf16.msra.mxu0 %v4172
    %4409 = vmatprep.subr.bf16.mxu0 %v4177
    %4410 = vmatpush1.bf16.msra.mxu0 %v4176
    %4411 = vmatprep.subr.bf16.mxu0 %v4181
    %4412 = vmatpush1.bf16.msra.mxu0 %v4180
    %4413 = vmatprep.subr.bf16.mxu0 %v4185
    %4414 = vmatpush1.bf16.msra.mxu0 %v4184
    %4415 = vmatprep.subr.bf16.mxu0 %v4189
    %4416 = vmatpush1.bf16.msra.mxu0 %v4188
    %4417 = vmatprep.subr.bf16.mxu0 %v4193
    %4418 = vmatpush1.bf16.msra.mxu0 %v4192
    %4419 = vmatprep.mubr.bf16.mxu0 %v4253
    %4420 = vmatmul.mubr.bf16.gmra.mrb[0].mxu0 %v4252
    %v4421 = vpop.f32.mrb[0].mxu0
    %v4422 = vadd.f32 %v4369, %v4421
    %v4423 = vpop.f32.mrb[0].mxu0
    %v4424 = vadd.f32 %v4371, %v4423
    %v4425 = vpop.f32.mrb[0].mxu0
    %v4426 = vadd.f32 %v4373, %v4425
    %v4427 = vpop.f32.mrb[0].mxu0
    %v4428 = vadd.f32 %v4375, %v4427
    %4429 = vmatprep.mubr.bf16.mxu0 %v4260
    %4430 = vmatmul.mubr.bf16.gmra.mrb[0].mxu0 %v4259
    %v4431 = vpop.f32.mrb[0].mxu0
    %v4432 = vadd.f32 %v4379, %v4431
    %v4433 = vpop.f32.mrb[0].mxu0
    %v4434 = vadd.f32 %v4381, %v4433
    %v4435 = vpop.f32.mrb[0].mxu0
    %v4436 = vadd.f32 %v4383, %v4435
    %v4437 = vpop.f32.mrb[0].mxu0
    %v4438 = vadd.f32 %v4385, %v4437
    %4439 = vdwg.mxu0
    %4440 = vmatprep.subr.bf16.mxu0 %v4197
    %4441 = vmatpush1.bf16.msra.mxu0 %v4196
    %4442 = vmatprep.subr.bf16.mxu0 %v4201
    %4443 = vmatpush1.bf16.msra.mxu0 %v4200
    %4444 = vmatprep.subr.bf16.mxu0 0
    %4445 = vmatpush1.bf16.msra.mxu0 0
    %4446 = vmatprep.subr.bf16.mxu0 0
    %4447 = vmatpush1.bf16.msra.mxu0 0
    %4448 = vmatprep.subr.bf16.mxu0 0
    %4449 = vmatpush1.bf16.msra.mxu0 0
    %4450 = vmatprep.subr.bf16.mxu0 0
    %4451 = vmatpush1.bf16.msra.mxu0 0
    %4452 = vmatprep.subr.bf16.mxu0 0
    %4453 = vmatpush1.bf16.msra.mxu0 0
    %4454 = vmatprep.subr.bf16.mxu0 0
    %4455 = vmatpush1.bf16.msra.mxu0 0
    %4456 = vmatprep.subr.bf16.mxu0 0
    %4457 = vmatpush1.bf16.msra.mxu0 0
    %4458 = vmatprep.subr.bf16.mxu0 0
    %4459 = vmatpush1.bf16.msra.mxu0 0
    %4460 = vmatprep.subr.bf16.mxu0 0
    %4461 = vmatpush1.bf16.msra.mxu0 0
    %4462 = vmatprep.subr.bf16.mxu0 0
    %4463 = vmatpush1.bf16.msra.mxu0 0
    %4464 = vmatprep.subr.bf16.mxu0 0
    %4465 = vmatpush1.bf16.msra.mxu0 0
    %4466 = vmatprep.subr.bf16.mxu0 0
    %4467 = vmatpush1.bf16.msra.mxu0 0
    %4468 = vmatprep.subr.bf16.mxu0 0
    %4469 = vmatpush1.bf16.msra.mxu0 0
    %4470 = vmatprep.subr.bf16.mxu0 0
    %4471 = vmatpush1.bf16.msra.mxu0 0
    %4472 = vmatprep.mubr.bf16.mxu0 0
    %4473 = vmatmul.mubr.bf16.gmra.mrb[0].mxu0 %v4276
    %v4474 = vpop.f32.mrb[0].mxu0
    %v4475 = vadd.f32 %v4422, %v4474
    %v4476 = vpop.f32.mrb[0].mxu0
    %v4477 = vadd.f32 %v4424, %v4476
    %v4478 = vpop.f32.mrb[0].mxu0
    %v4479 = vadd.f32 %v4426, %v4478
    %v4480 = vpop.f32.mrb[0].mxu0
    %v4481 = vadd.f32 %v4428, %v4480
    %4482 = vmatprep.mubr.bf16.mxu0 0
    %4483 = vmatmul.mubr.bf16.gmra.mrb[0].mxu0 %v4279
    %v4484 = vpop.f32.mrb[0].mxu0
    %v4485 = vadd.f32 %v4432, %v4484
    %v4486 = vpop.f32.mrb[0].mxu0
    %v4487 = vadd.f32 %v4434, %v4486
    %v4488 = vpop.f32.mrb[0].mxu0
    %v4489 = vadd.f32 %v4436, %v4488
    %v4490 = vpop.f32.mrb[0].mxu0
    %v4491 = vadd.f32 %v4438, %v4490
    %4492 = vdwg.mxu0
    %4493 = vmatprep.subr.bf16.mxu0 %v4007
    %4494 = vmatpush1.bf16.msra.mxu0 %v4006
    %4495 = vmatprep.subr.bf16.mxu0 %v4011
    %4496 = vmatpush1.bf16.msra.mxu0 %v4010
    %4497 = vmatprep.subr.bf16.mxu0 %v4015
    %4498 = vmatpush1.bf16.msra.mxu0 %v4014
    %4499 = vmatprep.subr.bf16.mxu0 %v4019
    %4500 = vmatpush1.bf16.msra.mxu0 %v4018
    %4501 = vmatprep.subr.bf16.mxu0 %v4023
    %4502 = vmatpush1.bf16.msra.mxu0 %v4022
    %4503 = vmatprep.subr.bf16.mxu0 %v4027
    %4504 = vmatpush1.bf16.msra.mxu0 %v4026
    %4505 = vmatprep.subr.bf16.mxu0 %v4031
    %4506 = vmatpush1.bf16.msra.mxu0 %v4030
    %4507 = vmatprep.subr.bf16.mxu0 %v4035
    %4508 = vmatpush1.bf16.msra.mxu0 %v4034
    %4509 = vmatprep.subr.bf16.mxu0 %v4039
    %4510 = vmatpush1.bf16.msra.mxu0 %v4038
    %4511 = vmatprep.subr.bf16.mxu0 %v4043
    %4512 = vmatpush1.bf16.msra.mxu0 %v4042
    %4513 = vmatprep.subr.bf16.mxu0 %v4047
    %4514 = vmatpush1.bf16.msra.mxu0 %v4046
    %4515 = vmatprep.subr.bf16.mxu0 %v4051
    %4516 = vmatpush1.bf16.msra.mxu0 %v4050
    %4517 = vmatprep.subr.bf16.mxu0 %v4055
    %4518 = vmatpush1.bf16.msra.mxu0 %v4054
    %4519 = vmatprep.subr.bf16.mxu0 %v4059
    %4520 = vmatpush1.bf16.msra.mxu0 %v4058
    %4521 = vmatprep.subr.bf16.mxu0 %v4063
    %4522 = vmatpush1.bf16.msra.mxu0 %v4062
    %4523 = vmatprep.subr.bf16.mxu0 %v4067
    %4524 = vmatpush1.bf16.msra.mxu0 %v4066
    %4525 = vmatprep.mubr.bf16.mxu0 %v4249
    %4526 = vmatmul.mubr.bf16.gmra.mrb[0].mxu0 %v4248
    %v4527 = vpop.f32.mrb[0].mxu0
    %v4528 = vadd.f32 0.0, %v4527
    %v4529 = vpop.f32.mrb[0].mxu0
    %v4530 = vadd.f32 0.0, %v4529
    %v4531 = vpop.f32.mrb[0].mxu0
    %v4532 = vadd.f32 0.0, %v4531
    %v4533 = vpop.f32.mrb[0].mxu0
    %v4534 = vadd.f32 0.0, %v4533
    %4535 = vmatprep.mubr.bf16.mxu0 %v4256
    %4536 = vmatmul.mubr.bf16.gmra.mrb[0].mxu0 %v4255
    %v4537 = vpop.f32.mrb[0].mxu0
    %v4538 = vadd.f32 0.0, %v4537
    %v4539 = vpop.f32.mrb[0].mxu0
    %v4540 = vadd.f32 0.0, %v4539
    %v4541 = vpop.f32.mrb[0].mxu0
    %v4542 = vadd.f32 0.0, %v4541
    %v4543 = vpop.f32.mrb[0].mxu0
    %v4544 = vadd.f32 0.0, %v4543
    %4545 = vdwg.mxu0
    %4546 = vmatprep.subr.bf16.mxu0 %v4071
    %4547 = vmatpush1.bf16.msra.mxu0 %v4070
    %4548 = vmatprep.subr.bf16.mxu0 %v4075
    %4549 = vmatpush1.bf16.msra.mxu0 %v4074
    %4550 = vmatprep.subr.bf16.mxu0 %v4079
    %4551 = vmatpush1.bf16.msra.mxu0 %v4078
    %4552 = vmatprep.subr.bf16.mxu0 %v4083
    %4553 = vmatpush1.bf16.msra.mxu0 %v4082
    %4554 = vmatprep.subr.bf16.mxu0 %v4087
    %4555 = vmatpush1.bf16.msra.mxu0 %v4086
    %4556 = vmatprep.subr.bf16.mxu0 %v4091
    %4557 = vmatpush1.bf16.msra.mxu0 %v4090
    %4558 = vmatprep.subr.bf16.mxu0 %v4095
    %4559 = vmatpush1.bf16.msra.mxu0 %v4094
    %4560 = vmatprep.subr.bf16.mxu0 %v4099
    %4561 = vmatpush1.bf16.msra.mxu0 %v4098
    %4562 = vmatprep.subr.bf16.mxu0 %v4103
    %4563 = vmatpush1.bf16.msra.mxu0 %v4102
    %4564 = vmatprep.subr.bf16.mxu0 %v4107
    %4565 = vmatpush1.bf16.msra.mxu0 %v4106
    %4566 = vmatprep.subr.bf16.mxu0 %v4111
    %4567 = vmatpush1.bf16.msra.mxu0 %v4110
    %4568 = vmatprep.subr.bf16.mxu0 %v4115
    %4569 = vmatpush1.bf16.msra.mxu0 %v4114
    %4570 = vmatprep.subr.bf16.mxu0 %v4119
    %4571 = vmatpush1.bf16.msra.mxu0 %v4118
    %4572 = vmatprep.subr.bf16.mxu0 %v4123
    %4573 = vmatpush1.bf16.msra.mxu0 %v4122
    %4574 = vmatprep.subr.bf16.mxu0 %v4127
    %4575 = vmatpush1.bf16.msra.mxu0 %v4126
    %4576 = vmatprep.subr.bf16.mxu0 %v4131
    %4577 = vmatpush1.bf16.msra.mxu0 %v4130
    %4578 = vmatprep.mubr.bf16.mxu0 %v4251
    %4579 = vmatmul.mubr.bf16.gmra.mrb[0].mxu0 %v4250
    %v4580 = vpop.f32.mrb[0].mxu0
    %v4581 = vadd.f32 %v4528, %v4580
    %v4582 = vpop.f32.mrb[0].mxu0
    %v4583 = vadd.f32 %v4530, %v4582
    %v4584 = vpop.f32.mrb[0].mxu0
    %v4585 = vadd.f32 %v4532, %v4584
    %v4586 = vpop.f32.mrb[0].mxu0
    %v4587 = vadd.f32 %v4534, %v4586
    %4588 = vmatprep.mubr.bf16.mxu0 %v4258
    %4589 = vmatmul.mubr.bf16.gmra.mrb[0].mxu0 %v4257
    %v4590 = vpop.f32.mrb[0].mxu0
    %v4591 = vadd.f32 %v4538, %v4590
    %v4592 = vpop.f32.mrb[0].mxu0
    %v4593 = vadd.f32 %v4540, %v4592
    %v4594 = vpop.f32.mrb[0].mxu0
    %v4595 = vadd.f32 %v4542, %v4594
    %v4596 = vpop.f32.mrb[0].mxu0
    %v4597 = vadd.f32 %v4544, %v4596
    %4598 = vdwg.mxu0
    %4599 = vmatprep.subr.bf16.mxu0 %v4135
    %4600 = vmatpush1.bf16.msra.mxu0 %v4134
    %4601 = vmatprep.subr.bf16.mxu0 %v4139
    %4602 = vmatpush1.bf16.msra.mxu0 %v4138
    %4603 = vmatprep.subr.bf16.mxu0 %v4143
    %4604 = vmatpush1.bf16.msra.mxu0 %v4142
    %4605 = vmatprep.subr.bf16.mxu0 %v4147
    %4606 = vmatpush1.bf16.msra.mxu0 %v4146
    %4607 = vmatprep.subr.bf16.mxu0 %v4151
    %4608 = vmatpush1.bf16.msra.mxu0 %v4150
    %4609 = vmatprep.subr.bf16.mxu0 %v4155
    %4610 = vmatpush1.bf16.msra.mxu0 %v4154
    %4611 = vmatprep.subr.bf16.mxu0 %v4159
    %4612 = vmatpush1.bf16.msra.mxu0 %v4158
    %4613 = vmatprep.subr.bf16.mxu0 %v4163
    %4614 = vmatpush1.bf16.msra.mxu0 %v4162
    %4615 = vmatprep.subr.bf16.mxu0 %v4167
    %4616 = vmatpush1.bf16.msra.mxu0 %v4166
    %4617 = vmatprep.subr.bf16.mxu0 %v4171
    %4618 = vmatpush1.bf16.msra.mxu0 %v4170
    %4619 = vmatprep.subr.bf16.mxu0 %v4175
    %4620 = vmatpush1.bf16.msra.mxu0 %v4174
    %4621 = vmatprep.subr.bf16.mxu0 %v4179
    %4622 = vmatpush1.bf16.msra.mxu0 %v4178
    %4623 = vmatprep.subr.bf16.mxu0 %v4183
    %4624 = vmatpush1.bf16.msra.mxu0 %v4182
    %4625 = vmatprep.subr.bf16.mxu0 %v4187
    %4626 = vmatpush1.bf16.msra.mxu0 %v4186
    %4627 = vmatprep.subr.bf16.mxu0 %v4191
    %4628 = vmatpush1.bf16.msra.mxu0 %v4190
    %4629 = vmatprep.subr.bf16.mxu0 %v4195
    %4630 = vmatpush1.bf16.msra.mxu0 %v4194
    %4631 = vmatprep.mubr.bf16.mxu0 %v4253
    %4632 = vmatmul.mubr.bf16.gmra.mrb[0].mxu0 %v4252
    %v4633 = vpop.f32.mrb[0].mxu0
    %v4634 = vadd.f32 %v4581, %v4633
    %v4635 = vpop.f32.mrb[0].mxu0
    %v4636 = vadd.f32 %v4583, %v4635
    %v4637 = vpop.f32.mrb[0].mxu0
    %v4638 = vadd.f32 %v4585, %v4637
    %v4639 = vpop.f32.mrb[0].mxu0
    %v4640 = vadd.f32 %v4587, %v4639
    %4641 = vmatprep.mubr.bf16.mxu0 %v4260
    %4642 = vmatmul.mubr.bf16.gmra.mrb[0].mxu0 %v4259
    %v4643 = vpop.f32.mrb[0].mxu0
    %v4644 = vadd.f32 %v4591, %v4643
    %v4645 = vpop.f32.mrb[0].mxu0
    %v4646 = vadd.f32 %v4593, %v4645
    %v4647 = vpop.f32.mrb[0].mxu0
    %v4648 = vadd.f32 %v4595, %v4647
    %v4649 = vpop.f32.mrb[0].mxu0
    %v4650 = vadd.f32 %v4597, %v4649
    %4651 = vdwg.mxu0
    %4652 = vmatprep.subr.bf16.mxu0 %v4199
    %4653 = vmatpush1.bf16.msra.mxu0 %v4198
    %4654 = vmatprep.subr.bf16.mxu0 %v4203
    %4655 = vmatpush1.bf16.msra.mxu0 %v4202
    %4656 = vmatprep.subr.bf16.mxu0 0
    %4657 = vmatpush1.bf16.msra.mxu0 0
    %4658 = vmatprep.subr.bf16.mxu0 0
    %4659 = vmatpush1.bf16.msra.mxu0 0
    %4660 = vmatprep.subr.bf16.mxu0 0
    %4661 = vmatpush1.bf16.msra.mxu0 0
    %4662 = vmatprep.subr.bf16.mxu0 0
    %4663 = vmatpush1.bf16.msra.mxu0 0
    %4664 = vmatprep.subr.bf16.mxu0 0
    %4665 = vmatpush1.bf16.msra.mxu0 0
    %4666 = vmatprep.subr.bf16.mxu0 0
    %4667 = vmatpush1.bf16.msra.mxu0 0
    %4668 = vmatprep.subr.bf16.mxu0 0
    %4669 = vmatpush1.bf16.msra.mxu0 0
    %4670 = vmatprep.subr.bf16.mxu0 0
    %4671 = vmatpush1.bf16.msra.mxu0 0
    %4672 = vmatprep.subr.bf16.mxu0 0
    %4673 = vmatpush1.bf16.msra.mxu0 0
    %4674 = vmatprep.subr.bf16.mxu0 0
    %4675 = vmatpush1.bf16.msra.mxu0 0
    %4676 = vmatprep.subr.bf16.mxu0 0
    %4677 = vmatpush1.bf16.msra.mxu0 0
    %4678 = vmatprep.subr.bf16.mxu0 0
    %4679 = vmatpush1.bf16.msra.mxu0 0
    %4680 = vmatprep.subr.bf16.mxu0 0
    %4681 = vmatpush1.bf16.msra.mxu0 0
    %4682 = vmatprep.subr.bf16.mxu0 0
    %4683 = vmatpush1.bf16.msra.mxu0 0
    %4684 = vmatprep.mubr.bf16.mxu0 0
    %4685 = vmatmul.mubr.bf16.gmra.mrb[0].mxu0 %v4276
    %v4686 = vpop.f32.mrb[0].mxu0
    %v4687 = vadd.f32 %v4634, %v4686
    %v4688 = vpop.f32.mrb[0].mxu0
    %v4689 = vadd.f32 %v4636, %v4688
    %v4690 = vpop.f32.mrb[0].mxu0
    %v4691 = vadd.f32 %v4638, %v4690
    %v4692 = vpop.f32.mrb[0].mxu0
    %v4693 = vadd.f32 %v4640, %v4692
    %4694 = vmatprep.mubr.bf16.mxu0 0
    %4695 = vmatmul.mubr.bf16.gmra.mrb[0].mxu0 %v4279
    %v4696 = vpop.f32.mrb[0].mxu0
    %v4697 = vadd.f32 %v4644, %v4696
    %v4698 = vpop.f32.mrb[0].mxu0
    %v4699 = vadd.f32 %v4646, %v4698
    %v4700 = vpop.f32.mrb[0].mxu0
    %v4701 = vadd.f32 %v4648, %v4700
    %v4702 = vpop.f32.mrb[0].mxu0
    %v4703 = vadd.f32 %v4650, %v4702
    %4704 = vdwg.mxu0
    %v4705 = vld [vmem:[%s8] sm:$0xff]
    %v4706 = vld [vmem:[%s8 + $0x8] sm:$0xff]
    %v4707 = vld [vmem:[%s8 + $0x10] sm:$0xff]
    %v4708 = vld [vmem:[%s8 + $0x18] sm:$0x1]
    %v4709 = vadd.f32 %v4475, %v4477
    %v4710 = vadd.f32 %v4709, %v4687
    %v4711 = vadd.f32 %v4710, %v4689
    %4712 = vadd.xlane.f32.xlu0 %v4711
    %v4713 = vpop.xlane.xlu0 %4712
    %v4714 = vadd.f32 %v4479, %v4481
    %v4715 = vadd.f32 %v4714, %v4691
    %v4716 = vadd.f32 %v4715, %v4693
    %4717 = vadd.xlane.f32.xlu0 %v4716
    %v4718 = vpop.xlane.xlu0 %4717
    %v4719 = vadd.f32 %v4485, %v4487
    %v4720 = vadd.f32 %v4719, %v4697
    %v4721 = vadd.f32 %v4720, %v4699
    %4722 = vadd.xlane.f32.xlu0 %v4721
    %v4723 = vpop.xlane.xlu0 %4722
    %v4724 = vsel %vm985, %v4489, 0.0
    %v4725 = vsel %vm985, %v4491, 0.0
    %v4726 = vadd.f32 %v4724, %v4725
    %v4727 = vsel %vm985, %v4701, 0.0
    %v4728 = vadd.f32 %v4726, %v4727
    %v4729 = vsel %vm985, %v4703, 0.0
    %v4730 = vadd.f32 %v4728, %v4729
    %4731 = vadd.xlane.f32.xlu0 %v4730
    %v4732 = vpop.xlane.xlu0 %4731
    %v4733 = vmul.f32 %v4475, %v4475
    %v4734 = vmul.f32 %v4477, %v4477
    %v4735 = vmul.f32 %v4687, %v4687
    %v4736 = vmul.f32 %v4689, %v4689
    %v4737 = vmul.f32 %v4479, %v4479
    %v4738 = vmul.f32 %v4481, %v4481
    %v4739 = vmul.f32 %v4691, %v4691
    %v4740 = vmul.f32 %v4693, %v4693
    %v4741 = vmul.f32 %v4485, %v4485
    %v4742 = vmul.f32 %v4487, %v4487
    %v4743 = vmul.f32 %v4697, %v4697
    %v4744 = vmul.f32 %v4699, %v4699
    %v4745 = vmul.f32 %v4489, %v4489
    %v4746 = vmul.f32 %v4491, %v4491
    %v4747 = vmul.f32 %v4701, %v4701
    %v4748 = vmul.f32 %v4703, %v4703
    %v4749 = vadd.f32 %v4733, %v4734
    %v4750 = vadd.f32 %v4749, %v4735
    %v4751 = vadd.f32 %v4750, %v4736
    %4752 = vadd.xlane.f32.xlu0 %v4751
    %v4753 = vpop.xlane.xlu0 %4752
    %v4754 = vadd.f32 %v4737, %v4738
    %v4755 = vadd.f32 %v4754, %v4739
    %v4756 = vadd.f32 %v4755, %v4740
    %4757 = vadd.xlane.f32.xlu0 %v4756
    %v4758 = vpop.xlane.xlu0 %4757
    %v4759 = vadd.f32 %v4741, %v4742
    %v4760 = vadd.f32 %v4759, %v4743
    %v4761 = vadd.f32 %v4760, %v4744
    %4762 = vadd.xlane.f32.xlu0 %v4761
    %v4763 = vpop.xlane.xlu0 %4762
    %v4764 = vsel %vm985, %v4745, 0.0
    %v4765 = vsel %vm985, %v4746, 0.0
    %v4766 = vadd.f32 %v4764, %v4765
    %v4767 = vsel %vm985, %v4747, 0.0
    %v4768 = vadd.f32 %v4766, %v4767
    %v4769 = vsel %vm985, %v4748, 0.0
    %v4770 = vadd.f32 %v4768, %v4769
    %4771 = vadd.xlane.f32.xlu0 %v4770
    %v4772 = vpop.xlane.xlu0 %4771
    %v4773 = vmul.f32 %v4713, 0.001953125
    %v4774 = vmul.f32 %v4718, 0.001953125
    %v4775 = vmul.f32 %v4723, 0.001953125
    %v4776 = vmul.f32 %v4732, 0.001953125
    %v4777 = vmul.f32 %v4753, 0.001953125
    %v4778 = vmul.f32 %v4758, 0.001953125
    %v4779 = vmul.f32 %v4763, 0.001953125
    %v4780 = vmul.f32 %v4772, 0.001953125
    %v4781 = vmul.f32 %v4773, %v4773
    %v4782 = vmul.f32 %v4774, %v4774
    %v4783 = vmul.f32 %v4775, %v4775
    %v4784 = vmul.f32 %v4776, %v4776
    %v4785 = vsub.f32 %v4777, %v4781
    %v4786 = vsub.f32 %v4778, %v4782
    %v4787 = vsub.f32 %v4779, %v4783
    %v4788 = vsub.f32 %v4780, %v4784
    %v4789 = vadd.f32 %v4785, 0.001
    %v4790 = vadd.f32 %v4786, 0.001
    %v4791 = vadd.f32 %v4787, 0.001
    %v4792 = vadd.f32 %v4788, 0.001
    %v4793 = vrsqrt.pop %v4789
    %v4794 = vrsqrt.pop %v4790
    %v4795 = vrsqrt.pop %v4791
    %v4796 = vrsqrt.pop %v4792
    %v4797 = vmul.f32 %v4793, %v4705
    %v4798 = vmul.f32 %v4794, %v4706
    %v4799 = vmul.f32 %v4795, %v4707
    %v4800 = vmul.f32 %v4796, %v4708
    %v4801 = vsub.f32 0.0, %v4773
    %v4802 = vsub.f32 0.0, %v4774
    %v4803 = vsub.f32 0.0, %v4775
    %v4804 = vsub.f32 0.0, %v4776
    %v4805 = vmul.f32 %v4801, %v4797
    %v4806 = vmul.f32 %v4802, %v4798
    %v4807 = vmul.f32 %v4803, %v4799
    %v4808 = vmul.f32 %v4804, %v4800
    %4810 = vset.pattern.permute.xlu0 0
    %4811 = vperm.xlu0 %4810, %v4797
    %v4812 = vpop.permute.xlu0 %4811
    %4815 = vset.pattern.permute.xlu0 0
    %4816 = vperm.xlu0 %4815, %v4798
    %v4817 = vpop.permute.xlu0 %4816
    %4820 = vset.pattern.permute.xlu0 0
    %4821 = vperm.xlu0 %4820, %v4799
    %v4822 = vpop.permute.xlu0 %4821
    %4825 = vset.pattern.permute.xlu0 0
    %4826 = vperm.xlu0 %4825, %v4800
    %v4827 = vpop.permute.xlu0 %4826
    %v4829 = vmul.f32 %v4475, %v4812
    %v4830 = vmul.f32 %v4477, %v4812
    %v4831 = vmul.f32 %v4687, %v4812
    %v4832 = vmul.f32 %v4689, %v4812
    %v4833 = vmul.f32 %v4479, %v4817
    %v4834 = vmul.f32 %v4481, %v4817
    %v4835 = vmul.f32 %v4691, %v4817
    %v4836 = vmul.f32 %v4693, %v4817
    %v4837 = vmul.f32 %v4485, %v4822
    %v4838 = vmul.f32 %v4487, %v4822
    %v4839 = vmul.f32 %v4697, %v4822
    %v4840 = vmul.f32 %v4699, %v4822
    %v4841 = vmul.f32 %v4489, %v4827
    %v4842 = vmul.f32 %v4491, %v4827
    %v4843 = vmul.f32 %v4701, %v4827
    %v4844 = vmul.f32 %v4703, %v4827
    %4846 = vset.pattern.permute.xlu0 0
    %4847 = vperm.xlu0 %4846, %v4805
    %v4848 = vpop.permute.xlu0 %4847
    %4851 = vset.pattern.permute.xlu0 0
    %4852 = vperm.xlu0 %4851, %v4806
    %v4853 = vpop.permute.xlu0 %4852
    %4856 = vset.pattern.permute.xlu0 0
    %4857 = vperm.xlu0 %4856, %v4807
    %v4858 = vpop.permute.xlu0 %4857
    %4861 = vset.pattern.permute.xlu0 0
    %4862 = vperm.xlu0 %4861, %v4808
    %v4863 = vpop.permute.xlu0 %4862
    %v4865 = vadd.f32 %v4829, %v4848
    %v4866 = vadd.f32 %v4830, %v4848
    %v4867 = vadd.f32 %v4831, %v4848
    %v4868 = vadd.f32 %v4832, %v4848
    %v4869 = vadd.f32 %v4833, %v4853
    %v4870 = vadd.f32 %v4834, %v4853
    %v4871 = vadd.f32 %v4835, %v4853
    %v4872 = vadd.f32 %v4836, %v4853
    %v4873 = vadd.f32 %v4837, %v4858
    %v4874 = vadd.f32 %v4838, %v4858
    %v4875 = vadd.f32 %v4839, %v4858
    %v4876 = vadd.f32 %v4840, %v4858
    %v4877 = vadd.f32 %v4841, %v4863
    %v4878 = vadd.f32 %v4842, %v4863
    %v4879 = vadd.f32 %v4843, %v4863
    %v4880 = vadd.f32 %v4844, %v4863
    %v4881 = vld [vmem:[#allocation3] sm:$0xff]
    %v4882 = vld [vmem:[#allocation3 + $0x8] sm:$0xff]
    %v4883 = vld [vmem:[#allocation3 + $0x10] sm:$0xff]
    %v4884 = vld [vmem:[#allocation3 + $0x18] sm:$0xff]
    %v4885 = vld [vmem:[#allocation3 + $0x20] sm:$0xff]
    %v4886 = vld [vmem:[#allocation3 + $0x28] sm:$0xff]
    %v4887 = vld [vmem:[#allocation3 + $0x30] sm:$0xff]
    %v4888 = vld [vmem:[#allocation3 + $0x38] sm:$0xff]
    %v4889 = vld [vmem:[#allocation3 + $0x40] sm:$0xff]
    %v4890 = vld [vmem:[#allocation3 + $0x48] sm:$0xff]
    %v4891 = vld [vmem:[#allocation3 + $0x50] sm:$0xff]
    %v4892 = vld [vmem:[#allocation3 + $0x58] sm:$0xff]
    %v4893 = vld [vmem:[#allocation3 + $0x60] sm:$0x1]
    %v4894 = vld [vmem:[#allocation3 + $0x68] sm:$0x1]
    %v4895 = vld [vmem:[#allocation3 + $0x70] sm:$0x1]
    %v4896 = vld [vmem:[#allocation3 + $0x78] sm:$0x1]
    %v4897 = vld [vmem:[#allocation4] sm:$0xff]
    %v4898 = vld [vmem:[#allocation4 + $0x8] sm:$0xff]
    %v4899 = vld [vmem:[#allocation4 + $0x10] sm:$0xff]
    %v4900 = vld [vmem:[#allocation4 + $0x18] sm:$0xff]
    %v4901 = vld [vmem:[#allocation4 + $0x20] sm:$0xff]
    %v4902 = vld [vmem:[#allocation4 + $0x28] sm:$0xff]
    %v4903 = vld [vmem:[#allocation4 + $0x30] sm:$0xff]
    %v4904 = vld [vmem:[#allocation4 + $0x38] sm:$0xff]
    %v4905 = vld [vmem:[#allocation4 + $0x40] sm:$0xff]
    %v4906 = vld [vmem:[#allocation4 + $0x48] sm:$0xff]
    %v4907 = vld [vmem:[#allocation4 + $0x50] sm:$0xff]
    %v4908 = vld [vmem:[#allocation4 + $0x58] sm:$0xff]
    %v4909 = vld [vmem:[#allocation4 + $0x60] sm:$0x1]
    %v4910 = vld [vmem:[#allocation4 + $0x68] sm:$0x1]
    %v4911 = vld [vmem:[#allocation4 + $0x70] sm:$0x1]
    %v4912 = vld [vmem:[#allocation4 + $0x78] sm:$0x1]
    %v4913 = vmul.f32 %v4897, %v936
    %v4914 = vmul.f32 %v4898, %v937
    %v4915 = vmul.f32 %v4899, %v938
    %v4916 = vmul.f32 %v4900, %v939
    %v4917 = vmul.f32 %v4901, %v940
    %v4918 = vmul.f32 %v4902, %v941
    %v4919 = vmul.f32 %v4903, %v942
    %v4920 = vmul.f32 %v4904, %v943
    %v4921 = vmul.f32 %v4905, %v944
    %v4922 = vmul.f32 %v4906, %v945
    %v4923 = vmul.f32 %v4907, %v946
    %v4924 = vmul.f32 %v4908, %v947
    %v4925 = vmul.f32 %v4909, %v948
    %v4926 = vmul.f32 %v4910, %v949
    %v4927 = vmul.f32 %v4911, %v950
    %v4928 = vmul.f32 %v4912, %v951
    %v4929 = vld [vmem:[%s104] sm:$0xff]
    %v4930 = vld [vmem:[%s104 + $0x8] sm:$0xff]
    %v4931 = vld [vmem:[%s104 + $0x10] sm:$0xff]
    %v4932 = vld [vmem:[%s104 + $0x18] sm:$0xff]
    %v4933 = vld [vmem:[%s104 + $0x20] sm:$0xff]
    %v4934 = vld [vmem:[%s104 + $0x28] sm:$0xff]
    %v4935 = vld [vmem:[%s104 + $0x30] sm:$0xff]
    %v4936 = vld [vmem:[%s104 + $0x38] sm:$0xff]
    %v4937 = vld [vmem:[%s104 + $0x40] sm:$0xff]
    %v4938 = vld [vmem:[%s104 + $0x48] sm:$0xff]
    %v4939 = vld [vmem:[%s104 + $0x50] sm:$0xff]
    %v4940 = vld [vmem:[%s104 + $0x58] sm:$0xff]
    %v4941 = vld [vmem:[%s104 + $0x60] sm:$0x1]
    %v4942 = vld [vmem:[%s104 + $0x68] sm:$0x1]
    %v4943 = vld [vmem:[%s104 + $0x70] sm:$0x1]
    %v4944 = vld [vmem:[%s104 + $0x78] sm:$0x1]
    %v4945 = vadd.f32 %v4913, %v4929
    %v4946 = vadd.f32 %v4914, %v4930
    %v4947 = vadd.f32 %v4915, %v4931
    %v4948 = vadd.f32 %v4916, %v4932
    %v4949 = vadd.f32 %v4917, %v4933
    %v4950 = vadd.f32 %v4918, %v4934
    %v4951 = vadd.f32 %v4919, %v4935
    %v4952 = vadd.f32 %v4920, %v4936
    %v4953 = vadd.f32 %v4921, %v4937
    %v4954 = vadd.f32 %v4922, %v4938
    %v4955 = vadd.f32 %v4923, %v4939
    %v4956 = vadd.f32 %v4924, %v4940
    %v4957 = vadd.f32 %v4925, %v4941
    %v4958 = vadd.f32 %v4926, %v4942
    %v4959 = vadd.f32 %v4927, %v4943
    %v4960 = vadd.f32 %v4928, %v4944
    %v4961 = vmul.f32 %v4865, %v4945
    %v4962 = vmul.f32 %v4866, %v4946
    %v4963 = vmul.f32 %v4867, %v4947
    %v4964 = vmul.f32 %v4868, %v4948
    %v4965 = vmul.f32 %v4869, %v4949
    %v4966 = vmul.f32 %v4870, %v4950
    %v4967 = vmul.f32 %v4871, %v4951
    %v4968 = vmul.f32 %v4872, %v4952
    %v4969 = vmul.f32 %v4873, %v4953
    %v4970 = vmul.f32 %v4874, %v4954
    %v4971 = vmul.f32 %v4875, %v4955
    %v4972 = vmul.f32 %v4876, %v4956
    %v4973 = vmul.f32 %v4877, %v4957
    %v4974 = vmul.f32 %v4878, %v4958
    %v4975 = vmul.f32 %v4879, %v4959
    %v4976 = vmul.f32 %v4880, %v4960
    %v4977 = vmax.f32 %v4961, 0.0
    %v4978 = vmax.f32 %v4962, 0.0
    %v4979 = vmax.f32 %v4963, 0.0
    %v4980 = vmax.f32 %v4964, 0.0
    %v4981 = vmax.f32 %v4965, 0.0
    %v4982 = vmax.f32 %v4966, 0.0
    %v4983 = vmax.f32 %v4967, 0.0
    %v4984 = vmax.f32 %v4968, 0.0
    %v4985 = vmax.f32 %v4969, 0.0
    %v4986 = vmax.f32 %v4970, 0.0
    %v4987 = vmax.f32 %v4971, 0.0
    %v4988 = vmax.f32 %v4972, 0.0
    %v4989 = vmax.f32 %v4973, 0.0
    %v4990 = vmax.f32 %v4974, 0.0
    %v4991 = vmax.f32 %v4975, 0.0
    %v4992 = vmax.f32 %v4976, 0.0
    %v4993 = vand.u32 2147483647, %v4961
    %v4994 = vand.u32 2147483647, %v4962
    %v4995 = vand.u32 2147483647, %v4963
    %v4996 = vand.u32 2147483647, %v4964
    %v4997 = vand.u32 2147483647, %v4965
    %v4998 = vand.u32 2147483647, %v4966
    %v4999 = vand.u32 2147483647, %v4967
    %v5000 = vand.u32 2147483647, %v4968
    %v5001 = vand.u32 2147483647, %v4969
    %v5002 = vand.u32 2147483647, %v4970
    %v5003 = vand.u32 2147483647, %v4971
    %v5004 = vand.u32 2147483647, %v4972
    %v5005 = vand.u32 2147483647, %v4973
    %v5006 = vand.u32 2147483647, %v4974
    %v5007 = vand.u32 2147483647, %v4975
    %v5008 = vand.u32 2147483647, %v4976
    %v5009 = vsub.f32 0.0, %v4993
    %v5010 = vsub.f32 0.0, %v4994
    %v5011 = vsub.f32 0.0, %v4995
    %v5012 = vsub.f32 0.0, %v4996
    %v5013 = vsub.f32 0.0, %v4997
    %v5014 = vsub.f32 0.0, %v4998
    %v5015 = vsub.f32 0.0, %v4999
    %v5016 = vsub.f32 0.0, %v5000
    %v5017 = vsub.f32 0.0, %v5001
    %v5018 = vsub.f32 0.0, %v5002
    %v5019 = vsub.f32 0.0, %v5003
    %v5020 = vsub.f32 0.0, %v5004
    %v5021 = vsub.f32 0.0, %v5005
    %v5022 = vsub.f32 0.0, %v5006
    %v5023 = vsub.f32 0.0, %v5007
    %v5024 = vsub.f32 0.0, %v5008
    %v5025 = vmul.f32 %v5009, 1.442695
    %v5026 = vpow.pop %v5025
    %v5027 = vmul.f32 %v5010, 1.442695
    %v5028 = vpow.pop %v5027
    %v5029 = vmul.f32 %v5011, 1.442695
    %v5030 = vpow.pop %v5029
    %v5031 = vmul.f32 %v5012, 1.442695
    %v5032 = vpow.pop %v5031
    %v5033 = vmul.f32 %v5013, 1.442695
    %v5034 = vpow.pop %v5033
    %v5035 = vmul.f32 %v5014, 1.442695
    %v5036 = vpow.pop %v5035
    %v5037 = vmul.f32 %v5015, 1.442695
    %v5038 = vpow.pop %v5037
    %v5039 = vmul.f32 %v5016, 1.442695
    %v5040 = vpow.pop %v5039
    %v5041 = vmul.f32 %v5017, 1.442695
    %v5042 = vpow.pop %v5041
    %v5043 = vmul.f32 %v5018, 1.442695
    %v5044 = vpow.pop %v5043
    %v5045 = vmul.f32 %v5019, 1.442695
    %v5046 = vpow.pop %v5045
    %v5047 = vmul.f32 %v5020, 1.442695
    %v5048 = vpow.pop %v5047
    %v5049 = vmul.f32 %v5021, 1.442695
    %v5050 = vpow.pop %v5049
    %v5051 = vmul.f32 %v5022, 1.442695
    %v5052 = vpow.pop %v5051
    %v5053 = vmul.f32 %v5023, 1.442695
    %v5054 = vpow.pop %v5053
    %v5055 = vmul.f32 %v5024, 1.442695
    %v5056 = vpow.pop %v5055
    %v5057 = vadd.f32 %v5026, 1.0
    %v5058 = vadd.f32 %v5028, 1.0
    %v5059 = vadd.f32 %v5030, 1.0
    %v5060 = vadd.f32 %v5032, 1.0
    %v5061 = vadd.f32 %v5034, 1.0
    %v5062 = vadd.f32 %v5036, 1.0
    %v5063 = vadd.f32 %v5038, 1.0
    %v5064 = vadd.f32 %v5040, 1.0
    %v5065 = vadd.f32 %v5042, 1.0
    %v5066 = vadd.f32 %v5044, 1.0
    %v5067 = vadd.f32 %v5046, 1.0
    %v5068 = vadd.f32 %v5048, 1.0
    %v5069 = vadd.f32 %v5050, 1.0
    %v5070 = vadd.f32 %v5052, 1.0
    %v5071 = vadd.f32 %v5054, 1.0
    %v5072 = vadd.f32 %v5056, 1.0
    %v5073 = vlog2.pop %v5057
    %v5074 = vmul.f32 %v5073, 0.6931472
    %v5075 = vlog2.pop %v5058
    %v5076 = vmul.f32 %v5075, 0.6931472
    %v5077 = vlog2.pop %v5059
    %v5078 = vmul.f32 %v5077, 0.6931472
    %v5079 = vlog2.pop %v5060
    %v5080 = vmul.f32 %v5079, 0.6931472
    %v5081 = vlog2.pop %v5061
    %v5082 = vmul.f32 %v5081, 0.6931472
    %v5083 = vlog2.pop %v5062
    %v5084 = vmul.f32 %v5083, 0.6931472
    %v5085 = vlog2.pop %v5063
    %v5086 = vmul.f32 %v5085, 0.6931472
    %v5087 = vlog2.pop %v5064
    %v5088 = vmul.f32 %v5087, 0.6931472
    %v5089 = vlog2.pop %v5065
    %v5090 = vmul.f32 %v5089, 0.6931472
    %v5091 = vlog2.pop %v5066
    %v5092 = vmul.f32 %v5091, 0.6931472
    %v5093 = vlog2.pop %v5067
    %v5094 = vmul.f32 %v5093, 0.6931472
    %v5095 = vlog2.pop %v5068
    %v5096 = vmul.f32 %v5095, 0.6931472
    %v5097 = vlog2.pop %v5069
    %v5098 = vmul.f32 %v5097, 0.6931472
    %v5099 = vlog2.pop %v5070
    %v5100 = vmul.f32 %v5099, 0.6931472
    %v5101 = vlog2.pop %v5071
    %v5102 = vmul.f32 %v5101, 0.6931472
    %v5103 = vlog2.pop %v5072
    %v5104 = vmul.f32 %v5103, 0.6931472
    %v5105 = vadd.f32 %v4977, %v5074
    %v5106 = vadd.f32 %v4978, %v5076
    %v5107 = vadd.f32 %v4979, %v5078
    %v5108 = vadd.f32 %v4980, %v5080
    %v5109 = vadd.f32 %v4981, %v5082
    %v5110 = vadd.f32 %v4982, %v5084
    %v5111 = vadd.f32 %v4983, %v5086
    %v5112 = vadd.f32 %v4984, %v5088
    %v5113 = vadd.f32 %v4985, %v5090
    %v5114 = vadd.f32 %v4986, %v5092
    %v5115 = vadd.f32 %v4987, %v5094
    %v5116 = vadd.f32 %v4988, %v5096
    %v5117 = vadd.f32 %v4989, %v5098
    %v5118 = vadd.f32 %v4990, %v5100
    %v5119 = vadd.f32 %v4991, %v5102
    %v5120 = vadd.f32 %v4992, %v5104
    %v5121 = vsub.f32 %v4881, %v5105
    %v5122 = vsub.f32 %v4882, %v5106
    %v5123 = vsub.f32 %v4883, %v5107
    %v5124 = vsub.f32 %v4884, %v5108
    %v5125 = vsub.f32 %v4885, %v5109
    %v5126 = vsub.f32 %v4886, %v5110
    %v5127 = vsub.f32 %v4887, %v5111
    %v5128 = vsub.f32 %v4888, %v5112
    %v5129 = vsub.f32 %v4889, %v5113
    %v5130 = vsub.f32 %v4890, %v5114
    %v5131 = vsub.f32 %v4891, %v5115
    %v5132 = vsub.f32 %v4892, %v5116
    %v5133 = vsub.f32 %v4893, %v5117
    %v5134 = vsub.f32 %v4894, %v5118
    %v5135 = vsub.f32 %v4895, %v5119
    %v5136 = vsub.f32 %v4896, %v5120
    %v5137 = vmax.f32 %v5121, 0.0
    %v5138 = vmax.f32 %v5122, 0.0
    %v5139 = vmax.f32 %v5123, 0.0
    %v5140 = vmax.f32 %v5124, 0.0
    %v5141 = vmax.f32 %v5125, 0.0
    %v5142 = vmax.f32 %v5126, 0.0
    %v5143 = vmax.f32 %v5127, 0.0
    %v5144 = vmax.f32 %v5128, 0.0
    %v5145 = vmax.f32 %v5129, 0.0
    %v5146 = vmax.f32 %v5130, 0.0
    %v5147 = vmax.f32 %v5131, 0.0
    %v5148 = vmax.f32 %v5132, 0.0
    %v5149 = vmax.f32 %v5133, 0.0
    %v5150 = vmax.f32 %v5134, 0.0
    %v5151 = vmax.f32 %v5135, 0.0
    %v5152 = vmax.f32 %v5136, 0.0
    %v5153 = vand.u32 2147483647, %v5121
    %v5154 = vand.u32 2147483647, %v5122
    %v5155 = vand.u32 2147483647, %v5123
    %v5156 = vand.u32 2147483647, %v5124
    %v5157 = vand.u32 2147483647, %v5125
    %v5158 = vand.u32 2147483647, %v5126
    %v5159 = vand.u32 2147483647, %v5127
    %v5160 = vand.u32 2147483647, %v5128
    %v5161 = vand.u32 2147483647, %v5129
    %v5162 = vand.u32 2147483647, %v5130
    %v5163 = vand.u32 2147483647, %v5131
    %v5164 = vand.u32 2147483647, %v5132
    %v5165 = vand.u32 2147483647, %v5133
    %v5166 = vand.u32 2147483647, %v5134
    %v5167 = vand.u32 2147483647, %v5135
    %v5168 = vand.u32 2147483647, %v5136
    %v5169 = vsub.f32 0.0, %v5153
    %v5170 = vsub.f32 0.0, %v5154
    %v5171 = vsub.f32 0.0, %v5155
    %v5172 = vsub.f32 0.0, %v5156
    %v5173 = vsub.f32 0.0, %v5157
    %v5174 = vsub.f32 0.0, %v5158
    %v5175 = vsub.f32 0.0, %v5159
    %v5176 = vsub.f32 0.0, %v5160
    %v5177 = vsub.f32 0.0, %v5161
    %v5178 = vsub.f32 0.0, %v5162
    %v5179 = vsub.f32 0.0, %v5163
    %v5180 = vsub.f32 0.0, %v5164
    %v5181 = vsub.f32 0.0, %v5165
    %v5182 = vsub.f32 0.0, %v5166
    %v5183 = vsub.f32 0.0, %v5167
    %v5184 = vsub.f32 0.0, %v5168
    %v5185 = vmul.f32 %v5169, 1.442695
    %v5186 = vpow.pop %v5185
    %v5187 = vmul.f32 %v5170, 1.442695
    %v5188 = vpow.pop %v5187
    %v5189 = vmul.f32 %v5171, 1.442695
    %v5190 = vpow.pop %v5189
    %v5191 = vmul.f32 %v5172, 1.442695
    %v5192 = vpow.pop %v5191
    %v5193 = vmul.f32 %v5173, 1.442695
    %v5194 = vpow.pop %v5193
    %v5195 = vmul.f32 %v5174, 1.442695
    %v5196 = vpow.pop %v5195
    %v5197 = vmul.f32 %v5175, 1.442695
    %v5198 = vpow.pop %v5197
    %v5199 = vmul.f32 %v5176, 1.442695
    %v5200 = vpow.pop %v5199
    %v5201 = vmul.f32 %v5177, 1.442695
    %v5202 = vpow.pop %v5201
    %v5203 = vmul.f32 %v5178, 1.442695
    %v5204 = vpow.pop %v5203
    %v5205 = vmul.f32 %v5179, 1.442695
    %v5206 = vpow.pop %v5205
    %v5207 = vmul.f32 %v5180, 1.442695
    %v5208 = vpow.pop %v5207
    %v5209 = vmul.f32 %v5181, 1.442695
    %v5210 = vpow.pop %v5209
    %v5211 = vmul.f32 %v5182, 1.442695
    %v5212 = vpow.pop %v5211
    %v5213 = vmul.f32 %v5183, 1.442695
    %v5214 = vpow.pop %v5213
    %v5215 = vmul.f32 %v5184, 1.442695
    %v5216 = vpow.pop %v5215
    %v5217 = vadd.f32 %v5186, 1.0
    %v5218 = vadd.f32 %v5188, 1.0
    %v5219 = vadd.f32 %v5190, 1.0
    %v5220 = vadd.f32 %v5192, 1.0
    %v5221 = vadd.f32 %v5194, 1.0
    %v5222 = vadd.f32 %v5196, 1.0
    %v5223 = vadd.f32 %v5198, 1.0
    %v5224 = vadd.f32 %v5200, 1.0
    %v5225 = vadd.f32 %v5202, 1.0
    %v5226 = vadd.f32 %v5204, 1.0
    %v5227 = vadd.f32 %v5206, 1.0
    %v5228 = vadd.f32 %v5208, 1.0
    %v5229 = vadd.f32 %v5210, 1.0
    %v5230 = vadd.f32 %v5212, 1.0
    %v5231 = vadd.f32 %v5214, 1.0
    %v5232 = vadd.f32 %v5216, 1.0
    %v5233 = vlog2.pop %v5217
    %v5234 = vmul.f32 %v5233, 0.6931472
    %v5235 = vlog2.pop %v5218
    %v5236 = vmul.f32 %v5235, 0.6931472
    %v5237 = vlog2.pop %v5219
    %v5238 = vmul.f32 %v5237, 0.6931472
    %v5239 = vlog2.pop %v5220
    %v5240 = vmul.f32 %v5239, 0.6931472
    %v5241 = vlog2.pop %v5221
    %v5242 = vmul.f32 %v5241, 0.6931472
    %v5243 = vlog2.pop %v5222
    %v5244 = vmul.f32 %v5243, 0.6931472
    %v5245 = vlog2.pop %v5223
    %v5246 = vmul.f32 %v5245, 0.6931472
    %v5247 = vlog2.pop %v5224
    %v5248 = vmul.f32 %v5247, 0.6931472
    %v5249 = vlog2.pop %v5225
    %v5250 = vmul.f32 %v5249, 0.6931472
    %v5251 = vlog2.pop %v5226
    %v5252 = vmul.f32 %v5251, 0.6931472
    %v5253 = vlog2.pop %v5227
    %v5254 = vmul.f32 %v5253, 0.6931472
    %v5255 = vlog2.pop %v5228
    %v5256 = vmul.f32 %v5255, 0.6931472
    %v5257 = vlog2.pop %v5229
    %v5258 = vmul.f32 %v5257, 0.6931472
    %v5259 = vlog2.pop %v5230
    %v5260 = vmul.f32 %v5259, 0.6931472
    %v5261 = vlog2.pop %v5231
    %v5262 = vmul.f32 %v5261, 0.6931472
    %v5263 = vlog2.pop %v5232
    %v5264 = vmul.f32 %v5263, 0.6931472
    %v5265 = vadd.f32 %v5137, %v5234
    %v5266 = vadd.f32 %v5138, %v5236
    %v5267 = vadd.f32 %v5139, %v5238
    %v5268 = vadd.f32 %v5140, %v5240
    %v5269 = vadd.f32 %v5141, %v5242
    %v5270 = vadd.f32 %v5142, %v5244
    %v5271 = vadd.f32 %v5143, %v5246
    %v5272 = vadd.f32 %v5144, %v5248
    %v5273 = vadd.f32 %v5145, %v5250
    %v5274 = vadd.f32 %v5146, %v5252
    %v5275 = vadd.f32 %v5147, %v5254
    %v5276 = vadd.f32 %v5148, %v5256
    %v5277 = vadd.f32 %v5149, %v5258
    %v5278 = vadd.f32 %v5150, %v5260
    %v5279 = vadd.f32 %v5151, %v5262
    %v5280 = vadd.f32 %v5152, %v5264
    %v5281 = vld [vmem:[%s3] sm:$0xff]
    %v5282 = vld [vmem:[%s3 + $0x8] sm:$0xff]
    %v5283 = vld [vmem:[%s3 + $0x10] sm:$0xff]
    %v5284 = vld [vmem:[%s3 + $0x18] sm:$0x1]
    %v5285 = vld [vmem:[%s314] sm:$0xff]
    %v5286 = vld [vmem:[%s314 + $0x8] sm:$0xff]
    %v5287 = vld [vmem:[%s314 + $0x10] sm:$0xff]
    %v5288 = vld [vmem:[%s314 + $0x18] sm:$0xff]
    %v5289 = vld [vmem:[%s314 + $0x20] sm:$0xff]
    %v5290 = vld [vmem:[%s314 + $0x28] sm:$0xff]
    %v5291 = vld [vmem:[%s314 + $0x30] sm:$0xff]
    %v5292 = vld [vmem:[%s314 + $0x38] sm:$0xff]
    %v5293 = vld [vmem:[%s314 + $0x40] sm:$0xff]
    %v5294 = vld [vmem:[%s314 + $0x48] sm:$0xff]
    %v5295 = vld [vmem:[%s314 + $0x50] sm:$0xff]
    %v5296 = vld [vmem:[%s314 + $0x58] sm:$0xff]
    %v5297 = vld [vmem:[%s314 + $0x60] sm:$0x1]
    %v5298 = vld [vmem:[%s314 + $0x68] sm:$0x1]
    %v5299 = vld [vmem:[%s314 + $0x70] sm:$0x1]
    %v5300 = vld [vmem:[%s314 + $0x78] sm:$0x1]
    %v5302 = vsel %vm972, %v5281, 0
    %v5305 = vsel %vm972, %v5282, 0
    %v5308 = vsel %vm972, %v5283, 0
    %v5311 = vsel %vm972, %v5284, 0
    %v5314 = vsel %vm985, %v5277, 0
    %v5317 = vsel %vm985, %v5278, 0
    %v5320 = vsel %vm985, %v5279, 0
    %v5323 = vsel %vm985, %v5280, 0
    %5325 = vmatprep.subr.mxu0 %v5266
    %5326 = vmatpush1.msra.mxu0 %v5265
    %5327 = vmatprep.subr.mxu0 %v5270
    %5328 = vmatpush1.msra.mxu0 %v5269
    %5329 = vmatprep.subr.mxu0 %v5274
    %5330 = vmatpush1.msra.mxu0 %v5273
    %5331 = vmatprep.subr.mxu0 %v5317
    %5332 = vmatpush1.msra.mxu0 %v5314
    %5333 = vmatprep.subr.mxu0 0.0
    %5334 = vmatpush1.msra.mxu0 0.0
    %5335 = vmatprep.subr.mxu0 0.0
    %5336 = vmatpush1.msra.mxu0 0.0
    %5337 = vmatprep.subr.mxu0 0.0
    %5338 = vmatpush1.msra.mxu0 0.0
    %5339 = vmatprep.subr.mxu0 0.0
    %5340 = vmatpush1.msra.mxu0 0.0
    %5341 = vmatprep.subr.mxu0 0.0
    %5342 = vmatpush1.msra.mxu0 0.0
    %5343 = vmatprep.subr.mxu0 0.0
    %5344 = vmatpush1.msra.mxu0 0.0
    %5345 = vmatprep.subr.mxu0 0.0
    %5346 = vmatpush1.msra.mxu0 0.0
    %5347 = vmatprep.subr.mxu0 0.0
    %5348 = vmatpush1.msra.mxu0 0.0
    %5349 = vmatprep.subr.mxu0 0.0
    %5350 = vmatpush1.msra.mxu0 0.0
    %5351 = vmatprep.subr.mxu0 0.0
    %5352 = vmatpush1.msra.mxu0 0.0
    %5353 = vmatprep.subr.mxu0 0.0
    %5354 = vmatpush1.msra.mxu0 0.0
    %5355 = vmatprep.subr.mxu0 0.0
    %5356 = vmatpush1.msra.mxu0 0.0
    %5357 = vmatprep.subr.mxu0 0.0
    %5358 = vmatpush1.msra.mxu0 0.0
    %5359 = vmatprep.subr.mxu0 0.0
    %5360 = vmatpush1.msra.mxu0 0.0
    %5361 = vmatprep.subr.mxu0 0.0
    %5362 = vmatpush1.msra.mxu0 0.0
    %5363 = vmatprep.subr.mxu0 0.0
    %5364 = vmatpush1.msra.mxu0 0.0
    %5365 = vmatprep.subr.mxu0 0.0
    %5366 = vmatpush1.msra.mxu0 0.0
    %5367 = vmatprep.subr.mxu0 0.0
    %5368 = vmatpush1.msra.mxu0 0.0
    %5369 = vmatprep.subr.mxu0 0.0
    %5370 = vmatpush1.msra.mxu0 0.0
    %5371 = vmatprep.subr.mxu0 0.0
    %5372 = vmatpush1.msra.mxu0 0.0
    %5373 = vmatprep.subr.mxu0 0.0
    %5374 = vmatpush1.msra.mxu0 0.0
    %5375 = vmatprep.subr.mxu0 0.0
    %5376 = vmatpush1.msra.mxu0 0.0
    %5377 = vmatprep.subr.mxu0 0.0
    %5378 = vmatpush1.msra.mxu0 0.0
    %5379 = vmatprep.subr.mxu0 0.0
    %5380 = vmatpush1.msra.mxu0 0.0
    %5381 = vmatprep.subr.mxu0 0.0
    %5382 = vmatpush1.msra.mxu0 0.0
    %5383 = vmatprep.subr.mxu0 0.0
    %5384 = vmatpush1.msra.mxu0 0.0
    %5385 = vmatprep.subr.mxu0 0.0
    %5386 = vmatpush1.msra.mxu0 0.0
    %5387 = vmatprep.subr.mxu0 0.0
    %5388 = vmatpush1.msra.mxu0 0.0
    %5389 = vmatprep.mubr.f32.mxu0 0.0
    %5390 = vmatmul.mubr.f32.gmra.mrb[0].mxu0 %v5302
    %v5391 = vpop.f32.mrb[0].mxu0
    %v5392 = vadd.f32 %v5285, %v5391
    %v5393 = vpop.f32.mrb[0].mxu0
    %v5394 = vadd.f32 %v5286, %v5393
    %5395 = vmatprep.mubr.f32.mxu0 0.0
    %5396 = vmatmul.mubr.f32.gmra.mrb[0].mxu0 %v5305
    %v5397 = vpop.f32.mrb[0].mxu0
    %v5398 = vadd.f32 %v5289, %v5397
    %v5399 = vpop.f32.mrb[0].mxu0
    %v5400 = vadd.f32 %v5290, %v5399
    %5401 = vmatprep.mubr.f32.mxu0 0.0
    %5402 = vmatmul.mubr.f32.gmra.mrb[0].mxu0 %v5308
    %v5403 = vpop.f32.mrb[0].mxu0
    %v5404 = vadd.f32 %v5293, %v5403
    %v5405 = vpop.f32.mrb[0].mxu0
    %v5406 = vadd.f32 %v5294, %v5405
    %5407 = vmatprep.mubr.f32.mxu0 0.0
    %5408 = vmatmul.mubr.f32.gmra.mrb[0].mxu0 %v5311
    %v5409 = vpop.f32.mrb[0].mxu0
    %v5410 = vadd.f32 %v5297, %v5409
    %v5411 = vpop.f32.mrb[0].mxu0
    %v5412 = vadd.f32 %v5298, %v5411
    %5413 = vdwg.mxu0
    %5414 = vmatprep.subr.mxu0 %v5268
    %5415 = vmatpush1.msra.mxu0 %v5267
    %5416 = vmatprep.subr.mxu0 %v5272
    %5417 = vmatpush1.msra.mxu0 %v5271
    %5418 = vmatprep.subr.mxu0 %v5276
    %5419 = vmatpush1.msra.mxu0 %v5275
    %5420 = vmatprep.subr.mxu0 %v5323
    %5421 = vmatpush1.msra.mxu0 %v5320
    %5422 = vmatprep.subr.mxu0 0.0
    %5423 = vmatpush1.msra.mxu0 0.0
    %5424 = vmatprep.subr.mxu0 0.0
    %5425 = vmatpush1.msra.mxu0 0.0
    %5426 = vmatprep.subr.mxu0 0.0
    %5427 = vmatpush1.msra.mxu0 0.0
    %5428 = vmatprep.subr.mxu0 0.0
    %5429 = vmatpush1.msra.mxu0 0.0
    %5430 = vmatprep.subr.mxu0 0.0
    %5431 = vmatpush1.msra.mxu0 0.0
    %5432 = vmatprep.subr.mxu0 0.0
    %5433 = vmatpush1.msra.mxu0 0.0
    %5434 = vmatprep.subr.mxu0 0.0
    %5435 = vmatpush1.msra.mxu0 0.0
    %5436 = vmatprep.subr.mxu0 0.0
    %5437 = vmatpush1.msra.mxu0 0.0
    %5438 = vmatprep.subr.mxu0 0.0
    %5439 = vmatpush1.msra.mxu0 0.0
    %5440 = vmatprep.subr.mxu0 0.0
    %5441 = vmatpush1.msra.mxu0 0.0
    %5442 = vmatprep.subr.mxu0 0.0
    %5443 = vmatpush1.msra.mxu0 0.0
    %5444 = vmatprep.subr.mxu0 0.0
    %5445 = vmatpush1.msra.mxu0 0.0
    %5446 = vmatprep.subr.mxu0 0.0
    %5447 = vmatpush1.msra.mxu0 0.0
    %5448 = vmatprep.subr.mxu0 0.0
    %5449 = vmatpush1.msra.mxu0 0.0
    %5450 = vmatprep.subr.mxu0 0.0
    %5451 = vmatpush1.msra.mxu0 0.0
    %5452 = vmatprep.subr.mxu0 0.0
    %5453 = vmatpush1.msra.mxu0 0.0
    %5454 = vmatprep.subr.mxu0 0.0
    %5455 = vmatpush1.msra.mxu0 0.0
    %5456 = vmatprep.subr.mxu0 0.0
    %5457 = vmatpush1.msra.mxu0 0.0
    %5458 = vmatprep.subr.mxu0 0.0
    %5459 = vmatpush1.msra.mxu0 0.0
    %5460 = vmatprep.subr.mxu0 0.0
    %5461 = vmatpush1.msra.mxu0 0.0
    %5462 = vmatprep.subr.mxu0 0.0
    %5463 = vmatpush1.msra.mxu0 0.0
    %5464 = vmatprep.subr.mxu0 0.0
    %5465 = vmatpush1.msra.mxu0 0.0
    %5466 = vmatprep.subr.mxu0 0.0
    %5467 = vmatpush1.msra.mxu0 0.0
    %5468 = vmatprep.subr.mxu0 0.0
    %5469 = vmatpush1.msra.mxu0 0.0
    %5470 = vmatprep.subr.mxu0 0.0
    %5471 = vmatpush1.msra.mxu0 0.0
    %5472 = vmatprep.subr.mxu0 0.0
    %5473 = vmatpush1.msra.mxu0 0.0
    %5474 = vmatprep.subr.mxu0 0.0
    %5475 = vmatpush1.msra.mxu0 0.0
    %5476 = vmatprep.subr.mxu0 0.0
    %5477 = vmatpush1.msra.mxu0 0.0
    %5478 = vmatprep.mubr.f32.mxu0 0.0
    %5479 = vmatmul.mubr.f32.gmra.mrb[0].mxu0 %v5302
    %v5480 = vpop.f32.mrb[0].mxu0
    %v5481 = vadd.f32 %v5287, %v5480
    %v5482 = vpop.f32.mrb[0].mxu0
    %v5483 = vadd.f32 %v5288, %v5482
    %5484 = vmatprep.mubr.f32.mxu0 0.0
    %5485 = vmatmul.mubr.f32.gmra.mrb[0].mxu0 %v5305
    %v5486 = vpop.f32.mrb[0].mxu0
    %v5487 = vadd.f32 %v5291, %v5486
    %v5488 = vpop.f32.mrb[0].mxu0
    %v5489 = vadd.f32 %v5292, %v5488
    %5490 = vmatprep.mubr.f32.mxu0 0.0
    %5491 = vmatmul.mubr.f32.gmra.mrb[0].mxu0 %v5308
    %v5492 = vpop.f32.mrb[0].mxu0
    %v5493 = vadd.f32 %v5295, %v5492
    %v5494 = vpop.f32.mrb[0].mxu0
    %v5495 = vadd.f32 %v5296, %v5494
    %5496 = vmatprep.mubr.f32.mxu0 0.0
    %5497 = vmatmul.mubr.f32.gmra.mrb[0].mxu0 %v5311
    %v5498 = vpop.f32.mrb[0].mxu0
    %v5499 = vadd.f32 %v5299, %v5498
    %v5500 = vpop.f32.mrb[0].mxu0
    %v5501 = vadd.f32 %v5300, %v5500
    %5502 = vdwg.mxu0
    %v5503 = vsub.f32 0.0, %v5392
    %v5504 = vsub.f32 0.0, %v5394
    %v5505 = vsub.f32 0.0, %v5481
    %v5506 = vsub.f32 0.0, %v5483
    %v5507 = vsub.f32 0.0, %v5398
    %v5508 = vsub.f32 0.0, %v5400
    %v5509 = vsub.f32 0.0, %v5487
    %v5510 = vsub.f32 0.0, %v5489
    %v5511 = vsub.f32 0.0, %v5404
    %v5512 = vsub.f32 0.0, %v5406
    %v5513 = vsub.f32 0.0, %v5493
    %v5514 = vsub.f32 0.0, %v5495
    %v5515 = vsub.f32 0.0, %v5410
    %v5516 = vsub.f32 0.0, %v5412
    %v5517 = vsub.f32 0.0, %v5499
    %v5518 = vsub.f32 0.0, %v5501
    %v5519 = vmul.f32 %v5503, 1.442695
    %v5520 = vpow.pop %v5519
    %v5521 = vmul.f32 %v5504, 1.442695
    %v5522 = vpow.pop %v5521
    %v5523 = vmul.f32 %v5505, 1.442695
    %v5524 = vpow.pop %v5523
    %v5525 = vmul.f32 %v5506, 1.442695
    %v5526 = vpow.pop %v5525
    %v5527 = vmul.f32 %v5507, 1.442695
    %v5528 = vpow.pop %v5527
    %v5529 = vmul.f32 %v5508, 1.442695
    %v5530 = vpow.pop %v5529
    %v5531 = vmul.f32 %v5509, 1.442695
    %v5532 = vpow.pop %v5531
    %v5533 = vmul.f32 %v5510, 1.442695
    %v5534 = vpow.pop %v5533
    %v5535 = vmul.f32 %v5511, 1.442695
    %v5536 = vpow.pop %v5535
    %v5537 = vmul.f32 %v5512, 1.442695
    %v5538 = vpow.pop %v5537
    %v5539 = vmul.f32 %v5513, 1.442695
    %v5540 = vpow.pop %v5539
    %v5541 = vmul.f32 %v5514, 1.442695
    %v5542 = vpow.pop %v5541
    %v5543 = vmul.f32 %v5515, 1.442695
    %v5544 = vpow.pop %v5543
    %v5545 = vmul.f32 %v5516, 1.442695
    %v5546 = vpow.pop %v5545
    %v5547 = vmul.f32 %v5517, 1.442695
    %v5548 = vpow.pop %v5547
    %v5549 = vmul.f32 %v5518, 1.442695
    %v5550 = vpow.pop %v5549
    %v5551 = vadd.f32 %v5520, 1.0
    %v5552 = vadd.f32 %v5522, 1.0
    %v5553 = vadd.f32 %v5524, 1.0
    %v5554 = vadd.f32 %v5526, 1.0
    %v5555 = vadd.f32 %v5528, 1.0
    %v5556 = vadd.f32 %v5530, 1.0
    %v5557 = vadd.f32 %v5532, 1.0
    %v5558 = vadd.f32 %v5534, 1.0
    %v5559 = vadd.f32 %v5536, 1.0
    %v5560 = vadd.f32 %v5538, 1.0
    %v5561 = vadd.f32 %v5540, 1.0
    %v5562 = vadd.f32 %v5542, 1.0
    %v5563 = vadd.f32 %v5544, 1.0
    %v5564 = vadd.f32 %v5546, 1.0
    %v5565 = vadd.f32 %v5548, 1.0
    %v5566 = vadd.f32 %v5550, 1.0
    %v5567 = vrcp.pop %v5551
    %v5568 = vrcp.pop %v5552
    %v5569 = vrcp.pop %v5553
    %v5570 = vrcp.pop %v5554
    %v5571 = vrcp.pop %v5555
    %v5572 = vrcp.pop %v5556
    %v5573 = vrcp.pop %v5557
    %v5574 = vrcp.pop %v5558
    %v5575 = vrcp.pop %v5559
    %v5576 = vrcp.pop %v5560
    %v5577 = vrcp.pop %v5561
    %v5578 = vrcp.pop %v5562
    %v5579 = vrcp.pop %v5563
    %v5580 = vrcp.pop %v5564
    %v5581 = vrcp.pop %v5565
    %v5582 = vrcp.pop %v5566
    %5583 = vrot.lane.b32.xlu0 %v5265, 34
    %v5584 = vpop.permute.xlu0 %5583
    %5585 = vrot.lane.b32.xlu0 %v5269, 34
    %v5586 = vpop.permute.xlu0 %5585
    %5587 = vrot.lane.b32.xlu0 %v5273, 34
    %v5588 = vpop.permute.xlu0 %5587
    %5589 = vrot.lane.b32.xlu0 %v5277, 34
    %v5590 = vpop.permute.xlu0 %5589
    %5591 = vrot.lane.b32.xlu0 %v5266, 34
    %v5592 = vpop.permute.xlu0 %5591
    %5593 = vrot.lane.b32.xlu0 %v5270, 34
    %v5594 = vpop.permute.xlu0 %5593
    %5595 = vrot.lane.b32.xlu0 %v5274, 34
    %v5596 = vpop.permute.xlu0 %5595
    %5597 = vrot.lane.b32.xlu0 %v5278, 34
    %v5598 = vpop.permute.xlu0 %5597
    %5599 = vrot.lane.b32.xlu0 %v5267, 34
    %v5600 = vpop.permute.xlu0 %5599
    %5601 = vrot.lane.b32.xlu0 %v5271, 34
    %v5602 = vpop.permute.xlu0 %5601
    %5603 = vrot.lane.b32.xlu0 %v5275, 34
    %v5604 = vpop.permute.xlu0 %5603
    %5605 = vrot.lane.b32.xlu0 %v5279, 34
    %v5606 = vpop.permute.xlu0 %5605
    %5607 = vrot.lane.b32.xlu0 %v5268, 34
    %v5608 = vpop.permute.xlu0 %5607
    %5609 = vrot.lane.b32.xlu0 %v5272, 34
    %v5610 = vpop.permute.xlu0 %5609
    %5611 = vrot.lane.b32.xlu0 %v5276, 34
    %v5612 = vpop.permute.xlu0 %5611
    %5613 = vrot.lane.b32.xlu0 %v5280, 34
    %v5614 = vpop.permute.xlu0 %5613
    %v5615 = vsel %vm1306, %v5600, %v5608
    %v5616 = vsel %vm1306, %v5602, %v5610
    %v5617 = vsel %vm1306, %v5604, %v5612
    %v5618 = vsel %vm1306, %v5606, %v5614
    %v5619 = vsel %vm1306, %v5592, %v5600
    %v5620 = vsel %vm1306, %v5594, %v5602
    %v5621 = vsel %vm1306, %v5596, %v5604
    %v5622 = vsel %vm1306, %v5598, %v5606
    %v5623 = vsel %vm1306, %v5584, %v5592
    %v5624 = vsel %vm1306, %v5586, %v5594
    %v5625 = vsel %vm1306, %v5588, %v5596
    %v5626 = vsel %vm1306, %v5590, %v5598
    %v5627 = vsel %vm1306, %v5608, %v5584
    %v5628 = vsel %vm1306, %v5610, %v5586
    %v5629 = vsel %vm1306, %v5612, %v5588
    %v5630 = vsel %vm1306, %v5614, %v5590
    %v5631 = vld [vmem:[%s6] ss:$8 sm:$0xf]
    %v5633 = vlaneseq
    %v5634 = vshrl.u32 %v5633, 7
    %v5635 = vsub.s32 0, %v5634
    %v5636 = vrot.slane %v5631, %v5635
    %v5637 = vlaneseq
    %v5638 = vshrl.u32 %v5637, 7
    %v5639 = vsub.s32 1, %v5638
    %v5640 = vrot.slane %v5631, %v5639
    %v5641 = vlaneseq
    %v5642 = vshrl.u32 %v5641, 7
    %v5643 = vsub.s32 2, %v5642
    %v5644 = vrot.slane %v5631, %v5643
    %v5645 = vlaneseq
    %v5646 = vshrl.u32 %v5645, 7
    %v5647 = vsub.s32 3, %v5646
    %v5648 = vrot.slane %v5631, %v5647
    %v5653 = vmul.f32 %v5627, %v5636
    %v5654 = vmul.f32 %v5623, %v5640
    %v5655 = vmul.f32 %v5619, %v5644
    %v5656 = vmul.f32 %v5615, %v5648
    %v5657 = vmul.f32 %v5628, %v5636
    %v5658 = vmul.f32 %v5624, %v5640
    %v5659 = vmul.f32 %v5620, %v5644
    %v5660 = vmul.f32 %v5616, %v5648
    %v5661 = vmul.f32 %v5629, %v5636
    %v5662 = vmul.f32 %v5625, %v5640
    %v5663 = vmul.f32 %v5621, %v5644
    %v5664 = vmul.f32 %v5617, %v5648
    %v5665 = vmul.f32 %v5630, %v5636
    %v5666 = vmul.f32 %v5626, %v5640
    %v5667 = vmul.f32 %v5622, %v5644
    %v5668 = vmul.f32 %v5618, %v5648
    %v5669 = vpack.c.bf16 %v5657, %v5653
    %v5670 = vpack.c.bf16 %v5658, %v5654
    %v5671 = vpack.c.bf16 %v5659, %v5655
    %v5672 = vpack.c.bf16 %v5660, %v5656
    %v5673 = vpack.c.bf16 %v5665, %v5661
    %v5674 = vpack.c.bf16 %v5666, %v5662
    %v5675 = vpack.c.bf16 %v5667, %v5663
    %v5676 = vpack.c.bf16 %v5668, %v5664
    %5677 = vst [vmem:[#allocation2] sm:$0xff] %v5669
    %5678 = vst [vmem:[#allocation2 + $0x8] sm:$0xff] %v5670
    %5679 = vst [vmem:[#allocation2 + $0x10] sm:$0xff] %v5671
    %5680 = vst [vmem:[#allocation2 + $0x18] sm:$0xff] %v5672
    %v5681 = vld [vmem:[#allocation2 + $0x20] sm:$0x1f]
    %v5682 = vsel %vm1375, %v5673, %v5681
    %5683 = vst [vmem:[#allocation2 + $0x20] sm:$0x1f] %v5682
    %v5684 = vld [vmem:[#allocation2 + $0x28] sm:$0x1f]
    %v5685 = vsel %vm1375, %v5674, %v5684
    %5686 = vst [vmem:[#allocation2 + $0x28] sm:$0x1f] %v5685
    %v5687 = vld [vmem:[#allocation2 + $0x30] sm:$0x1f]
    %v5688 = vsel %vm1375, %v5675, %v5687
    %5689 = vst [vmem:[#allocation2 + $0x30] sm:$0x1f] %v5688
    %v5690 = vld [vmem:[#allocation2 + $0x38] sm:$0x1f]
    %v5691 = vsel %vm1375, %v5676, %v5690
    %5692 = vst [vmem:[#allocation2 + $0x38] sm:$0x1f] %v5691
    %5693 = vrot.lane.b32.xlu0 %v5265, 33
    %v5694 = vpop.permute.xlu0 %5693
    %5695 = vrot.lane.b32.xlu0 %v5269, 33
    %v5696 = vpop.permute.xlu0 %5695
    %5697 = vrot.lane.b32.xlu0 %v5273, 33
    %v5698 = vpop.permute.xlu0 %5697
    %5699 = vrot.lane.b32.xlu0 %v5277, 33
    %v5700 = vpop.permute.xlu0 %5699
    %5701 = vrot.lane.b32.xlu0 %v5266, 33
    %v5702 = vpop.permute.xlu0 %5701
    %5703 = vrot.lane.b32.xlu0 %v5270, 33
    %v5704 = vpop.permute.xlu0 %5703
    %5705 = vrot.lane.b32.xlu0 %v5274, 33
    %v5706 = vpop.permute.xlu0 %5705
    %5707 = vrot.lane.b32.xlu0 %v5278, 33
    %v5708 = vpop.permute.xlu0 %5707
    %5709 = vrot.lane.b32.xlu0 %v5267, 33
    %v5710 = vpop.permute.xlu0 %5709
    %5711 = vrot.lane.b32.xlu0 %v5271, 33
    %v5712 = vpop.permute.xlu0 %5711
    %5713 = vrot.lane.b32.xlu0 %v5275, 33
    %v5714 = vpop.permute.xlu0 %5713
    %5715 = vrot.lane.b32.xlu0 %v5279, 33
    %v5716 = vpop.permute.xlu0 %5715
    %5717 = vrot.lane.b32.xlu0 %v5268, 33
    %v5718 = vpop.permute.xlu0 %5717
    %5719 = vrot.lane.b32.xlu0 %v5272, 33
    %v5720 = vpop.permute.xlu0 %5719
    %5721 = vrot.lane.b32.xlu0 %v5276, 33
    %v5722 = vpop.permute.xlu0 %5721
    %5723 = vrot.lane.b32.xlu0 %v5280, 33
    %v5724 = vpop.permute.xlu0 %5723
    %v5725 = vsel %vm1420, %v5710, %v5718
    %v5726 = vsel %vm1420, %v5712, %v5720
    %v5727 = vsel %vm1420, %v5714, %v5722
    %v5728 = vsel %vm1420, %v5716, %v5724
    %v5729 = vsel %vm1420, %v5702, %v5710
    %v5730 = vsel %vm1420, %v5704, %v5712
    %v5731 = vsel %vm1420, %v5706, %v5714
    %v5732 = vsel %vm1420, %v5708, %v5716
    %v5733 = vsel %vm1420, %v5694, %v5702
    %v5734 = vsel %vm1420, %v5696, %v5704
    %v5735 = vsel %vm1420, %v5698, %v5706
    %v5736 = vsel %vm1420, %v5700, %v5708
    %v5737 = vsel %vm1420, %v5718, %v5694
    %v5738 = vsel %vm1420, %v5720, %v5696
    %v5739 = vsel %vm1420, %v5722, %v5698
    %v5740 = vsel %vm1420, %v5724, %v5700
    %v5741 = vld [vmem:[%s1437] ss:$8 sm:$0xf]
    %v5743 = vlaneseq
    %v5744 = vshrl.u32 %v5743, 7
    %v5745 = vsub.s32 0, %v5744
    %v5746 = vrot.slane %v5741, %v5745
    %v5747 = vlaneseq
    %v5748 = vshrl.u32 %v5747, 7
    %v5749 = vsub.s32 1, %v5748
    %v5750 = vrot.slane %v5741, %v5749
    %v5751 = vlaneseq
    %v5752 = vshrl.u32 %v5751, 7
    %v5753 = vsub.s32 2, %v5752
    %v5754 = vrot.slane %v5741, %v5753
    %v5755 = vlaneseq
    %v5756 = vshrl.u32 %v5755, 7
    %v5757 = vsub.s32 3, %v5756
    %v5758 = vrot.slane %v5741, %v5757
    %v5763 = vmul.f32 %v5737, %v5746
    %v5764 = vmul.f32 %v5733, %v5750
    %v5765 = vmul.f32 %v5729, %v5754
    %v5766 = vmul.f32 %v5725, %v5758
    %v5767 = vmul.f32 %v5738, %v5746
    %v5768 = vmul.f32 %v5734, %v5750
    %v5769 = vmul.f32 %v5730, %v5754
    %v5770 = vmul.f32 %v5726, %v5758
    %v5771 = vmul.f32 %v5739, %v5746
    %v5772 = vmul.f32 %v5735, %v5750
    %v5773 = vmul.f32 %v5731, %v5754
    %v5774 = vmul.f32 %v5727, %v5758
    %v5775 = vmul.f32 %v5740, %v5746
    %v5776 = vmul.f32 %v5736, %v5750
    %v5777 = vmul.f32 %v5732, %v5754
    %v5778 = vmul.f32 %v5728, %v5758
    %v5779 = vpack.c.bf16 %v5767, %v5763
    %v5780 = vpack.c.bf16 %v5768, %v5764
    %v5781 = vpack.c.bf16 %v5769, %v5765
    %v5782 = vpack.c.bf16 %v5770, %v5766
    %v5783 = vpack.c.bf16 %v5775, %v5771
    %v5784 = vpack.c.bf16 %v5776, %v5772
    %v5785 = vpack.c.bf16 %v5777, %v5773
    %v5786 = vpack.c.bf16 %v5778, %v5774
    %5787 = vst [vmem:[#allocation2 + $0x40] sm:$0xff] %v5779
    %5788 = vst [vmem:[#allocation2 + $0x48] sm:$0xff] %v5780
    %5789 = vst [vmem:[#allocation2 + $0x50] sm:$0xff] %v5781
    %5790 = vst [vmem:[#allocation2 + $0x58] sm:$0xff] %v5782
    %v5791 = vld [vmem:[#allocation2 + $0x60] sm:$0x1f]
    %v5792 = vsel %vm1375, %v5783, %v5791
    %5793 = vst [vmem:[#allocation2 + $0x60] sm:$0x1f] %v5792
    %v5794 = vld [vmem:[#allocation2 + $0x68] sm:$0x1f]
    %v5795 = vsel %vm1375, %v5784, %v5794
    %5796 = vst [vmem:[#allocation2 + $0x68] sm:$0x1f] %v5795
    %v5797 = vld [vmem:[#allocation2 + $0x70] sm:$0x1f]
    %v5798 = vsel %vm1375, %v5785, %v5797
    %5799 = vst [vmem:[#allocation2 + $0x70] sm:$0x1f] %v5798
    %v5800 = vld [vmem:[#allocation2 + $0x78] sm:$0x1f]
    %v5801 = vsel %vm1375, %v5786, %v5800
    %5802 = vst [vmem:[#allocation2 + $0x78] sm:$0x1f] %v5801
    %5803 = vrot.lane.b32.xlu0 %v5265, 32
    %v5804 = vpop.permute.xlu0 %5803
    %5805 = vrot.lane.b32.xlu0 %v5269, 32
    %v5806 = vpop.permute.xlu0 %5805
    %5807 = vrot.lane.b32.xlu0 %v5273, 32
    %v5808 = vpop.permute.xlu0 %5807
    %5809 = vrot.lane.b32.xlu0 %v5277, 32
    %v5810 = vpop.permute.xlu0 %5809
    %5811 = vrot.lane.b32.xlu0 %v5266, 32
    %v5812 = vpop.permute.xlu0 %5811
    %5813 = vrot.lane.b32.xlu0 %v5270, 32
    %v5814 = vpop.permute.xlu0 %5813
    %5815 = vrot.lane.b32.xlu0 %v5274, 32
    %v5816 = vpop.permute.xlu0 %5815
    %5817 = vrot.lane.b32.xlu0 %v5278, 32
    %v5818 = vpop.permute.xlu0 %5817
    %5819 = vrot.lane.b32.xlu0 %v5267, 32
    %v5820 = vpop.permute.xlu0 %5819
    %5821 = vrot.lane.b32.xlu0 %v5271, 32
    %v5822 = vpop.permute.xlu0 %5821
    %5823 = vrot.lane.b32.xlu0 %v5275, 32
    %v5824 = vpop.permute.xlu0 %5823
    %5825 = vrot.lane.b32.xlu0 %v5279, 32
    %v5826 = vpop.permute.xlu0 %5825
    %5827 = vrot.lane.b32.xlu0 %v5268, 32
    %v5828 = vpop.permute.xlu0 %5827
    %5829 = vrot.lane.b32.xlu0 %v5272, 32
    %v5830 = vpop.permute.xlu0 %5829
    %5831 = vrot.lane.b32.xlu0 %v5276, 32
    %v5832 = vpop.permute.xlu0 %5831
    %5833 = vrot.lane.b32.xlu0 %v5280, 32
    %v5834 = vpop.permute.xlu0 %5833
    %v5835 = vsel %vm1532, %v5820, %v5828
    %v5836 = vsel %vm1532, %v5822, %v5830
    %v5837 = vsel %vm1532, %v5824, %v5832
    %v5838 = vsel %vm1532, %v5826, %v5834
    %v5839 = vsel %vm1532, %v5812, %v5820
    %v5840 = vsel %vm1532, %v5814, %v5822
    %v5841 = vsel %vm1532, %v5816, %v5824
    %v5842 = vsel %vm1532, %v5818, %v5826
    %v5843 = vsel %vm1532, %v5804, %v5812
    %v5844 = vsel %vm1532, %v5806, %v5814
    %v5845 = vsel %vm1532, %v5808, %v5816
    %v5846 = vsel %vm1532, %v5810, %v5818
    %v5847 = vsel %vm1532, %v5828, %v5804
    %v5848 = vsel %vm1532, %v5830, %v5806
    %v5849 = vsel %vm1532, %v5832, %v5808
    %v5850 = vsel %vm1532, %v5834, %v5810
    %v5851 = vld [vmem:[%s1549] ss:$8 sm:$0xf]
    %v5853 = vlaneseq
    %v5854 = vshrl.u32 %v5853, 7
    %v5855 = vsub.s32 0, %v5854
    %v5856 = vrot.slane %v5851, %v5855
    %v5857 = vlaneseq
    %v5858 = vshrl.u32 %v5857, 7
    %v5859 = vsub.s32 1, %v5858
    %v5860 = vrot.slane %v5851, %v5859
    %v5861 = vlaneseq
    %v5862 = vshrl.u32 %v5861, 7
    %v5863 = vsub.s32 2, %v5862
    %v5864 = vrot.slane %v5851, %v5863
    %v5865 = vlaneseq
    %v5866 = vshrl.u32 %v5865, 7
    %v5867 = vsub.s32 3, %v5866
    %v5868 = vrot.slane %v5851, %v5867
    %v5873 = vmul.f32 %v5847, %v5856
    %v5874 = vmul.f32 %v5843, %v5860
    %v5875 = vmul.f32 %v5839, %v5864
    %v5876 = vmul.f32 %v5835, %v5868
    %v5877 = vmul.f32 %v5848, %v5856
    %v5878 = vmul.f32 %v5844, %v5860
    %v5879 = vmul.f32 %v5840, %v5864
    %v5880 = vmul.f32 %v5836, %v5868
    %v5881 = vmul.f32 %v5849, %v5856
    %v5882 = vmul.f32 %v5845, %v5860
    %v5883 = vmul.f32 %v5841, %v5864
    %v5884 = vmul.f32 %v5837, %v5868
    %v5885 = vmul.f32 %v5850, %v5856
    %v5886 = vmul.f32 %v5846, %v5860
    %v5887 = vmul.f32 %v5842, %v5864
    %v5888 = vmul.f32 %v5838, %v5868
    %v5889 = vpack.c.bf16 %v5877, %v5873
    %v5890 = vpack.c.bf16 %v5878, %v5874
    %v5891 = vpack.c.bf16 %v5879, %v5875
    %v5892 = vpack.c.bf16 %v5880, %v5876
    %v5893 = vpack.c.bf16 %v5885, %v5881
    %v5894 = vpack.c.bf16 %v5886, %v5882
    %v5895 = vpack.c.bf16 %v5887, %v5883
    %v5896 = vpack.c.bf16 %v5888, %v5884
    %5897 = vst [vmem:[#allocation2 + $0x80] sm:$0xff] %v5889
    %5898 = vst [vmem:[#allocation2 + $0x88] sm:$0xff] %v5890
    %5899 = vst [vmem:[#allocation2 + $0x90] sm:$0xff] %v5891
    %5900 = vst [vmem:[#allocation2 + $0x98] sm:$0xff] %v5892
    %v5901 = vld [vmem:[#allocation2 + $0xa0] sm:$0x1f]
    %v5902 = vsel %vm1375, %v5893, %v5901
    %5903 = vst [vmem:[#allocation2 + $0xa0] sm:$0x1f] %v5902
    %v5904 = vld [vmem:[#allocation2 + $0xa8] sm:$0x1f]
    %v5905 = vsel %vm1375, %v5894, %v5904
    %5906 = vst [vmem:[#allocation2 + $0xa8] sm:$0x1f] %v5905
    %v5907 = vld [vmem:[#allocation2 + $0xb0] sm:$0x1f]
    %v5908 = vsel %vm1375, %v5895, %v5907
    %5909 = vst [vmem:[#allocation2 + $0xb0] sm:$0x1f] %v5908
    %v5910 = vld [vmem:[#allocation2 + $0xb8] sm:$0x1f]
    %v5911 = vsel %vm1375, %v5896, %v5910
    %5912 = vst [vmem:[#allocation2 + $0xb8] sm:$0x1f] %v5911
    %5913 = vrot.lane.b32.xlu0 %v5265, 31
    %v5914 = vpop.permute.xlu0 %5913
    %5915 = vrot.lane.b32.xlu0 %v5269, 31
    %v5916 = vpop.permute.xlu0 %5915
    %5917 = vrot.lane.b32.xlu0 %v5273, 31
    %v5918 = vpop.permute.xlu0 %5917
    %5919 = vrot.lane.b32.xlu0 %v5277, 31
    %v5920 = vpop.permute.xlu0 %5919
    %5921 = vrot.lane.b32.xlu0 %v5266, 31
    %v5922 = vpop.permute.xlu0 %5921
    %5923 = vrot.lane.b32.xlu0 %v5270, 31
    %v5924 = vpop.permute.xlu0 %5923
    %5925 = vrot.lane.b32.xlu0 %v5274, 31
    %v5926 = vpop.permute.xlu0 %5925
    %5927 = vrot.lane.b32.xlu0 %v5278, 31
    %v5928 = vpop.permute.xlu0 %5927
    %5929 = vrot.lane.b32.xlu0 %v5267, 31
    %v5930 = vpop.permute.xlu0 %5929
    %5931 = vrot.lane.b32.xlu0 %v5271, 31
    %v5932 = vpop.permute.xlu0 %5931
    %5933 = vrot.lane.b32.xlu0 %v5275, 31
    %v5934 = vpop.permute.xlu0 %5933
    %5935 = vrot.lane.b32.xlu0 %v5279, 31
    %v5936 = vpop.permute.xlu0 %5935
    %5937 = vrot.lane.b32.xlu0 %v5268, 31
    %v5938 = vpop.permute.xlu0 %5937
    %5939 = vrot.lane.b32.xlu0 %v5272, 31
    %v5940 = vpop.permute.xlu0 %5939
    %5941 = vrot.lane.b32.xlu0 %v5276, 31
    %v5942 = vpop.permute.xlu0 %5941
    %5943 = vrot.lane.b32.xlu0 %v5280, 31
    %v5944 = vpop.permute.xlu0 %5943
    %v5945 = vsel %vm1644, %v5930, %v5938
    %v5946 = vsel %vm1644, %v5932, %v5940
    %v5947 = vsel %vm1644, %v5934, %v5942
    %v5948 = vsel %vm1644, %v5936, %v5944
    %v5949 = vsel %vm1644, %v5922, %v5930
    %v5950 = vsel %vm1644, %v5924, %v5932
    %v5951 = vsel %vm1644, %v5926, %v5934
    %v5952 = vsel %vm1644, %v5928, %v5936
    %v5953 = vsel %vm1644, %v5914, %v5922
    %v5954 = vsel %vm1644, %v5916, %v5924
    %v5955 = vsel %vm1644, %v5918, %v5926
    %v5956 = vsel %vm1644, %v5920, %v5928
    %v5957 = vsel %vm1644, %v5938, %v5914
    %v5958 = vsel %vm1644, %v5940, %v5916
    %v5959 = vsel %vm1644, %v5942, %v5918
    %v5960 = vsel %vm1644, %v5944, %v5920
    %v5961 = vld [vmem:[%s1661] ss:$8 sm:$0xf]
    %v5963 = vlaneseq
    %v5964 = vshrl.u32 %v5963, 7
    %v5965 = vsub.s32 0, %v5964
    %v5966 = vrot.slane %v5961, %v5965
    %v5967 = vlaneseq
    %v5968 = vshrl.u32 %v5967, 7
    %v5969 = vsub.s32 1, %v5968
    %v5970 = vrot.slane %v5961, %v5969
    %v5971 = vlaneseq
    %v5972 = vshrl.u32 %v5971, 7
    %v5973 = vsub.s32 2, %v5972
    %v5974 = vrot.slane %v5961, %v5973
    %v5975 = vlaneseq
    %v5976 = vshrl.u32 %v5975, 7
    %v5977 = vsub.s32 3, %v5976
    %v5978 = vrot.slane %v5961, %v5977
    %v5983 = vmul.f32 %v5957, %v5966
    %v5984 = vmul.f32 %v5953, %v5970
    %v5985 = vmul.f32 %v5949, %v5974
    %v5986 = vmul.f32 %v5945, %v5978
    %v5987 = vmul.f32 %v5958, %v5966
    %v5988 = vmul.f32 %v5954, %v5970
    %v5989 = vmul.f32 %v5950, %v5974
    %v5990 = vmul.f32 %v5946, %v5978
    %v5991 = vmul.f32 %v5959, %v5966
    %v5992 = vmul.f32 %v5955, %v5970
    %v5993 = vmul.f32 %v5951, %v5974
    %v5994 = vmul.f32 %v5947, %v5978
    %v5995 = vmul.f32 %v5960, %v5966
    %v5996 = vmul.f32 %v5956, %v5970
    %v5997 = vmul.f32 %v5952, %v5974
    %v5998 = vmul.f32 %v5948, %v5978
    %v5999 = vpack.c.bf16 %v5987, %v5983
    %v6000 = vpack.c.bf16 %v5988, %v5984
    %v6001 = vpack.c.bf16 %v5989, %v5985
    %v6002 = vpack.c.bf16 %v5990, %v5986
    %v6003 = vpack.c.bf16 %v5995, %v5991
    %v6004 = vpack.c.bf16 %v5996, %v5992
    %v6005 = vpack.c.bf16 %v5997, %v5993
    %v6006 = vpack.c.bf16 %v5998, %v5994
    %6007 = vst [vmem:[#allocation2 + $0xc0] sm:$0xff] %v5999
    %6008 = vst [vmem:[#allocation2 + $0xc8] sm:$0xff] %v6000
    %6009 = vst [vmem:[#allocation2 + $0xd0] sm:$0xff] %v6001
    %6010 = vst [vmem:[#allocation2 + $0xd8] sm:$0xff] %v6002
    %v6011 = vld [vmem:[#allocation2 + $0xe0] sm:$0x1f]
    %v6012 = vsel %vm1375, %v6003, %v6011
    %6013 = vst [vmem:[#allocation2 + $0xe0] sm:$0x1f] %v6012
    %v6014 = vld [vmem:[#allocation2 + $0xe8] sm:$0x1f]
    %v6015 = vsel %vm1375, %v6004, %v6014
    %6016 = vst [vmem:[#allocation2 + $0xe8] sm:$0x1f] %v6015
    %v6017 = vld [vmem:[#allocation2 + $0xf0] sm:$0x1f]
    %v6018 = vsel %vm1375, %v6005, %v6017
    %6019 = vst [vmem:[#allocation2 + $0xf0] sm:$0x1f] %v6018
    %v6020 = vld [vmem:[#allocation2 + $0xf8] sm:$0x1f]
    %v6021 = vsel %vm1375, %v6006, %v6020
    %6022 = vst [vmem:[#allocation2 + $0xf8] sm:$0x1f] %v6021
    %6023 = vrot.lane.b32.xlu0 %v5265, 30
    %v6024 = vpop.permute.xlu0 %6023
    %6025 = vrot.lane.b32.xlu0 %v5269, 30
    %v6026 = vpop.permute.xlu0 %6025
    %6027 = vrot.lane.b32.xlu0 %v5273, 30
    %v6028 = vpop.permute.xlu0 %6027
    %6029 = vrot.lane.b32.xlu0 %v5277, 30
    %v6030 = vpop.permute.xlu0 %6029
    %6031 = vrot.lane.b32.xlu0 %v5266, 30
    %v6032 = vpop.permute.xlu0 %6031
    %6033 = vrot.lane.b32.xlu0 %v5270, 30
    %v6034 = vpop.permute.xlu0 %6033
    %6035 = vrot.lane.b32.xlu0 %v5274, 30
    %v6036 = vpop.permute.xlu0 %6035
    %6037 = vrot.lane.b32.xlu0 %v5278, 30
    %v6038 = vpop.permute.xlu0 %6037
    %6039 = vrot.lane.b32.xlu0 %v5267, 30
    %v6040 = vpop.permute.xlu0 %6039
    %6041 = vrot.lane.b32.xlu0 %v5271, 30
    %v6042 = vpop.permute.xlu0 %6041
    %6043 = vrot.lane.b32.xlu0 %v5275, 30
    %v6044 = vpop.permute.xlu0 %6043
    %6045 = vrot.lane.b32.xlu0 %v5279, 30
    %v6046 = vpop.permute.xlu0 %6045
    %6047 = vrot.lane.b32.xlu0 %v5268, 30
    %v6048 = vpop.permute.xlu0 %6047
    %6049 = vrot.lane.b32.xlu0 %v5272, 30
    %v6050 = vpop.permute.xlu0 %6049
    %6051 = vrot.lane.b32.xlu0 %v5276, 30
    %v6052 = vpop.permute.xlu0 %6051
    %6053 = vrot.lane.b32.xlu0 %v5280, 30
    %v6054 = vpop.permute.xlu0 %6053
    %v6055 = vsel %vm1756, %v6040, %v6048
    %v6056 = vsel %vm1756, %v6042, %v6050
    %v6057 = vsel %vm1756, %v6044, %v6052
    %v6058 = vsel %vm1756, %v6046, %v6054
    %v6059 = vsel %vm1756, %v6032, %v6040
    %v6060 = vsel %vm1756, %v6034, %v6042
    %v6061 = vsel %vm1756, %v6036, %v6044
    %v6062 = vsel %vm1756, %v6038, %v6046
    %v6063 = vsel %vm1756, %v6024, %v6032
    %v6064 = vsel %vm1756, %v6026, %v6034
    %v6065 = vsel %vm1756, %v6028, %v6036
    %v6066 = vsel %vm1756, %v6030, %v6038
    %v6067 = vsel %vm1756, %v6048, %v6024
    %v6068 = vsel %vm1756, %v6050, %v6026
    %v6069 = vsel %vm1756, %v6052, %v6028
    %v6070 = vsel %vm1756, %v6054, %v6030
    %v6071 = vld [vmem:[%s1773] ss:$8 sm:$0xf]
    %v6073 = vlaneseq
    %v6074 = vshrl.u32 %v6073, 7
    %v6075 = vsub.s32 0, %v6074
    %v6076 = vrot.slane %v6071, %v6075
    %v6077 = vlaneseq
    %v6078 = vshrl.u32 %v6077, 7
    %v6079 = vsub.s32 1, %v6078
    %v6080 = vrot.slane %v6071, %v6079
    %v6081 = vlaneseq
    %v6082 = vshrl.u32 %v6081, 7
    %v6083 = vsub.s32 2, %v6082
    %v6084 = vrot.slane %v6071, %v6083
    %v6085 = vlaneseq
    %v6086 = vshrl.u32 %v6085, 7
    %v6087 = vsub.s32 3, %v6086
    %v6088 = vrot.slane %v6071, %v6087
    %v6093 = vmul.f32 %v6067, %v6076
    %v6094 = vmul.f32 %v6063, %v6080
    %v6095 = vmul.f32 %v6059, %v6084
    %v6096 = vmul.f32 %v6055, %v6088
    %v6097 = vmul.f32 %v6068, %v6076
    %v6098 = vmul.f32 %v6064, %v6080
    %v6099 = vmul.f32 %v6060, %v6084
    %v6100 = vmul.f32 %v6056, %v6088
    %v6101 = vmul.f32 %v6069, %v6076
    %v6102 = vmul.f32 %v6065, %v6080
    %v6103 = vmul.f32 %v6061, %v6084
    %v6104 = vmul.f32 %v6057, %v6088
    %v6105 = vmul.f32 %v6070, %v6076
    %v6106 = vmul.f32 %v6066, %v6080
    %v6107 = vmul.f32 %v6062, %v6084
    %v6108 = vmul.f32 %v6058, %v6088
    %v6109 = vpack.c.bf16 %v6097, %v6093
    %v6110 = vpack.c.bf16 %v6098, %v6094
    %v6111 = vpack.c.bf16 %v6099, %v6095
    %v6112 = vpack.c.bf16 %v6100, %v6096
    %v6113 = vpack.c.bf16 %v6105, %v6101
    %v6114 = vpack.c.bf16 %v6106, %v6102
    %v6115 = vpack.c.bf16 %v6107, %v6103
    %v6116 = vpack.c.bf16 %v6108, %v6104
    %6117 = vst [vmem:[#allocation2 + $0x100] sm:$0xff] %v6109
    %6118 = vst [vmem:[#allocation2 + $0x108] sm:$0xff] %v6110
    %6119 = vst [vmem:[#allocation2 + $0x110] sm:$0xff] %v6111
    %6120 = vst [vmem:[#allocation2 + $0x118] sm:$0xff] %v6112
    %v6121 = vld [vmem:[#allocation2 + $0x120] sm:$0x1f]
    %v6122 = vsel %vm1375, %v6113, %v6121
    %6123 = vst [vmem:[#allocation2 + $0x120] sm:$0x1f] %v6122
    %v6124 = vld [vmem:[#allocation2 + $0x128] sm:$0x1f]
    %v6125 = vsel %vm1375, %v6114, %v6124
    %6126 = vst [vmem:[#allocation2 + $0x128] sm:$0x1f] %v6125
    %v6127 = vld [vmem:[#allocation2 + $0x130] sm:$0x1f]
    %v6128 = vsel %vm1375, %v6115, %v6127
    %6129 = vst [vmem:[#allocation2 + $0x130] sm:$0x1f] %v6128
    %v6130 = vld [vmem:[#allocation2 + $0x138] sm:$0x1f]
    %v6131 = vsel %vm1375, %v6116, %v6130
    %6132 = vst [vmem:[#allocation2 + $0x138] sm:$0x1f] %v6131
    %6133 = vrot.lane.b32.xlu0 %v5265, 18
    %v6134 = vpop.permute.xlu0 %6133
    %6135 = vrot.lane.b32.xlu0 %v5269, 18
    %v6136 = vpop.permute.xlu0 %6135
    %6137 = vrot.lane.b32.xlu0 %v5273, 18
    %v6138 = vpop.permute.xlu0 %6137
    %6139 = vrot.lane.b32.xlu0 %v5277, 18
    %v6140 = vpop.permute.xlu0 %6139
    %6141 = vrot.lane.b32.xlu0 %v5266, 18
    %v6142 = vpop.permute.xlu0 %6141
    %6143 = vrot.lane.b32.xlu0 %v5270, 18
    %v6144 = vpop.permute.xlu0 %6143
    %6145 = vrot.lane.b32.xlu0 %v5274, 18
    %v6146 = vpop.permute.xlu0 %6145
    %6147 = vrot.lane.b32.xlu0 %v5278, 18
    %v6148 = vpop.permute.xlu0 %6147
    %6149 = vrot.lane.b32.xlu0 %v5267, 18
    %v6150 = vpop.permute.xlu0 %6149
    %6151 = vrot.lane.b32.xlu0 %v5271, 18
    %v6152 = vpop.permute.xlu0 %6151
    %6153 = vrot.lane.b32.xlu0 %v5275, 18
    %v6154 = vpop.permute.xlu0 %6153
    %6155 = vrot.lane.b32.xlu0 %v5279, 18
    %v6156 = vpop.permute.xlu0 %6155
    %6157 = vrot.lane.b32.xlu0 %v5268, 18
    %v6158 = vpop.permute.xlu0 %6157
    %6159 = vrot.lane.b32.xlu0 %v5272, 18
    %v6160 = vpop.permute.xlu0 %6159
    %6161 = vrot.lane.b32.xlu0 %v5276, 18
    %v6162 = vpop.permute.xlu0 %6161
    %6163 = vrot.lane.b32.xlu0 %v5280, 18
    %v6164 = vpop.permute.xlu0 %6163
    %v6165 = vsel %vm1868, %v6150, %v6158
    %v6166 = vsel %vm1868, %v6152, %v6160
    %v6167 = vsel %vm1868, %v6154, %v6162
    %v6168 = vsel %vm1868, %v6156, %v6164
    %v6169 = vsel %vm1868, %v6142, %v6150
    %v6170 = vsel %vm1868, %v6144, %v6152
    %v6171 = vsel %vm1868, %v6146, %v6154
    %v6172 = vsel %vm1868, %v6148, %v6156
    %v6173 = vsel %vm1868, %v6134, %v6142
    %v6174 = vsel %vm1868, %v6136, %v6144
    %v6175 = vsel %vm1868, %v6138, %v6146
    %v6176 = vsel %vm1868, %v6140, %v6148
    %v6177 = vsel %vm1868, %v6158, %v6134
    %v6178 = vsel %vm1868, %v6160, %v6136
    %v6179 = vsel %vm1868, %v6162, %v6138
    %v6180 = vsel %vm1868, %v6164, %v6140
    %v6181 = vld [vmem:[%s1885] ss:$8 sm:$0xf]
    %v6183 = vlaneseq
    %v6184 = vshrl.u32 %v6183, 7
    %v6185 = vsub.s32 0, %v6184
    %v6186 = vrot.slane %v6181, %v6185
    %v6187 = vlaneseq
    %v6188 = vshrl.u32 %v6187, 7
    %v6189 = vsub.s32 1, %v6188
    %v6190 = vrot.slane %v6181, %v6189
    %v6191 = vlaneseq
    %v6192 = vshrl.u32 %v6191, 7
    %v6193 = vsub.s32 2, %v6192
    %v6194 = vrot.slane %v6181, %v6193
    %v6195 = vlaneseq
    %v6196 = vshrl.u32 %v6195, 7
    %v6197 = vsub.s32 3, %v6196
    %v6198 = vrot.slane %v6181, %v6197
    %v6203 = vmul.f32 %v6177, %v6186
    %v6204 = vmul.f32 %v6173, %v6190
    %v6205 = vmul.f32 %v6169, %v6194
    %v6206 = vmul.f32 %v6165, %v6198
    %v6207 = vmul.f32 %v6178, %v6186
    %v6208 = vmul.f32 %v6174, %v6190
    %v6209 = vmul.f32 %v6170, %v6194
    %v6210 = vmul.f32 %v6166, %v6198
    %v6211 = vmul.f32 %v6179, %v6186
    %v6212 = vmul.f32 %v6175, %v6190
    %v6213 = vmul.f32 %v6171, %v6194
    %v6214 = vmul.f32 %v6167, %v6198
    %v6215 = vmul.f32 %v6180, %v6186
    %v6216 = vmul.f32 %v6176, %v6190
    %v6217 = vmul.f32 %v6172, %v6194
    %v6218 = vmul.f32 %v6168, %v6198
    %v6219 = vpack.c.bf16 %v6207, %v6203
    %v6220 = vpack.c.bf16 %v6208, %v6204
    %v6221 = vpack.c.bf16 %v6209, %v6205
    %v6222 = vpack.c.bf16 %v6210, %v6206
    %v6223 = vpack.c.bf16 %v6215, %v6211
    %v6224 = vpack.c.bf16 %v6216, %v6212
    %v6225 = vpack.c.bf16 %v6217, %v6213
    %v6226 = vpack.c.bf16 %v6218, %v6214
    %6227 = vst [vmem:[#allocation2 + $0x140] sm:$0xff] %v6219
    %6228 = vst [vmem:[#allocation2 + $0x148] sm:$0xff] %v6220
    %6229 = vst [vmem:[#allocation2 + $0x150] sm:$0xff] %v6221
    %6230 = vst [vmem:[#allocation2 + $0x158] sm:$0xff] %v6222
    %v6231 = vld [vmem:[#allocation2 + $0x160] sm:$0x1f]
    %v6232 = vsel %vm1375, %v6223, %v6231
    %6233 = vst [vmem:[#allocation2 + $0x160] sm:$0x1f] %v6232
    %v6234 = vld [vmem:[#allocation2 + $0x168] sm:$0x1f]
    %v6235 = vsel %vm1375, %v6224, %v6234
    %6236 = vst [vmem:[#allocation2 + $0x168] sm:$0x1f] %v6235
    %v6237 = vld [vmem:[#allocation2 + $0x170] sm:$0x1f]
    %v6238 = vsel %vm1375, %v6225, %v6237
    %6239 = vst [vmem:[#allocation2 + $0x170] sm:$0x1f] %v6238
    %v6240 = vld [vmem:[#allocation2 + $0x178] sm:$0x1f]
    %v6241 = vsel %vm1375, %v6226, %v6240
    %6242 = vst [vmem:[#allocation2 + $0x178] sm:$0x1f] %v6241
    %6243 = vrot.lane.b32.xlu0 %v5265, 17
    %v6244 = vpop.permute.xlu0 %6243
    %6245 = vrot.lane.b32.xlu0 %v5269, 17
    %v6246 = vpop.permute.xlu0 %6245
    %6247 = vrot.lane.b32.xlu0 %v5273, 17
    %v6248 = vpop.permute.xlu0 %6247
    %6249 = vrot.lane.b32.xlu0 %v5277, 17
    %v6250 = vpop.permute.xlu0 %6249
    %6251 = vrot.lane.b32.xlu0 %v5266, 17
    %v6252 = vpop.permute.xlu0 %6251
    %6253 = vrot.lane.b32.xlu0 %v5270, 17
    %v6254 = vpop.permute.xlu0 %6253
    %6255 = vrot.lane.b32.xlu0 %v5274, 17
    %v6256 = vpop.permute.xlu0 %6255
    %6257 = vrot.lane.b32.xlu0 %v5278, 17
    %v6258 = vpop.permute.xlu0 %6257
    %6259 = vrot.lane.b32.xlu0 %v5267, 17
    %v6260 = vpop.permute.xlu0 %6259
    %6261 = vrot.lane.b32.xlu0 %v5271, 17
    %v6262 = vpop.permute.xlu0 %6261
    %6263 = vrot.lane.b32.xlu0 %v5275, 17
    %v6264 = vpop.permute.xlu0 %6263
    %6265 = vrot.lane.b32.xlu0 %v5279, 17
    %v6266 = vpop.permute.xlu0 %6265
    %6267 = vrot.lane.b32.xlu0 %v5268, 17
    %v6268 = vpop.permute.xlu0 %6267
    %6269 = vrot.lane.b32.xlu0 %v5272, 17
    %v6270 = vpop.permute.xlu0 %6269
    %6271 = vrot.lane.b32.xlu0 %v5276, 17
    %v6272 = vpop.permute.xlu0 %6271
    %6273 = vrot.lane.b32.xlu0 %v5280, 17
    %v6274 = vpop.permute.xlu0 %6273
    %v6275 = vsel %vm1980, %v6260, %v6268
    %v6276 = vsel %vm1980, %v6262, %v6270
    %v6277 = vsel %vm1980, %v6264, %v6272
    %v6278 = vsel %vm1980, %v6266, %v6274
    %v6279 = vsel %vm1980, %v6252, %v6260
    %v6280 = vsel %vm1980, %v6254, %v6262
    %v6281 = vsel %vm1980, %v6256, %v6264
    %v6282 = vsel %vm1980, %v6258, %v6266
    %v6283 = vsel %vm1980, %v6244, %v6252
    %v6284 = vsel %vm1980, %v6246, %v6254
    %v6285 = vsel %vm1980, %v6248, %v6256
    %v6286 = vsel %vm1980, %v6250, %v6258
    %v6287 = vsel %vm1980, %v6268, %v6244
    %v6288 = vsel %vm1980, %v6270, %v6246
    %v6289 = vsel %vm1980, %v6272, %v6248
    %v6290 = vsel %vm1980, %v6274, %v6250
    %v6291 = vld [vmem:[%s1997] ss:$8 sm:$0xf]
    %v6293 = vlaneseq
    %v6294 = vshrl.u32 %v6293, 7
    %v6295 = vsub.s32 0, %v6294
    %v6296 = vrot.slane %v6291, %v6295
    %v6297 = vlaneseq
    %v6298 = vshrl.u32 %v6297, 7
    %v6299 = vsub.s32 1, %v6298
    %v6300 = vrot.slane %v6291, %v6299
    %v6301 = vlaneseq
    %v6302 = vshrl.u32 %v6301, 7
    %v6303 = vsub.s32 2, %v6302
    %v6304 = vrot.slane %v6291, %v6303
    %v6305 = vlaneseq
    %v6306 = vshrl.u32 %v6305, 7
    %v6307 = vsub.s32 3, %v6306
    %v6308 = vrot.slane %v6291, %v6307
    %v6313 = vmul.f32 %v6287, %v6296
    %v6314 = vmul.f32 %v6283, %v6300
    %v6315 = vmul.f32 %v6279, %v6304
    %v6316 = vmul.f32 %v6275, %v6308
    %v6317 = vmul.f32 %v6288, %v6296
    %v6318 = vmul.f32 %v6284, %v6300
    %v6319 = vmul.f32 %v6280, %v6304
    %v6320 = vmul.f32 %v6276, %v6308
    %v6321 = vmul.f32 %v6289, %v6296
    %v6322 = vmul.f32 %v6285, %v6300
    %v6323 = vmul.f32 %v6281, %v6304
    %v6324 = vmul.f32 %v6277, %v6308
    %v6325 = vmul.f32 %v6290, %v6296
    %v6326 = vmul.f32 %v6286, %v6300
    %v6327 = vmul.f32 %v6282, %v6304
    %v6328 = vmul.f32 %v6278, %v6308
    %v6329 = vpack.c.bf16 %v6317, %v6313
    %v6330 = vpack.c.bf16 %v6318, %v6314
    %v6331 = vpack.c.bf16 %v6319, %v6315
    %v6332 = vpack.c.bf16 %v6320, %v6316
    %v6333 = vpack.c.bf16 %v6325, %v6321
    %v6334 = vpack.c.bf16 %v6326, %v6322
    %v6335 = vpack.c.bf16 %v6327, %v6323
    %v6336 = vpack.c.bf16 %v6328, %v6324
    %6337 = vst [vmem:[#allocation2 + $0x180] sm:$0xff] %v6329
    %6338 = vst [vmem:[#allocation2 + $0x188] sm:$0xff] %v6330
    %6339 = vst [vmem:[#allocation2 + $0x190] sm:$0xff] %v6331
    %6340 = vst [vmem:[#allocation2 + $0x198] sm:$0xff] %v6332
    %v6341 = vld [vmem:[#allocation2 + $0x1a0] sm:$0x1f]
    %v6342 = vsel %vm1375, %v6333, %v6341
    %6343 = vst [vmem:[#allocation2 + $0x1a0] sm:$0x1f] %v6342
    %v6344 = vld [vmem:[#allocation2 + $0x1a8] sm:$0x1f]
    %v6345 = vsel %vm1375, %v6334, %v6344
    %6346 = vst [vmem:[#allocation2 + $0x1a8] sm:$0x1f] %v6345
    %v6347 = vld [vmem:[#allocation2 + $0x1b0] sm:$0x1f]
    %v6348 = vsel %vm1375, %v6335, %v6347
    %6349 = vst [vmem:[#allocation2 + $0x1b0] sm:$0x1f] %v6348
    %v6350 = vld [vmem:[#allocation2 + $0x1b8] sm:$0x1f]
    %v6351 = vsel %vm1375, %v6336, %v6350
    %6352 = vst [vmem:[#allocation2 + $0x1b8] sm:$0x1f] %v6351
    %6353 = vrot.lane.b32.xlu0 %v5265, 16
    %v6354 = vpop.permute.xlu0 %6353
    %6355 = vrot.lane.b32.xlu0 %v5269, 16
    %v6356 = vpop.permute.xlu0 %6355
    %6357 = vrot.lane.b32.xlu0 %v5273, 16
    %v6358 = vpop.permute.xlu0 %6357
    %6359 = vrot.lane.b32.xlu0 %v5277, 16
    %v6360 = vpop.permute.xlu0 %6359
    %6361 = vrot.lane.b32.xlu0 %v5266, 16
    %v6362 = vpop.permute.xlu0 %6361
    %6363 = vrot.lane.b32.xlu0 %v5270, 16
    %v6364 = vpop.permute.xlu0 %6363
    %6365 = vrot.lane.b32.xlu0 %v5274, 16
    %v6366 = vpop.permute.xlu0 %6365
    %6367 = vrot.lane.b32.xlu0 %v5278, 16
    %v6368 = vpop.permute.xlu0 %6367
    %6369 = vrot.lane.b32.xlu0 %v5267, 16
    %v6370 = vpop.permute.xlu0 %6369
    %6371 = vrot.lane.b32.xlu0 %v5271, 16
    %v6372 = vpop.permute.xlu0 %6371
    %6373 = vrot.lane.b32.xlu0 %v5275, 16
    %v6374 = vpop.permute.xlu0 %6373
    %6375 = vrot.lane.b32.xlu0 %v5279, 16
    %v6376 = vpop.permute.xlu0 %6375
    %6377 = vrot.lane.b32.xlu0 %v5268, 16
    %v6378 = vpop.permute.xlu0 %6377
    %6379 = vrot.lane.b32.xlu0 %v5272, 16
    %v6380 = vpop.permute.xlu0 %6379
    %6381 = vrot.lane.b32.xlu0 %v5276, 16
    %v6382 = vpop.permute.xlu0 %6381
    %6383 = vrot.lane.b32.xlu0 %v5280, 16
    %v6384 = vpop.permute.xlu0 %6383
    %v6385 = vsel %vm2092, %v6370, %v6378
    %v6386 = vsel %vm2092, %v6372, %v6380
    %v6387 = vsel %vm2092, %v6374, %v6382
    %v6388 = vsel %vm2092, %v6376, %v6384
    %v6389 = vsel %vm2092, %v6362, %v6370
    %v6390 = vsel %vm2092, %v6364, %v6372
    %v6391 = vsel %vm2092, %v6366, %v6374
    %v6392 = vsel %vm2092, %v6368, %v6376
    %v6393 = vsel %vm2092, %v6354, %v6362
    %v6394 = vsel %vm2092, %v6356, %v6364
    %v6395 = vsel %vm2092, %v6358, %v6366
    %v6396 = vsel %vm2092, %v6360, %v6368
    %v6397 = vsel %vm2092, %v6378, %v6354
    %v6398 = vsel %vm2092, %v6380, %v6356
    %v6399 = vsel %vm2092, %v6382, %v6358
    %v6400 = vsel %vm2092, %v6384, %v6360
    %v6401 = vld [vmem:[%s2109] ss:$8 sm:$0xf]
    %v6403 = vlaneseq
    %v6404 = vshrl.u32 %v6403, 7
    %v6405 = vsub.s32 0, %v6404
    %v6406 = vrot.slane %v6401, %v6405
    %v6407 = vlaneseq
    %v6408 = vshrl.u32 %v6407, 7
    %v6409 = vsub.s32 1, %v6408
    %v6410 = vrot.slane %v6401, %v6409
    %v6411 = vlaneseq
    %v6412 = vshrl.u32 %v6411, 7
    %v6413 = vsub.s32 2, %v6412
    %v6414 = vrot.slane %v6401, %v6413
    %v6415 = vlaneseq
    %v6416 = vshrl.u32 %v6415, 7
    %v6417 = vsub.s32 3, %v6416
    %v6418 = vrot.slane %v6401, %v6417
    %v6423 = vmul.f32 %v6397, %v6406
    %v6424 = vmul.f32 %v6393, %v6410
    %v6425 = vmul.f32 %v6389, %v6414
    %v6426 = vmul.f32 %v6385, %v6418
    %v6427 = vmul.f32 %v6398, %v6406
    %v6428 = vmul.f32 %v6394, %v6410
    %v6429 = vmul.f32 %v6390, %v6414
    %v6430 = vmul.f32 %v6386, %v6418
    %v6431 = vmul.f32 %v6399, %v6406
    %v6432 = vmul.f32 %v6395, %v6410
    %v6433 = vmul.f32 %v6391, %v6414
    %v6434 = vmul.f32 %v6387, %v6418
    %v6435 = vmul.f32 %v6400, %v6406
    %v6436 = vmul.f32 %v6396, %v6410
    %v6437 = vmul.f32 %v6392, %v6414
    %v6438 = vmul.f32 %v6388, %v6418
    %v6439 = vpack.c.bf16 %v6427, %v6423
    %v6440 = vpack.c.bf16 %v6428, %v6424
    %v6441 = vpack.c.bf16 %v6429, %v6425
    %v6442 = vpack.c.bf16 %v6430, %v6426
    %v6443 = vpack.c.bf16 %v6435, %v6431
    %v6444 = vpack.c.bf16 %v6436, %v6432
    %v6445 = vpack.c.bf16 %v6437, %v6433
    %v6446 = vpack.c.bf16 %v6438, %v6434
    %6447 = vst [vmem:[#allocation2 + $0x1c0] sm:$0xff] %v6439
    %6448 = vst [vmem:[#allocation2 + $0x1c8] sm:$0xff] %v6440
    %6449 = vst [vmem:[#allocation2 + $0x1d0] sm:$0xff] %v6441
    %6450 = vst [vmem:[#allocation2 + $0x1d8] sm:$0xff] %v6442
    %v6451 = vld [vmem:[#allocation2 + $0x1e0] sm:$0x1f]
    %v6452 = vsel %vm1375, %v6443, %v6451
    %6453 = vst [vmem:[#allocation2 + $0x1e0] sm:$0x1f] %v6452
    %v6454 = vld [vmem:[#allocation2 + $0x1e8] sm:$0x1f]
    %v6455 = vsel %vm1375, %v6444, %v6454
    %6456 = vst [vmem:[#allocation2 + $0x1e8] sm:$0x1f] %v6455
    %v6457 = vld [vmem:[#allocation2 + $0x1f0] sm:$0x1f]
    %v6458 = vsel %vm1375, %v6445, %v6457
    %6459 = vst [vmem:[#allocation2 + $0x1f0] sm:$0x1f] %v6458
    %v6460 = vld [vmem:[#allocation2 + $0x1f8] sm:$0x1f]
    %v6461 = vsel %vm1375, %v6446, %v6460
    %6462 = vst [vmem:[#allocation2 + $0x1f8] sm:$0x1f] %v6461
    %6463 = vrot.lane.b32.xlu0 %v5265, 15
    %v6464 = vpop.permute.xlu0 %6463
    %6465 = vrot.lane.b32.xlu0 %v5269, 15
    %v6466 = vpop.permute.xlu0 %6465
    %6467 = vrot.lane.b32.xlu0 %v5273, 15
    %v6468 = vpop.permute.xlu0 %6467
    %6469 = vrot.lane.b32.xlu0 %v5277, 15
    %v6470 = vpop.permute.xlu0 %6469
    %6471 = vrot.lane.b32.xlu0 %v5266, 15
    %v6472 = vpop.permute.xlu0 %6471
    %6473 = vrot.lane.b32.xlu0 %v5270, 15
    %v6474 = vpop.permute.xlu0 %6473
    %6475 = vrot.lane.b32.xlu0 %v5274, 15
    %v6476 = vpop.permute.xlu0 %6475
    %6477 = vrot.lane.b32.xlu0 %v5278, 15
    %v6478 = vpop.permute.xlu0 %6477
    %6479 = vrot.lane.b32.xlu0 %v5267, 15
    %v6480 = vpop.permute.xlu0 %6479
    %6481 = vrot.lane.b32.xlu0 %v5271, 15
    %v6482 = vpop.permute.xlu0 %6481
    %6483 = vrot.lane.b32.xlu0 %v5275, 15
    %v6484 = vpop.permute.xlu0 %6483
    %6485 = vrot.lane.b32.xlu0 %v5279, 15
    %v6486 = vpop.permute.xlu0 %6485
    %6487 = vrot.lane.b32.xlu0 %v5268, 15
    %v6488 = vpop.permute.xlu0 %6487
    %6489 = vrot.lane.b32.xlu0 %v5272, 15
    %v6490 = vpop.permute.xlu0 %6489
    %6491 = vrot.lane.b32.xlu0 %v5276, 15
    %v6492 = vpop.permute.xlu0 %6491
    %6493 = vrot.lane.b32.xlu0 %v5280, 15
    %v6494 = vpop.permute.xlu0 %6493
    %v6495 = vsel %vm2204, %v6480, %v6488
    %v6496 = vsel %vm2204, %v6482, %v6490
    %v6497 = vsel %vm2204, %v6484, %v6492
    %v6498 = vsel %vm2204, %v6486, %v6494
    %v6499 = vsel %vm2204, %v6472, %v6480
    %v6500 = vsel %vm2204, %v6474, %v6482
    %v6501 = vsel %vm2204, %v6476, %v6484
    %v6502 = vsel %vm2204, %v6478, %v6486
    %v6503 = vsel %vm2204, %v6464, %v6472
    %v6504 = vsel %vm2204, %v6466, %v6474
    %v6505 = vsel %vm2204, %v6468, %v6476
    %v6506 = vsel %vm2204, %v6470, %v6478
    %v6507 = vsel %vm2204, %v6488, %v6464
    %v6508 = vsel %vm2204, %v6490, %v6466
    %v6509 = vsel %vm2204, %v6492, %v6468
    %v6510 = vsel %vm2204, %v6494, %v6470
    %v6511 = vld [vmem:[%s2221] ss:$8 sm:$0xf]
    %v6513 = vlaneseq
    %v6514 = vshrl.u32 %v6513, 7
    %v6515 = vsub.s32 0, %v6514
    %v6516 = vrot.slane %v6511, %v6515
    %v6517 = vlaneseq
    %v6518 = vshrl.u32 %v6517, 7
    %v6519 = vsub.s32 1, %v6518
    %v6520 = vrot.slane %v6511, %v6519
    %v6521 = vlaneseq
    %v6522 = vshrl.u32 %v6521, 7
    %v6523 = vsub.s32 2, %v6522
    %v6524 = vrot.slane %v6511, %v6523
    %v6525 = vlaneseq
    %v6526 = vshrl.u32 %v6525, 7
    %v6527 = vsub.s32 3, %v6526
    %v6528 = vrot.slane %v6511, %v6527
    %v6533 = vmul.f32 %v6507, %v6516
    %v6534 = vmul.f32 %v6503, %v6520
    %v6535 = vmul.f32 %v6499, %v6524
    %v6536 = vmul.f32 %v6495, %v6528
    %v6537 = vmul.f32 %v6508, %v6516
    %v6538 = vmul.f32 %v6504, %v6520
    %v6539 = vmul.f32 %v6500, %v6524
    %v6540 = vmul.f32 %v6496, %v6528
    %v6541 = vmul.f32 %v6509, %v6516
    %v6542 = vmul.f32 %v6505, %v6520
    %v6543 = vmul.f32 %v6501, %v6524
    %v6544 = vmul.f32 %v6497, %v6528
    %v6545 = vmul.f32 %v6510, %v6516
    %v6546 = vmul.f32 %v6506, %v6520
    %v6547 = vmul.f32 %v6502, %v6524
    %v6548 = vmul.f32 %v6498, %v6528
    %v6549 = vpack.c.bf16 %v6537, %v6533
    %v6550 = vpack.c.bf16 %v6538, %v6534
    %v6551 = vpack.c.bf16 %v6539, %v6535
    %v6552 = vpack.c.bf16 %v6540, %v6536
    %v6553 = vpack.c.bf16 %v6545, %v6541
    %v6554 = vpack.c.bf16 %v6546, %v6542
    %v6555 = vpack.c.bf16 %v6547, %v6543
    %v6556 = vpack.c.bf16 %v6548, %v6544
    %6557 = vst [vmem:[#allocation2 + $0x200] sm:$0xff] %v6549
    %6558 = vst [vmem:[#allocation2 + $0x208] sm:$0xff] %v6550
    %6559 = vst [vmem:[#allocation2 + $0x210] sm:$0xff] %v6551
    %6560 = vst [vmem:[#allocation2 + $0x218] sm:$0xff] %v6552
    %v6561 = vld [vmem:[#allocation2 + $0x220] sm:$0x1f]
    %v6562 = vsel %vm1375, %v6553, %v6561
    %6563 = vst [vmem:[#allocation2 + $0x220] sm:$0x1f] %v6562
    %v6564 = vld [vmem:[#allocation2 + $0x228] sm:$0x1f]
    %v6565 = vsel %vm1375, %v6554, %v6564
    %6566 = vst [vmem:[#allocation2 + $0x228] sm:$0x1f] %v6565
    %v6567 = vld [vmem:[#allocation2 + $0x230] sm:$0x1f]
    %v6568 = vsel %vm1375, %v6555, %v6567
    %6569 = vst [vmem:[#allocation2 + $0x230] sm:$0x1f] %v6568
    %v6570 = vld [vmem:[#allocation2 + $0x238] sm:$0x1f]
    %v6571 = vsel %vm1375, %v6556, %v6570
    %6572 = vst [vmem:[#allocation2 + $0x238] sm:$0x1f] %v6571
    %6573 = vrot.lane.b32.xlu0 %v5265, 14
    %v6574 = vpop.permute.xlu0 %6573
    %6575 = vrot.lane.b32.xlu0 %v5269, 14
    %v6576 = vpop.permute.xlu0 %6575
    %6577 = vrot.lane.b32.xlu0 %v5273, 14
    %v6578 = vpop.permute.xlu0 %6577
    %6579 = vrot.lane.b32.xlu0 %v5277, 14
    %v6580 = vpop.permute.xlu0 %6579
    %6581 = vrot.lane.b32.xlu0 %v5266, 14
    %v6582 = vpop.permute.xlu0 %6581
    %6583 = vrot.lane.b32.xlu0 %v5270, 14
    %v6584 = vpop.permute.xlu0 %6583
    %6585 = vrot.lane.b32.xlu0 %v5274, 14
    %v6586 = vpop.permute.xlu0 %6585
    %6587 = vrot.lane.b32.xlu0 %v5278, 14
    %v6588 = vpop.permute.xlu0 %6587
    %6589 = vrot.lane.b32.xlu0 %v5267, 14
    %v6590 = vpop.permute.xlu0 %6589
    %6591 = vrot.lane.b32.xlu0 %v5271, 14
    %v6592 = vpop.permute.xlu0 %6591
    %6593 = vrot.lane.b32.xlu0 %v5275, 14
    %v6594 = vpop.permute.xlu0 %6593
    %6595 = vrot.lane.b32.xlu0 %v5279, 14
    %v6596 = vpop.permute.xlu0 %6595
    %6597 = vrot.lane.b32.xlu0 %v5268, 14
    %v6598 = vpop.permute.xlu0 %6597
    %6599 = vrot.lane.b32.xlu0 %v5272, 14
    %v6600 = vpop.permute.xlu0 %6599
    %6601 = vrot.lane.b32.xlu0 %v5276, 14
    %v6602 = vpop.permute.xlu0 %6601
    %6603 = vrot.lane.b32.xlu0 %v5280, 14
    %v6604 = vpop.permute.xlu0 %6603
    %v6605 = vsel %vm2316, %v6590, %v6598
    %v6606 = vsel %vm2316, %v6592, %v6600
    %v6607 = vsel %vm2316, %v6594, %v6602
    %v6608 = vsel %vm2316, %v6596, %v6604
    %v6609 = vsel %vm2316, %v6582, %v6590
    %v6610 = vsel %vm2316, %v6584, %v6592
    %v6611 = vsel %vm2316, %v6586, %v6594
    %v6612 = vsel %vm2316, %v6588, %v6596
    %v6613 = vsel %vm2316, %v6574, %v6582
    %v6614 = vsel %vm2316, %v6576, %v6584
    %v6615 = vsel %vm2316, %v6578, %v6586
    %v6616 = vsel %vm2316, %v6580, %v6588
    %v6617 = vsel %vm2316, %v6598, %v6574
    %v6618 = vsel %vm2316, %v6600, %v6576
    %v6619 = vsel %vm2316, %v6602, %v6578
    %v6620 = vsel %vm2316, %v6604, %v6580
    %v6621 = vld [vmem:[%s2333] ss:$8 sm:$0xf]
    %v6623 = vlaneseq
    %v6624 = vshrl.u32 %v6623, 7
    %v6625 = vsub.s32 0, %v6624
    %v6626 = vrot.slane %v6621, %v6625
    %v6627 = vlaneseq
    %v6628 = vshrl.u32 %v6627, 7
    %v6629 = vsub.s32 1, %v6628
    %v6630 = vrot.slane %v6621, %v6629
    %v6631 = vlaneseq
    %v6632 = vshrl.u32 %v6631, 7
    %v6633 = vsub.s32 2, %v6632
    %v6634 = vrot.slane %v6621, %v6633
    %v6635 = vlaneseq
    %v6636 = vshrl.u32 %v6635, 7
    %v6637 = vsub.s32 3, %v6636
    %v6638 = vrot.slane %v6621, %v6637
    %v6643 = vmul.f32 %v6617, %v6626
    %v6644 = vmul.f32 %v6613, %v6630
    %v6645 = vmul.f32 %v6609, %v6634
    %v6646 = vmul.f32 %v6605, %v6638
    %v6647 = vmul.f32 %v6618, %v6626
    %v6648 = vmul.f32 %v6614, %v6630
    %v6649 = vmul.f32 %v6610, %v6634
    %v6650 = vmul.f32 %v6606, %v6638
    %v6651 = vmul.f32 %v6619, %v6626
    %v6652 = vmul.f32 %v6615, %v6630
    %v6653 = vmul.f32 %v6611, %v6634
    %v6654 = vmul.f32 %v6607, %v6638
    %v6655 = vmul.f32 %v6620, %v6626
    %v6656 = vmul.f32 %v6616, %v6630
    %v6657 = vmul.f32 %v6612, %v6634
    %v6658 = vmul.f32 %v6608, %v6638
    %v6659 = vpack.c.bf16 %v6647, %v6643
    %v6660 = vpack.c.bf16 %v6648, %v6644
    %v6661 = vpack.c.bf16 %v6649, %v6645
    %v6662 = vpack.c.bf16 %v6650, %v6646
    %v6663 = vpack.c.bf16 %v6655, %v6651
    %v6664 = vpack.c.bf16 %v6656, %v6652
    %v6665 = vpack.c.bf16 %v6657, %v6653
    %v6666 = vpack.c.bf16 %v6658, %v6654
    %6667 = vst [vmem:[#allocation2 + $0x240] sm:$0xff] %v6659
    %6668 = vst [vmem:[#allocation2 + $0x248] sm:$0xff] %v6660
    %6669 = vst [vmem:[#allocation2 + $0x250] sm:$0xff] %v6661
    %6670 = vst [vmem:[#allocation2 + $0x258] sm:$0xff] %v6662
    %v6671 = vld [vmem:[#allocation2 + $0x260] sm:$0x1f]
    %v6672 = vsel %vm1375, %v6663, %v6671
    %6673 = vst [vmem:[#allocation2 + $0x260] sm:$0x1f] %v6672
    %v6674 = vld [vmem:[#allocation2 + $0x268] sm:$0x1f]
    %v6675 = vsel %vm1375, %v6664, %v6674
    %6676 = vst [vmem:[#allocation2 + $0x268] sm:$0x1f] %v6675
    %v6677 = vld [vmem:[#allocation2 + $0x270] sm:$0x1f]
    %v6678 = vsel %vm1375, %v6665, %v6677
    %6679 = vst [vmem:[#allocation2 + $0x270] sm:$0x1f] %v6678
    %v6680 = vld [vmem:[#allocation2 + $0x278] sm:$0x1f]
    %v6681 = vsel %vm1375, %v6666, %v6680
    %6682 = vst [vmem:[#allocation2 + $0x278] sm:$0x1f] %v6681
    %6683 = vrot.lane.b32.xlu0 %v5265, 2
    %v6684 = vpop.permute.xlu0 %6683
    %6685 = vrot.lane.b32.xlu0 %v5269, 2
    %v6686 = vpop.permute.xlu0 %6685
    %6687 = vrot.lane.b32.xlu0 %v5273, 2
    %v6688 = vpop.permute.xlu0 %6687
    %6689 = vrot.lane.b32.xlu0 %v5277, 2
    %v6690 = vpop.permute.xlu0 %6689
    %6691 = vrot.lane.b32.xlu0 %v5266, 2
    %v6692 = vpop.permute.xlu0 %6691
    %6693 = vrot.lane.b32.xlu0 %v5270, 2
    %v6694 = vpop.permute.xlu0 %6693
    %6695 = vrot.lane.b32.xlu0 %v5274, 2
    %v6696 = vpop.permute.xlu0 %6695
    %6697 = vrot.lane.b32.xlu0 %v5278, 2
    %v6698 = vpop.permute.xlu0 %6697
    %6699 = vrot.lane.b32.xlu0 %v5267, 2
    %v6700 = vpop.permute.xlu0 %6699
    %6701 = vrot.lane.b32.xlu0 %v5271, 2
    %v6702 = vpop.permute.xlu0 %6701
    %6703 = vrot.lane.b32.xlu0 %v5275, 2
    %v6704 = vpop.permute.xlu0 %6703
    %6705 = vrot.lane.b32.xlu0 %v5279, 2
    %v6706 = vpop.permute.xlu0 %6705
    %6707 = vrot.lane.b32.xlu0 %v5268, 2
    %v6708 = vpop.permute.xlu0 %6707
    %6709 = vrot.lane.b32.xlu0 %v5272, 2
    %v6710 = vpop.permute.xlu0 %6709
    %6711 = vrot.lane.b32.xlu0 %v5276, 2
    %v6712 = vpop.permute.xlu0 %6711
    %6713 = vrot.lane.b32.xlu0 %v5280, 2
    %v6714 = vpop.permute.xlu0 %6713
    %v6715 = vsel %vm2428, %v6700, %v6708
    %v6716 = vsel %vm2428, %v6702, %v6710
    %v6717 = vsel %vm2428, %v6704, %v6712
    %v6718 = vsel %vm2428, %v6706, %v6714
    %v6719 = vsel %vm2428, %v6692, %v6700
    %v6720 = vsel %vm2428, %v6694, %v6702
    %v6721 = vsel %vm2428, %v6696, %v6704
    %v6722 = vsel %vm2428, %v6698, %v6706
    %v6723 = vsel %vm2428, %v6684, %v6692
    %v6724 = vsel %vm2428, %v6686, %v6694
    %v6725 = vsel %vm2428, %v6688, %v6696
    %v6726 = vsel %vm2428, %v6690, %v6698
    %v6727 = vsel %vm2428, %v6708, %v6684
    %v6728 = vsel %vm2428, %v6710, %v6686
    %v6729 = vsel %vm2428, %v6712, %v6688
    %v6730 = vsel %vm2428, %v6714, %v6690
    %v6731 = vld [vmem:[%s2445] ss:$8 sm:$0xf]
    %v6733 = vlaneseq
    %v6734 = vshrl.u32 %v6733, 7
    %v6735 = vsub.s32 0, %v6734
    %v6736 = vrot.slane %v6731, %v6735
    %v6737 = vlaneseq
    %v6738 = vshrl.u32 %v6737, 7
    %v6739 = vsub.s32 1, %v6738
    %v6740 = vrot.slane %v6731, %v6739
    %v6741 = vlaneseq
    %v6742 = vshrl.u32 %v6741, 7
    %v6743 = vsub.s32 2, %v6742
    %v6744 = vrot.slane %v6731, %v6743
    %v6745 = vlaneseq
    %v6746 = vshrl.u32 %v6745, 7
    %v6747 = vsub.s32 3, %v6746
    %v6748 = vrot.slane %v6731, %v6747
    %v6753 = vmul.f32 %v6727, %v6736
    %v6754 = vmul.f32 %v6723, %v6740
    %v6755 = vmul.f32 %v6719, %v6744
    %v6756 = vmul.f32 %v6715, %v6748
    %v6757 = vmul.f32 %v6728, %v6736
    %v6758 = vmul.f32 %v6724, %v6740
    %v6759 = vmul.f32 %v6720, %v6744
    %v6760 = vmul.f32 %v6716, %v6748
    %v6761 = vmul.f32 %v6729, %v6736
    %v6762 = vmul.f32 %v6725, %v6740
    %v6763 = vmul.f32 %v6721, %v6744
    %v6764 = vmul.f32 %v6717, %v6748
    %v6765 = vmul.f32 %v6730, %v6736
    %v6766 = vmul.f32 %v6726, %v6740
    %v6767 = vmul.f32 %v6722, %v6744
    %v6768 = vmul.f32 %v6718, %v6748
    %v6769 = vpack.c.bf16 %v6757, %v6753
    %v6770 = vpack.c.bf16 %v6758, %v6754
    %v6771 = vpack.c.bf16 %v6759, %v6755
    %v6772 = vpack.c.bf16 %v6760, %v6756
    %v6773 = vpack.c.bf16 %v6765, %v6761
    %v6774 = vpack.c.bf16 %v6766, %v6762
    %v6775 = vpack.c.bf16 %v6767, %v6763
    %v6776 = vpack.c.bf16 %v6768, %v6764
    %6777 = vst [vmem:[#allocation2 + $0x280] sm:$0xff] %v6769
    %6778 = vst [vmem:[#allocation2 + $0x288] sm:$0xff] %v6770
    %6779 = vst [vmem:[#allocation2 + $0x290] sm:$0xff] %v6771
    %6780 = vst [vmem:[#allocation2 + $0x298] sm:$0xff] %v6772
    %v6781 = vld [vmem:[#allocation2 + $0x2a0] sm:$0x1f]
    %v6782 = vsel %vm1375, %v6773, %v6781
    %6783 = vst [vmem:[#allocation2 + $0x2a0] sm:$0x1f] %v6782
    %v6784 = vld [vmem:[#allocation2 + $0x2a8] sm:$0x1f]
    %v6785 = vsel %vm1375, %v6774, %v6784
    %6786 = vst [vmem:[#allocation2 + $0x2a8] sm:$0x1f] %v6785
    %v6787 = vld [vmem:[#allocation2 + $0x2b0] sm:$0x1f]
    %v6788 = vsel %vm1375, %v6775, %v6787
    %6789 = vst [vmem:[#allocation2 + $0x2b0] sm:$0x1f] %v6788
    %v6790 = vld [vmem:[#allocation2 + $0x2b8] sm:$0x1f]
    %v6791 = vsel %vm1375, %v6776, %v6790
    %6792 = vst [vmem:[#allocation2 + $0x2b8] sm:$0x1f] %v6791
    %6793 = vrot.lane.b32.xlu0 %v5265, 1
    %v6794 = vpop.permute.xlu0 %6793
    %6795 = vrot.lane.b32.xlu0 %v5269, 1
    %v6796 = vpop.permute.xlu0 %6795
    %6797 = vrot.lane.b32.xlu0 %v5273, 1
    %v6798 = vpop.permute.xlu0 %6797
    %6799 = vrot.lane.b32.xlu0 %v5277, 1
    %v6800 = vpop.permute.xlu0 %6799
    %6801 = vrot.lane.b32.xlu0 %v5266, 1
    %v6802 = vpop.permute.xlu0 %6801
    %6803 = vrot.lane.b32.xlu0 %v5270, 1
    %v6804 = vpop.permute.xlu0 %6803
    %6805 = vrot.lane.b32.xlu0 %v5274, 1
    %v6806 = vpop.permute.xlu0 %6805
    %6807 = vrot.lane.b32.xlu0 %v5278, 1
    %v6808 = vpop.permute.xlu0 %6807
    %6809 = vrot.lane.b32.xlu0 %v5267, 1
    %v6810 = vpop.permute.xlu0 %6809
    %6811 = vrot.lane.b32.xlu0 %v5271, 1
    %v6812 = vpop.permute.xlu0 %6811
    %6813 = vrot.lane.b32.xlu0 %v5275, 1
    %v6814 = vpop.permute.xlu0 %6813
    %6815 = vrot.lane.b32.xlu0 %v5279, 1
    %v6816 = vpop.permute.xlu0 %6815
    %6817 = vrot.lane.b32.xlu0 %v5268, 1
    %v6818 = vpop.permute.xlu0 %6817
    %6819 = vrot.lane.b32.xlu0 %v5272, 1
    %v6820 = vpop.permute.xlu0 %6819
    %6821 = vrot.lane.b32.xlu0 %v5276, 1
    %v6822 = vpop.permute.xlu0 %6821
    %6823 = vrot.lane.b32.xlu0 %v5280, 1
    %v6824 = vpop.permute.xlu0 %6823
    %v6825 = vsel %vm2540, %v6810, %v6818
    %v6826 = vsel %vm2540, %v6812, %v6820
    %v6827 = vsel %vm2540, %v6814, %v6822
    %v6828 = vsel %vm2540, %v6816, %v6824
    %v6829 = vsel %vm2540, %v6802, %v6810
    %v6830 = vsel %vm2540, %v6804, %v6812
    %v6831 = vsel %vm2540, %v6806, %v6814
    %v6832 = vsel %vm2540, %v6808, %v6816
    %v6833 = vsel %vm2540, %v6794, %v6802
    %v6834 = vsel %vm2540, %v6796, %v6804
    %v6835 = vsel %vm2540, %v6798, %v6806
    %v6836 = vsel %vm2540, %v6800, %v6808
    %v6837 = vsel %vm2540, %v6818, %v6794
    %v6838 = vsel %vm2540, %v6820, %v6796
    %v6839 = vsel %vm2540, %v6822, %v6798
    %v6840 = vsel %vm2540, %v6824, %v6800
    %v6841 = vld [vmem:[%s2557] ss:$8 sm:$0xf]
    %v6843 = vlaneseq
    %v6844 = vshrl.u32 %v6843, 7
    %v6845 = vsub.s32 0, %v6844
    %v6846 = vrot.slane %v6841, %v6845
    %v6847 = vlaneseq
    %v6848 = vshrl.u32 %v6847, 7
    %v6849 = vsub.s32 1, %v6848
    %v6850 = vrot.slane %v6841, %v6849
    %v6851 = vlaneseq
    %v6852 = vshrl.u32 %v6851, 7
    %v6853 = vsub.s32 2, %v6852
    %v6854 = vrot.slane %v6841, %v6853
    %v6855 = vlaneseq
    %v6856 = vshrl.u32 %v6855, 7
    %v6857 = vsub.s32 3, %v6856
    %v6858 = vrot.slane %v6841, %v6857
    %v6863 = vmul.f32 %v6837, %v6846
    %v6864 = vmul.f32 %v6833, %v6850
    %v6865 = vmul.f32 %v6829, %v6854
    %v6866 = vmul.f32 %v6825, %v6858
    %v6867 = vmul.f32 %v6838, %v6846
    %v6868 = vmul.f32 %v6834, %v6850
    %v6869 = vmul.f32 %v6830, %v6854
    %v6870 = vmul.f32 %v6826, %v6858
    %v6871 = vmul.f32 %v6839, %v6846
    %v6872 = vmul.f32 %v6835, %v6850
    %v6873 = vmul.f32 %v6831, %v6854
    %v6874 = vmul.f32 %v6827, %v6858
    %v6875 = vmul.f32 %v6840, %v6846
    %v6876 = vmul.f32 %v6836, %v6850
    %v6877 = vmul.f32 %v6832, %v6854
    %v6878 = vmul.f32 %v6828, %v6858
    %v6879 = vpack.c.bf16 %v6867, %v6863
    %v6880 = vpack.c.bf16 %v6868, %v6864
    %v6881 = vpack.c.bf16 %v6869, %v6865
    %v6882 = vpack.c.bf16 %v6870, %v6866
    %v6883 = vpack.c.bf16 %v6875, %v6871
    %v6884 = vpack.c.bf16 %v6876, %v6872
    %v6885 = vpack.c.bf16 %v6877, %v6873
    %v6886 = vpack.c.bf16 %v6878, %v6874
    %6887 = vst [vmem:[#allocation2 + $0x2c0] sm:$0xff] %v6879
    %6888 = vst [vmem:[#allocation2 + $0x2c8] sm:$0xff] %v6880
    %6889 = vst [vmem:[#allocation2 + $0x2d0] sm:$0xff] %v6881
    %6890 = vst [vmem:[#allocation2 + $0x2d8] sm:$0xff] %v6882
    %v6891 = vld [vmem:[#allocation2 + $0x2e0] sm:$0x1f]
    %v6892 = vsel %vm1375, %v6883, %v6891
    %6893 = vst [vmem:[#allocation2 + $0x2e0] sm:$0x1f] %v6892
    %v6894 = vld [vmem:[#allocation2 + $0x2e8] sm:$0x1f]
    %v6895 = vsel %vm1375, %v6884, %v6894
    %6896 = vst [vmem:[#allocation2 + $0x2e8] sm:$0x1f] %v6895
    %v6897 = vld [vmem:[#allocation2 + $0x2f0] sm:$0x1f]
    %v6898 = vsel %vm1375, %v6885, %v6897
    %6899 = vst [vmem:[#allocation2 + $0x2f0] sm:$0x1f] %v6898
    %v6900 = vld [vmem:[#allocation2 + $0x2f8] sm:$0x1f]
    %v6901 = vsel %vm1375, %v6886, %v6900
    %6902 = vst [vmem:[#allocation2 + $0x2f8] sm:$0x1f] %v6901
    %v6903 = vpack.c.bf16 %v5269, %v5265
    %v6904 = vpack.c.bf16 %v5270, %v5266
    %v6905 = vpack.c.bf16 %v5271, %v5267
    %v6906 = vpack.c.bf16 %v5272, %v5268
    %v6907 = vpack.c.bf16 %v5277, %v5273
    %v6908 = vpack.c.bf16 %v5278, %v5274
    %v6909 = vpack.c.bf16 %v5279, %v5275
    %v6910 = vpack.c.bf16 %v5280, %v5276
    %6911 = vst [vmem:[#allocation2 + $0x300] sm:$0xff] %v6903
    %6912 = vst [vmem:[#allocation2 + $0x308] sm:$0xff] %v6904
    %6913 = vst [vmem:[#allocation2 + $0x310] sm:$0xff] %v6905
    %6914 = vst [vmem:[#allocation2 + $0x318] sm:$0xff] %v6906
    %v6915 = vld [vmem:[#allocation2 + $0x320] sm:$0x1f]
    %v6916 = vsel %vm1375, %v6907, %v6915
    %6917 = vst [vmem:[#allocation2 + $0x320] sm:$0x1f] %v6916
    %v6918 = vld [vmem:[#allocation2 + $0x328] sm:$0x1f]
    %v6919 = vsel %vm1375, %v6908, %v6918
    %6920 = vst [vmem:[#allocation2 + $0x328] sm:$0x1f] %v6919
    %v6921 = vld [vmem:[#allocation2 + $0x330] sm:$0x1f]
    %v6922 = vsel %vm1375, %v6909, %v6921
    %6923 = vst [vmem:[#allocation2 + $0x330] sm:$0x1f] %v6922
    %v6924 = vld [vmem:[#allocation2 + $0x338] sm:$0x1f]
    %v6925 = vsel %vm1375, %v6910, %v6924
    %6926 = vst [vmem:[#allocation2 + $0x338] sm:$0x1f] %v6925
    %6927 = vrot.lane.b32.xlu0 %v5265, 127
    %v6928 = vpop.permute.xlu0 %6927
    %6929 = vrot.lane.b32.xlu0 %v5269, 127
    %v6930 = vpop.permute.xlu0 %6929
    %6931 = vrot.lane.b32.xlu0 %v5273, 127
    %v6932 = vpop.permute.xlu0 %6931
    %6933 = vrot.lane.b32.xlu0 %v5277, 127
    %v6934 = vpop.permute.xlu0 %6933
    %6935 = vrot.lane.b32.xlu0 %v5266, 127
    %v6936 = vpop.permute.xlu0 %6935
    %6937 = vrot.lane.b32.xlu0 %v5270, 127
    %v6938 = vpop.permute.xlu0 %6937
    %6939 = vrot.lane.b32.xlu0 %v5274, 127
    %v6940 = vpop.permute.xlu0 %6939
    %6941 = vrot.lane.b32.xlu0 %v5278, 127
    %v6942 = vpop.permute.xlu0 %6941
    %6943 = vrot.lane.b32.xlu0 %v5267, 127
    %v6944 = vpop.permute.xlu0 %6943
    %6945 = vrot.lane.b32.xlu0 %v5271, 127
    %v6946 = vpop.permute.xlu0 %6945
    %6947 = vrot.lane.b32.xlu0 %v5275, 127
    %v6948 = vpop.permute.xlu0 %6947
    %6949 = vrot.lane.b32.xlu0 %v5279, 127
    %v6950 = vpop.permute.xlu0 %6949
    %6951 = vrot.lane.b32.xlu0 %v5268, 127
    %v6952 = vpop.permute.xlu0 %6951
    %6953 = vrot.lane.b32.xlu0 %v5272, 127
    %v6954 = vpop.permute.xlu0 %6953
    %6955 = vrot.lane.b32.xlu0 %v5276, 127
    %v6956 = vpop.permute.xlu0 %6955
    %6957 = vrot.lane.b32.xlu0 %v5280, 127
    %v6958 = vpop.permute.xlu0 %6957
    %v6959 = vsel %vm2676, %v6944, %v6952
    %v6960 = vsel %vm2676, %v6946, %v6954
    %v6961 = vsel %vm2676, %v6948, %v6956
    %v6962 = vsel %vm2676, %v6950, %v6958
    %v6963 = vsel %vm2676, %v6936, %v6944
    %v6964 = vsel %vm2676, %v6938, %v6946
    %v6965 = vsel %vm2676, %v6940, %v6948
    %v6966 = vsel %vm2676, %v6942, %v6950
    %v6967 = vsel %vm2676, %v6928, %v6936
    %v6968 = vsel %vm2676, %v6930, %v6938
    %v6969 = vsel %vm2676, %v6932, %v6940
    %v6970 = vsel %vm2676, %v6934, %v6942
    %v6971 = vsel %vm2676, %v6952, %v6928
    %v6972 = vsel %vm2676, %v6954, %v6930
    %v6973 = vsel %vm2676, %v6956, %v6932
    %v6974 = vsel %vm2676, %v6958, %v6934
    %v6975 = vld [vmem:[%s2693] ss:$8 sm:$0xf]
    %v6977 = vlaneseq
    %v6978 = vshrl.u32 %v6977, 7
    %v6979 = vsub.s32 0, %v6978
    %v6980 = vrot.slane %v6975, %v6979
    %v6981 = vlaneseq
    %v6982 = vshrl.u32 %v6981, 7
    %v6983 = vsub.s32 1, %v6982
    %v6984 = vrot.slane %v6975, %v6983
    %v6985 = vlaneseq
    %v6986 = vshrl.u32 %v6985, 7
    %v6987 = vsub.s32 2, %v6986
    %v6988 = vrot.slane %v6975, %v6987
    %v6989 = vlaneseq
    %v6990 = vshrl.u32 %v6989, 7
    %v6991 = vsub.s32 3, %v6990
    %v6992 = vrot.slane %v6975, %v6991
    %v6997 = vmul.f32 %v6967, %v6980
    %v6998 = vmul.f32 %v6963, %v6984
    %v6999 = vmul.f32 %v6959, %v6988
    %v7000 = vmul.f32 %v6971, %v6992
    %v7001 = vmul.f32 %v6968, %v6980
    %v7002 = vmul.f32 %v6964, %v6984
    %v7003 = vmul.f32 %v6960, %v6988
    %v7004 = vmul.f32 %v6972, %v6992
    %v7005 = vmul.f32 %v6969, %v6980
    %v7006 = vmul.f32 %v6965, %v6984
    %v7007 = vmul.f32 %v6961, %v6988
    %v7008 = vmul.f32 %v6973, %v6992
    %v7009 = vmul.f32 %v6970, %v6980
    %v7010 = vmul.f32 %v6966, %v6984
    %v7011 = vmul.f32 %v6962, %v6988
    %v7012 = vmul.f32 %v6974, %v6992
    %v7013 = vpack.c.bf16 %v7001, %v6997
    %v7014 = vpack.c.bf16 %v7002, %v6998
    %v7015 = vpack.c.bf16 %v7003, %v6999
    %v7016 = vpack.c.bf16 %v7004, %v7000
    %v7017 = vpack.c.bf16 %v7009, %v7005
    %v7018 = vpack.c.bf16 %v7010, %v7006
    %v7019 = vpack.c.bf16 %v7011, %v7007
    %v7020 = vpack.c.bf16 %v7012, %v7008
    %7021 = vst [vmem:[#allocation2 + $0x340] sm:$0xff] %v7013
    %7022 = vst [vmem:[#allocation2 + $0x348] sm:$0xff] %v7014
    %7023 = vst [vmem:[#allocation2 + $0x350] sm:$0xff] %v7015
    %7024 = vst [vmem:[#allocation2 + $0x358] sm:$0xff] %v7016
    %v7025 = vld [vmem:[#allocation2 + $0x360] sm:$0x1f]
    %v7026 = vsel %vm1375, %v7017, %v7025
    %7027 = vst [vmem:[#allocation2 + $0x360] sm:$0x1f] %v7026
    %v7028 = vld [vmem:[#allocation2 + $0x368] sm:$0x1f]
    %v7029 = vsel %vm1375, %v7018, %v7028
    %7030 = vst [vmem:[#allocation2 + $0x368] sm:$0x1f] %v7029
    %v7031 = vld [vmem:[#allocation2 + $0x370] sm:$0x1f]
    %v7032 = vsel %vm1375, %v7019, %v7031
    %7033 = vst [vmem:[#allocation2 + $0x370] sm:$0x1f] %v7032
    %v7034 = vld [vmem:[#allocation2 + $0x378] sm:$0x1f]
    %v7035 = vsel %vm1375, %v7020, %v7034
    %7036 = vst [vmem:[#allocation2 + $0x378] sm:$0x1f] %v7035
    %7037 = vrot.lane.b32.xlu0 %v5265, 126
    %v7038 = vpop.permute.xlu0 %7037
    %7039 = vrot.lane.b32.xlu0 %v5269, 126
    %v7040 = vpop.permute.xlu0 %7039
    %7041 = vrot.lane.b32.xlu0 %v5273, 126
    %v7042 = vpop.permute.xlu0 %7041
    %7043 = vrot.lane.b32.xlu0 %v5277, 126
    %v7044 = vpop.permute.xlu0 %7043
    %7045 = vrot.lane.b32.xlu0 %v5266, 126
    %v7046 = vpop.permute.xlu0 %7045
    %7047 = vrot.lane.b32.xlu0 %v5270, 126
    %v7048 = vpop.permute.xlu0 %7047
    %7049 = vrot.lane.b32.xlu0 %v5274, 126
    %v7050 = vpop.permute.xlu0 %7049
    %7051 = vrot.lane.b32.xlu0 %v5278, 126
    %v7052 = vpop.permute.xlu0 %7051
    %7053 = vrot.lane.b32.xlu0 %v5267, 126
    %v7054 = vpop.permute.xlu0 %7053
    %7055 = vrot.lane.b32.xlu0 %v5271, 126
    %v7056 = vpop.permute.xlu0 %7055
    %7057 = vrot.lane.b32.xlu0 %v5275, 126
    %v7058 = vpop.permute.xlu0 %7057
    %7059 = vrot.lane.b32.xlu0 %v5279, 126
    %v7060 = vpop.permute.xlu0 %7059
    %7061 = vrot.lane.b32.xlu0 %v5268, 126
    %v7062 = vpop.permute.xlu0 %7061
    %7063 = vrot.lane.b32.xlu0 %v5272, 126
    %v7064 = vpop.permute.xlu0 %7063
    %7065 = vrot.lane.b32.xlu0 %v5276, 126
    %v7066 = vpop.permute.xlu0 %7065
    %7067 = vrot.lane.b32.xlu0 %v5280, 126
    %v7068 = vpop.permute.xlu0 %7067
    %v7069 = vsel %vm2788, %v7054, %v7062
    %v7070 = vsel %vm2788, %v7056, %v7064
    %v7071 = vsel %vm2788, %v7058, %v7066
    %v7072 = vsel %vm2788, %v7060, %v7068
    %v7073 = vsel %vm2788, %v7046, %v7054
    %v7074 = vsel %vm2788, %v7048, %v7056
    %v7075 = vsel %vm2788, %v7050, %v7058
    %v7076 = vsel %vm2788, %v7052, %v7060
    %v7077 = vsel %vm2788, %v7038, %v7046
    %v7078 = vsel %vm2788, %v7040, %v7048
    %v7079 = vsel %vm2788, %v7042, %v7050
    %v7080 = vsel %vm2788, %v7044, %v7052
    %v7081 = vsel %vm2788, %v7062, %v7038
    %v7082 = vsel %vm2788, %v7064, %v7040
    %v7083 = vsel %vm2788, %v7066, %v7042
    %v7084 = vsel %vm2788, %v7068, %v7044
    %v7085 = vld [vmem:[%s2805] ss:$8 sm:$0xf]
    %v7087 = vlaneseq
    %v7088 = vshrl.u32 %v7087, 7
    %v7089 = vsub.s32 0, %v7088
    %v7090 = vrot.slane %v7085, %v7089
    %v7091 = vlaneseq
    %v7092 = vshrl.u32 %v7091, 7
    %v7093 = vsub.s32 1, %v7092
    %v7094 = vrot.slane %v7085, %v7093
    %v7095 = vlaneseq
    %v7096 = vshrl.u32 %v7095, 7
    %v7097 = vsub.s32 2, %v7096
    %v7098 = vrot.slane %v7085, %v7097
    %v7099 = vlaneseq
    %v7100 = vshrl.u32 %v7099, 7
    %v7101 = vsub.s32 3, %v7100
    %v7102 = vrot.slane %v7085, %v7101
    %v7107 = vmul.f32 %v7077, %v7090
    %v7108 = vmul.f32 %v7073, %v7094
    %v7109 = vmul.f32 %v7069, %v7098
    %v7110 = vmul.f32 %v7081, %v7102
    %v7111 = vmul.f32 %v7078, %v7090
    %v7112 = vmul.f32 %v7074, %v7094
    %v7113 = vmul.f32 %v7070, %v7098
    %v7114 = vmul.f32 %v7082, %v7102
    %v7115 = vmul.f32 %v7079, %v7090
    %v7116 = vmul.f32 %v7075, %v7094
    %v7117 = vmul.f32 %v7071, %v7098
    %v7118 = vmul.f32 %v7083, %v7102
    %v7119 = vmul.f32 %v7080, %v7090
    %v7120 = vmul.f32 %v7076, %v7094
    %v7121 = vmul.f32 %v7072, %v7098
    %v7122 = vmul.f32 %v7084, %v7102
    %v7123 = vpack.c.bf16 %v7111, %v7107
    %v7124 = vpack.c.bf16 %v7112, %v7108
    %v7125 = vpack.c.bf16 %v7113, %v7109
    %v7126 = vpack.c.bf16 %v7114, %v7110
    %v7127 = vpack.c.bf16 %v7119, %v7115
    %v7128 = vpack.c.bf16 %v7120, %v7116
    %v7129 = vpack.c.bf16 %v7121, %v7117
    %v7130 = vpack.c.bf16 %v7122, %v7118
    %7131 = vst [vmem:[#allocation2 + $0x380] sm:$0xff] %v7123
    %7132 = vst [vmem:[#allocation2 + $0x388] sm:$0xff] %v7124
    %7133 = vst [vmem:[#allocation2 + $0x390] sm:$0xff] %v7125
    %7134 = vst [vmem:[#allocation2 + $0x398] sm:$0xff] %v7126
    %v7135 = vld [vmem:[#allocation2 + $0x3a0] sm:$0x1f]
    %v7136 = vsel %vm1375, %v7127, %v7135
    %7137 = vst [vmem:[#allocation2 + $0x3a0] sm:$0x1f] %v7136
    %v7138 = vld [vmem:[#allocation2 + $0x3a8] sm:$0x1f]
    %v7139 = vsel %vm1375, %v7128, %v7138
    %7140 = vst [vmem:[#allocation2 + $0x3a8] sm:$0x1f] %v7139
    %v7141 = vld [vmem:[#allocation2 + $0x3b0] sm:$0x1f]
    %v7142 = vsel %vm1375, %v7129, %v7141
    %7143 = vst [vmem:[#allocation2 + $0x3b0] sm:$0x1f] %v7142
    %v7144 = vld [vmem:[#allocation2 + $0x3b8] sm:$0x1f]
    %v7145 = vsel %vm1375, %v7130, %v7144
    %7146 = vst [vmem:[#allocation2 + $0x3b8] sm:$0x1f] %v7145
    %7147 = vrot.lane.b32.xlu0 %v5265, 114
    %v7148 = vpop.permute.xlu0 %7147
    %7149 = vrot.lane.b32.xlu0 %v5269, 114
    %v7150 = vpop.permute.xlu0 %7149
    %7151 = vrot.lane.b32.xlu0 %v5273, 114
    %v7152 = vpop.permute.xlu0 %7151
    %7153 = vrot.lane.b32.xlu0 %v5277, 114
    %v7154 = vpop.permute.xlu0 %7153
    %7155 = vrot.lane.b32.xlu0 %v5266, 114
    %v7156 = vpop.permute.xlu0 %7155
    %7157 = vrot.lane.b32.xlu0 %v5270, 114
    %v7158 = vpop.permute.xlu0 %7157
    %7159 = vrot.lane.b32.xlu0 %v5274, 114
    %v7160 = vpop.permute.xlu0 %7159
    %7161 = vrot.lane.b32.xlu0 %v5278, 114
    %v7162 = vpop.permute.xlu0 %7161
    %7163 = vrot.lane.b32.xlu0 %v5267, 114
    %v7164 = vpop.permute.xlu0 %7163
    %7165 = vrot.lane.b32.xlu0 %v5271, 114
    %v7166 = vpop.permute.xlu0 %7165
    %7167 = vrot.lane.b32.xlu0 %v5275, 114
    %v7168 = vpop.permute.xlu0 %7167
    %7169 = vrot.lane.b32.xlu0 %v5279, 114
    %v7170 = vpop.permute.xlu0 %7169
    %7171 = vrot.lane.b32.xlu0 %v5268, 114
    %v7172 = vpop.permute.xlu0 %7171
    %7173 = vrot.lane.b32.xlu0 %v5272, 114
    %v7174 = vpop.permute.xlu0 %7173
    %7175 = vrot.lane.b32.xlu0 %v5276, 114
    %v7176 = vpop.permute.xlu0 %7175
    %7177 = vrot.lane.b32.xlu0 %v5280, 114
    %v7178 = vpop.permute.xlu0 %7177
    %v7179 = vsel %vm2900, %v7164, %v7172
    %v7180 = vsel %vm2900, %v7166, %v7174
    %v7181 = vsel %vm2900, %v7168, %v7176
    %v7182 = vsel %vm2900, %v7170, %v7178
    %v7183 = vsel %vm2900, %v7156, %v7164
    %v7184 = vsel %vm2900, %v7158, %v7166
    %v7185 = vsel %vm2900, %v7160, %v7168
    %v7186 = vsel %vm2900, %v7162, %v7170
    %v7187 = vsel %vm2900, %v7148, %v7156
    %v7188 = vsel %vm2900, %v7150, %v7158
    %v7189 = vsel %vm2900, %v7152, %v7160
    %v7190 = vsel %vm2900, %v7154, %v7162
    %v7191 = vsel %vm2900, %v7172, %v7148
    %v7192 = vsel %vm2900, %v7174, %v7150
    %v7193 = vsel %vm2900, %v7176, %v7152
    %v7194 = vsel %vm2900, %v7178, %v7154
    %v7195 = vld [vmem:[%s2917] ss:$8 sm:$0xf]
    %v7197 = vlaneseq
    %v7198 = vshrl.u32 %v7197, 7
    %v7199 = vsub.s32 0, %v7198
    %v7200 = vrot.slane %v7195, %v7199
    %v7201 = vlaneseq
    %v7202 = vshrl.u32 %v7201, 7
    %v7203 = vsub.s32 1, %v7202
    %v7204 = vrot.slane %v7195, %v7203
    %v7205 = vlaneseq
    %v7206 = vshrl.u32 %v7205, 7
    %v7207 = vsub.s32 2, %v7206
    %v7208 = vrot.slane %v7195, %v7207
    %v7209 = vlaneseq
    %v7210 = vshrl.u32 %v7209, 7
    %v7211 = vsub.s32 3, %v7210
    %v7212 = vrot.slane %v7195, %v7211
    %v7217 = vmul.f32 %v7187, %v7200
    %v7218 = vmul.f32 %v7183, %v7204
    %v7219 = vmul.f32 %v7179, %v7208
    %v7220 = vmul.f32 %v7191, %v7212
    %v7221 = vmul.f32 %v7188, %v7200
    %v7222 = vmul.f32 %v7184, %v7204
    %v7223 = vmul.f32 %v7180, %v7208
    %v7224 = vmul.f32 %v7192, %v7212
    %v7225 = vmul.f32 %v7189, %v7200
    %v7226 = vmul.f32 %v7185, %v7204
    %v7227 = vmul.f32 %v7181, %v7208
    %v7228 = vmul.f32 %v7193, %v7212
    %v7229 = vmul.f32 %v7190, %v7200
    %v7230 = vmul.f32 %v7186, %v7204
    %v7231 = vmul.f32 %v7182, %v7208
    %v7232 = vmul.f32 %v7194, %v7212
    %v7233 = vpack.c.bf16 %v7221, %v7217
    %v7234 = vpack.c.bf16 %v7222, %v7218
    %v7235 = vpack.c.bf16 %v7223, %v7219
    %v7236 = vpack.c.bf16 %v7224, %v7220
    %v7237 = vpack.c.bf16 %v7229, %v7225
    %v7238 = vpack.c.bf16 %v7230, %v7226
    %v7239 = vpack.c.bf16 %v7231, %v7227
    %v7240 = vpack.c.bf16 %v7232, %v7228
    %7241 = vst [vmem:[#allocation2 + $0x3c0] sm:$0xff] %v7233
    %7242 = vst [vmem:[#allocation2 + $0x3c8] sm:$0xff] %v7234
    %7243 = vst [vmem:[#allocation2 + $0x3d0] sm:$0xff] %v7235
    %7244 = vst [vmem:[#allocation2 + $0x3d8] sm:$0xff] %v7236
    %v7245 = vld [vmem:[#allocation2 + $0x3e0] sm:$0x1f]
    %v7246 = vsel %vm1375, %v7237, %v7245
    %7247 = vst [vmem:[#allocation2 + $0x3e0] sm:$0x1f] %v7246
    %v7248 = vld [vmem:[#allocation2 + $0x3e8] sm:$0x1f]
    %v7249 = vsel %vm1375, %v7238, %v7248
    %7250 = vst [vmem:[#allocation2 + $0x3e8] sm:$0x1f] %v7249
    %v7251 = vld [vmem:[#allocation2 + $0x3f0] sm:$0x1f]
    %v7252 = vsel %vm1375, %v7239, %v7251
    %7253 = vst [vmem:[#allocation2 + $0x3f0] sm:$0x1f] %v7252
    %v7254 = vld [vmem:[#allocation2 + $0x3f8] sm:$0x1f]
    %v7255 = vsel %vm1375, %v7240, %v7254
    %7256 = vst [vmem:[#allocation2 + $0x3f8] sm:$0x1f] %v7255
    %7257 = vrot.lane.b32.xlu0 %v5265, 113
    %v7258 = vpop.permute.xlu0 %7257
    %7259 = vrot.lane.b32.xlu0 %v5269, 113
    %v7260 = vpop.permute.xlu0 %7259
    %7261 = vrot.lane.b32.xlu0 %v5273, 113
    %v7262 = vpop.permute.xlu0 %7261
    %7263 = vrot.lane.b32.xlu0 %v5277, 113
    %v7264 = vpop.permute.xlu0 %7263
    %7265 = vrot.lane.b32.xlu0 %v5266, 113
    %v7266 = vpop.permute.xlu0 %7265
    %7267 = vrot.lane.b32.xlu0 %v5270, 113
    %v7268 = vpop.permute.xlu0 %7267
    %7269 = vrot.lane.b32.xlu0 %v5274, 113
    %v7270 = vpop.permute.xlu0 %7269
    %7271 = vrot.lane.b32.xlu0 %v5278, 113
    %v7272 = vpop.permute.xlu0 %7271
    %7273 = vrot.lane.b32.xlu0 %v5267, 113
    %v7274 = vpop.permute.xlu0 %7273
    %7275 = vrot.lane.b32.xlu0 %v5271, 113
    %v7276 = vpop.permute.xlu0 %7275
    %7277 = vrot.lane.b32.xlu0 %v5275, 113
    %v7278 = vpop.permute.xlu0 %7277
    %7279 = vrot.lane.b32.xlu0 %v5279, 113
    %v7280 = vpop.permute.xlu0 %7279
    %7281 = vrot.lane.b32.xlu0 %v5268, 113
    %v7282 = vpop.permute.xlu0 %7281
    %7283 = vrot.lane.b32.xlu0 %v5272, 113
    %v7284 = vpop.permute.xlu0 %7283
    %7285 = vrot.lane.b32.xlu0 %v5276, 113
    %v7286 = vpop.permute.xlu0 %7285
    %7287 = vrot.lane.b32.xlu0 %v5280, 113
    %v7288 = vpop.permute.xlu0 %7287
    %v7289 = vsel %vm3012, %v7274, %v7282
    %v7290 = vsel %vm3012, %v7276, %v7284
    %v7291 = vsel %vm3012, %v7278, %v7286
    %v7292 = vsel %vm3012, %v7280, %v7288
    %v7293 = vsel %vm3012, %v7266, %v7274
    %v7294 = vsel %vm3012, %v7268, %v7276
    %v7295 = vsel %vm3012, %v7270, %v7278
    %v7296 = vsel %vm3012, %v7272, %v7280
    %v7297 = vsel %vm3012, %v7258, %v7266
    %v7298 = vsel %vm3012, %v7260, %v7268
    %v7299 = vsel %vm3012, %v7262, %v7270
    %v7300 = vsel %vm3012, %v7264, %v7272
    %v7301 = vsel %vm3012, %v7282, %v7258
    %v7302 = vsel %vm3012, %v7284, %v7260
    %v7303 = vsel %vm3012, %v7286, %v7262
    %v7304 = vsel %vm3012, %v7288, %v7264
    %v7305 = vld [vmem:[%s3029] ss:$8 sm:$0xf]
    %v7307 = vlaneseq
    %v7308 = vshrl.u32 %v7307, 7
    %v7309 = vsub.s32 0, %v7308
    %v7310 = vrot.slane %v7305, %v7309
    %v7311 = vlaneseq
    %v7312 = vshrl.u32 %v7311, 7
    %v7313 = vsub.s32 1, %v7312
    %v7314 = vrot.slane %v7305, %v7313
    %v7315 = vlaneseq
    %v7316 = vshrl.u32 %v7315, 7
    %v7317 = vsub.s32 2, %v7316
    %v7318 = vrot.slane %v7305, %v7317
    %v7319 = vlaneseq
    %v7320 = vshrl.u32 %v7319, 7
    %v7321 = vsub.s32 3, %v7320
    %v7322 = vrot.slane %v7305, %v7321
    %v7327 = vmul.f32 %v7297, %v7310
    %v7328 = vmul.f32 %v7293, %v7314
    %v7329 = vmul.f32 %v7289, %v7318
    %v7330 = vmul.f32 %v7301, %v7322
    %v7331 = vmul.f32 %v7298, %v7310
    %v7332 = vmul.f32 %v7294, %v7314
    %v7333 = vmul.f32 %v7290, %v7318
    %v7334 = vmul.f32 %v7302, %v7322
    %v7335 = vmul.f32 %v7299, %v7310
    %v7336 = vmul.f32 %v7295, %v7314
    %v7337 = vmul.f32 %v7291, %v7318
    %v7338 = vmul.f32 %v7303, %v7322
    %v7339 = vmul.f32 %v7300, %v7310
    %v7340 = vmul.f32 %v7296, %v7314
    %v7341 = vmul.f32 %v7292, %v7318
    %v7342 = vmul.f32 %v7304, %v7322
    %v7343 = vpack.c.bf16 %v7331, %v7327
    %v7344 = vpack.c.bf16 %v7332, %v7328
    %v7345 = vpack.c.bf16 %v7333, %v7329
    %v7346 = vpack.c.bf16 %v7334, %v7330
    %v7347 = vpack.c.bf16 %v7339, %v7335
    %v7348 = vpack.c.bf16 %v7340, %v7336
    %v7349 = vpack.c.bf16 %v7341, %v7337
    %v7350 = vpack.c.bf16 %v7342, %v7338
    %7351 = vst [vmem:[#allocation2 + $0x400] sm:$0xff] %v7343
    %7352 = vst [vmem:[#allocation2 + $0x408] sm:$0xff] %v7344
    %7353 = vst [vmem:[#allocation2 + $0x410] sm:$0xff] %v7345
    %7354 = vst [vmem:[#allocation2 + $0x418] sm:$0xff] %v7346
    %v7355 = vld [vmem:[#allocation2 + $0x420] sm:$0x1f]
    %v7356 = vsel %vm1375, %v7347, %v7355
    %7357 = vst [vmem:[#allocation2 + $0x420] sm:$0x1f] %v7356
    %v7358 = vld [vmem:[#allocation2 + $0x428] sm:$0x1f]
    %v7359 = vsel %vm1375, %v7348, %v7358
    %7360 = vst [vmem:[#allocation2 + $0x428] sm:$0x1f] %v7359
    %v7361 = vld [vmem:[#allocation2 + $0x430] sm:$0x1f]
    %v7362 = vsel %vm1375, %v7349, %v7361
    %7363 = vst [vmem:[#allocation2 + $0x430] sm:$0x1f] %v7362
    %v7364 = vld [vmem:[#allocation2 + $0x438] sm:$0x1f]
    %v7365 = vsel %vm1375, %v7350, %v7364
    %7366 = vst [vmem:[#allocation2 + $0x438] sm:$0x1f] %v7365
    %7367 = vrot.lane.b32.xlu0 %v5265, 112
    %v7368 = vpop.permute.xlu0 %7367
    %7369 = vrot.lane.b32.xlu0 %v5269, 112
    %v7370 = vpop.permute.xlu0 %7369
    %7371 = vrot.lane.b32.xlu0 %v5273, 112
    %v7372 = vpop.permute.xlu0 %7371
    %7373 = vrot.lane.b32.xlu0 %v5277, 112
    %v7374 = vpop.permute.xlu0 %7373
    %7375 = vrot.lane.b32.xlu0 %v5266, 112
    %v7376 = vpop.permute.xlu0 %7375
    %7377 = vrot.lane.b32.xlu0 %v5270, 112
    %v7378 = vpop.permute.xlu0 %7377
    %7379 = vrot.lane.b32.xlu0 %v5274, 112
    %v7380 = vpop.permute.xlu0 %7379
    %7381 = vrot.lane.b32.xlu0 %v5278, 112
    %v7382 = vpop.permute.xlu0 %7381
    %7383 = vrot.lane.b32.xlu0 %v5267, 112
    %v7384 = vpop.permute.xlu0 %7383
    %7385 = vrot.lane.b32.xlu0 %v5271, 112
    %v7386 = vpop.permute.xlu0 %7385
    %7387 = vrot.lane.b32.xlu0 %v5275, 112
    %v7388 = vpop.permute.xlu0 %7387
    %7389 = vrot.lane.b32.xlu0 %v5279, 112
    %v7390 = vpop.permute.xlu0 %7389
    %7391 = vrot.lane.b32.xlu0 %v5268, 112
    %v7392 = vpop.permute.xlu0 %7391
    %7393 = vrot.lane.b32.xlu0 %v5272, 112
    %v7394 = vpop.permute.xlu0 %7393
    %7395 = vrot.lane.b32.xlu0 %v5276, 112
    %v7396 = vpop.permute.xlu0 %7395
    %7397 = vrot.lane.b32.xlu0 %v5280, 112
    %v7398 = vpop.permute.xlu0 %7397
    %v7399 = vsel %vm3124, %v7384, %v7392
    %v7400 = vsel %vm3124, %v7386, %v7394
    %v7401 = vsel %vm3124, %v7388, %v7396
    %v7402 = vsel %vm3124, %v7390, %v7398
    %v7403 = vsel %vm3124, %v7376, %v7384
    %v7404 = vsel %vm3124, %v7378, %v7386
    %v7405 = vsel %vm3124, %v7380, %v7388
    %v7406 = vsel %vm3124, %v7382, %v7390
    %v7407 = vsel %vm3124, %v7368, %v7376
    %v7408 = vsel %vm3124, %v7370, %v7378
    %v7409 = vsel %vm3124, %v7372, %v7380
    %v7410 = vsel %vm3124, %v7374, %v7382
    %v7411 = vsel %vm3124, %v7392, %v7368
    %v7412 = vsel %vm3124, %v7394, %v7370
    %v7413 = vsel %vm3124, %v7396, %v7372
    %v7414 = vsel %vm3124, %v7398, %v7374
    %v7415 = vld [vmem:[%s3141] ss:$8 sm:$0xf]
    %v7417 = vlaneseq
    %v7418 = vshrl.u32 %v7417, 7
    %v7419 = vsub.s32 0, %v7418
    %v7420 = vrot.slane %v7415, %v7419
    %v7421 = vlaneseq
    %v7422 = vshrl.u32 %v7421, 7
    %v7423 = vsub.s32 1, %v7422
    %v7424 = vrot.slane %v7415, %v7423
    %v7425 = vlaneseq
    %v7426 = vshrl.u32 %v7425, 7
    %v7427 = vsub.s32 2, %v7426
    %v7428 = vrot.slane %v7415, %v7427
    %v7429 = vlaneseq
    %v7430 = vshrl.u32 %v7429, 7
    %v7431 = vsub.s32 3, %v7430
    %v7432 = vrot.slane %v7415, %v7431
    %v7437 = vmul.f32 %v7407, %v7420
    %v7438 = vmul.f32 %v7403, %v7424
    %v7439 = vmul.f32 %v7399, %v7428
    %v7440 = vmul.f32 %v7411, %v7432
    %v7441 = vmul.f32 %v7408, %v7420
    %v7442 = vmul.f32 %v7404, %v7424
    %v7443 = vmul.f32 %v7400, %v7428
    %v7444 = vmul.f32 %v7412, %v7432
    %v7445 = vmul.f32 %v7409, %v7420
    %v7446 = vmul.f32 %v7405, %v7424
    %v7447 = vmul.f32 %v7401, %v7428
    %v7448 = vmul.f32 %v7413, %v7432
    %v7449 = vmul.f32 %v7410, %v7420
    %v7450 = vmul.f32 %v7406, %v7424
    %v7451 = vmul.f32 %v7402, %v7428
    %v7452 = vmul.f32 %v7414, %v7432
    %v7453 = vpack.c.bf16 %v7441, %v7437
    %v7454 = vpack.c.bf16 %v7442, %v7438
    %v7455 = vpack.c.bf16 %v7443, %v7439
    %v7456 = vpack.c.bf16 %v7444, %v7440
    %v7457 = vpack.c.bf16 %v7449, %v7445
    %v7458 = vpack.c.bf16 %v7450, %v7446
    %v7459 = vpack.c.bf16 %v7451, %v7447
    %v7460 = vpack.c.bf16 %v7452, %v7448
    %7461 = vst [vmem:[#allocation2 + $0x440] sm:$0xff] %v7453
    %7462 = vst [vmem:[#allocation2 + $0x448] sm:$0xff] %v7454
    %7463 = vst [vmem:[#allocation2 + $0x450] sm:$0xff] %v7455
    %7464 = vst [vmem:[#allocation2 + $0x458] sm:$0xff] %v7456
    %v7465 = vld [vmem:[#allocation2 + $0x460] sm:$0x1f]
    %v7466 = vsel %vm1375, %v7457, %v7465
    %7467 = vst [vmem:[#allocation2 + $0x460] sm:$0x1f] %v7466
    %v7468 = vld [vmem:[#allocation2 + $0x468] sm:$0x1f]
    %v7469 = vsel %vm1375, %v7458, %v7468
    %7470 = vst [vmem:[#allocation2 + $0x468] sm:$0x1f] %v7469
    %v7471 = vld [vmem:[#allocation2 + $0x470] sm:$0x1f]
    %v7472 = vsel %vm1375, %v7459, %v7471
    %7473 = vst [vmem:[#allocation2 + $0x470] sm:$0x1f] %v7472
    %v7474 = vld [vmem:[#allocation2 + $0x478] sm:$0x1f]
    %v7475 = vsel %vm1375, %v7460, %v7474
    %7476 = vst [vmem:[#allocation2 + $0x478] sm:$0x1f] %v7475
    %7477 = vrot.lane.b32.xlu0 %v5265, 111
    %v7478 = vpop.permute.xlu0 %7477
    %7479 = vrot.lane.b32.xlu0 %v5269, 111
    %v7480 = vpop.permute.xlu0 %7479
    %7481 = vrot.lane.b32.xlu0 %v5273, 111
    %v7482 = vpop.permute.xlu0 %7481
    %7483 = vrot.lane.b32.xlu0 %v5277, 111
    %v7484 = vpop.permute.xlu0 %7483
    %7485 = vrot.lane.b32.xlu0 %v5266, 111
    %v7486 = vpop.permute.xlu0 %7485
    %7487 = vrot.lane.b32.xlu0 %v5270, 111
    %v7488 = vpop.permute.xlu0 %7487
    %7489 = vrot.lane.b32.xlu0 %v5274, 111
    %v7490 = vpop.permute.xlu0 %7489
    %7491 = vrot.lane.b32.xlu0 %v5278, 111
    %v7492 = vpop.permute.xlu0 %7491
    %7493 = vrot.lane.b32.xlu0 %v5267, 111
    %v7494 = vpop.permute.xlu0 %7493
    %7495 = vrot.lane.b32.xlu0 %v5271, 111
    %v7496 = vpop.permute.xlu0 %7495
    %7497 = vrot.lane.b32.xlu0 %v5275, 111
    %v7498 = vpop.permute.xlu0 %7497
    %7499 = vrot.lane.b32.xlu0 %v5279, 111
    %v7500 = vpop.permute.xlu0 %7499
    %7501 = vrot.lane.b32.xlu0 %v5268, 111
    %v7502 = vpop.permute.xlu0 %7501
    %7503 = vrot.lane.b32.xlu0 %v5272, 111
    %v7504 = vpop.permute.xlu0 %7503
    %7505 = vrot.lane.b32.xlu0 %v5276, 111
    %v7506 = vpop.permute.xlu0 %7505
    %7507 = vrot.lane.b32.xlu0 %v5280, 111
    %v7508 = vpop.permute.xlu0 %7507
    %v7509 = vsel %vm3236, %v7494, %v7502
    %v7510 = vsel %vm3236, %v7496, %v7504
    %v7511 = vsel %vm3236, %v7498, %v7506
    %v7512 = vsel %vm3236, %v7500, %v7508
    %v7513 = vsel %vm3236, %v7486, %v7494
    %v7514 = vsel %vm3236, %v7488, %v7496
    %v7515 = vsel %vm3236, %v7490, %v7498
    %v7516 = vsel %vm3236, %v7492, %v7500
    %v7517 = vsel %vm3236, %v7478, %v7486
    %v7518 = vsel %vm3236, %v7480, %v7488
    %v7519 = vsel %vm3236, %v7482, %v7490
    %v7520 = vsel %vm3236, %v7484, %v7492
    %v7521 = vsel %vm3236, %v7502, %v7478
    %v7522 = vsel %vm3236, %v7504, %v7480
    %v7523 = vsel %vm3236, %v7506, %v7482
    %v7524 = vsel %vm3236, %v7508, %v7484
    %v7525 = vld [vmem:[%s3253] ss:$8 sm:$0xf]
    %v7527 = vlaneseq
    %v7528 = vshrl.u32 %v7527, 7
    %v7529 = vsub.s32 0, %v7528
    %v7530 = vrot.slane %v7525, %v7529
    %v7531 = vlaneseq
    %v7532 = vshrl.u32 %v7531, 7
    %v7533 = vsub.s32 1, %v7532
    %v7534 = vrot.slane %v7525, %v7533
    %v7535 = vlaneseq
    %v7536 = vshrl.u32 %v7535, 7
    %v7537 = vsub.s32 2, %v7536
    %v7538 = vrot.slane %v7525, %v7537
    %v7539 = vlaneseq
    %v7540 = vshrl.u32 %v7539, 7
    %v7541 = vsub.s32 3, %v7540
    %v7542 = vrot.slane %v7525, %v7541
    %v7547 = vmul.f32 %v7517, %v7530
    %v7548 = vmul.f32 %v7513, %v7534
    %v7549 = vmul.f32 %v7509, %v7538
    %v7550 = vmul.f32 %v7521, %v7542
    %v7551 = vmul.f32 %v7518, %v7530
    %v7552 = vmul.f32 %v7514, %v7534
    %v7553 = vmul.f32 %v7510, %v7538
    %v7554 = vmul.f32 %v7522, %v7542
    %v7555 = vmul.f32 %v7519, %v7530
    %v7556 = vmul.f32 %v7515, %v7534
    %v7557 = vmul.f32 %v7511, %v7538
    %v7558 = vmul.f32 %v7523, %v7542
    %v7559 = vmul.f32 %v7520, %v7530
    %v7560 = vmul.f32 %v7516, %v7534
    %v7561 = vmul.f32 %v7512, %v7538
    %v7562 = vmul.f32 %v7524, %v7542
    %v7563 = vpack.c.bf16 %v7551, %v7547
    %v7564 = vpack.c.bf16 %v7552, %v7548
    %v7565 = vpack.c.bf16 %v7553, %v7549
    %v7566 = vpack.c.bf16 %v7554, %v7550
    %v7567 = vpack.c.bf16 %v7559, %v7555
    %v7568 = vpack.c.bf16 %v7560, %v7556
    %v7569 = vpack.c.bf16 %v7561, %v7557
    %v7570 = vpack.c.bf16 %v7562, %v7558
    %7571 = vst [vmem:[#allocation2 + $0x480] sm:$0xff] %v7563
    %7572 = vst [vmem:[#allocation2 + $0x488] sm:$0xff] %v7564
    %7573 = vst [vmem:[#allocation2 + $0x490] sm:$0xff] %v7565
    %7574 = vst [vmem:[#allocation2 + $0x498] sm:$0xff] %v7566
    %v7575 = vld [vmem:[#allocation2 + $0x4a0] sm:$0x1f]
    %v7576 = vsel %vm1375, %v7567, %v7575
    %7577 = vst [vmem:[#allocation2 + $0x4a0] sm:$0x1f] %v7576
    %v7578 = vld [vmem:[#allocation2 + $0x4a8] sm:$0x1f]
    %v7579 = vsel %vm1375, %v7568, %v7578
    %7580 = vst [vmem:[#allocation2 + $0x4a8] sm:$0x1f] %v7579
    %v7581 = vld [vmem:[#allocation2 + $0x4b0] sm:$0x1f]
    %v7582 = vsel %vm1375, %v7569, %v7581
    %7583 = vst [vmem:[#allocation2 + $0x4b0] sm:$0x1f] %v7582
    %v7584 = vld [vmem:[#allocation2 + $0x4b8] sm:$0x1f]
    %v7585 = vsel %vm1375, %v7570, %v7584
    %7586 = vst [vmem:[#allocation2 + $0x4b8] sm:$0x1f] %v7585
    %7587 = vrot.lane.b32.xlu0 %v5265, 110
    %v7588 = vpop.permute.xlu0 %7587
    %7589 = vrot.lane.b32.xlu0 %v5269, 110
    %v7590 = vpop.permute.xlu0 %7589
    %7591 = vrot.lane.b32.xlu0 %v5273, 110
    %v7592 = vpop.permute.xlu0 %7591
    %7593 = vrot.lane.b32.xlu0 %v5277, 110
    %v7594 = vpop.permute.xlu0 %7593
    %7595 = vrot.lane.b32.xlu0 %v5266, 110
    %v7596 = vpop.permute.xlu0 %7595
    %7597 = vrot.lane.b32.xlu0 %v5270, 110
    %v7598 = vpop.permute.xlu0 %7597
    %7599 = vrot.lane.b32.xlu0 %v5274, 110
    %v7600 = vpop.permute.xlu0 %7599
    %7601 = vrot.lane.b32.xlu0 %v5278, 110
    %v7602 = vpop.permute.xlu0 %7601
    %7603 = vrot.lane.b32.xlu0 %v5267, 110
    %v7604 = vpop.permute.xlu0 %7603
    %7605 = vrot.lane.b32.xlu0 %v5271, 110
    %v7606 = vpop.permute.xlu0 %7605
    %7607 = vrot.lane.b32.xlu0 %v5275, 110
    %v7608 = vpop.permute.xlu0 %7607
    %7609 = vrot.lane.b32.xlu0 %v5279, 110
    %v7610 = vpop.permute.xlu0 %7609
    %7611 = vrot.lane.b32.xlu0 %v5268, 110
    %v7612 = vpop.permute.xlu0 %7611
    %7613 = vrot.lane.b32.xlu0 %v5272, 110
    %v7614 = vpop.permute.xlu0 %7613
    %7615 = vrot.lane.b32.xlu0 %v5276, 110
    %v7616 = vpop.permute.xlu0 %7615
    %7617 = vrot.lane.b32.xlu0 %v5280, 110
    %v7618 = vpop.permute.xlu0 %7617
    %v7619 = vsel %vm3348, %v7604, %v7612
    %v7620 = vsel %vm3348, %v7606, %v7614
    %v7621 = vsel %vm3348, %v7608, %v7616
    %v7622 = vsel %vm3348, %v7610, %v7618
    %v7623 = vsel %vm3348, %v7596, %v7604
    %v7624 = vsel %vm3348, %v7598, %v7606
    %v7625 = vsel %vm3348, %v7600, %v7608
    %v7626 = vsel %vm3348, %v7602, %v7610
    %v7627 = vsel %vm3348, %v7588, %v7596
    %v7628 = vsel %vm3348, %v7590, %v7598
    %v7629 = vsel %vm3348, %v7592, %v7600
    %v7630 = vsel %vm3348, %v7594, %v7602
    %v7631 = vsel %vm3348, %v7612, %v7588
    %v7632 = vsel %vm3348, %v7614, %v7590
    %v7633 = vsel %vm3348, %v7616, %v7592
    %v7634 = vsel %vm3348, %v7618, %v7594
    %v7635 = vld [vmem:[%s3365] ss:$8 sm:$0xf]
    %v7637 = vlaneseq
    %v7638 = vshrl.u32 %v7637, 7
    %v7639 = vsub.s32 0, %v7638
    %v7640 = vrot.slane %v7635, %v7639
    %v7641 = vlaneseq
    %v7642 = vshrl.u32 %v7641, 7
    %v7643 = vsub.s32 1, %v7642
    %v7644 = vrot.slane %v7635, %v7643
    %v7645 = vlaneseq
    %v7646 = vshrl.u32 %v7645, 7
    %v7647 = vsub.s32 2, %v7646
    %v7648 = vrot.slane %v7635, %v7647
    %v7649 = vlaneseq
    %v7650 = vshrl.u32 %v7649, 7
    %v7651 = vsub.s32 3, %v7650
    %v7652 = vrot.slane %v7635, %v7651
    %v7657 = vmul.f32 %v7627, %v7640
    %v7658 = vmul.f32 %v7623, %v7644
    %v7659 = vmul.f32 %v7619, %v7648
    %v7660 = vmul.f32 %v7631, %v7652
    %v7661 = vmul.f32 %v7628, %v7640
    %v7662 = vmul.f32 %v7624, %v7644
    %v7663 = vmul.f32 %v7620, %v7648
    %v7664 = vmul.f32 %v7632, %v7652
    %v7665 = vmul.f32 %v7629, %v7640
    %v7666 = vmul.f32 %v7625, %v7644
    %v7667 = vmul.f32 %v7621, %v7648
    %v7668 = vmul.f32 %v7633, %v7652
    %v7669 = vmul.f32 %v7630, %v7640
    %v7670 = vmul.f32 %v7626, %v7644
    %v7671 = vmul.f32 %v7622, %v7648
    %v7672 = vmul.f32 %v7634, %v7652
    %v7673 = vpack.c.bf16 %v7661, %v7657
    %v7674 = vpack.c.bf16 %v7662, %v7658
    %v7675 = vpack.c.bf16 %v7663, %v7659
    %v7676 = vpack.c.bf16 %v7664, %v7660
    %v7677 = vpack.c.bf16 %v7669, %v7665
    %v7678 = vpack.c.bf16 %v7670, %v7666
    %v7679 = vpack.c.bf16 %v7671, %v7667
    %v7680 = vpack.c.bf16 %v7672, %v7668
    %7681 = vst [vmem:[#allocation2 + $0x4c0] sm:$0xff] %v7673
    %7682 = vst [vmem:[#allocation2 + $0x4c8] sm:$0xff] %v7674
    %7683 = vst [vmem:[#allocation2 + $0x4d0] sm:$0xff] %v7675
    %7684 = vst [vmem:[#allocation2 + $0x4d8] sm:$0xff] %v7676
    %v7685 = vld [vmem:[#allocation2 + $0x4e0] sm:$0x1f]
    %v7686 = vsel %vm1375, %v7677, %v7685
    %7687 = vst [vmem:[#allocation2 + $0x4e0] sm:$0x1f] %v7686
    %v7688 = vld [vmem:[#allocation2 + $0x4e8] sm:$0x1f]
    %v7689 = vsel %vm1375, %v7678, %v7688
    %7690 = vst [vmem:[#allocation2 + $0x4e8] sm:$0x1f] %v7689
    %v7691 = vld [vmem:[#allocation2 + $0x4f0] sm:$0x1f]
    %v7692 = vsel %vm1375, %v7679, %v7691
    %7693 = vst [vmem:[#allocation2 + $0x4f0] sm:$0x1f] %v7692
    %v7694 = vld [vmem:[#allocation2 + $0x4f8] sm:$0x1f]
    %v7695 = vsel %vm1375, %v7680, %v7694
    %7696 = vst [vmem:[#allocation2 + $0x4f8] sm:$0x1f] %v7695
    %7697 = vrot.lane.b32.xlu0 %v5265, 98
    %v7698 = vpop.permute.xlu0 %7697
    %7699 = vrot.lane.b32.xlu0 %v5269, 98
    %v7700 = vpop.permute.xlu0 %7699
    %7701 = vrot.lane.b32.xlu0 %v5273, 98
    %v7702 = vpop.permute.xlu0 %7701
    %7703 = vrot.lane.b32.xlu0 %v5277, 98
    %v7704 = vpop.permute.xlu0 %7703
    %7705 = vrot.lane.b32.xlu0 %v5266, 98
    %v7706 = vpop.permute.xlu0 %7705
    %7707 = vrot.lane.b32.xlu0 %v5270, 98
    %v7708 = vpop.permute.xlu0 %7707
    %7709 = vrot.lane.b32.xlu0 %v5274, 98
    %v7710 = vpop.permute.xlu0 %7709
    %7711 = vrot.lane.b32.xlu0 %v5278, 98
    %v7712 = vpop.permute.xlu0 %7711
    %7713 = vrot.lane.b32.xlu0 %v5267, 98
    %v7714 = vpop.permute.xlu0 %7713
    %7715 = vrot.lane.b32.xlu0 %v5271, 98
    %v7716 = vpop.permute.xlu0 %7715
    %7717 = vrot.lane.b32.xlu0 %v5275, 98
    %v7718 = vpop.permute.xlu0 %7717
    %7719 = vrot.lane.b32.xlu0 %v5279, 98
    %v7720 = vpop.permute.xlu0 %7719
    %7721 = vrot.lane.b32.xlu0 %v5268, 98
    %v7722 = vpop.permute.xlu0 %7721
    %7723 = vrot.lane.b32.xlu0 %v5272, 98
    %v7724 = vpop.permute.xlu0 %7723
    %7725 = vrot.lane.b32.xlu0 %v5276, 98
    %v7726 = vpop.permute.xlu0 %7725
    %7727 = vrot.lane.b32.xlu0 %v5280, 98
    %v7728 = vpop.permute.xlu0 %7727
    %v7729 = vsel %vm3460, %v7714, %v7722
    %v7730 = vsel %vm3460, %v7716, %v7724
    %v7731 = vsel %vm3460, %v7718, %v7726
    %v7732 = vsel %vm3460, %v7720, %v7728
    %v7733 = vsel %vm3460, %v7706, %v7714
    %v7734 = vsel %vm3460, %v7708, %v7716
    %v7735 = vsel %vm3460, %v7710, %v7718
    %v7736 = vsel %vm3460, %v7712, %v7720
    %v7737 = vsel %vm3460, %v7698, %v7706
    %v7738 = vsel %vm3460, %v7700, %v7708
    %v7739 = vsel %vm3460, %v7702, %v7710
    %v7740 = vsel %vm3460, %v7704, %v7712
    %v7741 = vsel %vm3460, %v7722, %v7698
    %v7742 = vsel %vm3460, %v7724, %v7700
    %v7743 = vsel %vm3460, %v7726, %v7702
    %v7744 = vsel %vm3460, %v7728, %v7704
    %v7745 = vld [vmem:[%s3477] ss:$8 sm:$0xf]
    %v7747 = vlaneseq
    %v7748 = vshrl.u32 %v7747, 7
    %v7749 = vsub.s32 0, %v7748
    %v7750 = vrot.slane %v7745, %v7749
    %v7751 = vlaneseq
    %v7752 = vshrl.u32 %v7751, 7
    %v7753 = vsub.s32 1, %v7752
    %v7754 = vrot.slane %v7745, %v7753
    %v7755 = vlaneseq
    %v7756 = vshrl.u32 %v7755, 7
    %v7757 = vsub.s32 2, %v7756
    %v7758 = vrot.slane %v7745, %v7757
    %v7759 = vlaneseq
    %v7760 = vshrl.u32 %v7759, 7
    %v7761 = vsub.s32 3, %v7760
    %v7762 = vrot.slane %v7745, %v7761
    %v7767 = vmul.f32 %v7737, %v7750
    %v7768 = vmul.f32 %v7733, %v7754
    %v7769 = vmul.f32 %v7729, %v7758
    %v7770 = vmul.f32 %v7741, %v7762
    %v7771 = vmul.f32 %v7738, %v7750
    %v7772 = vmul.f32 %v7734, %v7754
    %v7773 = vmul.f32 %v7730, %v7758
    %v7774 = vmul.f32 %v7742, %v7762
    %v7775 = vmul.f32 %v7739, %v7750
    %v7776 = vmul.f32 %v7735, %v7754
    %v7777 = vmul.f32 %v7731, %v7758
    %v7778 = vmul.f32 %v7743, %v7762
    %v7779 = vmul.f32 %v7740, %v7750
    %v7780 = vmul.f32 %v7736, %v7754
    %v7781 = vmul.f32 %v7732, %v7758
    %v7782 = vmul.f32 %v7744, %v7762
    %v7783 = vpack.c.bf16 %v7771, %v7767
    %v7784 = vpack.c.bf16 %v7772, %v7768
    %v7785 = vpack.c.bf16 %v7773, %v7769
    %v7786 = vpack.c.bf16 %v7774, %v7770
    %v7787 = vpack.c.bf16 %v7779, %v7775
    %v7788 = vpack.c.bf16 %v7780, %v7776
    %v7789 = vpack.c.bf16 %v7781, %v7777
    %v7790 = vpack.c.bf16 %v7782, %v7778
    %7791 = vst [vmem:[#allocation2 + $0x500] sm:$0xff] %v7783
    %7792 = vst [vmem:[#allocation2 + $0x508] sm:$0xff] %v7784
    %7793 = vst [vmem:[#allocation2 + $0x510] sm:$0xff] %v7785
    %7794 = vst [vmem:[#allocation2 + $0x518] sm:$0xff] %v7786
    %v7795 = vld [vmem:[#allocation2 + $0x520] sm:$0x1f]
    %v7796 = vsel %vm1375, %v7787, %v7795
    %7797 = vst [vmem:[#allocation2 + $0x520] sm:$0x1f] %v7796
    %v7798 = vld [vmem:[#allocation2 + $0x528] sm:$0x1f]
    %v7799 = vsel %vm1375, %v7788, %v7798
    %7800 = vst [vmem:[#allocation2 + $0x528] sm:$0x1f] %v7799
    %v7801 = vld [vmem:[#allocation2 + $0x530] sm:$0x1f]
    %v7802 = vsel %vm1375, %v7789, %v7801
    %7803 = vst [vmem:[#allocation2 + $0x530] sm:$0x1f] %v7802
    %v7804 = vld [vmem:[#allocation2 + $0x538] sm:$0x1f]
    %v7805 = vsel %vm1375, %v7790, %v7804
    %7806 = vst [vmem:[#allocation2 + $0x538] sm:$0x1f] %v7805
    %7807 = vrot.lane.b32.xlu0 %v5265, 97
    %v7808 = vpop.permute.xlu0 %7807
    %7809 = vrot.lane.b32.xlu0 %v5269, 97
    %v7810 = vpop.permute.xlu0 %7809
    %7811 = vrot.lane.b32.xlu0 %v5273, 97
    %v7812 = vpop.permute.xlu0 %7811
    %7813 = vrot.lane.b32.xlu0 %v5277, 97
    %v7814 = vpop.permute.xlu0 %7813
    %7815 = vrot.lane.b32.xlu0 %v5266, 97
    %v7816 = vpop.permute.xlu0 %7815
    %7817 = vrot.lane.b32.xlu0 %v5270, 97
    %v7818 = vpop.permute.xlu0 %7817
    %7819 = vrot.lane.b32.xlu0 %v5274, 97
    %v7820 = vpop.permute.xlu0 %7819
    %7821 = vrot.lane.b32.xlu0 %v5278, 97
    %v7822 = vpop.permute.xlu0 %7821
    %7823 = vrot.lane.b32.xlu0 %v5267, 97
    %v7824 = vpop.permute.xlu0 %7823
    %7825 = vrot.lane.b32.xlu0 %v5271, 97
    %v7826 = vpop.permute.xlu0 %7825
    %7827 = vrot.lane.b32.xlu0 %v5275, 97
    %v7828 = vpop.permute.xlu0 %7827
    %7829 = vrot.lane.b32.xlu0 %v5279, 97
    %v7830 = vpop.permute.xlu0 %7829
    %7831 = vrot.lane.b32.xlu0 %v5268, 97
    %v7832 = vpop.permute.xlu0 %7831
    %7833 = vrot.lane.b32.xlu0 %v5272, 97
    %v7834 = vpop.permute.xlu0 %7833
    %7835 = vrot.lane.b32.xlu0 %v5276, 97
    %v7836 = vpop.permute.xlu0 %7835
    %7837 = vrot.lane.b32.xlu0 %v5280, 97
    %v7838 = vpop.permute.xlu0 %7837
    %v7839 = vsel %vm3572, %v7824, %v7832
    %v7840 = vsel %vm3572, %v7826, %v7834
    %v7841 = vsel %vm3572, %v7828, %v7836
    %v7842 = vsel %vm3572, %v7830, %v7838
    %v7843 = vsel %vm3572, %v7816, %v7824
    %v7844 = vsel %vm3572, %v7818, %v7826
    %v7845 = vsel %vm3572, %v7820, %v7828
    %v7846 = vsel %vm3572, %v7822, %v7830
    %v7847 = vsel %vm3572, %v7808, %v7816
    %v7848 = vsel %vm3572, %v7810, %v7818
    %v7849 = vsel %vm3572, %v7812, %v7820
    %v7850 = vsel %vm3572, %v7814, %v7822
    %v7851 = vsel %vm3572, %v7832, %v7808
    %v7852 = vsel %vm3572, %v7834, %v7810
    %v7853 = vsel %vm3572, %v7836, %v7812
    %v7854 = vsel %vm3572, %v7838, %v7814
    %v7855 = vld [vmem:[%s3589] ss:$8 sm:$0xf]
    %v7857 = vlaneseq
    %v7858 = vshrl.u32 %v7857, 7
    %v7859 = vsub.s32 0, %v7858
    %v7860 = vrot.slane %v7855, %v7859
    %v7861 = vlaneseq
    %v7862 = vshrl.u32 %v7861, 7
    %v7863 = vsub.s32 1, %v7862
    %v7864 = vrot.slane %v7855, %v7863
    %v7865 = vlaneseq
    %v7866 = vshrl.u32 %v7865, 7
    %v7867 = vsub.s32 2, %v7866
    %v7868 = vrot.slane %v7855, %v7867
    %v7869 = vlaneseq
    %v7870 = vshrl.u32 %v7869, 7
    %v7871 = vsub.s32 3, %v7870
    %v7872 = vrot.slane %v7855, %v7871
    %v7877 = vmul.f32 %v7847, %v7860
    %v7878 = vmul.f32 %v7843, %v7864
    %v7879 = vmul.f32 %v7839, %v7868
    %v7880 = vmul.f32 %v7851, %v7872
    %v7881 = vmul.f32 %v7848, %v7860
    %v7882 = vmul.f32 %v7844, %v7864
    %v7883 = vmul.f32 %v7840, %v7868
    %v7884 = vmul.f32 %v7852, %v7872
    %v7885 = vmul.f32 %v7849, %v7860
    %v7886 = vmul.f32 %v7845, %v7864
    %v7887 = vmul.f32 %v7841, %v7868
    %v7888 = vmul.f32 %v7853, %v7872
    %v7889 = vmul.f32 %v7850, %v7860
    %v7890 = vmul.f32 %v7846, %v7864
    %v7891 = vmul.f32 %v7842, %v7868
    %v7892 = vmul.f32 %v7854, %v7872
    %v7893 = vpack.c.bf16 %v7881, %v7877
    %v7894 = vpack.c.bf16 %v7882, %v7878
    %v7895 = vpack.c.bf16 %v7883, %v7879
    %v7896 = vpack.c.bf16 %v7884, %v7880
    %v7897 = vpack.c.bf16 %v7889, %v7885
    %v7898 = vpack.c.bf16 %v7890, %v7886
    %v7899 = vpack.c.bf16 %v7891, %v7887
    %v7900 = vpack.c.bf16 %v7892, %v7888
    %7901 = vst [vmem:[#allocation2 + $0x540] sm:$0xff] %v7893
    %7902 = vst [vmem:[#allocation2 + $0x548] sm:$0xff] %v7894
    %7903 = vst [vmem:[#allocation2 + $0x550] sm:$0xff] %v7895
    %7904 = vst [vmem:[#allocation2 + $0x558] sm:$0xff] %v7896
    %v7905 = vld [vmem:[#allocation2 + $0x560] sm:$0x1f]
    %v7906 = vsel %vm1375, %v7897, %v7905
    %7907 = vst [vmem:[#allocation2 + $0x560] sm:$0x1f] %v7906
    %v7908 = vld [vmem:[#allocation2 + $0x568] sm:$0x1f]
    %v7909 = vsel %vm1375, %v7898, %v7908
    %7910 = vst [vmem:[#allocation2 + $0x568] sm:$0x1f] %v7909
    %v7911 = vld [vmem:[#allocation2 + $0x570] sm:$0x1f]
    %v7912 = vsel %vm1375, %v7899, %v7911
    %7913 = vst [vmem:[#allocation2 + $0x570] sm:$0x1f] %v7912
    %v7914 = vld [vmem:[#allocation2 + $0x578] sm:$0x1f]
    %v7915 = vsel %vm1375, %v7900, %v7914
    %7916 = vst [vmem:[#allocation2 + $0x578] sm:$0x1f] %v7915
    %7917 = vrot.lane.b32.xlu0 %v5265, 96
    %v7918 = vpop.permute.xlu0 %7917
    %7919 = vrot.lane.b32.xlu0 %v5269, 96
    %v7920 = vpop.permute.xlu0 %7919
    %7921 = vrot.lane.b32.xlu0 %v5273, 96
    %v7922 = vpop.permute.xlu0 %7921
    %7923 = vrot.lane.b32.xlu0 %v5277, 96
    %v7924 = vpop.permute.xlu0 %7923
    %7925 = vrot.lane.b32.xlu0 %v5266, 96
    %v7926 = vpop.permute.xlu0 %7925
    %7927 = vrot.lane.b32.xlu0 %v5270, 96
    %v7928 = vpop.permute.xlu0 %7927
    %7929 = vrot.lane.b32.xlu0 %v5274, 96
    %v7930 = vpop.permute.xlu0 %7929
    %7931 = vrot.lane.b32.xlu0 %v5278, 96
    %v7932 = vpop.permute.xlu0 %7931
    %7933 = vrot.lane.b32.xlu0 %v5267, 96
    %v7934 = vpop.permute.xlu0 %7933
    %7935 = vrot.lane.b32.xlu0 %v5271, 96
    %v7936 = vpop.permute.xlu0 %7935
    %7937 = vrot.lane.b32.xlu0 %v5275, 96
    %v7938 = vpop.permute.xlu0 %7937
    %7939 = vrot.lane.b32.xlu0 %v5279, 96
    %v7940 = vpop.permute.xlu0 %7939
    %7941 = vrot.lane.b32.xlu0 %v5268, 96
    %v7942 = vpop.permute.xlu0 %7941
    %7943 = vrot.lane.b32.xlu0 %v5272, 96
    %v7944 = vpop.permute.xlu0 %7943
    %7945 = vrot.lane.b32.xlu0 %v5276, 96
    %v7946 = vpop.permute.xlu0 %7945
    %7947 = vrot.lane.b32.xlu0 %v5280, 96
    %v7948 = vpop.permute.xlu0 %7947
    %v7949 = vsel %vm3684, %v7934, %v7942
    %v7950 = vsel %vm3684, %v7936, %v7944
    %v7951 = vsel %vm3684, %v7938, %v7946
    %v7952 = vsel %vm3684, %v7940, %v7948
    %v7953 = vsel %vm3684, %v7926, %v7934
    %v7954 = vsel %vm3684, %v7928, %v7936
    %v7955 = vsel %vm3684, %v7930, %v7938
    %v7956 = vsel %vm3684, %v7932, %v7940
    %v7957 = vsel %vm3684, %v7918, %v7926
    %v7958 = vsel %vm3684, %v7920, %v7928
    %v7959 = vsel %vm3684, %v7922, %v7930
    %v7960 = vsel %vm3684, %v7924, %v7932
    %v7961 = vsel %vm3684, %v7942, %v7918
    %v7962 = vsel %vm3684, %v7944, %v7920
    %v7963 = vsel %vm3684, %v7946, %v7922
    %v7964 = vsel %vm3684, %v7948, %v7924
    %v7965 = vld [vmem:[%s3701] ss:$8 sm:$0xf]
    %v7967 = vlaneseq
    %v7968 = vshrl.u32 %v7967, 7
    %v7969 = vsub.s32 0, %v7968
    %v7970 = vrot.slane %v7965, %v7969
    %v7971 = vlaneseq
    %v7972 = vshrl.u32 %v7971, 7
    %v7973 = vsub.s32 1, %v7972
    %v7974 = vrot.slane %v7965, %v7973
    %v7975 = vlaneseq
    %v7976 = vshrl.u32 %v7975, 7
    %v7977 = vsub.s32 2, %v7976
    %v7978 = vrot.slane %v7965, %v7977
    %v7979 = vlaneseq
    %v7980 = vshrl.u32 %v7979, 7
    %v7981 = vsub.s32 3, %v7980
    %v7982 = vrot.slane %v7965, %v7981
    %v7987 = vmul.f32 %v7957, %v7970
    %v7988 = vmul.f32 %v7953, %v7974
    %v7989 = vmul.f32 %v7949, %v7978
    %v7990 = vmul.f32 %v7961, %v7982
    %v7991 = vmul.f32 %v7958, %v7970
    %v7992 = vmul.f32 %v7954, %v7974
    %v7993 = vmul.f32 %v7950, %v7978
    %v7994 = vmul.f32 %v7962, %v7982
    %v7995 = vmul.f32 %v7959, %v7970
    %v7996 = vmul.f32 %v7955, %v7974
    %v7997 = vmul.f32 %v7951, %v7978
    %v7998 = vmul.f32 %v7963, %v7982
    %v7999 = vmul.f32 %v7960, %v7970
    %v8000 = vmul.f32 %v7956, %v7974
    %v8001 = vmul.f32 %v7952, %v7978
    %v8002 = vmul.f32 %v7964, %v7982
    %v8003 = vpack.c.bf16 %v7991, %v7987
    %v8004 = vpack.c.bf16 %v7992, %v7988
    %v8005 = vpack.c.bf16 %v7993, %v7989
    %v8006 = vpack.c.bf16 %v7994, %v7990
    %v8007 = vpack.c.bf16 %v7999, %v7995
    %v8008 = vpack.c.bf16 %v8000, %v7996
    %v8009 = vpack.c.bf16 %v8001, %v7997
    %v8010 = vpack.c.bf16 %v8002, %v7998
    %8011 = vst [vmem:[#allocation2 + $0x580] sm:$0xff] %v8003
    %8012 = vst [vmem:[#allocation2 + $0x588] sm:$0xff] %v8004
    %8013 = vst [vmem:[#allocation2 + $0x590] sm:$0xff] %v8005
    %8014 = vst [vmem:[#allocation2 + $0x598] sm:$0xff] %v8006
    %v8015 = vld [vmem:[#allocation2 + $0x5a0] sm:$0x1f]
    %v8016 = vsel %vm1375, %v8007, %v8015
    %8017 = vst [vmem:[#allocation2 + $0x5a0] sm:$0x1f] %v8016
    %v8018 = vld [vmem:[#allocation2 + $0x5a8] sm:$0x1f]
    %v8019 = vsel %vm1375, %v8008, %v8018
    %8020 = vst [vmem:[#allocation2 + $0x5a8] sm:$0x1f] %v8019
    %v8021 = vld [vmem:[#allocation2 + $0x5b0] sm:$0x1f]
    %v8022 = vsel %vm1375, %v8009, %v8021
    %8023 = vst [vmem:[#allocation2 + $0x5b0] sm:$0x1f] %v8022
    %v8024 = vld [vmem:[#allocation2 + $0x5b8] sm:$0x1f]
    %v8025 = vsel %vm1375, %v8010, %v8024
    %8026 = vst [vmem:[#allocation2 + $0x5b8] sm:$0x1f] %v8025
    %8027 = vrot.lane.b32.xlu0 %v5265, 95
    %v8028 = vpop.permute.xlu0 %8027
    %8029 = vrot.lane.b32.xlu0 %v5269, 95
    %v8030 = vpop.permute.xlu0 %8029
    %8031 = vrot.lane.b32.xlu0 %v5273, 95
    %v8032 = vpop.permute.xlu0 %8031
    %8033 = vrot.lane.b32.xlu0 %v5277, 95
    %v8034 = vpop.permute.xlu0 %8033
    %8035 = vrot.lane.b32.xlu0 %v5266, 95
    %v8036 = vpop.permute.xlu0 %8035
    %8037 = vrot.lane.b32.xlu0 %v5270, 95
    %v8038 = vpop.permute.xlu0 %8037
    %8039 = vrot.lane.b32.xlu0 %v5274, 95
    %v8040 = vpop.permute.xlu0 %8039
    %8041 = vrot.lane.b32.xlu0 %v5278, 95
    %v8042 = vpop.permute.xlu0 %8041
    %8043 = vrot.lane.b32.xlu0 %v5267, 95
    %v8044 = vpop.permute.xlu0 %8043
    %8045 = vrot.lane.b32.xlu0 %v5271, 95
    %v8046 = vpop.permute.xlu0 %8045
    %8047 = vrot.lane.b32.xlu0 %v5275, 95
    %v8048 = vpop.permute.xlu0 %8047
    %8049 = vrot.lane.b32.xlu0 %v5279, 95
    %v8050 = vpop.permute.xlu0 %8049
    %8051 = vrot.lane.b32.xlu0 %v5268, 95
    %v8052 = vpop.permute.xlu0 %8051
    %8053 = vrot.lane.b32.xlu0 %v5272, 95
    %v8054 = vpop.permute.xlu0 %8053
    %8055 = vrot.lane.b32.xlu0 %v5276, 95
    %v8056 = vpop.permute.xlu0 %8055
    %8057 = vrot.lane.b32.xlu0 %v5280, 95
    %v8058 = vpop.permute.xlu0 %8057
    %v8059 = vsel %vm3796, %v8044, %v8052
    %v8060 = vsel %vm3796, %v8046, %v8054
    %v8061 = vsel %vm3796, %v8048, %v8056
    %v8062 = vsel %vm3796, %v8050, %v8058
    %v8063 = vsel %vm3796, %v8036, %v8044
    %v8064 = vsel %vm3796, %v8038, %v8046
    %v8065 = vsel %vm3796, %v8040, %v8048
    %v8066 = vsel %vm3796, %v8042, %v8050
    %v8067 = vsel %vm3796, %v8028, %v8036
    %v8068 = vsel %vm3796, %v8030, %v8038
    %v8069 = vsel %vm3796, %v8032, %v8040
    %v8070 = vsel %vm3796, %v8034, %v8042
    %v8071 = vsel %vm3796, %v8052, %v8028
    %v8072 = vsel %vm3796, %v8054, %v8030
    %v8073 = vsel %vm3796, %v8056, %v8032
    %v8074 = vsel %vm3796, %v8058, %v8034
    %v8075 = vld [vmem:[%s3813] ss:$8 sm:$0xf]
    %v8077 = vlaneseq
    %v8078 = vshrl.u32 %v8077, 7
    %v8079 = vsub.s32 0, %v8078
    %v8080 = vrot.slane %v8075, %v8079
    %v8081 = vlaneseq
    %v8082 = vshrl.u32 %v8081, 7
    %v8083 = vsub.s32 1, %v8082
    %v8084 = vrot.slane %v8075, %v8083
    %v8085 = vlaneseq
    %v8086 = vshrl.u32 %v8085, 7
    %v8087 = vsub.s32 2, %v8086
    %v8088 = vrot.slane %v8075, %v8087
    %v8089 = vlaneseq
    %v8090 = vshrl.u32 %v8089, 7
    %v8091 = vsub.s32 3, %v8090
    %v8092 = vrot.slane %v8075, %v8091
    %v8097 = vmul.f32 %v8067, %v8080
    %v8098 = vmul.f32 %v8063, %v8084
    %v8099 = vmul.f32 %v8059, %v8088
    %v8100 = vmul.f32 %v8071, %v8092
    %v8101 = vmul.f32 %v8068, %v8080
    %v8102 = vmul.f32 %v8064, %v8084
    %v8103 = vmul.f32 %v8060, %v8088
    %v8104 = vmul.f32 %v8072, %v8092
    %v8105 = vmul.f32 %v8069, %v8080
    %v8106 = vmul.f32 %v8065, %v8084
    %v8107 = vmul.f32 %v8061, %v8088
    %v8108 = vmul.f32 %v8073, %v8092
    %v8109 = vmul.f32 %v8070, %v8080
    %v8110 = vmul.f32 %v8066, %v8084
    %v8111 = vmul.f32 %v8062, %v8088
    %v8112 = vmul.f32 %v8074, %v8092
    %v8113 = vpack.c.bf16 %v8101, %v8097
    %v8114 = vpack.c.bf16 %v8102, %v8098
    %v8115 = vpack.c.bf16 %v8103, %v8099
    %v8116 = vpack.c.bf16 %v8104, %v8100
    %v8117 = vpack.c.bf16 %v8109, %v8105
    %v8118 = vpack.c.bf16 %v8110, %v8106
    %v8119 = vpack.c.bf16 %v8111, %v8107
    %v8120 = vpack.c.bf16 %v8112, %v8108
    %8121 = vst [vmem:[#allocation2 + $0x5c0] sm:$0xff] %v8113
    %8122 = vst [vmem:[#allocation2 + $0x5c8] sm:$0xff] %v8114
    %8123 = vst [vmem:[#allocation2 + $0x5d0] sm:$0xff] %v8115
    %8124 = vst [vmem:[#allocation2 + $0x5d8] sm:$0xff] %v8116
    %v8125 = vld [vmem:[#allocation2 + $0x5e0] sm:$0x1f]
    %v8126 = vsel %vm1375, %v8117, %v8125
    %8127 = vst [vmem:[#allocation2 + $0x5e0] sm:$0x1f] %v8126
    %v8128 = vld [vmem:[#allocation2 + $0x5e8] sm:$0x1f]
    %v8129 = vsel %vm1375, %v8118, %v8128
    %8130 = vst [vmem:[#allocation2 + $0x5e8] sm:$0x1f] %v8129
    %v8131 = vld [vmem:[#allocation2 + $0x5f0] sm:$0x1f]
    %v8132 = vsel %vm1375, %v8119, %v8131
    %8133 = vst [vmem:[#allocation2 + $0x5f0] sm:$0x1f] %v8132
    %v8134 = vld [vmem:[#allocation2 + $0x5f8] sm:$0x1f]
    %v8135 = vsel %vm1375, %v8120, %v8134
    %8136 = vst [vmem:[#allocation2 + $0x5f8] sm:$0x1f] %v8135
    %8137 = vrot.lane.b32.xlu0 %v5265, 94
    %v8138 = vpop.permute.xlu0 %8137
    %8139 = vrot.lane.b32.xlu0 %v5269, 94
    %v8140 = vpop.permute.xlu0 %8139
    %8141 = vrot.lane.b32.xlu0 %v5273, 94
    %v8142 = vpop.permute.xlu0 %8141
    %8143 = vrot.lane.b32.xlu0 %v5277, 94
    %v8144 = vpop.permute.xlu0 %8143
    %8145 = vrot.lane.b32.xlu0 %v5266, 94
    %v8146 = vpop.permute.xlu0 %8145
    %8147 = vrot.lane.b32.xlu0 %v5270, 94
    %v8148 = vpop.permute.xlu0 %8147
    %8149 = vrot.lane.b32.xlu0 %v5274, 94
    %v8150 = vpop.permute.xlu0 %8149
    %8151 = vrot.lane.b32.xlu0 %v5278, 94
    %v8152 = vpop.permute.xlu0 %8151
    %8153 = vrot.lane.b32.xlu0 %v5267, 94
    %v8154 = vpop.permute.xlu0 %8153
    %8155 = vrot.lane.b32.xlu0 %v5271, 94
    %v8156 = vpop.permute.xlu0 %8155
    %8157 = vrot.lane.b32.xlu0 %v5275, 94
    %v8158 = vpop.permute.xlu0 %8157
    %8159 = vrot.lane.b32.xlu0 %v5279, 94
    %v8160 = vpop.permute.xlu0 %8159
    %8161 = vrot.lane.b32.xlu0 %v5268, 94
    %v8162 = vpop.permute.xlu0 %8161
    %8163 = vrot.lane.b32.xlu0 %v5272, 94
    %v8164 = vpop.permute.xlu0 %8163
    %8165 = vrot.lane.b32.xlu0 %v5276, 94
    %v8166 = vpop.permute.xlu0 %8165
    %8167 = vrot.lane.b32.xlu0 %v5280, 94
    %v8168 = vpop.permute.xlu0 %8167
    %v8169 = vsel %vm3908, %v8154, %v8162
    %v8170 = vsel %vm3908, %v8156, %v8164
    %v8171 = vsel %vm3908, %v8158, %v8166
    %v8172 = vsel %vm3908, %v8160, %v8168
    %v8173 = vsel %vm3908, %v8146, %v8154
    %v8174 = vsel %vm3908, %v8148, %v8156
    %v8175 = vsel %vm3908, %v8150, %v8158
    %v8176 = vsel %vm3908, %v8152, %v8160
    %v8177 = vsel %vm3908, %v8138, %v8146
    %v8178 = vsel %vm3908, %v8140, %v8148
    %v8179 = vsel %vm3908, %v8142, %v8150
    %v8180 = vsel %vm3908, %v8144, %v8152
    %v8181 = vsel %vm3908, %v8162, %v8138
    %v8182 = vsel %vm3908, %v8164, %v8140
    %v8183 = vsel %vm3908, %v8166, %v8142
    %v8184 = vsel %vm3908, %v8168, %v8144
    %v8185 = vld [vmem:[%s3925] ss:$8 sm:$0xf]
    %v8187 = vlaneseq
    %v8188 = vshrl.u32 %v8187, 7
    %v8189 = vsub.s32 0, %v8188
    %v8190 = vrot.slane %v8185, %v8189
    %v8191 = vlaneseq
    %v8192 = vshrl.u32 %v8191, 7
    %v8193 = vsub.s32 1, %v8192
    %v8194 = vrot.slane %v8185, %v8193
    %v8195 = vlaneseq
    %v8196 = vshrl.u32 %v8195, 7
    %v8197 = vsub.s32 2, %v8196
    %v8198 = vrot.slane %v8185, %v8197
    %v8199 = vlaneseq
    %v8200 = vshrl.u32 %v8199, 7
    %v8201 = vsub.s32 3, %v8200
    %v8202 = vrot.slane %v8185, %v8201
    %v8207 = vmul.f32 %v8177, %v8190
    %v8208 = vmul.f32 %v8173, %v8194
    %v8209 = vmul.f32 %v8169, %v8198
    %v8210 = vmul.f32 %v8181, %v8202
    %v8211 = vmul.f32 %v8178, %v8190
    %v8212 = vmul.f32 %v8174, %v8194
    %v8213 = vmul.f32 %v8170, %v8198
    %v8214 = vmul.f32 %v8182, %v8202
    %v8215 = vmul.f32 %v8179, %v8190
    %v8216 = vmul.f32 %v8175, %v8194
    %v8217 = vmul.f32 %v8171, %v8198
    %v8218 = vmul.f32 %v8183, %v8202
    %v8219 = vmul.f32 %v8180, %v8190
    %v8220 = vmul.f32 %v8176, %v8194
    %v8221 = vmul.f32 %v8172, %v8198
    %v8222 = vmul.f32 %v8184, %v8202
    %v8223 = vpack.c.bf16 %v8211, %v8207
    %v8224 = vpack.c.bf16 %v8212, %v8208
    %v8225 = vpack.c.bf16 %v8213, %v8209
    %v8226 = vpack.c.bf16 %v8214, %v8210
    %v8227 = vpack.c.bf16 %v8219, %v8215
    %v8228 = vpack.c.bf16 %v8220, %v8216
    %v8229 = vpack.c.bf16 %v8221, %v8217
    %v8230 = vpack.c.bf16 %v8222, %v8218
    %8231 = vst [vmem:[#allocation2 + $0x600] sm:$0xff] %v8223
    %8232 = vst [vmem:[#allocation2 + $0x608] sm:$0xff] %v8224
    %8233 = vst [vmem:[#allocation2 + $0x610] sm:$0xff] %v8225
    %8234 = vst [vmem:[#allocation2 + $0x618] sm:$0xff] %v8226
    %v8235 = vld [vmem:[#allocation2 + $0x620] sm:$0x1f]
    %v8236 = vsel %vm1375, %v8227, %v8235
    %8237 = vst [vmem:[#allocation2 + $0x620] sm:$0x1f] %v8236
    %v8238 = vld [vmem:[#allocation2 + $0x628] sm:$0x1f]
    %v8239 = vsel %vm1375, %v8228, %v8238
    %8240 = vst [vmem:[#allocation2 + $0x628] sm:$0x1f] %v8239
    %v8241 = vld [vmem:[#allocation2 + $0x630] sm:$0x1f]
    %v8242 = vsel %vm1375, %v8229, %v8241
    %8243 = vst [vmem:[#allocation2 + $0x630] sm:$0x1f] %v8242
    %v8244 = vld [vmem:[#allocation2 + $0x638] sm:$0x1f]
    %v8245 = vsel %vm1375, %v8230, %v8244
    %8246 = vst [vmem:[#allocation2 + $0x638] sm:$0x1f] %v8245
    %v8247 = vld [vmem:[%s5] sm:$0xff]
    %v8248 = vld [vmem:[%s5 + $0x8] sm:$0xff]
    %v8249 = vld [vmem:[%s5 + $0x10] sm:$0xff]
    %v8250 = vld [vmem:[%s5 + $0x18] sm:$0xf]
    %v8251 = vld [vmem:[%s5 + $0x1c] sm:$0xff]
    %v8252 = vld [vmem:[%s5 + $0x24] sm:$0xff]
    %v8253 = vld [vmem:[%s5 + $0x2c] sm:$0xff]
    %v8254 = vld [vmem:[%s5 + $0x34] sm:$0xf]
    %v8255 = vld [vmem:[%s5 + $0x38] sm:$0xff]
    %v8256 = vld [vmem:[%s5 + $0x40] sm:$0xff]
    %v8257 = vld [vmem:[%s5 + $0x48] sm:$0xff]
    %v8258 = vld [vmem:[%s5 + $0x50] sm:$0xf]
    %v8259 = vld [vmem:[%s5 + $0x54] sm:$0x11]
    %v8260 = vld [vmem:[%s5 + $0x5c] sm:$0x11]
    %v8261 = vld [vmem:[%s5 + $0x64] sm:$0x11]
    %v8262 = vld [vmem:[%s5 + $0x6c] sm:$0x1]
    %v8263 = vld [vmem:[#allocation2] sm:$0xff]
    %v8264 = vld [vmem:[#allocation2 + $0x8] sm:$0xff]
    %v8265 = vld [vmem:[#allocation2 + $0x10] sm:$0xff]
    %v8266 = vld [vmem:[#allocation2 + $0x18] sm:$0xff]
    %v8267 = vld [vmem:[#allocation2 + $0x20] sm:$0xff]
    %v8268 = vld [vmem:[#allocation2 + $0x28] sm:$0xff]
    %v8269 = vld [vmem:[#allocation2 + $0x30] sm:$0xff]
    %v8270 = vld [vmem:[#allocation2 + $0x38] sm:$0xff]
    %v8271 = vld [vmem:[#allocation2 + $0x40] sm:$0xff]
    %v8272 = vld [vmem:[#allocation2 + $0x48] sm:$0xff]
    %v8273 = vld [vmem:[#allocation2 + $0x50] sm:$0xff]
    %v8274 = vld [vmem:[#allocation2 + $0x58] sm:$0xff]
    %v8275 = vld [vmem:[#allocation2 + $0x60] sm:$0xff]
    %v8276 = vld [vmem:[#allocation2 + $0x68] sm:$0xff]
    %v8277 = vld [vmem:[#allocation2 + $0x70] sm:$0xff]
    %v8278 = vld [vmem:[#allocation2 + $0x78] sm:$0xff]
    %v8279 = vld [vmem:[#allocation2 + $0x80] sm:$0xff]
    %v8280 = vld [vmem:[#allocation2 + $0x88] sm:$0xff]
    %v8281 = vld [vmem:[#allocation2 + $0x90] sm:$0xff]
    %v8282 = vld [vmem:[#allocation2 + $0x98] sm:$0xff]
    %v8283 = vld [vmem:[#allocation2 + $0xa0] sm:$0xff]
    %v8284 = vld [vmem:[#allocation2 + $0xa8] sm:$0xff]
    %v8285 = vld [vmem:[#allocation2 + $0xb0] sm:$0xff]
    %v8286 = vld [vmem:[#allocation2 + $0xb8] sm:$0xff]
    %v8287 = vld [vmem:[#allocation2 + $0xc0] sm:$0xff]
    %v8288 = vld [vmem:[#allocation2 + $0xc8] sm:$0xff]
    %v8289 = vld [vmem:[#allocation2 + $0xd0] sm:$0xff]
    %v8290 = vld [vmem:[#allocation2 + $0xd8] sm:$0xff]
    %v8291 = vld [vmem:[#allocation2 + $0xe0] sm:$0xff]
    %v8292 = vld [vmem:[#allocation2 + $0xe8] sm:$0xff]
    %v8293 = vld [vmem:[#allocation2 + $0xf0] sm:$0xff]
    %v8294 = vld [vmem:[#allocation2 + $0xf8] sm:$0xff]
    %v8295 = vld [vmem:[#allocation2 + $0x100] sm:$0xff]
    %v8296 = vld [vmem:[#allocation2 + $0x108] sm:$0xff]
    %v8297 = vld [vmem:[#allocation2 + $0x110] sm:$0xff]
    %v8298 = vld [vmem:[#allocation2 + $0x118] sm:$0xff]
    %v8299 = vld [vmem:[#allocation2 + $0x120] sm:$0xff]
    %v8300 = vld [vmem:[#allocation2 + $0x128] sm:$0xff]
    %v8301 = vld [vmem:[#allocation2 + $0x130] sm:$0xff]
    %v8302 = vld [vmem:[#allocation2 + $0x138] sm:$0xff]
    %v8303 = vld [vmem:[#allocation2 + $0x140] sm:$0xff]
    %v8304 = vld [vmem:[#allocation2 + $0x148] sm:$0xff]
    %v8305 = vld [vmem:[#allocation2 + $0x150] sm:$0xff]
    %v8306 = vld [vmem:[#allocation2 + $0x158] sm:$0xff]
    %v8307 = vld [vmem:[#allocation2 + $0x160] sm:$0xff]
    %v8308 = vld [vmem:[#allocation2 + $0x168] sm:$0xff]
    %v8309 = vld [vmem:[#allocation2 + $0x170] sm:$0xff]
    %v8310 = vld [vmem:[#allocation2 + $0x178] sm:$0xff]
    %v8311 = vld [vmem:[#allocation2 + $0x180] sm:$0xff]
    %v8312 = vld [vmem:[#allocation2 + $0x188] sm:$0xff]
    %v8313 = vld [vmem:[#allocation2 + $0x190] sm:$0xff]
    %v8314 = vld [vmem:[#allocation2 + $0x198] sm:$0xff]
    %v8315 = vld [vmem:[#allocation2 + $0x1a0] sm:$0xff]
    %v8316 = vld [vmem:[#allocation2 + $0x1a8] sm:$0xff]
    %v8317 = vld [vmem:[#allocation2 + $0x1b0] sm:$0xff]
    %v8318 = vld [vmem:[#allocation2 + $0x1b8] sm:$0xff]
    %v8319 = vld [vmem:[#allocation2 + $0x1c0] sm:$0xff]
    %v8320 = vld [vmem:[#allocation2 + $0x1c8] sm:$0xff]
    %v8321 = vld [vmem:[#allocation2 + $0x1d0] sm:$0xff]
    %v8322 = vld [vmem:[#allocation2 + $0x1d8] sm:$0xff]
    %v8323 = vld [vmem:[#allocation2 + $0x1e0] sm:$0xff]
    %v8324 = vld [vmem:[#allocation2 + $0x1e8] sm:$0xff]
    %v8325 = vld [vmem:[#allocation2 + $0x1f0] sm:$0xff]
    %v8326 = vld [vmem:[#allocation2 + $0x1f8] sm:$0xff]
    %v8327 = vld [vmem:[#allocation2 + $0x200] sm:$0xff]
    %v8328 = vld [vmem:[#allocation2 + $0x208] sm:$0xff]
    %v8329 = vld [vmem:[#allocation2 + $0x210] sm:$0xff]
    %v8330 = vld [vmem:[#allocation2 + $0x218] sm:$0xff]
    %v8331 = vld [vmem:[#allocation2 + $0x220] sm:$0xff]
    %v8332 = vld [vmem:[#allocation2 + $0x228] sm:$0xff]
    %v8333 = vld [vmem:[#allocation2 + $0x230] sm:$0xff]
    %v8334 = vld [vmem:[#allocation2 + $0x238] sm:$0xff]
    %v8335 = vld [vmem:[#allocation2 + $0x240] sm:$0xff]
    %v8336 = vld [vmem:[#allocation2 + $0x248] sm:$0xff]
    %v8337 = vld [vmem:[#allocation2 + $0x250] sm:$0xff]
    %v8338 = vld [vmem:[#allocation2 + $0x258] sm:$0xff]
    %v8339 = vld [vmem:[#allocation2 + $0x260] sm:$0xff]
    %v8340 = vld [vmem:[#allocation2 + $0x268] sm:$0xff]
    %v8341 = vld [vmem:[#allocation2 + $0x270] sm:$0xff]
    %v8342 = vld [vmem:[#allocation2 + $0x278] sm:$0xff]
    %v8343 = vld [vmem:[#allocation2 + $0x280] sm:$0xff]
    %v8344 = vld [vmem:[#allocation2 + $0x288] sm:$0xff]
    %v8345 = vld [vmem:[#allocation2 + $0x290] sm:$0xff]
    %v8346 = vld [vmem:[#allocation2 + $0x298] sm:$0xff]
    %v8347 = vld [vmem:[#allocation2 + $0x2a0] sm:$0xff]
    %v8348 = vld [vmem:[#allocation2 + $0x2a8] sm:$0xff]
    %v8349 = vld [vmem:[#allocation2 + $0x2b0] sm:$0xff]
    %v8350 = vld [vmem:[#allocation2 + $0x2b8] sm:$0xff]
    %v8351 = vld [vmem:[#allocation2 + $0x2c0] sm:$0xff]
    %v8352 = vld [vmem:[#allocation2 + $0x2c8] sm:$0xff]
    %v8353 = vld [vmem:[#allocation2 + $0x2d0] sm:$0xff]
    %v8354 = vld [vmem:[#allocation2 + $0x2d8] sm:$0xff]
    %v8355 = vld [vmem:[#allocation2 + $0x2e0] sm:$0xff]
    %v8356 = vld [vmem:[#allocation2 + $0x2e8] sm:$0xff]
    %v8357 = vld [vmem:[#allocation2 + $0x2f0] sm:$0xff]
    %v8358 = vld [vmem:[#allocation2 + $0x2f8] sm:$0xff]
    %v8359 = vld [vmem:[#allocation2 + $0x300] sm:$0xff]
    %v8360 = vld [vmem:[#allocation2 + $0x308] sm:$0xff]
    %v8361 = vld [vmem:[#allocation2 + $0x310] sm:$0xff]
    %v8362 = vld [vmem:[#allocation2 + $0x318] sm:$0xff]
    %v8363 = vld [vmem:[#allocation2 + $0x320] sm:$0xff]
    %v8364 = vld [vmem:[#allocation2 + $0x328] sm:$0xff]
    %v8365 = vld [vmem:[#allocation2 + $0x330] sm:$0xff]
    %v8366 = vld [vmem:[#allocation2 + $0x338] sm:$0xff]
    %v8367 = vld [vmem:[#allocation2 + $0x340] sm:$0xff]
    %v8368 = vld [vmem:[#allocation2 + $0x348] sm:$0xff]
    %v8369 = vld [vmem:[#allocation2 + $0x350] sm:$0xff]
    %v8370 = vld [vmem:[#allocation2 + $0x358] sm:$0xff]
    %v8371 = vld [vmem:[#allocation2 + $0x360] sm:$0xff]
    %v8372 = vld [vmem:[#allocation2 + $0x368] sm:$0xff]
    %v8373 = vld [vmem:[#allocation2 + $0x370] sm:$0xff]
    %v8374 = vld [vmem:[#allocation2 + $0x378] sm:$0xff]
    %v8375 = vld [vmem:[#allocation2 + $0x380] sm:$0xff]
    %v8376 = vld [vmem:[#allocation2 + $0x388] sm:$0xff]
    %v8377 = vld [vmem:[#allocation2 + $0x390] sm:$0xff]
    %v8378 = vld [vmem:[#allocation2 + $0x398] sm:$0xff]
    %v8379 = vld [vmem:[#allocation2 + $0x3a0] sm:$0xff]
    %v8380 = vld [vmem:[#allocation2 + $0x3a8] sm:$0xff]
    %v8381 = vld [vmem:[#allocation2 + $0x3b0] sm:$0xff]
    %v8382 = vld [vmem:[#allocation2 + $0x3b8] sm:$0xff]
    %v8383 = vld [vmem:[#allocation2 + $0x3c0] sm:$0xff]
    %v8384 = vld [vmem:[#allocation2 + $0x3c8] sm:$0xff]
    %v8385 = vld [vmem:[#allocation2 + $0x3d0] sm:$0xff]
    %v8386 = vld [vmem:[#allocation2 + $0x3d8] sm:$0xff]
    %v8387 = vld [vmem:[#allocation2 + $0x3e0] sm:$0xff]
    %v8388 = vld [vmem:[#allocation2 + $0x3e8] sm:$0xff]
    %v8389 = vld [vmem:[#allocation2 + $0x3f0] sm:$0xff]
    %v8390 = vld [vmem:[#allocation2 + $0x3f8] sm:$0xff]
    %v8391 = vld [vmem:[#allocation2 + $0x400] sm:$0xff]
    %v8392 = vld [vmem:[#allocation2 + $0x408] sm:$0xff]
    %v8393 = vld [vmem:[#allocation2 + $0x410] sm:$0xff]
    %v8394 = vld [vmem:[#allocation2 + $0x418] sm:$0xff]
    %v8395 = vld [vmem:[#allocation2 + $0x420] sm:$0xff]
    %v8396 = vld [vmem:[#allocation2 + $0x428] sm:$0xff]
    %v8397 = vld [vmem:[#allocation2 + $0x430] sm:$0xff]
    %v8398 = vld [vmem:[#allocation2 + $0x438] sm:$0xff]
    %v8399 = vld [vmem:[#allocation2 + $0x440] sm:$0xff]
    %v8400 = vld [vmem:[#allocation2 + $0x448] sm:$0xff]
    %v8401 = vld [vmem:[#allocation2 + $0x450] sm:$0xff]
    %v8402 = vld [vmem:[#allocation2 + $0x458] sm:$0xff]
    %v8403 = vld [vmem:[#allocation2 + $0x460] sm:$0xff]
    %v8404 = vld [vmem:[#allocation2 + $0x468] sm:$0xff]
    %v8405 = vld [vmem:[#allocation2 + $0x470] sm:$0xff]
    %v8406 = vld [vmem:[#allocation2 + $0x478] sm:$0xff]
    %v8407 = vld [vmem:[#allocation2 + $0x480] sm:$0xff]
    %v8408 = vld [vmem:[#allocation2 + $0x488] sm:$0xff]
    %v8409 = vld [vmem:[#allocation2 + $0x490] sm:$0xff]
    %v8410 = vld [vmem:[#allocation2 + $0x498] sm:$0xff]
    %v8411 = vld [vmem:[#allocation2 + $0x4a0] sm:$0xff]
    %v8412 = vld [vmem:[#allocation2 + $0x4a8] sm:$0xff]
    %v8413 = vld [vmem:[#allocation2 + $0x4b0] sm:$0xff]
    %v8414 = vld [vmem:[#allocation2 + $0x4b8] sm:$0xff]
    %v8415 = vld [vmem:[#allocation2 + $0x4c0] sm:$0xff]
    %v8416 = vld [vmem:[#allocation2 + $0x4c8] sm:$0xff]
    %v8417 = vld [vmem:[#allocation2 + $0x4d0] sm:$0xff]
    %v8418 = vld [vmem:[#allocation2 + $0x4d8] sm:$0xff]
    %v8419 = vld [vmem:[#allocation2 + $0x4e0] sm:$0xff]
    %v8420 = vld [vmem:[#allocation2 + $0x4e8] sm:$0xff]
    %v8421 = vld [vmem:[#allocation2 + $0x4f0] sm:$0xff]
    %v8422 = vld [vmem:[#allocation2 + $0x4f8] sm:$0xff]
    %v8423 = vld [vmem:[#allocation2 + $0x500] sm:$0xff]
    %v8424 = vld [vmem:[#allocation2 + $0x508] sm:$0xff]
    %v8425 = vld [vmem:[#allocation2 + $0x510] sm:$0xff]
    %v8426 = vld [vmem:[#allocation2 + $0x518] sm:$0xff]
    %v8427 = vld [vmem:[#allocation2 + $0x520] sm:$0xff]
    %v8428 = vld [vmem:[#allocation2 + $0x528] sm:$0xff]
    %v8429 = vld [vmem:[#allocation2 + $0x530] sm:$0xff]
    %v8430 = vld [vmem:[#allocation2 + $0x538] sm:$0xff]
    %v8431 = vld [vmem:[#allocation2 + $0x540] sm:$0xff]
    %v8432 = vld [vmem:[#allocation2 + $0x548] sm:$0xff]
    %v8433 = vld [vmem:[#allocation2 + $0x550] sm:$0xff]
    %v8434 = vld [vmem:[#allocation2 + $0x558] sm:$0xff]
    %v8435 = vld [vmem:[#allocation2 + $0x560] sm:$0xff]
    %v8436 = vld [vmem:[#allocation2 + $0x568] sm:$0xff]
    %v8437 = vld [vmem:[#allocation2 + $0x570] sm:$0xff]
    %v8438 = vld [vmem:[#allocation2 + $0x578] sm:$0xff]
    %v8439 = vld [vmem:[#allocation2 + $0x580] sm:$0xff]
    %v8440 = vld [vmem:[#allocation2 + $0x588] sm:$0xff]
    %v8441 = vld [vmem:[#allocation2 + $0x590] sm:$0xff]
    %v8442 = vld [vmem:[#allocation2 + $0x598] sm:$0xff]
    %v8443 = vld [vmem:[#allocation2 + $0x5a0] sm:$0xff]
    %v8444 = vld [vmem:[#allocation2 + $0x5a8] sm:$0xff]
    %v8445 = vld [vmem:[#allocation2 + $0x5b0] sm:$0xff]
    %v8446 = vld [vmem:[#allocation2 + $0x5b8] sm:$0xff]
    %v8447 = vld [vmem:[#allocation2 + $0x5c0] sm:$0xff]
    %v8448 = vld [vmem:[#allocation2 + $0x5c8] sm:$0xff]
    %v8449 = vld [vmem:[#allocation2 + $0x5d0] sm:$0xff]
    %v8450 = vld [vmem:[#allocation2 + $0x5d8] sm:$0xff]
    %v8451 = vld [vmem:[#allocation2 + $0x5e0] sm:$0xff]
    %v8452 = vld [vmem:[#allocation2 + $0x5e8] sm:$0xff]
    %v8453 = vld [vmem:[#allocation2 + $0x5f0] sm:$0xff]
    %v8454 = vld [vmem:[#allocation2 + $0x5f8] sm:$0xff]
    %v8455 = vld [vmem:[#allocation2 + $0x600] sm:$0xff]
    %v8456 = vld [vmem:[#allocation2 + $0x608] sm:$0xff]
    %v8457 = vld [vmem:[#allocation2 + $0x610] sm:$0xff]
    %v8458 = vld [vmem:[#allocation2 + $0x618] sm:$0xff]
    %v8459 = vld [vmem:[#allocation2 + $0x620] sm:$0xff]
    %v8460 = vld [vmem:[#allocation2 + $0x628] sm:$0xff]
    %v8461 = vld [vmem:[#allocation2 + $0x630] sm:$0xff]
    %v8462 = vld [vmem:[#allocation2 + $0x638] sm:$0xff]
    %v8479 = vunpack.c.l.b16 %v8247
    %v8480 = vunpack.c.h.b16 %v8247
    %v8481 = vunpack.c.l.b16 %v8248
    %v8482 = vunpack.c.h.b16 %v8248
    %v8483 = vunpack.c.l.b16 %v8249
    %v8484 = vunpack.c.h.b16 %v8249
    %v8485 = vunpack.c.l.b16 %v8250
    %v8486 = vunpack.c.l.b16 %v8251
    %v8487 = vunpack.c.h.b16 %v8251
    %v8488 = vunpack.c.l.b16 %v8252
    %v8489 = vunpack.c.h.b16 %v8252
    %v8490 = vunpack.c.l.b16 %v8253
    %v8491 = vunpack.c.h.b16 %v8253
    %v8492 = vunpack.c.l.b16 %v8254
    %v8493 = vunpack.c.l.b16 %v8255
    %v8494 = vunpack.c.h.b16 %v8255
    %v8495 = vunpack.c.l.b16 %v8256
    %v8496 = vunpack.c.h.b16 %v8256
    %v8497 = vunpack.c.l.b16 %v8257
    %v8498 = vunpack.c.h.b16 %v8257
    %v8499 = vunpack.c.l.b16 %v8258
    %v8500 = vunpack.c.l.b16 %v8259
    %v8501 = vunpack.c.h.b16 %v8259
    %v8502 = vunpack.c.l.b16 %v8260
    %v8503 = vunpack.c.h.b16 %v8260
    %v8504 = vunpack.c.l.b16 %v8261
    %v8505 = vunpack.c.h.b16 %v8261
    %v8506 = vunpack.c.l.b16 %v8262
    %v8507 = vpack.c.b16 %v8486, %v8479
    %v8508 = vpack.c.b16 %v8487, %v8480
    %v8509 = vpack.c.b16 %v8488, %v8481
    %v8510 = vpack.c.b16 %v8489, %v8482
    %v8511 = vpack.c.b16 %v8490, %v8483
    %v8512 = vpack.c.b16 %v8491, %v8484
    %v8513 = vpack.c.b16 %v8492, %v8485
    %v8514 = vpack.c.b16 %v8500, %v8493
    %v8515 = vpack.c.b16 %v8501, %v8494
    %v8516 = vpack.c.b16 %v8502, %v8495
    %v8517 = vpack.c.b16 %v8503, %v8496
    %v8518 = vpack.c.b16 %v8504, %v8497
    %v8519 = vpack.c.b16 %v8505, %v8498
    %v8520 = vpack.c.b16 %v8506, %v8499
    %v8534 = vsel %vm4274, %v8513, 0
    %v8537 = vsel %vm4274, %v8520, 0
    %8539 = vmatprep.subr.bf16.mxu0 %v8264
    %8540 = vmatpush1.bf16.msra.mxu0 %v8263
    %8541 = vmatprep.subr.bf16.mxu0 %v8268
    %8542 = vmatpush1.bf16.msra.mxu0 %v8267
    %8543 = vmatprep.subr.bf16.mxu0 %v8272
    %8544 = vmatpush1.bf16.msra.mxu0 %v8271
    %8545 = vmatprep.subr.bf16.mxu0 %v8276
    %8546 = vmatpush1.bf16.msra.mxu0 %v8275
    %8547 = vmatprep.subr.bf16.mxu0 %v8280
    %8548 = vmatpush1.bf16.msra.mxu0 %v8279
    %8549 = vmatprep.subr.bf16.mxu0 %v8284
    %8550 = vmatpush1.bf16.msra.mxu0 %v8283
    %8551 = vmatprep.subr.bf16.mxu0 %v8288
    %8552 = vmatpush1.bf16.msra.mxu0 %v8287
    %8553 = vmatprep.subr.bf16.mxu0 %v8292
    %8554 = vmatpush1.bf16.msra.mxu0 %v8291
    %8555 = vmatprep.subr.bf16.mxu0 %v8296
    %8556 = vmatpush1.bf16.msra.mxu0 %v8295
    %8557 = vmatprep.subr.bf16.mxu0 %v8300
    %8558 = vmatpush1.bf16.msra.mxu0 %v8299
    %8559 = vmatprep.subr.bf16.mxu0 %v8304
    %8560 = vmatpush1.bf16.msra.mxu0 %v8303
    %8561 = vmatprep.subr.bf16.mxu0 %v8308
    %8562 = vmatpush1.bf16.msra.mxu0 %v8307
    %8563 = vmatprep.subr.bf16.mxu0 %v8312
    %8564 = vmatpush1.bf16.msra.mxu0 %v8311
    %8565 = vmatprep.subr.bf16.mxu0 %v8316
    %8566 = vmatpush1.bf16.msra.mxu0 %v8315
    %8567 = vmatprep.subr.bf16.mxu0 %v8320
    %8568 = vmatpush1.bf16.msra.mxu0 %v8319
    %8569 = vmatprep.subr.bf16.mxu0 %v8324
    %8570 = vmatpush1.bf16.msra.mxu0 %v8323
    %8571 = vmatprep.mubr.bf16.mxu0 %v8508
    %8572 = vmatmul.mubr.bf16.gmra.mrb[0].mxu0 %v8507
    %v8573 = vpop.f32.mrb[0].mxu0
    %v8574 = vadd.f32 0.0, %v8573
    %v8575 = vpop.f32.mrb[0].mxu0
    %v8576 = vadd.f32 0.0, %v8575
    %v8577 = vpop.f32.mrb[0].mxu0
    %v8578 = vadd.f32 0.0, %v8577
    %v8579 = vpop.f32.mrb[0].mxu0
    %v8580 = vadd.f32 0.0, %v8579
    %8581 = vmatprep.mubr.bf16.mxu0 %v8515
    %8582 = vmatmul.mubr.bf16.gmra.mrb[0].mxu0 %v8514
    %v8583 = vpop.f32.mrb[0].mxu0
    %v8584 = vadd.f32 0.0, %v8583
    %v8585 = vpop.f32.mrb[0].mxu0
    %v8586 = vadd.f32 0.0, %v8585
    %v8587 = vpop.f32.mrb[0].mxu0
    %v8588 = vadd.f32 0.0, %v8587
    %v8589 = vpop.f32.mrb[0].mxu0
    %v8590 = vadd.f32 0.0, %v8589
    %8591 = vdwg.mxu0
    %8592 = vmatprep.subr.bf16.mxu0 %v8328
    %8593 = vmatpush1.bf16.msra.mxu0 %v8327
    %8594 = vmatprep.subr.bf16.mxu0 %v8332
    %8595 = vmatpush1.bf16.msra.mxu0 %v8331
    %8596 = vmatprep.subr.bf16.mxu0 %v8336
    %8597 = vmatpush1.bf16.msra.mxu0 %v8335
    %8598 = vmatprep.subr.bf16.mxu0 %v8340
    %8599 = vmatpush1.bf16.msra.mxu0 %v8339
    %8600 = vmatprep.subr.bf16.mxu0 %v8344
    %8601 = vmatpush1.bf16.msra.mxu0 %v8343
    %8602 = vmatprep.subr.bf16.mxu0 %v8348
    %8603 = vmatpush1.bf16.msra.mxu0 %v8347
    %8604 = vmatprep.subr.bf16.mxu0 %v8352
    %8605 = vmatpush1.bf16.msra.mxu0 %v8351
    %8606 = vmatprep.subr.bf16.mxu0 %v8356
    %8607 = vmatpush1.bf16.msra.mxu0 %v8355
    %8608 = vmatprep.subr.bf16.mxu0 %v8360
    %8609 = vmatpush1.bf16.msra.mxu0 %v8359
    %8610 = vmatprep.subr.bf16.mxu0 %v8364
    %8611 = vmatpush1.bf16.msra.mxu0 %v8363
    %8612 = vmatprep.subr.bf16.mxu0 %v8368
    %8613 = vmatpush1.bf16.msra.mxu0 %v8367
    %8614 = vmatprep.subr.bf16.mxu0 %v8372
    %8615 = vmatpush1.bf16.msra.mxu0 %v8371
    %8616 = vmatprep.subr.bf16.mxu0 %v8376
    %8617 = vmatpush1.bf16.msra.mxu0 %v8375
    %8618 = vmatprep.subr.bf16.mxu0 %v8380
    %8619 = vmatpush1.bf16.msra.mxu0 %v8379
    %8620 = vmatprep.subr.bf16.mxu0 %v8384
    %8621 = vmatpush1.bf16.msra.mxu0 %v8383
    %8622 = vmatprep.subr.bf16.mxu0 %v8388
    %8623 = vmatpush1.bf16.msra.mxu0 %v8387
    %8624 = vmatprep.mubr.bf16.mxu0 %v8510
    %8625 = vmatmul.mubr.bf16.gmra.mrb[0].mxu0 %v8509
    %v8626 = vpop.f32.mrb[0].mxu0
    %v8627 = vadd.f32 %v8574, %v8626
    %v8628 = vpop.f32.mrb[0].mxu0
    %v8629 = vadd.f32 %v8576, %v8628
    %v8630 = vpop.f32.mrb[0].mxu0
    %v8631 = vadd.f32 %v8578, %v8630
    %v8632 = vpop.f32.mrb[0].mxu0
    %v8633 = vadd.f32 %v8580, %v8632
    %8634 = vmatprep.mubr.bf16.mxu0 %v8517
    %8635 = vmatmul.mubr.bf16.gmra.mrb[0].mxu0 %v8516
    %v8636 = vpop.f32.mrb[0].mxu0
    %v8637 = vadd.f32 %v8584, %v8636
    %v8638 = vpop.f32.mrb[0].mxu0
    %v8639 = vadd.f32 %v8586, %v8638
    %v8640 = vpop.f32.mrb[0].mxu0
    %v8641 = vadd.f32 %v8588, %v8640
    %v8642 = vpop.f32.mrb[0].mxu0
    %v8643 = vadd.f32 %v8590, %v8642
    %8644 = vdwg.mxu0
    %8645 = vmatprep.subr.bf16.mxu0 %v8392
    %8646 = vmatpush1.bf16.msra.mxu0 %v8391
    %8647 = vmatprep.subr.bf16.mxu0 %v8396
    %8648 = vmatpush1.bf16.msra.mxu0 %v8395
    %8649 = vmatprep.subr.bf16.mxu0 %v8400
    %8650 = vmatpush1.bf16.msra.mxu0 %v8399
    %8651 = vmatprep.subr.bf16.mxu0 %v8404
    %8652 = vmatpush1.bf16.msra.mxu0 %v8403
    %8653 = vmatprep.subr.bf16.mxu0 %v8408
    %8654 = vmatpush1.bf16.msra.mxu0 %v8407
    %8655 = vmatprep.subr.bf16.mxu0 %v8412
    %8656 = vmatpush1.bf16.msra.mxu0 %v8411
    %8657 = vmatprep.subr.bf16.mxu0 %v8416
    %8658 = vmatpush1.bf16.msra.mxu0 %v8415
    %8659 = vmatprep.subr.bf16.mxu0 %v8420
    %8660 = vmatpush1.bf16.msra.mxu0 %v8419
    %8661 = vmatprep.subr.bf16.mxu0 %v8424
    %8662 = vmatpush1.bf16.msra.mxu0 %v8423
    %8663 = vmatprep.subr.bf16.mxu0 %v8428
    %8664 = vmatpush1.bf16.msra.mxu0 %v8427
    %8665 = vmatprep.subr.bf16.mxu0 %v8432
    %8666 = vmatpush1.bf16.msra.mxu0 %v8431
    %8667 = vmatprep.subr.bf16.mxu0 %v8436
    %8668 = vmatpush1.bf16.msra.mxu0 %v8435
    %8669 = vmatprep.subr.bf16.mxu0 %v8440
    %8670 = vmatpush1.bf16.msra.mxu0 %v8439
    %8671 = vmatprep.subr.bf16.mxu0 %v8444
    %8672 = vmatpush1.bf16.msra.mxu0 %v8443
    %8673 = vmatprep.subr.bf16.mxu0 %v8448
    %8674 = vmatpush1.bf16.msra.mxu0 %v8447
    %8675 = vmatprep.subr.bf16.mxu0 %v8452
    %8676 = vmatpush1.bf16.msra.mxu0 %v8451
    %8677 = vmatprep.mubr.bf16.mxu0 %v8512
    %8678 = vmatmul.mubr.bf16.gmra.mrb[0].mxu0 %v8511
    %v8679 = vpop.f32.mrb[0].mxu0
    %v8680 = vadd.f32 %v8627, %v8679
    %v8681 = vpop.f32.mrb[0].mxu0
    %v8682 = vadd.f32 %v8629, %v8681
    %v8683 = vpop.f32.mrb[0].mxu0
    %v8684 = vadd.f32 %v8631, %v8683
    %v8685 = vpop.f32.mrb[0].mxu0
    %v8686 = vadd.f32 %v8633, %v8685
    %8687 = vmatprep.mubr.bf16.mxu0 %v8519
    %8688 = vmatmul.mubr.bf16.gmra.mrb[0].mxu0 %v8518
    %v8689 = vpop.f32.mrb[0].mxu0
    %v8690 = vadd.f32 %v8637, %v8689
    %v8691 = vpop.f32.mrb[0].mxu0
    %v8692 = vadd.f32 %v8639, %v8691
    %v8693 = vpop.f32.mrb[0].mxu0
    %v8694 = vadd.f32 %v8641, %v8693
    %v8695 = vpop.f32.mrb[0].mxu0
    %v8696 = vadd.f32 %v8643, %v8695
    %8697 = vdwg.mxu0
    %8698 = vmatprep.subr.bf16.mxu0 %v8456
    %8699 = vmatpush1.bf16.msra.mxu0 %v8455
    %8700 = vmatprep.subr.bf16.mxu0 %v8460
    %8701 = vmatpush1.bf16.msra.mxu0 %v8459
    %8702 = vmatprep.subr.bf16.mxu0 0
    %8703 = vmatpush1.bf16.msra.mxu0 0
    %8704 = vmatprep.subr.bf16.mxu0 0
    %8705 = vmatpush1.bf16.msra.mxu0 0
    %8706 = vmatprep.subr.bf16.mxu0 0
    %8707 = vmatpush1.bf16.msra.mxu0 0
    %8708 = vmatprep.subr.bf16.mxu0 0
    %8709 = vmatpush1.bf16.msra.mxu0 0
    %8710 = vmatprep.subr.bf16.mxu0 0
    %8711 = vmatpush1.bf16.msra.mxu0 0
    %8712 = vmatprep.subr.bf16.mxu0 0
    %8713 = vmatpush1.bf16.msra.mxu0 0
    %8714 = vmatprep.subr.bf16.mxu0 0
    %8715 = vmatpush1.bf16.msra.mxu0 0
    %8716 = vmatprep.subr.bf16.mxu0 0
    %8717 = vmatpush1.bf16.msra.mxu0 0
    %8718 = vmatprep.subr.bf16.mxu0 0
    %8719 = vmatpush1.bf16.msra.mxu0 0
    %8720 = vmatprep.subr.bf16.mxu0 0
    %8721 = vmatpush1.bf16.msra.mxu0 0
    %8722 = vmatprep.subr.bf16.mxu0 0
    %8723 = vmatpush1.bf16.msra.mxu0 0
    %8724 = vmatprep.subr.bf16.mxu0 0
    %8725 = vmatpush1.bf16.msra.mxu0 0
    %8726 = vmatprep.subr.bf16.mxu0 0
    %8727 = vmatpush1.bf16.msra.mxu0 0
    %8728 = vmatprep.subr.bf16.mxu0 0
    %8729 = vmatpush1.bf16.msra.mxu0 0
    %8730 = vmatprep.mubr.bf16.mxu0 0
    %8731 = vmatmul.mubr.bf16.gmra.mrb[0].mxu0 %v8534
    %v8732 = vpop.f32.mrb[0].mxu0
    %v8733 = vadd.f32 %v8680, %v8732
    %v8734 = vpop.f32.mrb[0].mxu0
    %v8735 = vadd.f32 %v8682, %v8734
    %v8736 = vpop.f32.mrb[0].mxu0
    %v8737 = vadd.f32 %v8684, %v8736
    %v8738 = vpop.f32.mrb[0].mxu0
    %v8739 = vadd.f32 %v8686, %v8738
    %8740 = vmatprep.mubr.bf16.mxu0 0
    %8741 = vmatmul.mubr.bf16.gmra.mrb[0].mxu0 %v8537
    %v8742 = vpop.f32.mrb[0].mxu0
    %v8743 = vadd.f32 %v8690, %v8742
    %v8744 = vpop.f32.mrb[0].mxu0
    %v8745 = vadd.f32 %v8692, %v8744
    %v8746 = vpop.f32.mrb[0].mxu0
    %v8747 = vadd.f32 %v8694, %v8746
    %v8748 = vpop.f32.mrb[0].mxu0
    %v8749 = vadd.f32 %v8696, %v8748
    %8750 = vdwg.mxu0
    %8751 = vmatprep.subr.bf16.mxu0 %v8266
    %8752 = vmatpush1.bf16.msra.mxu0 %v8265
    %8753 = vmatprep.subr.bf16.mxu0 %v8270
    %8754 = vmatpush1.bf16.msra.mxu0 %v8269
    %8755 = vmatprep.subr.bf16.mxu0 %v8274
    %8756 = vmatpush1.bf16.msra.mxu0 %v8273
    %8757 = vmatprep.subr.bf16.mxu0 %v8278
    %8758 = vmatpush1.bf16.msra.mxu0 %v8277
    %8759 = vmatprep.subr.bf16.mxu0 %v8282
    %8760 = vmatpush1.bf16.msra.mxu0 %v8281
    %8761 = vmatprep.subr.bf16.mxu0 %v8286
    %8762 = vmatpush1.bf16.msra.mxu0 %v8285
    %8763 = vmatprep.subr.bf16.mxu0 %v8290
    %8764 = vmatpush1.bf16.msra.mxu0 %v8289
    %8765 = vmatprep.subr.bf16.mxu0 %v8294
    %8766 = vmatpush1.bf16.msra.mxu0 %v8293
    %8767 = vmatprep.subr.bf16.mxu0 %v8298
    %8768 = vmatpush1.bf16.msra.mxu0 %v8297
    %8769 = vmatprep.subr.bf16.mxu0 %v8302
    %8770 = vmatpush1.bf16.msra.mxu0 %v8301
    %8771 = vmatprep.subr.bf16.mxu0 %v8306
    %8772 = vmatpush1.bf16.msra.mxu0 %v8305
    %8773 = vmatprep.subr.bf16.mxu0 %v8310
    %8774 = vmatpush1.bf16.msra.mxu0 %v8309
    %8775 = vmatprep.subr.bf16.mxu0 %v8314
    %8776 = vmatpush1.bf16.msra.mxu0 %v8313
    %8777 = vmatprep.subr.bf16.mxu0 %v8318
    %8778 = vmatpush1.bf16.msra.mxu0 %v8317
    %8779 = vmatprep.subr.bf16.mxu0 %v8322
    %8780 = vmatpush1.bf16.msra.mxu0 %v8321
    %8781 = vmatprep.subr.bf16.mxu0 %v8326
    %8782 = vmatpush1.bf16.msra.mxu0 %v8325
    %8783 = vmatprep.mubr.bf16.mxu0 %v8508
    %8784 = vmatmul.mubr.bf16.gmra.mrb[0].mxu0 %v8507
    %v8785 = vpop.f32.mrb[0].mxu0
    %v8786 = vadd.f32 0.0, %v8785
    %v8787 = vpop.f32.mrb[0].mxu0
    %v8788 = vadd.f32 0.0, %v8787
    %v8789 = vpop.f32.mrb[0].mxu0
    %v8790 = vadd.f32 0.0, %v8789
    %v8791 = vpop.f32.mrb[0].mxu0
    %v8792 = vadd.f32 0.0, %v8791
    %8793 = vmatprep.mubr.bf16.mxu0 %v8515
    %8794 = vmatmul.mubr.bf16.gmra.mrb[0].mxu0 %v8514
    %v8795 = vpop.f32.mrb[0].mxu0
    %v8796 = vadd.f32 0.0, %v8795
    %v8797 = vpop.f32.mrb[0].mxu0
    %v8798 = vadd.f32 0.0, %v8797
    %v8799 = vpop.f32.mrb[0].mxu0
    %v8800 = vadd.f32 0.0, %v8799
    %v8801 = vpop.f32.mrb[0].mxu0
    %v8802 = vadd.f32 0.0, %v8801
    %8803 = vdwg.mxu0
    %8804 = vmatprep.subr.bf16.mxu0 %v8330
    %8805 = vmatpush1.bf16.msra.mxu0 %v8329
    %8806 = vmatprep.subr.bf16.mxu0 %v8334
    %8807 = vmatpush1.bf16.msra.mxu0 %v8333
    %8808 = vmatprep.subr.bf16.mxu0 %v8338
    %8809 = vmatpush1.bf16.msra.mxu0 %v8337
    %8810 = vmatprep.subr.bf16.mxu0 %v8342
    %8811 = vmatpush1.bf16.msra.mxu0 %v8341
    %8812 = vmatprep.subr.bf16.mxu0 %v8346
    %8813 = vmatpush1.bf16.msra.mxu0 %v8345
    %8814 = vmatprep.subr.bf16.mxu0 %v8350
    %8815 = vmatpush1.bf16.msra.mxu0 %v8349
    %8816 = vmatprep.subr.bf16.mxu0 %v8354
    %8817 = vmatpush1.bf16.msra.mxu0 %v8353
    %8818 = vmatprep.subr.bf16.mxu0 %v8358
    %8819 = vmatpush1.bf16.msra.mxu0 %v8357
    %8820 = vmatprep.subr.bf16.mxu0 %v8362
    %8821 = vmatpush1.bf16.msra.mxu0 %v8361
    %8822 = vmatprep.subr.bf16.mxu0 %v8366
    %8823 = vmatpush1.bf16.msra.mxu0 %v8365
    %8824 = vmatprep.subr.bf16.mxu0 %v8370
    %8825 = vmatpush1.bf16.msra.mxu0 %v8369
    %8826 = vmatprep.subr.bf16.mxu0 %v8374
    %8827 = vmatpush1.bf16.msra.mxu0 %v8373
    %8828 = vmatprep.subr.bf16.mxu0 %v8378
    %8829 = vmatpush1.bf16.msra.mxu0 %v8377
    %8830 = vmatprep.subr.bf16.mxu0 %v8382
    %8831 = vmatpush1.bf16.msra.mxu0 %v8381
    %8832 = vmatprep.subr.bf16.mxu0 %v8386
    %8833 = vmatpush1.bf16.msra.mxu0 %v8385
    %8834 = vmatprep.subr.bf16.mxu0 %v8390
    %8835 = vmatpush1.bf16.msra.mxu0 %v8389
    %8836 = vmatprep.mubr.bf16.mxu0 %v8510
    %8837 = vmatmul.mubr.bf16.gmra.mrb[0].mxu0 %v8509
    %v8838 = vpop.f32.mrb[0].mxu0
    %v8839 = vadd.f32 %v8786, %v8838
    %v8840 = vpop.f32.mrb[0].mxu0
    %v8841 = vadd.f32 %v8788, %v8840
    %v8842 = vpop.f32.mrb[0].mxu0
    %v8843 = vadd.f32 %v8790, %v8842
    %v8844 = vpop.f32.mrb[0].mxu0
    %v8845 = vadd.f32 %v8792, %v8844
    %8846 = vmatprep.mubr.bf16.mxu0 %v8517
    %8847 = vmatmul.mubr.bf16.gmra.mrb[0].mxu0 %v8516
    %v8848 = vpop.f32.mrb[0].mxu0
    %v8849 = vadd.f32 %v8796, %v8848
    %v8850 = vpop.f32.mrb[0].mxu0
    %v8851 = vadd.f32 %v8798, %v8850
    %v8852 = vpop.f32.mrb[0].mxu0
    %v8853 = vadd.f32 %v8800, %v8852
    %v8854 = vpop.f32.mrb[0].mxu0
    %v8855 = vadd.f32 %v8802, %v8854
    %8856 = vdwg.mxu0
    %8857 = vmatprep.subr.bf16.mxu0 %v8394
    %8858 = vmatpush1.bf16.msra.mxu0 %v8393
    %8859 = vmatprep.subr.bf16.mxu0 %v8398
    %8860 = vmatpush1.bf16.msra.mxu0 %v8397
    %8861 = vmatprep.subr.bf16.mxu0 %v8402
    %8862 = vmatpush1.bf16.msra.mxu0 %v8401
    %8863 = vmatprep.subr.bf16.mxu0 %v8406
    %8864 = vmatpush1.bf16.msra.mxu0 %v8405
    %8865 = vmatprep.subr.bf16.mxu0 %v8410
    %8866 = vmatpush1.bf16.msra.mxu0 %v8409
    %8867 = vmatprep.subr.bf16.mxu0 %v8414
    %8868 = vmatpush1.bf16.msra.mxu0 %v8413
    %8869 = vmatprep.subr.bf16.mxu0 %v8418
    %8870 = vmatpush1.bf16.msra.mxu0 %v8417
    %8871 = vmatprep.subr.bf16.mxu0 %v8422
    %8872 = vmatpush1.bf16.msra.mxu0 %v8421
    %8873 = vmatprep.subr.bf16.mxu0 %v8426
    %8874 = vmatpush1.bf16.msra.mxu0 %v8425
    %8875 = vmatprep.subr.bf16.mxu0 %v8430
    %8876 = vmatpush1.bf16.msra.mxu0 %v8429
    %8877 = vmatprep.subr.bf16.mxu0 %v8434
    %8878 = vmatpush1.bf16.msra.mxu0 %v8433
    %8879 = vmatprep.subr.bf16.mxu0 %v8438
    %8880 = vmatpush1.bf16.msra.mxu0 %v8437
    %8881 = vmatprep.subr.bf16.mxu0 %v8442
    %8882 = vmatpush1.bf16.msra.mxu0 %v8441
    %8883 = vmatprep.subr.bf16.mxu0 %v8446
    %8884 = vmatpush1.bf16.msra.mxu0 %v8445
    %8885 = vmatprep.subr.bf16.mxu0 %v8450
    %8886 = vmatpush1.bf16.msra.mxu0 %v8449
    %8887 = vmatprep.subr.bf16.mxu0 %v8454
    %8888 = vmatpush1.bf16.msra.mxu0 %v8453
    %8889 = vmatprep.mubr.bf16.mxu0 %v8512
    %8890 = vmatmul.mubr.bf16.gmra.mrb[0].mxu0 %v8511
    %v8891 = vpop.f32.mrb[0].mxu0
    %v8892 = vadd.f32 %v8839, %v8891
    %v8893 = vpop.f32.mrb[0].mxu0
    %v8894 = vadd.f32 %v8841, %v8893
    %v8895 = vpop.f32.mrb[0].mxu0
    %v8896 = vadd.f32 %v8843, %v8895
    %v8897 = vpop.f32.mrb[0].mxu0
    %v8898 = vadd.f32 %v8845, %v8897
    %8899 = vmatprep.mubr.bf16.mxu0 %v8519
    %8900 = vmatmul.mubr.bf16.gmra.mrb[0].mxu0 %v8518
    %v8901 = vpop.f32.mrb[0].mxu0
    %v8902 = vadd.f32 %v8849, %v8901
    %v8903 = vpop.f32.mrb[0].mxu0
    %v8904 = vadd.f32 %v8851, %v8903
    %v8905 = vpop.f32.mrb[0].mxu0
    %v8906 = vadd.f32 %v8853, %v8905
    %v8907 = vpop.f32.mrb[0].mxu0
    %v8908 = vadd.f32 %v8855, %v8907
    %8909 = vdwg.mxu0
    %8910 = vmatprep.subr.bf16.mxu0 %v8458
    %8911 = vmatpush1.bf16.msra.mxu0 %v8457
    %8912 = vmatprep.subr.bf16.mxu0 %v8462
    %8913 = vmatpush1.bf16.msra.mxu0 %v8461
    %8914 = vmatprep.subr.bf16.mxu0 0
    %8915 = vmatpush1.bf16.msra.mxu0 0
    %8916 = vmatprep.subr.bf16.mxu0 0
    %8917 = vmatpush1.bf16.msra.mxu0 0
    %8918 = vmatprep.subr.bf16.mxu0 0
    %8919 = vmatpush1.bf16.msra.mxu0 0
    %8920 = vmatprep.subr.bf16.mxu0 0
    %8921 = vmatpush1.bf16.msra.mxu0 0
    %8922 = vmatprep.subr.bf16.mxu0 0
    %8923 = vmatpush1.bf16.msra.mxu0 0
    %8924 = vmatprep.subr.bf16.mxu0 0
    %8925 = vmatpush1.bf16.msra.mxu0 0
    %8926 = vmatprep.subr.bf16.mxu0 0
    %8927 = vmatpush1.bf16.msra.mxu0 0
    %8928 = vmatprep.subr.bf16.mxu0 0
    %8929 = vmatpush1.bf16.msra.mxu0 0
    %8930 = vmatprep.subr.bf16.mxu0 0
    %8931 = vmatpush1.bf16.msra.mxu0 0
    %8932 = vmatprep.subr.bf16.mxu0 0
    %8933 = vmatpush1.bf16.msra.mxu0 0
    %8934 = vmatprep.subr.bf16.mxu0 0
    %8935 = vmatpush1.bf16.msra.mxu0 0
    %8936 = vmatprep.subr.bf16.mxu0 0
    %8937 = vmatpush1.bf16.msra.mxu0 0
    %8938 = vmatprep.subr.bf16.mxu0 0
    %8939 = vmatpush1.bf16.msra.mxu0 0
    %8940 = vmatprep.subr.bf16.mxu0 0
    %8941 = vmatpush1.bf16.msra.mxu0 0
    %8942 = vmatprep.mubr.bf16.mxu0 0
    %8943 = vmatmul.mubr.bf16.gmra.mrb[0].mxu0 %v8534
    %v8944 = vpop.f32.mrb[0].mxu0
    %v8945 = vadd.f32 %v8892, %v8944
    %v8946 = vpop.f32.mrb[0].mxu0
    %v8947 = vadd.f32 %v8894, %v8946
    %v8948 = vpop.f32.mrb[0].mxu0
    %v8949 = vadd.f32 %v8896, %v8948
    %v8950 = vpop.f32.mrb[0].mxu0
    %v8951 = vadd.f32 %v8898, %v8950
    %8952 = vmatprep.mubr.bf16.mxu0 0
    %8953 = vmatmul.mubr.bf16.gmra.mrb[0].mxu0 %v8537
    %v8954 = vpop.f32.mrb[0].mxu0
    %v8955 = vadd.f32 %v8902, %v8954
    %v8956 = vpop.f32.mrb[0].mxu0
    %v8957 = vadd.f32 %v8904, %v8956
    %v8958 = vpop.f32.mrb[0].mxu0
    %v8959 = vadd.f32 %v8906, %v8958
    %v8960 = vpop.f32.mrb[0].mxu0
    %v8961 = vadd.f32 %v8908, %v8960
    %8962 = vdwg.mxu0
    %s8963 = scalar_lea.vmem %s8, 32
    %v8964 = vld [vmem:[%s8963] sm:$0xff]
    %v8965 = vld [vmem:[%s8963 + $0x8] sm:$0xff]
    %v8966 = vld [vmem:[%s8963 + $0x10] sm:$0xff]
    %v8967 = vld [vmem:[%s8963 + $0x18] sm:$0x1]
    %v8968 = vadd.f32 %v8733, %v8735
    %v8969 = vadd.f32 %v8968, %v8945
    %v8970 = vadd.f32 %v8969, %v8947
    %8971 = vadd.xlane.f32.xlu0 %v8970
    %v8972 = vpop.xlane.xlu0 %8971
    %v8973 = vadd.f32 %v8737, %v8739
    %v8974 = vadd.f32 %v8973, %v8949
    %v8975 = vadd.f32 %v8974, %v8951
    %8976 = vadd.xlane.f32.xlu0 %v8975
    %v8977 = vpop.xlane.xlu0 %8976
    %v8978 = vadd.f32 %v8743, %v8745
    %v8979 = vadd.f32 %v8978, %v8955
    %v8980 = vadd.f32 %v8979, %v8957
    %8981 = vadd.xlane.f32.xlu0 %v8980
    %v8982 = vpop.xlane.xlu0 %8981
    %v8983 = vsel %vm985, %v8747, 0.0
    %v8984 = vsel %vm985, %v8749, 0.0
    %v8985 = vadd.f32 %v8983, %v8984
    %v8986 = vsel %vm985, %v8959, 0.0
    %v8987 = vadd.f32 %v8985, %v8986
    %v8988 = vsel %vm985, %v8961, 0.0
    %v8989 = vadd.f32 %v8987, %v8988
    %8990 = vadd.xlane.f32.xlu0 %v8989
    %v8991 = vpop.xlane.xlu0 %8990
    %v8992 = vmul.f32 %v8733, %v8733
    %v8993 = vmul.f32 %v8735, %v8735
    %v8994 = vmul.f32 %v8945, %v8945
    %v8995 = vmul.f32 %v8947, %v8947
    %v8996 = vmul.f32 %v8737, %v8737
    %v8997 = vmul.f32 %v8739, %v8739
    %v8998 = vmul.f32 %v8949, %v8949
    %v8999 = vmul.f32 %v8951, %v8951
    %v9000 = vmul.f32 %v8743, %v8743
    %v9001 = vmul.f32 %v8745, %v8745
    %v9002 = vmul.f32 %v8955, %v8955
    %v9003 = vmul.f32 %v8957, %v8957
    %v9004 = vmul.f32 %v8747, %v8747
    %v9005 = vmul.f32 %v8749, %v8749
    %v9006 = vmul.f32 %v8959, %v8959
    %v9007 = vmul.f32 %v8961, %v8961
    %v9008 = vadd.f32 %v8992, %v8993
    %v9009 = vadd.f32 %v9008, %v8994
    %v9010 = vadd.f32 %v9009, %v8995
    %9011 = vadd.xlane.f32.xlu0 %v9010
    %v9012 = vpop.xlane.xlu0 %9011
    %v9013 = vadd.f32 %v8996, %v8997
    %v9014 = vadd.f32 %v9013, %v8998
    %v9015 = vadd.f32 %v9014, %v8999
    %9016 = vadd.xlane.f32.xlu0 %v9015
    %v9017 = vpop.xlane.xlu0 %9016
    %v9018 = vadd.f32 %v9000, %v9001
    %v9019 = vadd.f32 %v9018, %v9002
    %v9020 = vadd.f32 %v9019, %v9003
    %9021 = vadd.xlane.f32.xlu0 %v9020
    %v9022 = vpop.xlane.xlu0 %9021
    %v9023 = vsel %vm985, %v9004, 0.0
    %v9024 = vsel %vm985, %v9005, 0.0
    %v9025 = vadd.f32 %v9023, %v9024
    %v9026 = vsel %vm985, %v9006, 0.0
    %v9027 = vadd.f32 %v9025, %v9026
    %v9028 = vsel %vm985, %v9007, 0.0
    %v9029 = vadd.f32 %v9027, %v9028
    %9030 = vadd.xlane.f32.xlu0 %v9029
    %v9031 = vpop.xlane.xlu0 %9030
    %v9032 = vmul.f32 %v8972, 0.001953125
    %v9033 = vmul.f32 %v8977, 0.001953125
    %v9034 = vmul.f32 %v8982, 0.001953125
    %v9035 = vmul.f32 %v8991, 0.001953125
    %v9036 = vmul.f32 %v9012, 0.001953125
    %v9037 = vmul.f32 %v9017, 0.001953125
    %v9038 = vmul.f32 %v9022, 0.001953125
    %v9039 = vmul.f32 %v9031, 0.001953125
    %v9040 = vmul.f32 %v9032, %v9032
    %v9041 = vmul.f32 %v9033, %v9033
    %v9042 = vmul.f32 %v9034, %v9034
    %v9043 = vmul.f32 %v9035, %v9035
    %v9044 = vsub.f32 %v9036, %v9040
    %v9045 = vsub.f32 %v9037, %v9041
    %v9046 = vsub.f32 %v9038, %v9042
    %v9047 = vsub.f32 %v9039, %v9043
    %v9048 = vadd.f32 %v9044, 0.001
    %v9049 = vadd.f32 %v9045, 0.001
    %v9050 = vadd.f32 %v9046, 0.001
    %v9051 = vadd.f32 %v9047, 0.001
    %v9052 = vrsqrt.pop %v9048
    %v9053 = vrsqrt.pop %v9049
    %v9054 = vrsqrt.pop %v9050
    %v9055 = vrsqrt.pop %v9051
    %v9056 = vmul.f32 %v9052, %v8964
    %v9057 = vmul.f32 %v9053, %v8965
    %v9058 = vmul.f32 %v9054, %v8966
    %v9059 = vmul.f32 %v9055, %v8967
    %v9060 = vsub.f32 0.0, %v9032
    %v9061 = vsub.f32 0.0, %v9033
    %v9062 = vsub.f32 0.0, %v9034
    %v9063 = vsub.f32 0.0, %v9035
    %v9064 = vmul.f32 %v9060, %v9056
    %v9065 = vmul.f32 %v9061, %v9057
    %v9066 = vmul.f32 %v9062, %v9058
    %v9067 = vmul.f32 %v9063, %v9059
    %9069 = vset.pattern.permute.xlu0 0
    %9070 = vperm.xlu0 %9069, %v9056
    %v9071 = vpop.permute.xlu0 %9070
    %9074 = vset.pattern.permute.xlu0 0
    %9075 = vperm.xlu0 %9074, %v9057
    %v9076 = vpop.permute.xlu0 %9075
    %9079 = vset.pattern.permute.xlu0 0
    %9080 = vperm.xlu0 %9079, %v9058
    %v9081 = vpop.permute.xlu0 %9080
    %9084 = vset.pattern.permute.xlu0 0
    %9085 = vperm.xlu0 %9084, %v9059
    %v9086 = vpop.permute.xlu0 %9085
    %v9088 = vmul.f32 %v8733, %v9071
    %v9089 = vmul.f32 %v8735, %v9071
    %v9090 = vmul.f32 %v8945, %v9071
    %v9091 = vmul.f32 %v8947, %v9071
    %v9092 = vmul.f32 %v8737, %v9076
    %v9093 = vmul.f32 %v8739, %v9076
    %v9094 = vmul.f32 %v8949, %v9076
    %v9095 = vmul.f32 %v8951, %v9076
    %v9096 = vmul.f32 %v8743, %v9081
    %v9097 = vmul.f32 %v8745, %v9081
    %v9098 = vmul.f32 %v8955, %v9081
    %v9099 = vmul.f32 %v8957, %v9081
    %v9100 = vmul.f32 %v8747, %v9086
    %v9101 = vmul.f32 %v8749, %v9086
    %v9102 = vmul.f32 %v8959, %v9086
    %v9103 = vmul.f32 %v8961, %v9086
    %9105 = vset.pattern.permute.xlu0 0
    %9106 = vperm.xlu0 %9105, %v9064
    %v9107 = vpop.permute.xlu0 %9106
    %9110 = vset.pattern.permute.xlu0 0
    %9111 = vperm.xlu0 %9110, %v9065
    %v9112 = vpop.permute.xlu0 %9111
    %9115 = vset.pattern.permute.xlu0 0
    %9116 = vperm.xlu0 %9115, %v9066
    %v9117 = vpop.permute.xlu0 %9116
    %9120 = vset.pattern.permute.xlu0 0
    %9121 = vperm.xlu0 %9120, %v9067
    %v9122 = vpop.permute.xlu0 %9121
    %v9124 = vadd.f32 %v9088, %v9107
    %v9125 = vadd.f32 %v9089, %v9107
    %v9126 = vadd.f32 %v9090, %v9107
    %v9127 = vadd.f32 %v9091, %v9107
    %v9128 = vadd.f32 %v9092, %v9112
    %v9129 = vadd.f32 %v9093, %v9112
    %v9130 = vadd.f32 %v9094, %v9112
    %v9131 = vadd.f32 %v9095, %v9112
    %v9132 = vadd.f32 %v9096, %v9117
    %v9133 = vadd.f32 %v9097, %v9117
    %v9134 = vadd.f32 %v9098, %v9117
    %v9135 = vadd.f32 %v9099, %v9117
    %v9136 = vadd.f32 %v9100, %v9122
    %v9137 = vadd.f32 %v9101, %v9122
    %v9138 = vadd.f32 %v9102, %v9122
    %v9139 = vadd.f32 %v9103, %v9122
    %v9140 = vld [vmem:[%s146] sm:$0xff]
    %v9141 = vld [vmem:[%s146 + $0x8] sm:$0xff]
    %v9142 = vld [vmem:[%s146 + $0x10] sm:$0xff]
    %v9143 = vld [vmem:[%s146 + $0x18] sm:$0xff]
    %v9144 = vld [vmem:[%s146 + $0x20] sm:$0xff]
    %v9145 = vld [vmem:[%s146 + $0x28] sm:$0xff]
    %v9146 = vld [vmem:[%s146 + $0x30] sm:$0xff]
    %v9147 = vld [vmem:[%s146 + $0x38] sm:$0xff]
    %v9148 = vld [vmem:[%s146 + $0x40] sm:$0xff]
    %v9149 = vld [vmem:[%s146 + $0x48] sm:$0xff]
    %v9150 = vld [vmem:[%s146 + $0x50] sm:$0xff]
    %v9151 = vld [vmem:[%s146 + $0x58] sm:$0xff]
    %v9152 = vld [vmem:[%s146 + $0x60] sm:$0x1]
    %v9153 = vld [vmem:[%s146 + $0x68] sm:$0x1]
    %v9154 = vld [vmem:[%s146 + $0x70] sm:$0x1]
    %v9155 = vld [vmem:[%s146 + $0x78] sm:$0x1]
    %v9156 = vmul.f32 %v9140, %v5265
    %v9157 = vmul.f32 %v9141, %v5266
    %v9158 = vmul.f32 %v9142, %v5267
    %v9159 = vmul.f32 %v9143, %v5268
    %v9160 = vmul.f32 %v9144, %v5269
    %v9161 = vmul.f32 %v9145, %v5270
    %v9162 = vmul.f32 %v9146, %v5271
    %v9163 = vmul.f32 %v9147, %v5272
    %v9164 = vmul.f32 %v9148, %v5273
    %v9165 = vmul.f32 %v9149, %v5274
    %v9166 = vmul.f32 %v9150, %v5275
    %v9167 = vmul.f32 %v9151, %v5276
    %v9168 = vmul.f32 %v9152, %v5277
    %v9169 = vmul.f32 %v9153, %v5278
    %v9170 = vmul.f32 %v9154, %v5279
    %v9171 = vmul.f32 %v9155, %v5280
    %v9172 = vld [vmem:[%s188] sm:$0xff]
    %v9173 = vld [vmem:[%s188 + $0x8] sm:$0xff]
    %v9174 = vld [vmem:[%s188 + $0x10] sm:$0xff]
    %v9175 = vld [vmem:[%s188 + $0x18] sm:$0xff]
    %v9176 = vld [vmem:[%s188 + $0x20] sm:$0xff]
    %v9177 = vld [vmem:[%s188 + $0x28] sm:$0xff]
    %v9178 = vld [vmem:[%s188 + $0x30] sm:$0xff]
    %v9179 = vld [vmem:[%s188 + $0x38] sm:$0xff]
    %v9180 = vld [vmem:[%s188 + $0x40] sm:$0xff]
    %v9181 = vld [vmem:[%s188 + $0x48] sm:$0xff]
    %v9182 = vld [vmem:[%s188 + $0x50] sm:$0xff]
    %v9183 = vld [vmem:[%s188 + $0x58] sm:$0xff]
    %v9184 = vld [vmem:[%s188 + $0x60] sm:$0x1]
    %v9185 = vld [vmem:[%s188 + $0x68] sm:$0x1]
    %v9186 = vld [vmem:[%s188 + $0x70] sm:$0x1]
    %v9187 = vld [vmem:[%s188 + $0x78] sm:$0x1]
    %v9188 = vmul.f32 %v9172, %v9124
    %v9189 = vmul.f32 %v9173, %v9125
    %v9190 = vmul.f32 %v9174, %v9126
    %v9191 = vmul.f32 %v9175, %v9127
    %v9192 = vmul.f32 %v9176, %v9128
    %v9193 = vmul.f32 %v9177, %v9129
    %v9194 = vmul.f32 %v9178, %v9130
    %v9195 = vmul.f32 %v9179, %v9131
    %v9196 = vmul.f32 %v9180, %v9132
    %v9197 = vmul.f32 %v9181, %v9133
    %v9198 = vmul.f32 %v9182, %v9134
    %v9199 = vmul.f32 %v9183, %v9135
    %v9200 = vmul.f32 %v9184, %v9136
    %v9201 = vmul.f32 %v9185, %v9137
    %v9202 = vmul.f32 %v9186, %v9138
    %v9203 = vmul.f32 %v9187, %v9139
    %v9204 = vadd.f32 %v9156, %v9188
    %v9205 = vadd.f32 %v9157, %v9189
    %v9206 = vadd.f32 %v9158, %v9190
    %v9207 = vadd.f32 %v9159, %v9191
    %v9208 = vadd.f32 %v9160, %v9192
    %v9209 = vadd.f32 %v9161, %v9193
    %v9210 = vadd.f32 %v9162, %v9194
    %v9211 = vadd.f32 %v9163, %v9195
    %v9212 = vadd.f32 %v9164, %v9196
    %v9213 = vadd.f32 %v9165, %v9197
    %v9214 = vadd.f32 %v9166, %v9198
    %v9215 = vadd.f32 %v9167, %v9199
    %v9216 = vadd.f32 %v9168, %v9200
    %v9217 = vadd.f32 %v9169, %v9201
    %v9218 = vadd.f32 %v9170, %v9202
    %v9219 = vadd.f32 %v9171, %v9203
    %v9220 = vld [vmem:[%s230] sm:$0xff]
    %v9221 = vld [vmem:[%s230 + $0x8] sm:$0xff]
    %v9222 = vld [vmem:[%s230 + $0x10] sm:$0xff]
    %v9223 = vld [vmem:[%s230 + $0x18] sm:$0xff]
    %v9224 = vld [vmem:[%s230 + $0x20] sm:$0xff]
    %v9225 = vld [vmem:[%s230 + $0x28] sm:$0xff]
    %v9226 = vld [vmem:[%s230 + $0x30] sm:$0xff]
    %v9227 = vld [vmem:[%s230 + $0x38] sm:$0xff]
    %v9228 = vld [vmem:[%s230 + $0x40] sm:$0xff]
    %v9229 = vld [vmem:[%s230 + $0x48] sm:$0xff]
    %v9230 = vld [vmem:[%s230 + $0x50] sm:$0xff]
    %v9231 = vld [vmem:[%s230 + $0x58] sm:$0xff]
    %v9232 = vld [vmem:[%s230 + $0x60] sm:$0x1]
    %v9233 = vld [vmem:[%s230 + $0x68] sm:$0x1]
    %v9234 = vld [vmem:[%s230 + $0x70] sm:$0x1]
    %v9235 = vld [vmem:[%s230 + $0x78] sm:$0x1]
    %v9236 = vmul.f32 %v9220, %v5265
    %v9237 = vmul.f32 %v9221, %v5266
    %v9238 = vmul.f32 %v9222, %v5267
    %v9239 = vmul.f32 %v9223, %v5268
    %v9240 = vmul.f32 %v9224, %v5269
    %v9241 = vmul.f32 %v9225, %v5270
    %v9242 = vmul.f32 %v9226, %v5271
    %v9243 = vmul.f32 %v9227, %v5272
    %v9244 = vmul.f32 %v9228, %v5273
    %v9245 = vmul.f32 %v9229, %v5274
    %v9246 = vmul.f32 %v9230, %v5275
    %v9247 = vmul.f32 %v9231, %v5276
    %v9248 = vmul.f32 %v9232, %v5277
    %v9249 = vmul.f32 %v9233, %v5278
    %v9250 = vmul.f32 %v9234, %v5279
    %v9251 = vmul.f32 %v9235, %v5280
    %v9252 = vmul.f32 %v9236, %v9124
    %v9253 = vmul.f32 %v9237, %v9125
    %v9254 = vmul.f32 %v9238, %v9126
    %v9255 = vmul.f32 %v9239, %v9127
    %v9256 = vmul.f32 %v9240, %v9128
    %v9257 = vmul.f32 %v9241, %v9129
    %v9258 = vmul.f32 %v9242, %v9130
    %v9259 = vmul.f32 %v9243, %v9131
    %v9260 = vmul.f32 %v9244, %v9132
    %v9261 = vmul.f32 %v9245, %v9133
    %v9262 = vmul.f32 %v9246, %v9134
    %v9263 = vmul.f32 %v9247, %v9135
    %v9264 = vmul.f32 %v9248, %v9136
    %v9265 = vmul.f32 %v9249, %v9137
    %v9266 = vmul.f32 %v9250, %v9138
    %v9267 = vmul.f32 %v9251, %v9139
    %v9268 = vadd.f32 %v9204, %v9252
    %v9269 = vadd.f32 %v9205, %v9253
    %v9270 = vadd.f32 %v9206, %v9254
    %v9271 = vadd.f32 %v9207, %v9255
    %v9272 = vadd.f32 %v9208, %v9256
    %v9273 = vadd.f32 %v9209, %v9257
    %v9274 = vadd.f32 %v9210, %v9258
    %v9275 = vadd.f32 %v9211, %v9259
    %v9276 = vadd.f32 %v9212, %v9260
    %v9277 = vadd.f32 %v9213, %v9261
    %v9278 = vadd.f32 %v9214, %v9262
    %v9279 = vadd.f32 %v9215, %v9263
    %v9280 = vadd.f32 %v9216, %v9264
    %v9281 = vadd.f32 %v9217, %v9265
    %v9282 = vadd.f32 %v9218, %v9266
    %v9283 = vadd.f32 %v9219, %v9267
    %v9284 = vmax.f32 %v9268, 0.0
    %v9285 = vmax.f32 %v9269, 0.0
    %v9286 = vmax.f32 %v9270, 0.0
    %v9287 = vmax.f32 %v9271, 0.0
    %v9288 = vmax.f32 %v9272, 0.0
    %v9289 = vmax.f32 %v9273, 0.0
    %v9290 = vmax.f32 %v9274, 0.0
    %v9291 = vmax.f32 %v9275, 0.0
    %v9292 = vmax.f32 %v9276, 0.0
    %v9293 = vmax.f32 %v9277, 0.0
    %v9294 = vmax.f32 %v9278, 0.0
    %v9295 = vmax.f32 %v9279, 0.0
    %v9296 = vmax.f32 %v9280, 0.0
    %v9297 = vmax.f32 %v9281, 0.0
    %v9298 = vmax.f32 %v9282, 0.0
    %v9299 = vmax.f32 %v9283, 0.0
    %v9300 = vand.u32 2147483647, %v9268
    %v9301 = vand.u32 2147483647, %v9269
    %v9302 = vand.u32 2147483647, %v9270
    %v9303 = vand.u32 2147483647, %v9271
    %v9304 = vand.u32 2147483647, %v9272
    %v9305 = vand.u32 2147483647, %v9273
    %v9306 = vand.u32 2147483647, %v9274
    %v9307 = vand.u32 2147483647, %v9275
    %v9308 = vand.u32 2147483647, %v9276
    %v9309 = vand.u32 2147483647, %v9277
    %v9310 = vand.u32 2147483647, %v9278
    %v9311 = vand.u32 2147483647, %v9279
    %v9312 = vand.u32 2147483647, %v9280
    %v9313 = vand.u32 2147483647, %v9281
    %v9314 = vand.u32 2147483647, %v9282
    %v9315 = vand.u32 2147483647, %v9283
    %v9316 = vsub.f32 0.0, %v9300
    %v9317 = vsub.f32 0.0, %v9301
    %v9318 = vsub.f32 0.0, %v9302
    %v9319 = vsub.f32 0.0, %v9303
    %v9320 = vsub.f32 0.0, %v9304
    %v9321 = vsub.f32 0.0, %v9305
    %v9322 = vsub.f32 0.0, %v9306
    %v9323 = vsub.f32 0.0, %v9307
    %v9324 = vsub.f32 0.0, %v9308
    %v9325 = vsub.f32 0.0, %v9309
    %v9326 = vsub.f32 0.0, %v9310
    %v9327 = vsub.f32 0.0, %v9311
    %v9328 = vsub.f32 0.0, %v9312
    %v9329 = vsub.f32 0.0, %v9313
    %v9330 = vsub.f32 0.0, %v9314
    %v9331 = vsub.f32 0.0, %v9315
    %v9332 = vmul.f32 %v9316, 1.442695
    %v9333 = vpow.pop %v9332
    %v9334 = vmul.f32 %v9317, 1.442695
    %v9335 = vpow.pop %v9334
    %v9336 = vmul.f32 %v9318, 1.442695
    %v9337 = vpow.pop %v9336
    %v9338 = vmul.f32 %v9319, 1.442695
    %v9339 = vpow.pop %v9338
    %v9340 = vmul.f32 %v9320, 1.442695
    %v9341 = vpow.pop %v9340
    %v9342 = vmul.f32 %v9321, 1.442695
    %v9343 = vpow.pop %v9342
    %v9344 = vmul.f32 %v9322, 1.442695
    %v9345 = vpow.pop %v9344
    %v9346 = vmul.f32 %v9323, 1.442695
    %v9347 = vpow.pop %v9346
    %v9348 = vmul.f32 %v9324, 1.442695
    %v9349 = vpow.pop %v9348
    %v9350 = vmul.f32 %v9325, 1.442695
    %v9351 = vpow.pop %v9350
    %v9352 = vmul.f32 %v9326, 1.442695
    %v9353 = vpow.pop %v9352
    %v9354 = vmul.f32 %v9327, 1.442695
    %v9355 = vpow.pop %v9354
    %v9356 = vmul.f32 %v9328, 1.442695
    %v9357 = vpow.pop %v9356
    %v9358 = vmul.f32 %v9329, 1.442695
    %v9359 = vpow.pop %v9358
    %v9360 = vmul.f32 %v9330, 1.442695
    %v9361 = vpow.pop %v9360
    %v9362 = vmul.f32 %v9331, 1.442695
    %v9363 = vpow.pop %v9362
    %v9364 = vadd.f32 %v9333, 1.0
    %v9365 = vadd.f32 %v9335, 1.0
    %v9366 = vadd.f32 %v9337, 1.0
    %v9367 = vadd.f32 %v9339, 1.0
    %v9368 = vadd.f32 %v9341, 1.0
    %v9369 = vadd.f32 %v9343, 1.0
    %v9370 = vadd.f32 %v9345, 1.0
    %v9371 = vadd.f32 %v9347, 1.0
    %v9372 = vadd.f32 %v9349, 1.0
    %v9373 = vadd.f32 %v9351, 1.0
    %v9374 = vadd.f32 %v9353, 1.0
    %v9375 = vadd.f32 %v9355, 1.0
    %v9376 = vadd.f32 %v9357, 1.0
    %v9377 = vadd.f32 %v9359, 1.0
    %v9378 = vadd.f32 %v9361, 1.0
    %v9379 = vadd.f32 %v9363, 1.0
    %v9380 = vlog2.pop %v9364
    %v9381 = vmul.f32 %v9380, 0.6931472
    %v9382 = vlog2.pop %v9365
    %v9383 = vmul.f32 %v9382, 0.6931472
    %v9384 = vlog2.pop %v9366
    %v9385 = vmul.f32 %v9384, 0.6931472
    %v9386 = vlog2.pop %v9367
    %v9387 = vmul.f32 %v9386, 0.6931472
    %v9388 = vlog2.pop %v9368
    %v9389 = vmul.f32 %v9388, 0.6931472
    %v9390 = vlog2.pop %v9369
    %v9391 = vmul.f32 %v9390, 0.6931472
    %v9392 = vlog2.pop %v9370
    %v9393 = vmul.f32 %v9392, 0.6931472
    %v9394 = vlog2.pop %v9371
    %v9395 = vmul.f32 %v9394, 0.6931472
    %v9396 = vlog2.pop %v9372
    %v9397 = vmul.f32 %v9396, 0.6931472
    %v9398 = vlog2.pop %v9373
    %v9399 = vmul.f32 %v9398, 0.6931472
    %v9400 = vlog2.pop %v9374
    %v9401 = vmul.f32 %v9400, 0.6931472
    %v9402 = vlog2.pop %v9375
    %v9403 = vmul.f32 %v9402, 0.6931472
    %v9404 = vlog2.pop %v9376
    %v9405 = vmul.f32 %v9404, 0.6931472
    %v9406 = vlog2.pop %v9377
    %v9407 = vmul.f32 %v9406, 0.6931472
    %v9408 = vlog2.pop %v9378
    %v9409 = vmul.f32 %v9408, 0.6931472
    %v9410 = vlog2.pop %v9379
    %v9411 = vmul.f32 %v9410, 0.6931472
    %v9412 = vadd.f32 %v9284, %v9381
    %v9413 = vadd.f32 %v9285, %v9383
    %v9414 = vadd.f32 %v9286, %v9385
    %v9415 = vadd.f32 %v9287, %v9387
    %v9416 = vadd.f32 %v9288, %v9389
    %v9417 = vadd.f32 %v9289, %v9391
    %v9418 = vadd.f32 %v9290, %v9393
    %v9419 = vadd.f32 %v9291, %v9395
    %v9420 = vadd.f32 %v9292, %v9397
    %v9421 = vadd.f32 %v9293, %v9399
    %v9422 = vadd.f32 %v9294, %v9401
    %v9423 = vadd.f32 %v9295, %v9403
    %v9424 = vadd.f32 %v9296, %v9405
    %v9425 = vadd.f32 %v9297, %v9407
    %v9426 = vadd.f32 %v9298, %v9409
    %v9427 = vadd.f32 %v9299, %v9411
    %v9428 = vsub.f32 1.0, %v5567
    %v9429 = vsub.f32 1.0, %v5568
    %v9430 = vsub.f32 1.0, %v5569
    %v9431 = vsub.f32 1.0, %v5570
    %v9432 = vsub.f32 1.0, %v5571
    %v9433 = vsub.f32 1.0, %v5572
    %v9434 = vsub.f32 1.0, %v5573
    %v9435 = vsub.f32 1.0, %v5574
    %v9436 = vsub.f32 1.0, %v5575
    %v9437 = vsub.f32 1.0, %v5576
    %v9438 = vsub.f32 1.0, %v5577
    %v9439 = vsub.f32 1.0, %v5578
    %v9440 = vsub.f32 1.0, %v5579
    %v9441 = vsub.f32 1.0, %v5580
    %v9442 = vsub.f32 1.0, %v5581
    %v9443 = vsub.f32 1.0, %v5582
    %v9444 = vmul.f32 %v9428, %v936
    %v9445 = vmul.f32 %v9429, %v937
    %v9446 = vmul.f32 %v9430, %v938
    %v9447 = vmul.f32 %v9431, %v939
    %v9448 = vmul.f32 %v9432, %v940
    %v9449 = vmul.f32 %v9433, %v941
    %v9450 = vmul.f32 %v9434, %v942
    %v9451 = vmul.f32 %v9435, %v943
    %v9452 = vmul.f32 %v9436, %v944
    %v9453 = vmul.f32 %v9437, %v945
    %v9454 = vmul.f32 %v9438, %v946
    %v9455 = vmul.f32 %v9439, %v947
    %v9456 = vmul.f32 %v9440, %v948
    %v9457 = vmul.f32 %v9441, %v949
    %v9458 = vmul.f32 %v9442, %v950
    %v9459 = vmul.f32 %v9443, %v951
    %v9460 = vmul.f32 %v5567, %v9412
    %v9461 = vmul.f32 %v5568, %v9413
    %v9462 = vmul.f32 %v5569, %v9414
    %v9463 = vmul.f32 %v5570, %v9415
    %v9464 = vmul.f32 %v5571, %v9416
    %v9465 = vmul.f32 %v5572, %v9417
    %v9466 = vmul.f32 %v5573, %v9418
    %v9467 = vmul.f32 %v5574, %v9419
    %v9468 = vmul.f32 %v5575, %v9420
    %v9469 = vmul.f32 %v5576, %v9421
    %v9470 = vmul.f32 %v5577, %v9422
    %v9471 = vmul.f32 %v5578, %v9423
    %v9472 = vmul.f32 %v5579, %v9424
    %v9473 = vmul.f32 %v5580, %v9425
    %v9474 = vmul.f32 %v5581, %v9426
    %v9475 = vmul.f32 %v5582, %v9427
    %v9476 = vadd.f32 %v9444, %v9460
    %v9477 = vadd.f32 %v9445, %v9461
    %v9478 = vadd.f32 %v9446, %v9462
    %v9479 = vadd.f32 %v9447, %v9463
    %v9480 = vadd.f32 %v9448, %v9464
    %v9481 = vadd.f32 %v9449, %v9465
    %v9482 = vadd.f32 %v9450, %v9466
    %v9483 = vadd.f32 %v9451, %v9467
    %v9484 = vadd.f32 %v9452, %v9468
    %v9485 = vadd.f32 %v9453, %v9469
    %v9486 = vadd.f32 %v9454, %v9470
    %v9487 = vadd.f32 %v9455, %v9471
    %v9488 = vadd.f32 %v9456, %v9472
    %v9489 = vadd.f32 %v9457, %v9473
    %v9490 = vadd.f32 %v9458, %v9474
    %v9491 = vadd.f32 %v9459, %v9475
    %v9492 = vmax.f32 %v9476, 0.0
    %v9493 = vmax.f32 %v9477, 0.0
    %v9494 = vmax.f32 %v9478, 0.0
    %v9495 = vmax.f32 %v9479, 0.0
    %v9496 = vmax.f32 %v9480, 0.0
    %v9497 = vmax.f32 %v9481, 0.0
    %v9498 = vmax.f32 %v9482, 0.0
    %v9499 = vmax.f32 %v9483, 0.0
    %v9500 = vmax.f32 %v9484, 0.0
    %v9501 = vmax.f32 %v9485, 0.0
    %v9502 = vmax.f32 %v9486, 0.0
    %v9503 = vmax.f32 %v9487, 0.0
    %v9504 = vmax.f32 %v9488, 0.0
    %v9505 = vmax.f32 %v9489, 0.0
    %v9506 = vmax.f32 %v9490, 0.0
    %v9507 = vmax.f32 %v9491, 0.0
    %v9508 = vand.u32 2147483647, %v9476
    %v9509 = vand.u32 2147483647, %v9477
    %v9510 = vand.u32 2147483647, %v9478
    %v9511 = vand.u32 2147483647, %v9479
    %v9512 = vand.u32 2147483647, %v9480
    %v9513 = vand.u32 2147483647, %v9481
    %v9514 = vand.u32 2147483647, %v9482
    %v9515 = vand.u32 2147483647, %v9483
    %v9516 = vand.u32 2147483647, %v9484
    %v9517 = vand.u32 2147483647, %v9485
    %v9518 = vand.u32 2147483647, %v9486
    %v9519 = vand.u32 2147483647, %v9487
    %v9520 = vand.u32 2147483647, %v9488
    %v9521 = vand.u32 2147483647, %v9489
    %v9522 = vand.u32 2147483647, %v9490
    %v9523 = vand.u32 2147483647, %v9491
    %v9524 = vsub.f32 0.0, %v9508
    %v9525 = vsub.f32 0.0, %v9509
    %v9526 = vsub.f32 0.0, %v9510
    %v9527 = vsub.f32 0.0, %v9511
    %v9528 = vsub.f32 0.0, %v9512
    %v9529 = vsub.f32 0.0, %v9513
    %v9530 = vsub.f32 0.0, %v9514
    %v9531 = vsub.f32 0.0, %v9515
    %v9532 = vsub.f32 0.0, %v9516
    %v9533 = vsub.f32 0.0, %v9517
    %v9534 = vsub.f32 0.0, %v9518
    %v9535 = vsub.f32 0.0, %v9519
    %v9536 = vsub.f32 0.0, %v9520
    %v9537 = vsub.f32 0.0, %v9521
    %v9538 = vsub.f32 0.0, %v9522
    %v9539 = vsub.f32 0.0, %v9523
    %v9540 = vmul.f32 %v9524, 1.442695
    %v9541 = vpow.pop %v9540
    %v9542 = vmul.f32 %v9525, 1.442695
    %v9543 = vpow.pop %v9542
    %v9544 = vmul.f32 %v9526, 1.442695
    %v9545 = vpow.pop %v9544
    %v9546 = vmul.f32 %v9527, 1.442695
    %v9547 = vpow.pop %v9546
    %v9548 = vmul.f32 %v9528, 1.442695
    %v9549 = vpow.pop %v9548
    %v9550 = vmul.f32 %v9529, 1.442695
    %v9551 = vpow.pop %v9550
    %v9552 = vmul.f32 %v9530, 1.442695
    %v9553 = vpow.pop %v9552
    %v9554 = vmul.f32 %v9531, 1.442695
    %v9555 = vpow.pop %v9554
    %v9556 = vmul.f32 %v9532, 1.442695
    %v9557 = vpow.pop %v9556
    %v9558 = vmul.f32 %v9533, 1.442695
    %v9559 = vpow.pop %v9558
    %v9560 = vmul.f32 %v9534, 1.442695
    %v9561 = vpow.pop %v9560
    %v9562 = vmul.f32 %v9535, 1.442695
    %v9563 = vpow.pop %v9562
    %v9564 = vmul.f32 %v9536, 1.442695
    %v9565 = vpow.pop %v9564
    %v9566 = vmul.f32 %v9537, 1.442695
    %v9567 = vpow.pop %v9566
    %v9568 = vmul.f32 %v9538, 1.442695
    %v9569 = vpow.pop %v9568
    %v9570 = vmul.f32 %v9539, 1.442695
    %v9571 = vpow.pop %v9570
    %v9572 = vadd.f32 %v9541, 1.0
    %v9573 = vadd.f32 %v9543, 1.0
    %v9574 = vadd.f32 %v9545, 1.0
    %v9575 = vadd.f32 %v9547, 1.0
    %v9576 = vadd.f32 %v9549, 1.0
    %v9577 = vadd.f32 %v9551, 1.0
    %v9578 = vadd.f32 %v9553, 1.0
    %v9579 = vadd.f32 %v9555, 1.0
    %v9580 = vadd.f32 %v9557, 1.0
    %v9581 = vadd.f32 %v9559, 1.0
    %v9582 = vadd.f32 %v9561, 1.0
    %v9583 = vadd.f32 %v9563, 1.0
    %v9584 = vadd.f32 %v9565, 1.0
    %v9585 = vadd.f32 %v9567, 1.0
    %v9586 = vadd.f32 %v9569, 1.0
    %v9587 = vadd.f32 %v9571, 1.0
    %v9588 = vlog2.pop %v9572
    %v9589 = vmul.f32 %v9588, 0.6931472
    %v9590 = vlog2.pop %v9573
    %v9591 = vmul.f32 %v9590, 0.6931472
    %v9592 = vlog2.pop %v9574
    %v9593 = vmul.f32 %v9592, 0.6931472
    %v9594 = vlog2.pop %v9575
    %v9595 = vmul.f32 %v9594, 0.6931472
    %v9596 = vlog2.pop %v9576
    %v9597 = vmul.f32 %v9596, 0.6931472
    %v9598 = vlog2.pop %v9577
    %v9599 = vmul.f32 %v9598, 0.6931472
    %v9600 = vlog2.pop %v9578
    %v9601 = vmul.f32 %v9600, 0.6931472
    %v9602 = vlog2.pop %v9579
    %v9603 = vmul.f32 %v9602, 0.6931472
    %v9604 = vlog2.pop %v9580
    %v9605 = vmul.f32 %v9604, 0.6931472
    %v9606 = vlog2.pop %v9581
    %v9607 = vmul.f32 %v9606, 0.6931472
    %v9608 = vlog2.pop %v9582
    %v9609 = vmul.f32 %v9608, 0.6931472
    %v9610 = vlog2.pop %v9583
    %v9611 = vmul.f32 %v9610, 0.6931472
    %v9612 = vlog2.pop %v9584
    %v9613 = vmul.f32 %v9612, 0.6931472
    %v9614 = vlog2.pop %v9585
    %v9615 = vmul.f32 %v9614, 0.6931472
    %v9616 = vlog2.pop %v9586
    %v9617 = vmul.f32 %v9616, 0.6931472
    %v9618 = vlog2.pop %v9587
    %v9619 = vmul.f32 %v9618, 0.6931472
    %v9620 = vadd.f32 %v9492, %v9589
    %v9621 = vadd.f32 %v9493, %v9591
    %v9622 = vadd.f32 %v9494, %v9593
    %v9623 = vadd.f32 %v9495, %v9595
    %v9624 = vadd.f32 %v9496, %v9597
    %v9625 = vadd.f32 %v9497, %v9599
    %v9626 = vadd.f32 %v9498, %v9601
    %v9627 = vadd.f32 %v9499, %v9603
    %v9628 = vadd.f32 %v9500, %v9605
    %v9629 = vadd.f32 %v9501, %v9607
    %v9630 = vadd.f32 %v9502, %v9609
    %v9631 = vadd.f32 %v9503, %v9611
    %v9632 = vadd.f32 %v9504, %v9613
    %v9633 = vadd.f32 %v9505, %v9615
    %v9634 = vadd.f32 %v9506, %v9617
    %v9635 = vadd.f32 %v9507, %v9619
    %9636 = vst [vmem:[#allocation5] sm:$0xff] %v9620
    %9637 = vst [vmem:[#allocation5 + $0x8] sm:$0xff] %v9621
    %9638 = vst [vmem:[#allocation5 + $0x10] sm:$0xff] %v9622
    %9639 = vst [vmem:[#allocation5 + $0x18] sm:$0xff] %v9623
    %9640 = vst [vmem:[#allocation5 + $0x20] sm:$0xff] %v9624
    %9641 = vst [vmem:[#allocation5 + $0x28] sm:$0xff] %v9625
    %9642 = vst [vmem:[#allocation5 + $0x30] sm:$0xff] %v9626
    %9643 = vst [vmem:[#allocation5 + $0x38] sm:$0xff] %v9627
    %9644 = vst [vmem:[#allocation5 + $0x40] sm:$0xff] %v9628
    %9645 = vst [vmem:[#allocation5 + $0x48] sm:$0xff] %v9629
    %9646 = vst [vmem:[#allocation5 + $0x50] sm:$0xff] %v9630
    %9647 = vst [vmem:[#allocation5 + $0x58] sm:$0xff] %v9631
    %9648 = vst [vmem:[#allocation5 + $0x60] sm:$0x1] %v9632
    %9649 = vst [vmem:[#allocation5 + $0x68] sm:$0x1] %v9633
    %9650 = vst [vmem:[#allocation5 + $0x70] sm:$0x1] %v9634
    %9651 = vst [vmem:[#allocation5 + $0x78] sm:$0x1] %v9635
  $region50: #{_lambda_.1} parent=0 // loop_footer
    %s935 = sadd.s32 1, %s931
  $region51: #{_lambda_.1} parent=0 // loop_footer_branch
    %930 = sbr.rel target = $region47
  $region52: #{_lambda_.1} parent=0 // loop_exit
    _
  %v9652 = vld [vmem:[#allocation5] sm:$0xff]
  %v9653 = vld [vmem:[#allocation5 + $0x8] sm:$0xff]
  %v9654 = vld [vmem:[#allocation5 + $0x10] sm:$0xff]
  %v9655 = vld [vmem:[#allocation5 + $0x18] sm:$0xff]
  %v9656 = vld [vmem:[#allocation5 + $0x20] sm:$0xff]
  %v9657 = vld [vmem:[#allocation5 + $0x28] sm:$0xff]
  %v9658 = vld [vmem:[#allocation5 + $0x30] sm:$0xff]
  %v9659 = vld [vmem:[#allocation5 + $0x38] sm:$0xff]
  %v9660 = vld [vmem:[#allocation5 + $0x40] sm:$0xff]
  %v9661 = vld [vmem:[#allocation5 + $0x48] sm:$0xff]
  %v9662 = vld [vmem:[#allocation5 + $0x50] sm:$0xff]
  %v9663 = vld [vmem:[#allocation5 + $0x58] sm:$0xff]
  %v9664 = vld [vmem:[#allocation5 + $0x60] sm:$0x1]
  %v9665 = vld [vmem:[#allocation5 + $0x68] sm:$0x1]
  %v9666 = vld [vmem:[#allocation5 + $0x70] sm:$0x1]
  %v9667 = vld [vmem:[#allocation5 + $0x78] sm:$0x1]
  %s9668 = scalar_lea.vmem %s8, 64
  %v9669 = vld [vmem:[%s9668] sm:$0xff]
  %v9670 = vld [vmem:[%s9668 + $0x8] sm:$0xff]
  %v9671 = vld [vmem:[%s9668 + $0x10] sm:$0xff]
  %v9672 = vld [vmem:[%s9668 + $0x18] sm:$0x1]
  %s9673 = scalar_lea.vmem %s8, 96
  %v9674 = vld [vmem:[%s9673] sm:$0xff]
  %v9675 = vld [vmem:[%s9673 + $0x8] sm:$0xff]
  %v9676 = vld [vmem:[%s9673 + $0x10] sm:$0xff]
  %v9677 = vld [vmem:[%s9673 + $0x18] sm:$0x1]
  %v9678 = vadd.f32 %v9652, %v9653
  %v9679 = vadd.f32 %v9678, %v9654
  %v9680 = vadd.f32 %v9679, %v9655
  %9681 = vadd.xlane.f32.xlu0 %v9680
  %v9682 = vpop.xlane.xlu0 %9681
  %v9683 = vadd.f32 %v9656, %v9657
  %v9684 = vadd.f32 %v9683, %v9658
  %v9685 = vadd.f32 %v9684, %v9659
  %9686 = vadd.xlane.f32.xlu0 %v9685
  %v9687 = vpop.xlane.xlu0 %9686
  %v9688 = vadd.f32 %v9660, %v9661
  %v9689 = vadd.f32 %v9688, %v9662
  %v9690 = vadd.f32 %v9689, %v9663
  %9691 = vadd.xlane.f32.xlu0 %v9690
  %v9692 = vpop.xlane.xlu0 %9691
  %vm9693 = vcmask 1040384
  %v9694 = vsel %vm9693, %v9664, 0.0
  %v9695 = vsel %vm9693, %v9665, 0.0
  %v9696 = vadd.f32 %v9694, %v9695
  %v9697 = vsel %vm9693, %v9666, 0.0
  %v9698 = vadd.f32 %v9696, %v9697
  %v9699 = vsel %vm9693, %v9667, 0.0
  %v9700 = vadd.f32 %v9698, %v9699
  %9701 = vadd.xlane.f32.xlu0 %v9700
  %v9702 = vpop.xlane.xlu0 %9701
  %v9703 = vmul.f32 %v9652, %v9652
  %v9704 = vmul.f32 %v9653, %v9653
  %v9705 = vmul.f32 %v9654, %v9654
  %v9706 = vmul.f32 %v9655, %v9655
  %v9707 = vmul.f32 %v9656, %v9656
  %v9708 = vmul.f32 %v9657, %v9657
  %v9709 = vmul.f32 %v9658, %v9658
  %v9710 = vmul.f32 %v9659, %v9659
  %v9711 = vmul.f32 %v9660, %v9660
  %v9712 = vmul.f32 %v9661, %v9661
  %v9713 = vmul.f32 %v9662, %v9662
  %v9714 = vmul.f32 %v9663, %v9663
  %v9715 = vmul.f32 %v9664, %v9664
  %v9716 = vmul.f32 %v9665, %v9665
  %v9717 = vmul.f32 %v9666, %v9666
  %v9718 = vmul.f32 %v9667, %v9667
  %v9719 = vadd.f32 %v9703, %v9704
  %v9720 = vadd.f32 %v9719, %v9705
  %v9721 = vadd.f32 %v9720, %v9706
  %9722 = vadd.xlane.f32.xlu0 %v9721
  %v9723 = vpop.xlane.xlu0 %9722
  %v9724 = vadd.f32 %v9707, %v9708
  %v9725 = vadd.f32 %v9724, %v9709
  %v9726 = vadd.f32 %v9725, %v9710
  %9727 = vadd.xlane.f32.xlu0 %v9726
  %v9728 = vpop.xlane.xlu0 %9727
  %v9729 = vadd.f32 %v9711, %v9712
  %v9730 = vadd.f32 %v9729, %v9713
  %v9731 = vadd.f32 %v9730, %v9714
  %9732 = vadd.xlane.f32.xlu0 %v9731
  %v9733 = vpop.xlane.xlu0 %9732
  %v9734 = vsel %vm9693, %v9715, 0.0
  %v9735 = vsel %vm9693, %v9716, 0.0
  %v9736 = vadd.f32 %v9734, %v9735
  %v9737 = vsel %vm9693, %v9717, 0.0
  %v9738 = vadd.f32 %v9736, %v9737
  %v9739 = vsel %vm9693, %v9718, 0.0
  %v9740 = vadd.f32 %v9738, %v9739
  %9741 = vadd.xlane.f32.xlu0 %v9740
  %v9742 = vpop.xlane.xlu0 %9741
  %v9743 = vmul.f32 %v9682, 0.001953125
  %v9744 = vmul.f32 %v9687, 0.001953125
  %v9745 = vmul.f32 %v9692, 0.001953125
  %v9746 = vmul.f32 %v9702, 0.001953125
  %v9747 = vmul.f32 %v9723, 0.001953125
  %v9748 = vmul.f32 %v9728, 0.001953125
  %v9749 = vmul.f32 %v9733, 0.001953125
  %v9750 = vmul.f32 %v9742, 0.001953125
  %v9751 = vmul.f32 %v9743, %v9743
  %v9752 = vmul.f32 %v9744, %v9744
  %v9753 = vmul.f32 %v9745, %v9745
  %v9754 = vmul.f32 %v9746, %v9746
  %v9755 = vsub.f32 %v9747, %v9751
  %v9756 = vsub.f32 %v9748, %v9752
  %v9757 = vsub.f32 %v9749, %v9753
  %v9758 = vsub.f32 %v9750, %v9754
  %v9759 = vadd.f32 %v9755, 0.001
  %v9760 = vadd.f32 %v9756, 0.001
  %v9761 = vadd.f32 %v9757, 0.001
  %v9762 = vadd.f32 %v9758, 0.001
  %v9763 = vrsqrt.pop %v9759
  %v9764 = vrsqrt.pop %v9760
  %v9765 = vrsqrt.pop %v9761
  %v9766 = vrsqrt.pop %v9762
  %v9767 = vmul.f32 %v9763, %v9669
  %v9768 = vmul.f32 %v9764, %v9670
  %v9769 = vmul.f32 %v9765, %v9671
  %v9770 = vmul.f32 %v9766, %v9672
  %v9771 = vmul.f32 %v9743, %v9767
  %v9772 = vmul.f32 %v9744, %v9768
  %v9773 = vmul.f32 %v9745, %v9769
  %v9774 = vmul.f32 %v9746, %v9770
  %v9775 = vsub.f32 %v9674, %v9771
  %v9776 = vsub.f32 %v9675, %v9772
  %v9777 = vsub.f32 %v9676, %v9773
  %v9778 = vsub.f32 %v9677, %v9774
  %9780 = vset.pattern.permute.xlu0 0
  %9781 = vperm.xlu0 %9780, %v9767
  %v9782 = vpop.permute.xlu0 %9781
  %9785 = vset.pattern.permute.xlu0 0
  %9786 = vperm.xlu0 %9785, %v9768
  %v9787 = vpop.permute.xlu0 %9786
  %9790 = vset.pattern.permute.xlu0 0
  %9791 = vperm.xlu0 %9790, %v9769
  %v9792 = vpop.permute.xlu0 %9791
  %9795 = vset.pattern.permute.xlu0 0
  %9796 = vperm.xlu0 %9795, %v9770
  %v9797 = vpop.permute.xlu0 %9796
  %v9799 = vmul.f32 %v9652, %v9782
  %v9800 = vmul.f32 %v9653, %v9782
  %v9801 = vmul.f32 %v9654, %v9782
  %v9802 = vmul.f32 %v9655, %v9782
  %v9803 = vmul.f32 %v9656, %v9787
  %v9804 = vmul.f32 %v9657, %v9787
  %v9805 = vmul.f32 %v9658, %v9787
  %v9806 = vmul.f32 %v9659, %v9787
  %v9807 = vmul.f32 %v9660, %v9792
  %v9808 = vmul.f32 %v9661, %v9792
  %v9809 = vmul.f32 %v9662, %v9792
  %v9810 = vmul.f32 %v9663, %v9792
  %v9811 = vmul.f32 %v9664, %v9797
  %v9812 = vmul.f32 %v9665, %v9797
  %v9813 = vmul.f32 %v9666, %v9797
  %v9814 = vmul.f32 %v9667, %v9797
  %9816 = vset.pattern.permute.xlu0 0
  %9817 = vperm.xlu0 %9816, %v9775
  %v9818 = vpop.permute.xlu0 %9817
  %9821 = vset.pattern.permute.xlu0 0
  %9822 = vperm.xlu0 %9821, %v9776
  %v9823 = vpop.permute.xlu0 %9822
  %9826 = vset.pattern.permute.xlu0 0
  %9827 = vperm.xlu0 %9826, %v9777
  %v9828 = vpop.permute.xlu0 %9827
  %9831 = vset.pattern.permute.xlu0 0
  %9832 = vperm.xlu0 %9831, %v9778
  %v9833 = vpop.permute.xlu0 %9832
  %v9835 = vadd.f32 %v9799, %v9818
  %v9836 = vadd.f32 %v9800, %v9818
  %v9837 = vadd.f32 %v9801, %v9818
  %v9838 = vadd.f32 %v9802, %v9818
  %v9839 = vadd.f32 %v9803, %v9823
  %v9840 = vadd.f32 %v9804, %v9823
  %v9841 = vadd.f32 %v9805, %v9823
  %v9842 = vadd.f32 %v9806, %v9823
  %v9843 = vadd.f32 %v9807, %v9828
  %v9844 = vadd.f32 %v9808, %v9828
  %v9845 = vadd.f32 %v9809, %v9828
  %v9846 = vadd.f32 %v9810, %v9828
  %v9847 = vadd.f32 %v9811, %v9833
  %v9848 = vadd.f32 %v9812, %v9833
  %v9849 = vadd.f32 %v9813, %v9833
  %v9850 = vadd.f32 %v9814, %v9833
  %v9851 = vld [vmem:[%s9] sm:$0x3]
  %v9852 = vld [vmem:[%s10] sm:$0x3]
  %9854 = vset.pattern.permute.xlu0 0
  %9855 = vperm.xlu0 %9854, %v9852
  %v9856 = vpop.permute.xlu0 %9855
  %vm9858 = vcmask 203776
  %v9860 = vsel %vm9858, %v9851, 0
  %v9863 = vsel %vm9693, %v9847, 0
  %v9866 = vsel %vm9693, %v9848, 0
  %v9869 = vsel %vm9693, %v9849, 0
  %v9872 = vsel %vm9693, %v9850, 0
  %9874 = vmatprep.subr.mxu0 %v9836
  %9875 = vmatpush1.msra.mxu0 %v9835
  %9876 = vmatprep.subr.mxu0 %v9840
  %9877 = vmatpush1.msra.mxu0 %v9839
  %9878 = vmatprep.subr.mxu0 %v9844
  %9879 = vmatpush1.msra.mxu0 %v9843
  %9880 = vmatprep.subr.mxu0 %v9866
  %9881 = vmatpush1.msra.mxu0 %v9863
  %9882 = vmatprep.subr.mxu0 0.0
  %9883 = vmatpush1.msra.mxu0 0.0
  %9884 = vmatprep.subr.mxu0 0.0
  %9885 = vmatpush1.msra.mxu0 0.0
  %9886 = vmatprep.subr.mxu0 0.0
  %9887 = vmatpush1.msra.mxu0 0.0
  %9888 = vmatprep.subr.mxu0 0.0
  %9889 = vmatpush1.msra.mxu0 0.0
  %9890 = vmatprep.subr.mxu0 0.0
  %9891 = vmatpush1.msra.mxu0 0.0
  %9892 = vmatprep.subr.mxu0 0.0
  %9893 = vmatpush1.msra.mxu0 0.0
  %9894 = vmatprep.subr.mxu0 0.0
  %9895 = vmatpush1.msra.mxu0 0.0
  %9896 = vmatprep.subr.mxu0 0.0
  %9897 = vmatpush1.msra.mxu0 0.0
  %9898 = vmatprep.subr.mxu0 0.0
  %9899 = vmatpush1.msra.mxu0 0.0
  %9900 = vmatprep.subr.mxu0 0.0
  %9901 = vmatpush1.msra.mxu0 0.0
  %9902 = vmatprep.subr.mxu0 0.0
  %9903 = vmatpush1.msra.mxu0 0.0
  %9904 = vmatprep.subr.mxu0 0.0
  %9905 = vmatpush1.msra.mxu0 0.0
  %9906 = vmatprep.subr.mxu0 0.0
  %9907 = vmatpush1.msra.mxu0 0.0
  %9908 = vmatprep.subr.mxu0 0.0
  %9909 = vmatpush1.msra.mxu0 0.0
  %9910 = vmatprep.subr.mxu0 0.0
  %9911 = vmatpush1.msra.mxu0 0.0
  %9912 = vmatprep.subr.mxu0 0.0
  %9913 = vmatpush1.msra.mxu0 0.0
  %9914 = vmatprep.subr.mxu0 0.0
  %9915 = vmatpush1.msra.mxu0 0.0
  %9916 = vmatprep.subr.mxu0 0.0
  %9917 = vmatpush1.msra.mxu0 0.0
  %9918 = vmatprep.subr.mxu0 0.0
  %9919 = vmatpush1.msra.mxu0 0.0
  %9920 = vmatprep.subr.mxu0 0.0
  %9921 = vmatpush1.msra.mxu0 0.0
  %9922 = vmatprep.subr.mxu0 0.0
  %9923 = vmatpush1.msra.mxu0 0.0
  %9924 = vmatprep.subr.mxu0 0.0
  %9925 = vmatpush1.msra.mxu0 0.0
  %9926 = vmatprep.subr.mxu0 0.0
  %9927 = vmatpush1.msra.mxu0 0.0
  %9928 = vmatprep.subr.mxu0 0.0
  %9929 = vmatpush1.msra.mxu0 0.0
  %9930 = vmatprep.subr.mxu0 0.0
  %9931 = vmatpush1.msra.mxu0 0.0
  %9932 = vmatprep.subr.mxu0 0.0
  %9933 = vmatpush1.msra.mxu0 0.0
  %9934 = vmatprep.subr.mxu0 0.0
  %9935 = vmatpush1.msra.mxu0 0.0
  %9936 = vmatprep.subr.mxu0 0.0
  %9937 = vmatpush1.msra.mxu0 0.0
  %9938 = vmatprep.mubr.f32.mxu0 0.0
  %9939 = vmatmul.mubr.f32.gmra.mrb[0].mxu0 %v9860
  %v9940 = vpop.f32.mrb[0].mxu0
  %v9941 = vadd.f32 %v9856, %v9940
  %v9942 = vpop.f32.mrb[0].mxu0
  %v9943 = vadd.f32 %v9856, %v9942
  %9944 = vdwg.mxu0
  %9945 = vmatprep.subr.mxu0 %v9838
  %9946 = vmatpush1.msra.mxu0 %v9837
  %9947 = vmatprep.subr.mxu0 %v9842
  %9948 = vmatpush1.msra.mxu0 %v9841
  %9949 = vmatprep.subr.mxu0 %v9846
  %9950 = vmatpush1.msra.mxu0 %v9845
  %9951 = vmatprep.subr.mxu0 %v9872
  %9952 = vmatpush1.msra.mxu0 %v9869
  %9953 = vmatprep.subr.mxu0 0.0
  %9954 = vmatpush1.msra.mxu0 0.0
  %9955 = vmatprep.subr.mxu0 0.0
  %9956 = vmatpush1.msra.mxu0 0.0
  %9957 = vmatprep.subr.mxu0 0.0
  %9958 = vmatpush1.msra.mxu0 0.0
  %9959 = vmatprep.subr.mxu0 0.0
  %9960 = vmatpush1.msra.mxu0 0.0
  %9961 = vmatprep.subr.mxu0 0.0
  %9962 = vmatpush1.msra.mxu0 0.0
  %9963 = vmatprep.subr.mxu0 0.0
  %9964 = vmatpush1.msra.mxu0 0.0
  %9965 = vmatprep.subr.mxu0 0.0
  %9966 = vmatpush1.msra.mxu0 0.0
  %9967 = vmatprep.subr.mxu0 0.0
  %9968 = vmatpush1.msra.mxu0 0.0
  %9969 = vmatprep.subr.mxu0 0.0
  %9970 = vmatpush1.msra.mxu0 0.0
  %9971 = vmatprep.subr.mxu0 0.0
  %9972 = vmatpush1.msra.mxu0 0.0
  %9973 = vmatprep.subr.mxu0 0.0
  %9974 = vmatpush1.msra.mxu0 0.0
  %9975 = vmatprep.subr.mxu0 0.0
  %9976 = vmatpush1.msra.mxu0 0.0
  %9977 = vmatprep.subr.mxu0 0.0
  %9978 = vmatpush1.msra.mxu0 0.0
  %9979 = vmatprep.subr.mxu0 0.0
  %9980 = vmatpush1.msra.mxu0 0.0
  %9981 = vmatprep.subr.mxu0 0.0
  %9982 = vmatpush1.msra.mxu0 0.0
  %9983 = vmatprep.subr.mxu0 0.0
  %9984 = vmatpush1.msra.mxu0 0.0
  %9985 = vmatprep.subr.mxu0 0.0
  %9986 = vmatpush1.msra.mxu0 0.0
  %9987 = vmatprep.subr.mxu0 0.0
  %9988 = vmatpush1.msra.mxu0 0.0
  %9989 = vmatprep.subr.mxu0 0.0
  %9990 = vmatpush1.msra.mxu0 0.0
  %9991 = vmatprep.subr.mxu0 0.0
  %9992 = vmatpush1.msra.mxu0 0.0
  %9993 = vmatprep.subr.mxu0 0.0
  %9994 = vmatpush1.msra.mxu0 0.0
  %9995 = vmatprep.subr.mxu0 0.0
  %9996 = vmatpush1.msra.mxu0 0.0
  %9997 = vmatprep.subr.mxu0 0.0
  %9998 = vmatpush1.msra.mxu0 0.0
  %9999 = vmatprep.subr.mxu0 0.0
  %10000 = vmatpush1.msra.mxu0 0.0
  %10001 = vmatprep.subr.mxu0 0.0
  %10002 = vmatpush1.msra.mxu0 0.0
  %10003 = vmatprep.subr.mxu0 0.0
  %10004 = vmatpush1.msra.mxu0 0.0
  %10005 = vmatprep.subr.mxu0 0.0
  %10006 = vmatpush1.msra.mxu0 0.0
  %10007 = vmatprep.subr.mxu0 0.0
  %10008 = vmatpush1.msra.mxu0 0.0
  %10009 = vmatprep.mubr.f32.mxu0 0.0
  %10010 = vmatmul.mubr.f32.gmra.mrb[0].mxu0 %v9860
  %v10011 = vpop.f32.mrb[0].mxu0
  %v10012 = vadd.f32 %v9856, %v10011
  %v10013 = vpop.f32.mrb[0].mxu0
  %v10014 = vadd.f32 %v9856, %v10013
  %10015 = vdwg.mxu0
  %v10020 = vcombine.low %v9941, %v9943
  %v10021 = vcombine.low %v10012, %v10014
  %v10023 = vunpack.c.l.s4 1983009808
  %v10024 = vunpack.c.0.s8 %v10023
  %v10025 = vlaneseq
  %v10026 = vshrl.u32 %v10025, 7
  %v10027 = vsub.s32 %v10024, %v10026
  %v10028 = vrot.slane %v10020, %v10027
  %v10030 = vunpack.c.l.s4 1983009808
  %v10031 = vunpack.c.0.s8 %v10030
  %v10032 = vlaneseq
  %v10033 = vshrl.u32 %v10032, 7
  %v10034 = vsub.s32 %v10031, %v10033
  %v10035 = vrot.slane %v10021, %v10034
  %v10036 = vcombine.low %v10028, %v10035
  %10038 = vst [vmem:[%s11] sm:$0xff] %v10036
  // Predicated region
  $region53: #{_lambda_.1} parent=0 // pred_check
    _
  $region54: #{_lambda_.1} parent=0 // pred_check_branch
    %10040 = sbr.rel (0) target = $region56
  $region55: #{_lambda_.1} parent=0 // pred_region
    _
  $region56: #{_lambda_.1} parent=0 // pred_fallthru
    _
  // Predicated region
  $region57: #{_lambda_.1} parent=0 // pred_check
    _
  $region58: #{_lambda_.1} parent=0 // pred_check_branch
    %10042 = sbr.rel (0) target = $region60
  $region59: #{_lambda_.1} parent=0 // pred_region
    _
  $region60: #{_lambda_.1} parent=0 // pred_fallthru
    _

</llo_original>
